<compile_context>
chip_gen: v6e
topology: v6e:2x2x1
jax: 0.10.0
libtpu: 0.0.40
codegen_flags: <defaults>
</compile_context>

<pallas_src>
import functools
import math

import jax
import jax.numpy as jnp
from jax import lax
from jax.experimental import pallas as pl
from jax.experimental.pallas import tpu as pltpu


# ----------------------------------------------------------------------------
# Generation-aware compiler parameters
# ----------------------------------------------------------------------------
def _detect_vmem_limit():
    try:
        cap = int(pltpu.get_tpu_info().vmem_capacity_bytes)
    except Exception:
        cap = 64 * 1024 * 1024
    if cap >= 96 * 1024 * 1024:          # v5e / v6e: 128 MiB physical VMEM
        return 100 * 1024 * 1024
    return 36 * 1024 * 1024              # v7x: 64 MiB physical VMEM


_VMEM_LIMIT = _detect_vmem_limit()
_TILE_M = 1024 if _VMEM_LIMIT > 64 * 1024 * 1024 else 512


def _cparams(semantics):
    return pltpu.CompilerParams(dimension_semantics=semantics,
                                vmem_limit_bytes=_VMEM_LIMIT)


def _pick_bm(M, tile_m=None):
    """M-tile such that there are >=2 grid steps whenever M > 8 (v7x megacore)."""
    tile_m = _TILE_M if tile_m is None else tile_m
    if M <= 8:
        return M
    bm = min(tile_m, M)
    if bm >= M:
        bm = max(8, ((M + 1) // 2 + 7) // 8 * 8)
    return bm


# ----------------------------------------------------------------------------
# Kernels
# ----------------------------------------------------------------------------
def _mm_kernel(a_ref, w_ref, b_ref, o_ref):
    acc = jnp.dot(a_ref[...], w_ref[...], preferred_element_type=jnp.float32)
    o_ref[...] = (acc + b_ref[...]).astype(o_ref.dtype)


def _conv_taps_kernel(x_ref, w_ref, b_ref, o_ref, *, offs, relu):
    """Generic conv-as-shifted-matmul: acc = sum_t x[off_t : off_t+R, :] @ w[t]."""
    out_rows = o_ref.shape[-2]
    acc = jnp.dot(x_ref[offs[0]:offs[0] + out_rows, :], w_ref[0],
                  preferred_element_type=jnp.float32)
    for idx in range(1, len(offs)):
        off = offs[idx]
        acc = acc + jnp.dot(x_ref[off:off + out_rows, :], w_ref[idx],
                            preferred_element_type=jnp.float32)
    acc = acc + b_ref[...]
    if relu:
        acc = jnp.maximum(acc, 0.0)
    o_ref[...] = acc.astype(o_ref.dtype)


def _fft_h_kernel(x_ref, w1_ref, b1_ref, w2_ref, b2_ref, o_ref):
    """Fused Conv1d(3) -> ReLU -> Conv1d(3), 'same' padding, one time-segment."""
    t_out = o_ref.shape[-2]
    t_ext = t_out + 2
    h = jnp.dot(x_ref[0:t_ext, :], w1_ref[0], preferred_element_type=jnp.float32)
    h = h + jnp.dot(x_ref[1:t_ext + 1, :], w1_ref[1], preferred_element_type=jnp.float32)
    h = h + jnp.dot(x_ref[2:t_ext + 2, :], w1_ref[2], preferred_element_type=jnp.float32)
    h = jnp.maximum(h + b1_ref[...], 0.0)
    rid = lax.broadcasted_iota(jnp.int32, (t_ext, 1), 0)
    # rows 0 / t_out+1 correspond to the second conv's zero padding
    h = jnp.where((rid >= 1) & (rid <= t_out), h, 0.0).astype(jnp.bfloat16)
    o = jnp.dot(h[0:t_out, :], w2_ref[0], preferred_element_type=jnp.float32)
    o = o + jnp.dot(h[1:t_out + 1, :], w2_ref[1], preferred_element_type=jnp.float32)
    o = o + jnp.dot(h[2:t_out + 2, :], w2_ref[2], preferred_element_type=jnp.float32)
    o_ref[...] = (o + b2_ref[...]).astype(o_ref.dtype)


def _fft_layer_kernel(x_ref, ln_ref, qkvw_ref, qkvb_ref, ow_ref, ob_ref,
                      w1_ref, b1_ref, w2_ref, b2_ref, o_ref,
                      *, num_heads, n_tok, rows_total, eps):
    """One fused pre-LN transformer layer over rows = (group, token)."""
    bm, C = x_ref.shape
    d = C // num_heads
    scale = 1.0 / float(d) ** 0.5

    x = x_ref[...].astype(jnp.float32)
    ln = ln_ref[...]                                           # [4, C]

    def _lnorm(v, gamma, beta):
        mu = jnp.mean(v, axis=-1, keepdims=True)
        var = jnp.mean((v - mu) ** 2, axis=-1, keepdims=True)
        return (v - mu) * lax.rsqrt(var + eps) * gamma + beta

    xn = _lnorm(x, ln[0:1, :], ln[1:2, :])
    qkv = jnp.dot(xn.astype(jnp.bfloat16), qkvw_ref[...],
                  preferred_element_type=jnp.float32) + qkvb_ref[...]

    # block-diagonal (per-group) attention mask: groups are n_tok consecutive rows
    inv_n = 1.0 / float(n_tok)
    rid = lax.broadcasted_iota(jnp.int32, (bm, 1), 0).astype(jnp.float32)
    cid = lax.broadcasted_iota(jnp.int32, (1, bm), 1).astype(jnp.float32)
    same_group = jnp.floor((rid + 0.5) * inv_n) == jnp.floor((cid + 0.5) * inv_n)
    col_global = cid + (pl.program_id(0) * bm).astype(jnp.float32)
    valid = same_group & (col_global < float(rows_total))

    res1 = x
    for h in range(num_heads):
        q = qkv[:, h * d:(h + 1) * d].astype(jnp.bfloat16)
        k = qkv[:, C + h * d:C + (h + 1) * d].astype(jnp.bfloat16)
        v = qkv[:, 2 * C + h * d:2 * C + (h + 1) * d].astype(jnp.bfloat16)
        s = lax.dot_general(q, k, (((1,), (1,)), ((), ())),
                            preferred_element_type=jnp.float32) * scale
        s = jnp.where(valid, s, -1e30)
        s = s - jnp.max(s, axis=-1, keepdims=True)
        p = jnp.exp(s)
        p = p * pl.reciprocal(jnp.sum(p, axis=-1, keepdims=True), approx=True)
        o_h = jnp.dot(p.astype(jnp.bfloat16), v, preferred_element_type=jnp.float32)
        # accumulate this head through its slice of the output projection
        res1 = res1 + jnp.dot(o_h.astype(jnp.bfloat16), ow_ref[h * d:(h + 1) * d, :],
                              preferred_element_type=jnp.float32)
    res1 = res1 + ob_ref[...]

    xn2 = _lnorm(res1, ln[2:3, :], ln[3:4, :])
    hmid = jnp.dot(xn2.astype(jnp.bfloat16), w1_ref[...],
                   preferred_element_type=jnp.float32) + b1_ref[...]
    hmid = jnp.maximum(hmid, 0.0)
    ffn = jnp.dot(hmid.astype(jnp.bfloat16), w2_ref[...],
                  preferred_element_type=jnp.float32) + b2_ref[...]
    o_ref[...] = (res1 + ffn).astype(o_ref.dtype)


def _coupling_kernel(x1_ref, m_ref, logs_ref, mask_ref, z1_ref, logdet_ref, *,
                     reverse, t_total, bt):
    t = pl.program_id(0)

    @pl.when(t == 0)
    def _():
        logdet_ref[...] = jnp.zeros_like(logdet_ref)

    x1 = x1_ref[...]
    m = m_ref[...]
    logs = logs_ref[...]
    mask = mask_ref[...]                                       # [B, 1, bt]
    col = lax.broadcasted_iota(jnp.int32, (1, 1, bt), 2) + t * bt
    valid = col < t_total                                      # guard partial T block
    if reverse:
        z1 = (x1 - m) * jnp.exp(-logs) * mask
        contrib = jnp.where(valid, -logs * mask, 0.0)
    else:
        z1 = (m + jnp.exp(logs) * x1) * mask
        contrib = jnp.where(valid, logs * mask, 0.0)
    z1_ref[...] = z1.astype(z1_ref.dtype)
    part = jnp.sum(contrib, axis=2)                            # [B, C]
    logdet_ref[...] += jnp.sum(part, axis=1, keepdims=True)    # [B, 1]


# ----------------------------------------------------------------------------
# Pallas wrappers
# ----------------------------------------------------------------------------
def pl_matmul(a, w, bias, out_dtype=jnp.float32):
    """a:[M,K] @ w:[K,N] + bias[N]; bf16 operands, f32 accumulation; M-tiled."""
    M, K = a.shape
    _, N = w.shape
    bm = _pick_bm(M)
    return pl.pallas_call(
        _mm_kernel,
        out_shape=jax.ShapeDtypeStruct((M, N), out_dtype),
        grid=(pl.cdiv(M, bm),),
        in_specs=[pl.BlockSpec((bm, K), lambda i: (i, 0)),
                  pl.BlockSpec((K, N), lambda i: (0, 0)),
                  pl.BlockSpec((1, N), lambda i: (0, 0))],
        out_specs=pl.BlockSpec((bm, N), lambda i: (i, 0)),
        compiler_params=_cparams(("parallel",)),
    )(a.astype(jnp.bfloat16), w, bias.reshape(1, N).astype(jnp.float32))


def pl_conv_taps(x, w_taps, bias, *, offs, out_rows, relu=False,
                 out_dtype=jnp.bfloat16):
    """Fused conv-as-tap-matmul. x: [B, R_in, K]; w_taps: [ntap, K, O]."""
    B, R, K = x.shape
    ntap, K2, O = w_taps.shape
    assert K2 == K and ntap == len(offs)
    kern = functools.partial(_conv_taps_kernel,
                             offs=tuple(int(o) for o in offs), relu=relu)
    return pl.pallas_call(
        kern,
        out_shape=jax.ShapeDtypeStruct((B, out_rows, O), out_dtype),
        grid=(B,),
        in_specs=[pl.BlockSpec((None, R, K), lambda b: (b, 0, 0)),
                  pl.BlockSpec((ntap, K, O), lambda b: (0, 0, 0)),
                  pl.BlockSpec((1, O), lambda b: (0, 0))],
        out_specs=pl.BlockSpec((None, out_rows, O), lambda b: (b, 0, 0)),
        compiler_params=_cparams(("parallel",)),
    )(x, w_taps, bias.reshape(1, O).astype(jnp.float32))


def pl_conv3x3_nhwc(x, w9, bias, *, relu):
    """'same' 3x3 Conv2d on an NHWC tensor via per-batch pitch-flattened taps."""
    B, H, W, C = x.shape
    P = W + 2
    xp = jnp.pad(x, ((0, 0), (1, 1), (1, 1), (0, 0))).reshape(B, (H + 2) * P, C)
    xp = jnp.concatenate([xp, jnp.zeros((B, 8, C), x.dtype)], axis=1)
    offs = tuple(i * P + j for i in range(3) for j in range(3))
    o = pl_conv_taps(xp, w9, bias, offs=offs, out_rows=H * P, relu=relu)
    return o.reshape(B, H, P, -1)[:, :, :W, :]


def pl_fft_h(xp, w1, b1, w2, b2):
    """Fused Conv1d(3)->ReLU->Conv1d(3) over [Bc, To+4, C] (padded by 2 each side)."""
    Bc, R, C = xp.shape
    To = R - 4
    return pl.pallas_call(
        _fft_h_kernel,
        out_shape=jax.ShapeDtypeStruct((Bc, To, C), jnp.bfloat16),
        grid=(Bc,),
        in_specs=[pl.BlockSpec((None, R, C), lambda b: (b, 0, 0)),
                  pl.BlockSpec((3, C, C), lambda b: (0, 0, 0)),
                  pl.BlockSpec((1, C), lambda b: (0, 0)),
                  pl.BlockSpec((3, C, C), lambda b: (0, 0, 0)),
                  pl.BlockSpec((1, C), lambda b: (0, 0))],
        out_specs=pl.BlockSpec((None, To, C), lambda b: (b, 0, 0)),
        compiler_params=_cparams(("parallel",)),
    )(xp, w1, b1.reshape(1, C).astype(jnp.float32),
      w2, b2.reshape(1, C).astype(jnp.float32))


def _pick_groups_per_block(G, N):
    """Groups per block such that (gt*N) % 8 == 0 unless the block covers everything."""
    g_step = 8 // math.gcd(8, N)
    if N >= 256:
        gt = 1 if N % 8 == 0 else min(g_step, G)
        return max(1, min(gt, G))
    target = max(g_step, 256 // max(N, 1))
    gt = max(g_step, (target // g_step) * g_step)
    if gt >= G:
        half = -(-((G + 1) // 2) // g_step) * g_step
        gt = half if 0 < half < G else G
    return max(1, min(gt, G))


def pl_fft_layer(x, layer, *, num_heads=2, eps=1e-5):
    """Whole transformer layer in one pallas_call. x: [G, N, C] bf16."""
    G, N, C = x.shape
    rows = G * N
    Hf = layer["ffn_w1"].shape[1]
    gt = _pick_groups_per_block(G, N)
    bm = gt * N
    x2 = x.reshape(rows, C)
    full = lambda i: (0, 0)
    out = pl.pallas_call(
        functools.partial(_fft_layer_kernel, num_heads=num_heads, n_tok=N,
                          rows_total=rows, eps=eps),
        out_shape=jax.ShapeDtypeStruct((rows, C), jnp.bfloat16),
        grid=(pl.cdiv(rows, bm),),
        in_specs=[pl.BlockSpec((bm, C), lambda i: (i, 0)),
                  pl.BlockSpec((4, C), full),
                  pl.BlockSpec((C, 3 * C), full),
                  pl.BlockSpec((1, 3 * C), full),
                  pl.BlockSpec((C, C), full),
                  pl.BlockSpec((1, C), full),
                  pl.BlockSpec((C, Hf), full),
                  pl.BlockSpec((1, Hf), full),
                  pl.BlockSpec((Hf, C), full),
                  pl.BlockSpec((1, C), full)],
        out_specs=pl.BlockSpec((bm, C), lambda i: (i, 0)),
        compiler_params=_cparams(("parallel",)),
    )(x2, layer["ln"], layer["qkv_w"], layer["qkv_b"], layer["out_w"],
      layer["out_b"], layer["ffn_w1"], layer["ffn_b1"], layer["ffn_w2"],
      layer["ffn_b2"])
    return out.reshape(G, N, C)


def pl_affine_coupling(x1, m, logs, mask, reverse=False):
    """x1, m, logs: [B,C,T]; mask: [B,1,T]. Returns (z1 [B,C,T], logdet [B])."""
    B, C, T = x1.shape
    bt = T if T <= 1024 else 512
    z1, logdet = pl.pallas_call(
        functools.partial(_coupling_kernel, reverse=reverse, t_total=T, bt=bt),
        out_shape=(jax.ShapeDtypeStruct((B, C, T), jnp.float32),
                   jax.ShapeDtypeStruct((B, 1), jnp.float32)),
        grid=(pl.cdiv(T, bt),),
        in_specs=[pl.BlockSpec((B, C, bt), lambda t: (0, 0, t)),
                  pl.BlockSpec((B, C, bt), lambda t: (0, 0, t)),
                  pl.BlockSpec((B, C, bt), lambda t: (0, 0, t)),
                  pl.BlockSpec((B, 1, bt), lambda t: (0, 0, t))],
        out_specs=(pl.BlockSpec((B, C, bt), lambda t: (0, 0, t)),
                   pl.BlockSpec((B, 1), lambda t: (0, 0))),
        compiler_params=_cparams(("arbitrary",)),   # logdet accumulates over T blocks
    )(x1.astype(jnp.float32), m.astype(jnp.float32),
      logs.astype(jnp.float32), mask.astype(jnp.float32))
    return z1, logdet[:, 0]


# ----------------------------------------------------------------------------
# Small XLA helpers (layout plumbing / light elementwise)
# ----------------------------------------------------------------------------
def layer_norm(x, g, b, eps=1e-5):
    mu = jnp.mean(x, axis=-1, keepdims=True)
    var = jnp.mean((x - mu) ** 2, axis=-1, keepdims=True)
    return (x - mu) * lax.rsqrt(var + eps) * g + b


def group_norm_nhwc(x, g, b, num_groups=4, eps=1e-5):
    B, H, W, C = x.shape
    xf = x.astype(jnp.float32).reshape(B, H, W, num_groups, C // num_groups)
    mu = jnp.mean(xf, axis=(1, 2, 4), keepdims=True)
    var = jnp.mean((xf - mu) ** 2, axis=(1, 2, 4), keepdims=True)
    xn = ((xf - mu) * lax.rsqrt(var + eps)).reshape(B, H, W, C)
    return xn * g[None, None, None, :] + b[None, None, None, :]


def sinusoidal_pos_emb(n, dim):
    half = dim // 2
    emb = jnp.log(10000.0) / (half - 1)
    emb = jnp.exp(jnp.arange(half, dtype=jnp.float32) * -emb)
    pos = jnp.arange(1, n + 1, dtype=jnp.float32)
    emb = pos[:, None] * emb[None, :]
    return jnp.concatenate([jnp.sin(emb), jnp.cos(emb)], axis=1)


def squeeze_jax(x, n_sqz=2):
    b, c, t = x.shape
    t = t // n_sqz * n_sqz
    x = x[:, :, :t]
    x = x.reshape(b, c, t // n_sqz, n_sqz).transpose(0, 3, 1, 2)
    return x.reshape(b, c * n_sqz, t // n_sqz)


def unsqueeze_jax(x, n_sqz=2):
    b, c, t = x.shape
    x = x.reshape(b, n_sqz, c // n_sqz, t).transpose(0, 2, 3, 1)
    return x.reshape(b, c // n_sqz, t * n_sqz)


# ----------------------------------------------------------------------------
# Transformer (FFTBlocks approximation) built from the fused layer kernel
# ----------------------------------------------------------------------------
def fft_blocks(x, blk, num_heads=2):
    """x: [G, N, C] -> [G, N, C] bf16. Pre-LN transformer, inference approximation."""
    G, N, C = x.shape
    h = (x.astype(jnp.float32) + sinusoidal_pos_emb(N, C)[None]).astype(jnp.bfloat16)
    for layer in blk["layers"]:
        h = pl_fft_layer(h, layer, num_heads=num_heads)
    h = layer_norm(h.astype(jnp.float32), blk["ln_f_g"], blk["ln_f_b"])
    return h.astype(jnp.bfloat16)


# ----------------------------------------------------------------------------
# Forward pass
# ----------------------------------------------------------------------------
def freq_fft_coupling_forward(params, x, g, x_mask=None, *, in_channels,
                              reverse=False, sigmoid_scale=False):
    B, _, T = x.shape
    assert T % 8 == 0
    half = in_channels // 2
    assert half % 8 == 0
    nb = half // 8                      # frequency bins after the stride-8 conv (10)
    To = T // 8
    P2 = To + 1

    g_ = unsqueeze_jax(g)
    g_mel = squeeze_jax(g_[:, :80])                       # [B, 160, T]
    g_txt = squeeze_jax(g_[:, 80:])                       # [B, gin-160, T]
    mask = jnp.ones((B, 1, T), jnp.float32) if x_mask is None else x_mask

    x_0 = x[:, :half]
    x_1 = x[:, half:]

    xs = jnp.stack([x_0, g_mel[:, :80], g_mel[:, 80:]], axis=1)     # [B, 3, half, T]

    # ---- start: Conv2d(3, hs, 16, stride 8, pad 4) as fused 2x2 tap-block matmuls
    hs_ch = params["start_w"].shape[-1]
    xp = jnp.pad(xs.astype(jnp.bfloat16), ((0, 0), (0, 0), (4, 4), (4, 4)))
    xp = xp.transpose(0, 2, 3, 1)                                    # [B, half+8, T+8, 3]
    xt = xp.reshape(B, nb + 1, 8, P2, 8, 3).transpose(0, 1, 3, 2, 4, 5)
    xt = xt.reshape(B, (nb + 1) * P2, 8 * 8 * 3)
    xt = jnp.concatenate([xt, jnp.zeros((B, 8, 8 * 8 * 3), jnp.bfloat16)], axis=1)
    h = pl_conv_taps(xt, params["start_w"], params["start_b"],
                     offs=(0, 1, P2, P2 + 1), out_rows=nb * P2)
    h = h.reshape(B, nb, P2, hs_ch)[:, :, :To, :]                    # NHWC [B, nb, To, hs]

    # ---- vertical transformer over frequency bins (fused layer kernel)
    xv = fft_blocks(h.transpose(0, 2, 1, 3).reshape(B * To, nb, hs_ch),
                    params["fft_v"])
    xv = xv.reshape(B, To, nb, hs_ch).transpose(0, 2, 1, 3)          # [B, nb, To, hs]

    # ---- horizontal conv stack over time (fused Conv1d-ReLU-Conv1d)
    xh = pl_fft_h(jnp.pad(h.reshape(B * nb, To, hs_ch), ((0, 0), (2, 2), (0, 0))),
                  params["fft_h_w1"], params["fft_h_b1"],
                  params["fft_h_w2"], params["fft_h_b2"])
    xh = xh.reshape(B, nb, To, hs_ch)

    # ---- conditioning branch: Conv1d(stride 8) + transformer
    cg = g_txt.shape[1]
    gp = jnp.pad(g_txt.astype(jnp.bfloat16), ((0, 0), (0, 0), (4, 4))).transpose(0, 2, 1)
    gt_tiles = gp.reshape(B, P2, 8 * cg)
    xg = pl_conv_taps(gt_tiles, params["fft_g_w"], params["fft_g_b"],
                      offs=(0, 1), out_rows=To)                      # [B, To, hs]
    xg = fft_blocks(xg, params["fft_g_fft"])
    # TODO(synk): broadcast over the bin axis could be fused into end_c1 weight split.
    xg = jnp.broadcast_to(xg[:, None, :, :], (B, nb, To, hs_ch))

    hcat = jnp.concatenate([xv, xh, xg], axis=-1)                    # [B, nb, To, 3hs]

    # ---- end: Conv2d(3hs->hs,3x3)+ReLU -> GroupNorm(4) -> Conv2d(hs,3x3) -> ConvT(8x8)
    e = pl_conv3x3_nhwc(hcat, params["end_c1_w"], params["end_c1_b"], relu=True)
    e = group_norm_nhwc(e, params["end_gn_g"], params["end_gn_b"], 4).astype(jnp.bfloat16)
    e = pl_conv3x3_nhwc(e, params["end_c2_w"], params["end_c2_b"], relu=False)

    # ConvTranspose2d(hs->2, k=s=8): lane-dense 128-wide matmul with folded bias
    ct = pl_matmul(e.reshape(B * nb * To, hs_ch), params["end_ct_w"],
                   params["end_ct_b"], out_dtype=jnp.float32)
    out = ct.reshape(B, nb, To, 2, 8, 8).transpose(0, 3, 1, 4, 2, 5)
    out = out.reshape(B, 2, half, T)

    m = out[:, 0]
    logs = out[:, 1]
    if sigmoid_scale:
        logs = jnp.log(1e-6 + jax.nn.sigmoid(logs + 2.0))

    z_1, logdet = pl_affine_coupling(x_1, m, logs, mask, reverse=reverse)
    z = jnp.concatenate([x_0, z_1], axis=1)
    return z, logdet


# ----------------------------------------------------------------------------
# Weight preparation (PyTorch layout -> tap-matmul ready, bf16) and init
# ----------------------------------------------------------------------------
def _prep_linear(w):                         # [out, in] -> [in, out]
    return jnp.asarray(w).T.astype(jnp.bfloat16)


def _prep_conv2d_3x3(w):                     # [O, C, 3, 3] -> [9, C, O]
    O, C, _, _ = w.shape
    return jnp.transpose(w, (2, 3, 1, 0)).reshape(9, C, O).astype(jnp.bfloat16)


def _prep_conv2d_down8(w):                   # [O, C, 16, 16] -> [4, 192, O]
    O, C, K, _ = w.shape
    s = K // 2
    w = w.reshape(O, C, 2, s, 2, s).transpose(2, 4, 3, 5, 1, 0)
    return w.reshape(4, s * s * C, O).astype(jnp.bfloat16)


def _prep_conv1d_3(w):                       # [O, C, 3] -> [3, C, O]
    return jnp.transpose(w, (2, 1, 0)).astype(jnp.bfloat16)


def _prep_conv1d_down8(w):                   # [O, C, 16] -> [2, 8*C, O]
    O, C, K = w.shape
    s = K // 2
    w = w.reshape(O, C, 2, s).transpose(2, 3, 1, 0)
    return w.reshape(2, s * C, O).astype(jnp.bfloat16)


def _prep_convT(w):                          # [C, O, 8, 8] -> [C, O*64]
    C, O, kh, kw = w.shape
    return w.reshape(C, O * kh * kw).astype(jnp.bfloat16)


def init_params(key, hs=32, n_layers=1, gin_channels=176):
    keys = iter(jax.random.split(key, 128))

    def nrm(shape, scale=0.02):
        return scale * jax.random.normal(next(keys), shape, jnp.float32)

    zeros = lambda s: jnp.zeros(s, jnp.float32)
    ones = lambda s: jnp.ones(s, jnp.float32)

    def init_fft(n):
        layers = []
        for _ in range(n):
            layers.append({
                "ln": jnp.concatenate([ones((1, hs)), zeros((1, hs)),
                                       ones((1, hs)), zeros((1, hs))], axis=0),
                "qkv_w": _prep_linear(nrm((3 * hs, hs))), "qkv_b": zeros((1, 3 * hs)),
                "out_w": _prep_linear(nrm((hs, hs))), "out_b": zeros((1, hs)),
                "ffn_w1": _prep_linear(nrm((4 * hs, hs))), "ffn_b1": zeros((1, 4 * hs)),
                "ffn_w2": _prep_linear(nrm((hs, 4 * hs))), "ffn_b2": zeros((1, hs)),
            })
        return {"layers": layers, "ln_f_g": ones((hs,)), "ln_f_b": zeros((hs,))}

    cg = gin_channels - 160
    return {
        # start: Conv2d(3, hs, 16, stride=8, padding=4)
        "start_w": _prep_conv2d_down8(nrm((hs, 3, 16, 16))), "start_b": zeros((hs,)),
        # end: Conv2d(3hs, hs, 3) -> ReLU -> GroupNorm(4) -> Conv2d(hs, hs, 3)
        #      -> ConvTranspose2d(hs, 2, 8, 8) (zero-initialized, as in PyTorch)
        "end_c1_w": _prep_conv2d_3x3(nrm((hs, 3 * hs, 3, 3))), "end_c1_b": zeros((hs,)),
        "end_gn_g": ones((hs,)), "end_gn_b": zeros((hs,)),
        "end_c2_w": _prep_conv2d_3x3(nrm((hs, hs, 3, 3))), "end_c2_b": zeros((hs,)),
        "end_ct_w": _prep_convT(jnp.zeros((hs, 2, 8, 8), jnp.float32)),
        "end_ct_b": jnp.repeat(zeros((2,)), 64),              # folded per-column bias
        # fft_h: Conv1d(hs, hs, 3) -> ReLU -> Conv1d(hs, hs, 3)
        "fft_h_w1": _prep_conv1d_3(nrm((hs, hs, 3))), "fft_h_b1": zeros((hs,)),
        "fft_h_w2": _prep_conv1d_3(nrm((hs, hs, 3))), "fft_h_b2": zeros((hs,)),
        # fft_g front conv: Conv1d(gin-160, hs, 16, stride=8, padding=4)
        "fft_g_w": _prep_conv1d_down8(nrm((hs, cg, 16))), "fft_g_b": zeros((hs,)),
        # transformers
        "fft_v": init_fft(n_layers),
        "fft_g_fft": init_fft(n_layers),
    }


# ----------------------------------------------------------------------------
if __name__ == "__main__":
    hs = 32
    n_layers = 1
    gin_channels = 176          # g_txt channels after squeeze = gin - 160 = 16
    in_channels = 160           # forward implies in_channels // 2 == 80 mel bins
    B, T = 2, 16                # T divisible by 8

    key = jax.random.PRNGKey(0)
    kp, kx, kg = jax.random.split(key, 3)
    params = init_params(kp, hs=hs, n_layers=n_layers, gin_channels=gin_channels)
    x = jax.random.normal(kx, (B, in_channels, T), jnp.float32)
    g = jax.random.normal(kg, (B, gin_channels, T), jnp.float32)

    fwd = jax.jit(functools.partial(freq_fft_coupling_forward,
                                    in_channels=in_channels,
                                    reverse=False, sigmoid_scale=False))
    z, logdet = fwd(params, x, g)
    jax.block_until_ready((z, logdet))

    assert z.shape == (B, in_channels, T), z.shape
    assert logdet.shape == (B,), logdet.shape
    assert bool(jnp.all(jnp.isfinite(z))) and bool(jnp.all(jnp.isfinite(logdet)))
    print("KERNEL_OK")
</pallas_src>

<mosaic_0001>
module attributes {stable_mosaic.version = 11 : i64} {
  func.func @_conv_taps_kernel(%arg0: i32, %arg1: memref<1x41x192xbf16, #tpu.memory_space<vmem>>, %arg2: memref<4x192x32xbf16, #tpu.memory_space<vmem>>, %arg3: memref<1x32xf32, #tpu.memory_space<vmem>>, %arg4: memref<1x30x32xbf16, #tpu.memory_space<vmem>>) attributes {dimension_semantics = [#tpu.dimension_semantics<parallel>], iteration_bounds = array<i64: 2>, scalar_prefetch = 0 : i64, scratch_operands = 0 : i64, tpu.core_type = #tpu.core_type<tc>, window_params = [{transform_indices = @transform_0, window_bounds = array<i64: 1, 41, 192>}, {pipeline_mode = #tpu.pipeline_mode<synchronous>, transform_indices = @transform_1, window_bounds = array<i64: 4, 192, 32>}, {pipeline_mode = #tpu.pipeline_mode<synchronous>, transform_indices = @transform_2, window_bounds = array<i64: 1, 32>}, {transform_indices = @transform_3, window_bounds = array<i64: 1, 30, 32>}]} {
    %c0 = arith.constant 0 : index
    %c0_0 = arith.constant 0 : index
    %c0_1 = arith.constant 0 : index
    %0 = vector.load %arg1[%c0, %c0_0, %c0_1] : memref<1x41x192xbf16, #tpu.memory_space<vmem>>, vector<1x30x192xbf16>
    %1 = vector.shape_cast %0 : vector<1x30x192xbf16> to vector<30x192xbf16>
    %c0_2 = arith.constant 0 : index
    %c0_3 = arith.constant 0 : index
    %c0_4 = arith.constant 0 : index
    %2 = vector.load %arg2[%c0_2, %c0_3, %c0_4] : memref<4x192x32xbf16, #tpu.memory_space<vmem>>, vector<1x192x32xbf16>
    %3 = vector.shape_cast %2 : vector<1x192x32xbf16> to vector<192x32xbf16>
    %cst = arith.constant dense<0.000000e+00> : vector<30x32xf32>
    %4 = tpu.matmul %1, %3, %cst {dimension_numbers = #tpu.dot_dimension_numbers<[1], [0], [0], [1], [0, 0, 1, 1], [], []>} : vector<30x192xbf16>, vector<192x32xbf16>, vector<30x32xf32> -> vector<30x32xf32>
    %c0_5 = arith.constant 0 : index
    %c1 = arith.constant 1 : index
    %c0_6 = arith.constant 0 : index
    %5 = vector.load %arg1[%c0_5, %c1, %c0_6] : memref<1x41x192xbf16, #tpu.memory_space<vmem>>, vector<1x30x192xbf16>
    %6 = vector.shape_cast %5 : vector<1x30x192xbf16> to vector<30x192xbf16>
    %c1_7 = arith.constant 1 : index
    %c0_8 = arith.constant 0 : index
    %c0_9 = arith.constant 0 : index
    %7 = vector.load %arg2[%c1_7, %c0_8, %c0_9] : memref<4x192x32xbf16, #tpu.memory_space<vmem>>, vector<1x192x32xbf16>
    %8 = vector.shape_cast %7 : vector<1x192x32xbf16> to vector<192x32xbf16>
    %cst_10 = arith.constant dense<0.000000e+00> : vector<30x32xf32>
    %9 = tpu.matmul %6, %8, %cst_10 {dimension_numbers = #tpu.dot_dimension_numbers<[1], [0], [0], [1], [0, 0, 1, 1], [], []>} : vector<30x192xbf16>, vector<192x32xbf16>, vector<30x32xf32> -> vector<30x32xf32>
    %10 = arith.addf %4, %9 : vector<30x32xf32>
    %c0_11 = arith.constant 0 : index
    %c3 = arith.constant 3 : index
    %c0_12 = arith.constant 0 : index
    %11 = vector.load %arg1[%c0_11, %c3, %c0_12] : memref<1x41x192xbf16, #tpu.memory_space<vmem>>, vector<1x30x192xbf16>
    %12 = vector.shape_cast %11 : vector<1x30x192xbf16> to vector<30x192xbf16>
    %c2 = arith.constant 2 : index
    %c0_13 = arith.constant 0 : index
    %c0_14 = arith.constant 0 : index
    %13 = vector.load %arg2[%c2, %c0_13, %c0_14] : memref<4x192x32xbf16, #tpu.memory_space<vmem>>, vector<1x192x32xbf16>
    %14 = vector.shape_cast %13 : vector<1x192x32xbf16> to vector<192x32xbf16>
    %cst_15 = arith.constant dense<0.000000e+00> : vector<30x32xf32>
    %15 = tpu.matmul %12, %14, %cst_15 {dimension_numbers = #tpu.dot_dimension_numbers<[1], [0], [0], [1], [0, 0, 1, 1], [], []>} : vector<30x192xbf16>, vector<192x32xbf16>, vector<30x32xf32> -> vector<30x32xf32>
    %16 = arith.addf %10, %15 : vector<30x32xf32>
    %c0_16 = arith.constant 0 : index
    %c4 = arith.constant 4 : index
    %c0_17 = arith.constant 0 : index
    %17 = vector.load %arg1[%c0_16, %c4, %c0_17] : memref<1x41x192xbf16, #tpu.memory_space<vmem>>, vector<1x30x192xbf16>
    %18 = vector.shape_cast %17 : vector<1x30x192xbf16> to vector<30x192xbf16>
    %c3_18 = arith.constant 3 : index
    %c0_19 = arith.constant 0 : index
    %c0_20 = arith.constant 0 : index
    %19 = vector.load %arg2[%c3_18, %c0_19, %c0_20] : memref<4x192x32xbf16, #tpu.memory_space<vmem>>, vector<1x192x32xbf16>
    %20 = vector.shape_cast %19 : vector<1x192x32xbf16> to vector<192x32xbf16>
    %cst_21 = arith.constant dense<0.000000e+00> : vector<30x32xf32>
    %21 = tpu.matmul %18, %20, %cst_21 {dimension_numbers = #tpu.dot_dimension_numbers<[1], [0], [0], [1], [0, 0, 1, 1], [], []>} : vector<30x192xbf16>, vector<192x32xbf16>, vector<30x32xf32> -> vector<30x32xf32>
    %22 = arith.addf %16, %21 : vector<30x32xf32>
    %c0_22 = arith.constant 0 : index
    %c0_23 = arith.constant 0 : index
    %23 = vector.load %arg3[%c0_22, %c0_23] : memref<1x32xf32, #tpu.memory_space<vmem>>, vector<1x32xf32>
    %24 = vector.broadcast %23 : vector<1x32xf32> to vector<30x32xf32>
    %25 = arith.addf %22, %24 : vector<30x32xf32>
    %26 = arith.truncf %25 : vector<30x32xf32> to vector<30x32xbf16>
    %c0_24 = arith.constant 0 : index
    %c0_25 = arith.constant 0 : index
    %c0_26 = arith.constant 0 : index
    %27 = vector.load %arg4[%c0_24, %c0_25, %c0_26] : memref<1x30x32xbf16, #tpu.memory_space<vmem>>, vector<1x30x32xbf16>
    %28 = vector.shape_cast %27 : vector<1x30x32xbf16> to vector<30x32xbf16>
    %29 = vector.shape_cast %26 : vector<30x32xbf16> to vector<1x30x32xbf16>
    tpu.vector_store %arg4[%c0_24, %c0_25, %c0_26], %29 {strides = array<i32>} : memref<1x30x32xbf16, #tpu.memory_space<vmem>>, vector<1x30x32xbf16>,
    return
  }
  func.func @transform_0(%arg0: i32) -> (i32, i32, i32) {
    %c0_i32 = arith.constant 0 : i32
    %c0_i32_0 = arith.constant 0 : i32
    %c0_i32_1 = arith.constant 0 : i32
    return %arg0, %c0_i32, %c0_i32_0 : i32, i32, i32
  }
  func.func @transform_1(%arg0: i32) -> (i32, i32, i32) {
    %c0_i32 = arith.constant 0 : i32
    %c0_i32_0 = arith.constant 0 : i32
    %c0_i32_1 = arith.constant 0 : i32
    %c0_i32_2 = arith.constant 0 : i32
    return %c0_i32, %c0_i32_0, %c0_i32_1 : i32, i32, i32
  }
  func.func @transform_2(%arg0: i32) -> (i32, i32) {
    %c0_i32 = arith.constant 0 : i32
    %c0_i32_0 = arith.constant 0 : i32
    %c0_i32_1 = arith.constant 0 : i32
    return %c0_i32, %c0_i32_0 : i32, i32
  }
  func.func @transform_3(%arg0: i32) -> (i32, i32, i32) {
    %c0_i32 = arith.constant 0 : i32
    %c0_i32_0 = arith.constant 0 : i32
    %c0_i32_1 = arith.constant 0 : i32
    return %arg0, %c0_i32, %c0_i32_0 : i32, i32, i32
  }
}

module attributes {stable_mosaic.version = 11 : i64} {
  func.func @_fft_layer_kernel(%arg0: i32, %arg1: memref<40x32xbf16, #tpu.memory_space<vmem>>, %arg2: memref<4x32xf32, #tpu.memory_space<vmem>>, %arg3: memref<32x96xbf16, #tpu.memory_space<vmem>>, %arg4: memref<1x96xf32, #tpu.memory_space<vmem>>, %arg5: memref<32x32xbf16, #tpu.memory_space<vmem>>, %arg6: memref<1x32xf32, #tpu.memory_space<vmem>>, %arg7: memref<32x128xbf16, #tpu.memory_space<vmem>>, %arg8: memref<1x128xf32, #tpu.memory_space<vmem>>, %arg9: memref<128x32xbf16, #tpu.memory_space<vmem>>, %arg10: memref<1x32xf32, #tpu.memory_space<vmem>>, %arg11: memref<40x32xbf16, #tpu.memory_space<vmem>>) attributes {dimension_semantics = [#tpu.dimension_semantics<parallel>], iteration_bounds = array<i64: 1>, scalar_prefetch = 0 : i64, scratch_operands = 0 : i64, tpu.core_type = #tpu.core_type<tc>, window_params = [{transform_indices = @transform_0, window_bounds = array<i64: 40, 32>}, {pipeline_mode = #tpu.pipeline_mode<synchronous>, transform_indices = @transform_1, window_bounds = array<i64: 4, 32>}, {pipeline_mode = #tpu.pipeline_mode<synchronous>, transform_indices = @transform_2, window_bounds = array<i64: 32, 96>}, {pipeline_mode = #tpu.pipeline_mode<synchronous>, transform_indices = @transform_3, window_bounds = array<i64: 1, 96>}, {pipeline_mode = #tpu.pipeline_mode<synchronous>, transform_indices = @transform_4, window_bounds = array<i64: 32, 32>}, {pipeline_mode = #tpu.pipeline_mode<synchronous>, transform_indices = @transform_5, window_bounds = array<i64: 1, 32>}, {pipeline_mode = #tpu.pipeline_mode<synchronous>, transform_indices = @transform_6, window_bounds = array<i64: 32, 128>}, {pipeline_mode = #tpu.pipeline_mode<synchronous>, transform_indices = @transform_7, window_bounds = array<i64: 1, 128>}, {pipeline_mode = #tpu.pipeline_mode<synchronous>, transform_indices = @transform_8, window_bounds = array<i64: 128, 32>}, {pipeline_mode = #tpu.pipeline_mode<synchronous>, transform_indices = @transform_9, window_bounds = array<i64: 1, 32>}, {transform_indices = @transform_10, window_bounds = array<i64: 40, 32>}]} {
    %c0 = arith.constant 0 : index
    %c0_0 = arith.constant 0 : index
    %0 = vector.load %arg1[%c0, %c0_0] : memref<40x32xbf16, #tpu.memory_space<vmem>>, vector<40x32xbf16>
    %1 = arith.extf %0 : vector<40x32xbf16> to vector<40x32xf32>
    %c0_1 = arith.constant 0 : index
    %c0_2 = arith.constant 0 : index
    %2 = vector.load %arg2[%c0_1, %c0_2] : memref<4x32xf32, #tpu.memory_space<vmem>>, vector<4x32xf32>
    %3 = vector.extract_strided_slice %2 {offsets = [0, 0], sizes = [1, 32], strides = [1, 1]} : vector<4x32xf32> to vector<1x32xf32>
    %4 = vector.extract_strided_slice %2 {offsets = [1, 0], sizes = [1, 32], strides = [1, 1]} : vector<4x32xf32> to vector<1x32xf32>
    %cst = arith.constant dense<0.000000e+00> : vector<40xf32>
    %5 = vector.multi_reduction <add>, %1, %cst [1] : vector<40x32xf32> to vector<40xf32>
    %6 = vector.shape_cast %5 : vector<40xf32> to vector<40x1xf32>
    %cst_3 = arith.constant 3.200000e+01 : f32
    %7 = vector.broadcast %cst_3 : f32 to vector<40x1xf32>
    %8 = arith.divf %6, %7 : vector<40x1xf32>
    %9 = vector.broadcast %8 : vector<40x1xf32> to vector<40x32xf32>
    %10 = arith.subf %1, %9 : vector<40x32xf32>
    %11 = arith.mulf %10, %10 : vector<40x32xf32>
    %cst_4 = arith.constant dense<0.000000e+00> : vector<40xf32>
    %12 = vector.multi_reduction <add>, %11, %cst_4 [1] : vector<40x32xf32> to vector<40xf32>
    %13 = vector.shape_cast %12 : vector<40xf32> to vector<40x1xf32>
    %cst_5 = arith.constant 3.200000e+01 : f32
    %14 = vector.broadcast %cst_5 : f32 to vector<40x1xf32>
    %15 = arith.divf %13, %14 : vector<40x1xf32>
    %16 = vector.broadcast %8 : vector<40x1xf32> to vector<40x32xf32>
    %17 = arith.subf %1, %16 : vector<40x32xf32>
    %cst_6 = arith.constant 9.99999974E-6 : f32
    %18 = vector.broadcast %cst_6 : f32 to vector<40x1xf32>
    %19 = arith.addf %15, %18 : vector<40x1xf32>
    %20 = math.rsqrt %19 : vector<40x1xf32>
    %21 = vector.broadcast %20 : vector<40x1xf32> to vector<40x32xf32>
    %22 = arith.mulf %17, %21 : vector<40x32xf32>
    %23 = vector.broadcast %3 : vector<1x32xf32> to vector<40x32xf32>
    %24 = arith.mulf %22, %23 : vector<40x32xf32>
    %25 = vector.broadcast %4 : vector<1x32xf32> to vector<40x32xf32>
    %26 = arith.addf %24, %25 : vector<40x32xf32>
    %27 = arith.truncf %26 : vector<40x32xf32> to vector<40x32xbf16>
    %c0_7 = arith.constant 0 : index
    %c0_8 = arith.constant 0 : index
    %28 = vector.load %arg3[%c0_7, %c0_8] : memref<32x96xbf16, #tpu.memory_space<vmem>>, vector<32x96xbf16>
    %cst_9 = arith.constant dense<0.000000e+00> : vector<40x96xf32>
    %29 = tpu.matmul %27, %28, %cst_9 {dimension_numbers = #tpu.dot_dimension_numbers<[1], [0], [0], [1], [0, 0, 1, 1], [], []>} : vector<40x32xbf16>, vector<32x96xbf16>, vector<40x96xf32> -> vector<40x96xf32>
    %c0_10 = arith.constant 0 : index
    %c0_11 = arith.constant 0 : index
    %30 = vector.load %arg4[%c0_10, %c0_11] : memref<1x96xf32, #tpu.memory_space<vmem>>, vector<1x96xf32>
    %31 = vector.broadcast %30 : vector<1x96xf32> to vector<40x96xf32>
    %32 = arith.addf %29, %31 : vector<40x96xf32>
    %33 = tpu.iota {dimensions = array<i32: 0>} : vector<40x1xi32>
    %34 = arith.sitofp %33 : vector<40x1xi32> to vector<40x1xf32>
    %35 = tpu.iota {dimensions = array<i32: 1>} : vector<1x40xi32>
    %36 = arith.sitofp %35 : vector<1x40xi32> to vector<1x40xf32>
    %cst_12 = arith.constant 5.000000e-01 : f32
    %37 = vector.broadcast %cst_12 : f32 to vector<40x1xf32>
    %38 = arith.addf %34, %37 : vector<40x1xf32>
    %cst_13 = arith.constant 1.000000e-01 : f32
    %39 = vector.broadcast %cst_13 : f32 to vector<40x1xf32>
    %40 = arith.mulf %38, %39 : vector<40x1xf32>
    %41 = math.floor %40 : vector<40x1xf32>
    %cst_14 = arith.constant 5.000000e-01 : f32
    %42 = vector.broadcast %cst_14 : f32 to vector<1x40xf32>
    %43 = arith.addf %36, %42 : vector<1x40xf32>
    %cst_15 = arith.constant 1.000000e-01 : f32
    %44 = vector.broadcast %cst_15 : f32 to vector<1x40xf32>
    %45 = arith.mulf %43, %44 : vector<1x40xf32>
    %46 = math.floor %45 : vector<1x40xf32>
    %47 = vector.broadcast %41 : vector<40x1xf32> to vector<40x40xf32>
    %48 = vector.broadcast %46 : vector<1x40xf32> to vector<40x40xf32>
    %49 = arith.cmpf oeq, %47, %48 : vector<40x40xf32>
    %c40_i32 = arith.constant 40 : i32
    %50 = arith.muli %arg0, %c40_i32 : i32
    %51 = arith.sitofp %50 : i32 to f32
    %52 = vector.broadcast %51 : f32 to vector<1x40xf32>
    %53 = arith.addf %36, %52 : vector<1x40xf32>
    %cst_16 = arith.constant 4.000000e+01 : f32
    %54 = vector.broadcast %cst_16 : f32 to vector<1x40xf32>
    %55 = arith.cmpf olt, %53, %54 : vector<1x40xf32>
    %56 = vector.broadcast %55 : vector<1x40xi1> to vector<40x40xi1>
    %57 = arith.andi %49, %56 : vector<40x40xi1>
    %58 = vector.extract_strided_slice %32 {offsets = [0, 0], sizes = [40, 16], strides = [1, 1]} : vector<40x96xf32> to vector<40x16xf32>
    %59 = arith.truncf %58 : vector<40x16xf32> to vector<40x16xbf16>
    %60 = vector.extract_strided_slice %32 {offsets = [0, 32], sizes = [40, 16], strides = [1, 1]} : vector<40x96xf32> to vector<40x16xf32>
    %61 = arith.truncf %60 : vector<40x16xf32> to vector<40x16xbf16>
    %62 = vector.extract_strided_slice %32 {offsets = [0, 64], sizes = [40, 16], strides = [1, 1]} : vector<40x96xf32> to vector<40x16xf32>
    %63 = arith.truncf %62 : vector<40x16xf32> to vector<40x16xbf16>
    %cst_17 = arith.constant dense<0.000000e+00> : vector<40x40xf32>
    %64 = tpu.matmul %59, %61, %cst_17 {dimension_numbers = #tpu.dot_dimension_numbers<[1], [1], [0], [0], [0, 0, 1, 0], [], []>} : vector<40x16xbf16>, vector<40x16xbf16>, vector<40x40xf32> -> vector<40x40xf32>
    %cst_18 = arith.constant 2.500000e-01 : f32
    %65 = vector.broadcast %cst_18 : f32 to vector<40x40xf32>
    %66 = arith.mulf %64, %65 : vector<40x40xf32>
    %cst_19 = arith.constant -1.000000e+30 : f32
    %67 = vector.broadcast %cst_19 : f32 to vector<40x40xf32>
    %68 = arith.select %57, %66, %67 : vector<40x40xi1>, vector<40x40xf32>
    %cst_20 = arith.constant dense<0xFF800000> : vector<40xf32>
    %69 = vector.multi_reduction <maximumf>, %68, %cst_20 [1] : vector<40x40xf32> to vector<40xf32>
    %70 = vector.shape_cast %69 : vector<40xf32> to vector<40x1xf32>
    %71 = vector.broadcast %70 : vector<40x1xf32> to vector<40x40xf32>
    %72 = arith.subf %68, %71 : vector<40x40xf32>
    %73 = math.exp %72 : vector<40x40xf32>
    %cst_21 = arith.constant dense<0.000000e+00> : vector<40xf32>
    %74 = vector.multi_reduction <add>, %73, %cst_21 [1] : vector<40x40xf32> to vector<40xf32>
    %75 = vector.shape_cast %74 : vector<40xf32> to vector<40x1xf32>
    %76 = tpu.reciprocal %75 {approx = true} : vector<40x1xf32> -> vector<40x1xf32>
    %77 = vector.broadcast %76 : vector<40x1xf32> to vector<40x40xf32>
    %78 = arith.mulf %73, %77 : vector<40x40xf32>
    %79 = arith.truncf %78 : vector<40x40xf32> to vector<40x40xbf16>
    %cst_22 = arith.constant dense<0.000000e+00> : vector<40x16xf32>
    %80 = tpu.matmul %79, %63, %cst_22 {dimension_numbers = #tpu.dot_dimension_numbers<[1], [0], [0], [1], [0, 0, 1, 1], [], []>} : vector<40x40xbf16>, vector<40x16xbf16>, vector<40x16xf32> -> vector<40x16xf32>
    %81 = arith.truncf %80 : vector<40x16xf32> to vector<40x16xbf16>
    %c0_23 = arith.constant 0 : index
    %c0_24 = arith.constant 0 : index
    %82 = vector.load %arg5[%c0_23, %c0_24] : memref<32x32xbf16, #tpu.memory_space<vmem>>, vector<16x32xbf16>
    %cst_25 = arith.constant dense<0.000000e+00> : vector<40x32xf32>
    %83 = tpu.matmul %81, %82, %cst_25 {dimension_numbers = #tpu.dot_dimension_numbers<[1], [0], [0], [1], [0, 0, 1, 1], [], []>} : vector<40x16xbf16>, vector<16x32xbf16>, vector<40x32xf32> -> vector<40x32xf32>
    %84 = arith.addf %1, %83 : vector<40x32xf32>
    %85 = vector.extract_strided_slice %32 {offsets = [0, 16], sizes = [40, 16], strides = [1, 1]} : vector<40x96xf32> to vector<40x16xf32>
    %86 = arith.truncf %85 : vector<40x16xf32> to vector<40x16xbf16>
    %87 = vector.extract_strided_slice %32 {offsets = [0, 48], sizes = [40, 16], strides = [1, 1]} : vector<40x96xf32> to vector<40x16xf32>
    %88 = arith.truncf %87 : vector<40x16xf32> to vector<40x16xbf16>
    %89 = vector.extract_strided_slice %32 {offsets = [0, 80], sizes = [40, 16], strides = [1, 1]} : vector<40x96xf32> to vector<40x16xf32>
    %90 = arith.truncf %89 : vector<40x16xf32> to vector<40x16xbf16>
    %cst_26 = arith.constant dense<0.000000e+00> : vector<40x40xf32>
    %91 = tpu.matmul %86, %88, %cst_26 {dimension_numbers = #tpu.dot_dimension_numbers<[1], [1], [0], [0], [0, 0, 1, 0], [], []>} : vector<40x16xbf16>, vector<40x16xbf16>, vector<40x40xf32> -> vector<40x40xf32>
    %cst_27 = arith.constant 2.500000e-01 : f32
    %92 = vector.broadcast %cst_27 : f32 to vector<40x40xf32>
    %93 = arith.mulf %91, %92 : vector<40x40xf32>
    %cst_28 = arith.constant -1.000000e+30 : f32
    %94 = vector.broadcast %cst_28 : f32 to vector<40x40xf32>
    %95 = arith.select %57, %93, %94 : vector<40x40xi1>, vector<40x40xf32>
    %cst_29 = arith.constant dense<0xFF800000> : vector<40xf32>
    %96 = vector.multi_reduction <maximumf>, %95, %cst_29 [1] : vector<40x40xf32> to vector<40xf32>
    %97 = vector.shape_cast %96 : vector<40xf32> to vector<40x1xf32>
    %98 = vector.broadcast %97 : vector<40x1xf32> to vector<40x40xf32>
    %99 = arith.subf %95, %98 : vector<40x40xf32>
    %100 = math.exp %99 : vector<40x40xf32>
    %cst_30 = arith.constant dense<0.000000e+00> : vector<40xf32>
    %101 = vector.multi_reduction <add>, %100, %cst_30 [1] : vector<40x40xf32> to vector<40xf32>
    %102 = vector.shape_cast %101 : vector<40xf32> to vector<40x1xf32>
    %103 = tpu.reciprocal %102 {approx = true} : vector<40x1xf32> -> vector<40x1xf32>
    %104 = vector.broadcast %103 : vector<40x1xf32> to vector<40x40xf32>
    %105 = arith.mulf %100, %104 : vector<40x40xf32>
    %106 = arith.truncf %105 : vector<40x40xf32> to vector<40x40xbf16>
    %cst_31 = arith.constant dense<0.000000e+00> : vector<40x16xf32>
    %107 = tpu.matmul %106, %90, %cst_31 {dimension_numbers = #tpu.dot_dimension_numbers<[1], [0], [0], [1], [0, 0, 1, 1], [], []>} : vector<40x40xbf16>, vector<40x16xbf16>, vector<40x16xf32> -> vector<40x16xf32>
    %108 = arith.truncf %107 : vector<40x16xf32> to vector<40x16xbf16>
    %c16 = arith.constant 16 : index
    %c0_32 = arith.constant 0 : index
    %109 = vector.load %arg5[%c16, %c0_32] : memref<32x32xbf16, #tpu.memory_space<vmem>>, vector<16x32xbf16>
    %cst_33 = arith.constant dense<0.000000e+00> : vector<40x32xf32>
    %110 = tpu.matmul %108, %109, %cst_33 {dimension_numbers = #tpu.dot_dimension_numbers<[1], [0], [0], [1], [0, 0, 1, 1], [], []>} : vector<40x16xbf16>, vector<16x32xbf16>, vector<40x32xf32> -> vector<40x32xf32>
    %111 = arith.addf %84, %110 : vector<40x32xf32>
    %c0_34 = arith.constant 0 : index
    %c0_35 = arith.constant 0 : index
    %112 = vector.load %arg6[%c0_34, %c0_35] : memref<1x32xf32, #tpu.memory_space<vmem>>, vector<1x32xf32>
    %113 = vector.broadcast %112 : vector<1x32xf32> to vector<40x32xf32>
    %114 = arith.addf %111, %113 : vector<40x32xf32>
    %115 = vector.extract_strided_slice %2 {offsets = [2, 0], sizes = [1, 32], strides = [1, 1]} : vector<4x32xf32> to vector<1x32xf32>
    %116 = vector.extract_strided_slice %2 {offsets = [3, 0], sizes = [1, 32], strides = [1, 1]} : vector<4x32xf32> to vector<1x32xf32>
    %cst_36 = arith.constant dense<0.000000e+00> : vector<40xf32>
    %117 = vector.multi_reduction <add>, %114, %cst_36 [1] : vector<40x32xf32> to vector<40xf32>
    %118 = vector.shape_cast %117 : vector<40xf32> to vector<40x1xf32>
    %cst_37 = arith.constant 3.200000e+01 : f32
    %119 = vector.broadcast %cst_37 : f32 to vector<40x1xf32>
    %120 = arith.divf %118, %119 : vector<40x1xf32>
    %121 = vector.broadcast %120 : vector<40x1xf32> to vector<40x32xf32>
    %122 = arith.subf %114, %121 : vector<40x32xf32>
    %123 = arith.mulf %122, %122 : vector<40x32xf32>
    %cst_38 = arith.constant dense<0.000000e+00> : vector<40xf32>
    %124 = vector.multi_reduction <add>, %123, %cst_38 [1] : vector<40x32xf32> to vector<40xf32>
    %125 = vector.shape_cast %124 : vector<40xf32> to vector<40x1xf32>
    %cst_39 = arith.constant 3.200000e+01 : f32
    %126 = vector.broadcast %cst_39 : f32 to vector<40x1xf32>
    %127 = arith.divf %125, %126 : vector<40x1xf32>
    %128 = vector.broadcast %120 : vector<40x1xf32> to vector<40x32xf32>
    %129 = arith.subf %114, %128 : vector<40x32xf32>
    %cst_40 = arith.constant 9.99999974E-6 : f32
    %130 = vector.broadcast %cst_40 : f32 to vector<40x1xf32>
    %131 = arith.addf %127, %130 : vector<40x1xf32>
    %132 = math.rsqrt %131 : vector<40x1xf32>
    %133 = vector.broadcast %132 : vector<40x1xf32> to vector<40x32xf32>
    %134 = arith.mulf %129, %133 : vector<40x32xf32>
    %135 = vector.broadcast %115 : vector<1x32xf32> to vector<40x32xf32>
    %136 = arith.mulf %134, %135 : vector<40x32xf32>
    %137 = vector.broadcast %116 : vector<1x32xf32> to vector<40x32xf32>
    %138 = arith.addf %136, %137 : vector<40x32xf32>
    %139 = arith.truncf %138 : vector<40x32xf32> to vector<40x32xbf16>
    %c0_41 = arith.constant 0 : index
    %c0_42 = arith.constant 0 : index
    %140 = vector.load %arg7[%c0_41, %c0_42] : memref<32x128xbf16, #tpu.memory_space<vmem>>, vector<32x128xbf16>
    %cst_43 = arith.constant dense<0.000000e+00> : vector<40x128xf32>
    %141 = tpu.matmul %139, %140, %cst_43 {dimension_numbers = #tpu.dot_dimension_numbers<[1], [0], [0], [1], [0, 0, 1, 1], [], []>} : vector<40x32xbf16>, vector<32x128xbf16>, vector<40x128xf32> -> vector<40x128xf32>
    %c0_44 = arith.constant 0 : index
    %c0_45 = arith.constant 0 : index
    %142 = vector.load %arg8[%c0_44, %c0_45] : memref<1x128xf32, #tpu.memory_space<vmem>>, vector<1x128xf32>
    %143 = vector.broadcast %142 : vector<1x128xf32> to vector<40x128xf32>
    %144 = arith.addf %141, %143 : vector<40x128xf32>
    %cst_46 = arith.constant 0.000000e+00 : f32
    %145 = vector.broadcast %cst_46 : f32 to vector<40x128xf32>
    %146 = arith.maximumf %144, %145 : vector<40x128xf32>
    %147 = arith.truncf %146 : vector<40x128xf32> to vector<40x128xbf16>
    %c0_47 = arith.constant 0 : index
    %c0_48 = arith.constant 0 : index
    %148 = vector.load %arg9[%c0_47, %c0_48] : memref<128x32xbf16, #tpu.memory_space<vmem>>, vector<128x32xbf16>
    %cst_49 = arith.constant dense<0.000000e+00> : vector<40x32xf32>
    %149 = tpu.matmul %147, %148, %cst_49 {dimension_numbers = #tpu.dot_dimension_numbers<[1], [0], [0], [1], [0, 0, 1, 1], [], []>} : vector<40x128xbf16>, vector<128x32xbf16>, vector<40x32xf32> -> vector<40x32xf32>
    %c0_50 = arith.constant 0 : index
    %c0_51 = arith.constant 0 : index
    %150 = vector.load %arg10[%c0_50, %c0_51] : memref<1x32xf32, #tpu.memory_space<vmem>>, vector<1x32xf32>
    %151 = vector.broadcast %150 : vector<1x32xf32> to vector<40x32xf32>
    %152 = arith.addf %149, %151 : vector<40x32xf32>
    %153 = arith.addf %114, %152 : vector<40x32xf32>
    %154 = arith.truncf %153 : vector<40x32xf32> to vector<40x32xbf16>
    %c0_52 = arith.constant 0 : index
    %c0_53 = arith.constant 0 : index
    %155 = vector.load %arg11[%c0_52, %c0_53] : memref<40x32xbf16, #tpu.memory_space<vmem>>, vector<40x32xbf16>
    tpu.vector_store %arg11[%c0_52, %c0_53], %154 {strides = array<i32>} : memref<40x32xbf16, #tpu.memory_space<vmem>>, vector<40x32xbf16>,
    return
  }
  func.func @transform_0(%arg0: i32) -> (i32, i32) {
    %c0_i32 = arith.constant 0 : i32
    %c0_i32_0 = arith.constant 0 : i32
    return %arg0, %c0_i32 : i32, i32
  }
  func.func @transform_1(%arg0: i32) -> (i32, i32) {
    %c0_i32 = arith.constant 0 : i32
    %c0_i32_0 = arith.constant 0 : i32
    %c0_i32_1 = arith.constant 0 : i32
    return %c0_i32, %c0_i32_0 : i32, i32
  }
  func.func @transform_2(%arg0: i32) -> (i32, i32) {
    %c0_i32 = arith.constant 0 : i32
    %c0_i32_0 = arith.constant 0 : i32
    %c0_i32_1 = arith.constant 0 : i32
    return %c0_i32, %c0_i32_0 : i32, i32
  }
  func.func @transform_3(%arg0: i32) -> (i32, i32) {
    %c0_i32 = arith.constant 0 : i32
    %c0_i32_0 = arith.constant 0 : i32
    %c0_i32_1 = arith.constant 0 : i32
    return %c0_i32, %c0_i32_0 : i32, i32
  }
  func.func @transform_4(%arg0: i32) -> (i32, i32) {
    %c0_i32 = arith.constant 0 : i32
    %c0_i32_0 = arith.constant 0 : i32
    %c0_i32_1 = arith.constant 0 : i32
    return %c0_i32, %c0_i32_0 : i32, i32
  }
  func.func @transform_5(%arg0: i32) -> (i32, i32) {
    %c0_i32 = arith.constant 0 : i32
    %c0_i32_0 = arith.constant 0 : i32
    %c0_i32_1 = arith.constant 0 : i32
    return %c0_i32, %c0_i32_0 : i32, i32
  }
  func.func @transform_6(%arg0: i32) -> (i32, i32) {
    %c0_i32 = arith.constant 0 : i32
    %c0_i32_0 = arith.constant 0 : i32
    %c0_i32_1 = arith.constant 0 : i32
    return %c0_i32, %c0_i32_0 : i32, i32
  }
  func.func @transform_7(%arg0: i32) -> (i32, i32) {
    %c0_i32 = arith.constant 0 : i32
    %c0_i32_0 = arith.constant 0 : i32
    %c0_i32_1 = arith.constant 0 : i32
    return %c0_i32, %c0_i32_0 : i32, i32
  }
  func.func @transform_8(%arg0: i32) -> (i32, i32) {
    %c0_i32 = arith.constant 0 : i32
    %c0_i32_0 = arith.constant 0 : i32
    %c0_i32_1 = arith.constant 0 : i32
    return %c0_i32, %c0_i32_0 : i32, i32
  }
  func.func @transform_9(%arg0: i32) -> (i32, i32) {
    %c0_i32 = arith.constant 0 : i32
    %c0_i32_0 = arith.constant 0 : i32
    %c0_i32_1 = arith.constant 0 : i32
    return %c0_i32, %c0_i32_0 : i32, i32
  }
  func.func @transform_10(%arg0: i32) -> (i32, i32) {
    %c0_i32 = arith.constant 0 : i32
    %c0_i32_0 = arith.constant 0 : i32
    return %arg0, %c0_i32 : i32, i32
  }
}

module attributes {stable_mosaic.version = 11 : i64} {
  func.func @_conv_taps_kernel(%arg0: i32, %arg1: memref<1x3x128xbf16, #tpu.memory_space<vmem>>, %arg2: memref<2x128x32xbf16, #tpu.memory_space<vmem>>, %arg3: memref<1x32xf32, #tpu.memory_space<vmem>>, %arg4: memref<1x2x32xbf16, #tpu.memory_space<vmem>>) attributes {dimension_semantics = [#tpu.dimension_semantics<parallel>], iteration_bounds = array<i64: 2>, scalar_prefetch = 0 : i64, scratch_operands = 0 : i64, tpu.core_type = #tpu.core_type<tc>, window_params = [{transform_indices = @transform_0, window_bounds = array<i64: 1, 3, 128>}, {pipeline_mode = #tpu.pipeline_mode<synchronous>, transform_indices = @transform_1, window_bounds = array<i64: 2, 128, 32>}, {pipeline_mode = #tpu.pipeline_mode<synchronous>, transform_indices = @transform_2, window_bounds = array<i64: 1, 32>}, {transform_indices = @transform_3, window_bounds = array<i64: 1, 2, 32>}]} {
    %c0 = arith.constant 0 : index
    %c0_0 = arith.constant 0 : index
    %c0_1 = arith.constant 0 : index
    %0 = vector.load %arg1[%c0, %c0_0, %c0_1] : memref<1x3x128xbf16, #tpu.memory_space<vmem>>, vector<1x2x128xbf16>
    %1 = vector.shape_cast %0 : vector<1x2x128xbf16> to vector<2x128xbf16>
    %c0_2 = arith.constant 0 : index
    %c0_3 = arith.constant 0 : index
    %c0_4 = arith.constant 0 : index
    %2 = vector.load %arg2[%c0_2, %c0_3, %c0_4] : memref<2x128x32xbf16, #tpu.memory_space<vmem>>, vector<1x128x32xbf16>
    %3 = vector.shape_cast %2 : vector<1x128x32xbf16> to vector<128x32xbf16>
    %cst = arith.constant dense<0.000000e+00> : vector<2x32xf32>
    %4 = tpu.matmul %1, %3, %cst {dimension_numbers = #tpu.dot_dimension_numbers<[1], [0], [0], [1], [0, 0, 1, 1], [], []>} : vector<2x128xbf16>, vector<128x32xbf16>, vector<2x32xf32> -> vector<2x32xf32>
    %c0_5 = arith.constant 0 : index
    %c1 = arith.constant 1 : index
    %c0_6 = arith.constant 0 : index
    %5 = vector.load %arg1[%c0_5, %c1, %c0_6] : memref<1x3x128xbf16, #tpu.memory_space<vmem>>, vector<1x2x128xbf16>
    %6 = vector.shape_cast %5 : vector<1x2x128xbf16> to vector<2x128xbf16>
    %c1_7 = arith.constant 1 : index
    %c0_8 = arith.constant 0 : index
    %c0_9 = arith.constant 0 : index
    %7 = vector.load %arg2[%c1_7, %c0_8, %c0_9] : memref<2x128x32xbf16, #tpu.memory_space<vmem>>, vector<1x128x32xbf16>
    %8 = vector.shape_cast %7 : vector<1x128x32xbf16> to vector<128x32xbf16>
    %cst_10 = arith.constant dense<0.000000e+00> : vector<2x32xf32>
    %9 = tpu.matmul %6, %8, %cst_10 {dimension_numbers = #tpu.dot_dimension_numbers<[1], [0], [0], [1], [0, 0, 1, 1], [], []>} : vector<2x128xbf16>, vector<128x32xbf16>, vector<2x32xf32> -> vector<2x32xf32>
    %10 = arith.addf %4, %9 : vector<2x32xf32>
    %c0_11 = arith.constant 0 : index
    %c0_12 = arith.constant 0 : index
    %11 = vector.load %arg3[%c0_11, %c0_12] : memref<1x32xf32, #tpu.memory_space<vmem>>, vector<1x32xf32>
    %12 = vector.broadcast %11 : vector<1x32xf32> to vector<2x32xf32>
    %13 = arith.addf %10, %12 : vector<2x32xf32>
    %14 = arith.truncf %13 : vector<2x32xf32> to vector<2x32xbf16>
    %c0_13 = arith.constant 0 : index
    %c0_14 = arith.constant 0 : index
    %c0_15 = arith.constant 0 : index
    %15 = vector.load %arg4[%c0_13, %c0_14, %c0_15] : memref<1x2x32xbf16, #tpu.memory_space<vmem>>, vector<1x2x32xbf16>
    %16 = vector.shape_cast %15 : vector<1x2x32xbf16> to vector<2x32xbf16>
    %17 = vector.shape_cast %14 : vector<2x32xbf16> to vector<1x2x32xbf16>
    tpu.vector_store %arg4[%c0_13, %c0_14, %c0_15], %17 {strides = array<i32>} : memref<1x2x32xbf16, #tpu.memory_space<vmem>>, vector<1x2x32xbf16>,
    return
  }
  func.func @transform_0(%arg0: i32) -> (i32, i32, i32) {
    %c0_i32 = arith.constant 0 : i32
    %c0_i32_0 = arith.constant 0 : i32
    %c0_i32_1 = arith.constant 0 : i32
    return %arg0, %c0_i32, %c0_i32_0 : i32, i32, i32
  }
  func.func @transform_1(%arg0: i32) -> (i32, i32, i32) {
    %c0_i32 = arith.constant 0 : i32
    %c0_i32_0 = arith.constant 0 : i32
    %c0_i32_1 = arith.constant 0 : i32
    %c0_i32_2 = arith.constant 0 : i32
    return %c0_i32, %c0_i32_0, %c0_i32_1 : i32, i32, i32
  }
  func.func @transform_2(%arg0: i32) -> (i32, i32) {
    %c0_i32 = arith.constant 0 : i32
    %c0_i32_0 = arith.constant 0 : i32
    %c0_i32_1 = arith.constant 0 : i32
    return %c0_i32, %c0_i32_0 : i32, i32
  }
  func.func @transform_3(%arg0: i32) -> (i32, i32, i32) {
    %c0_i32 = arith.constant 0 : i32
    %c0_i32_0 = arith.constant 0 : i32
    %c0_i32_1 = arith.constant 0 : i32
    return %arg0, %c0_i32, %c0_i32_0 : i32, i32, i32
  }
}

module attributes {stable_mosaic.version = 11 : i64} {
  func.func @_fft_layer_kernel(%arg0: i32, %arg1: memref<4x32xbf16, #tpu.memory_space<vmem>>, %arg2: memref<4x32xf32, #tpu.memory_space<vmem>>, %arg3: memref<32x96xbf16, #tpu.memory_space<vmem>>, %arg4: memref<1x96xf32, #tpu.memory_space<vmem>>, %arg5: memref<32x32xbf16, #tpu.memory_space<vmem>>, %arg6: memref<1x32xf32, #tpu.memory_space<vmem>>, %arg7: memref<32x128xbf16, #tpu.memory_space<vmem>>, %arg8: memref<1x128xf32, #tpu.memory_space<vmem>>, %arg9: memref<128x32xbf16, #tpu.memory_space<vmem>>, %arg10: memref<1x32xf32, #tpu.memory_space<vmem>>, %arg11: memref<4x32xbf16, #tpu.memory_space<vmem>>) attributes {dimension_semantics = [#tpu.dimension_semantics<parallel>], iteration_bounds = array<i64: 1>, scalar_prefetch = 0 : i64, scratch_operands = 0 : i64, tpu.core_type = #tpu.core_type<tc>, window_params = [{transform_indices = @transform_0, window_bounds = array<i64: 4, 32>}, {pipeline_mode = #tpu.pipeline_mode<synchronous>, transform_indices = @transform_1, window_bounds = array<i64: 4, 32>}, {pipeline_mode = #tpu.pipeline_mode<synchronous>, transform_indices = @transform_2, window_bounds = array<i64: 32, 96>}, {pipeline_mode = #tpu.pipeline_mode<synchronous>, transform_indices = @transform_3, window_bounds = array<i64: 1, 96>}, {pipeline_mode = #tpu.pipeline_mode<synchronous>, transform_indices = @transform_4, window_bounds = array<i64: 32, 32>}, {pipeline_mode = #tpu.pipeline_mode<synchronous>, transform_indices = @transform_5, window_bounds = array<i64: 1, 32>}, {pipeline_mode = #tpu.pipeline_mode<synchronous>, transform_indices = @transform_6, window_bounds = array<i64: 32, 128>}, {pipeline_mode = #tpu.pipeline_mode<synchronous>, transform_indices = @transform_7, window_bounds = array<i64: 1, 128>}, {pipeline_mode = #tpu.pipeline_mode<synchronous>, transform_indices = @transform_8, window_bounds = array<i64: 128, 32>}, {pipeline_mode = #tpu.pipeline_mode<synchronous>, transform_indices = @transform_9, window_bounds = array<i64: 1, 32>}, {transform_indices = @transform_10, window_bounds = array<i64: 4, 32>}]} {
    %c0 = arith.constant 0 : index
    %c0_0 = arith.constant 0 : index
    %0 = vector.load %arg1[%c0, %c0_0] : memref<4x32xbf16, #tpu.memory_space<vmem>>, vector<4x32xbf16>
    %1 = arith.extf %0 : vector<4x32xbf16> to vector<4x32xf32>
    %c0_1 = arith.constant 0 : index
    %c0_2 = arith.constant 0 : index
    %2 = vector.load %arg2[%c0_1, %c0_2] : memref<4x32xf32, #tpu.memory_space<vmem>>, vector<4x32xf32>
    %3 = vector.extract_strided_slice %2 {offsets = [0, 0], sizes = [1, 32], strides = [1, 1]} : vector<4x32xf32> to vector<1x32xf32>
    %4 = vector.extract_strided_slice %2 {offsets = [1, 0], sizes = [1, 32], strides = [1, 1]} : vector<4x32xf32> to vector<1x32xf32>
    %cst = arith.constant dense<0.000000e+00> : vector<4xf32>
    %5 = vector.multi_reduction <add>, %1, %cst [1] : vector<4x32xf32> to vector<4xf32>
    %6 = vector.shape_cast %5 : vector<4xf32> to vector<4x1xf32>
    %cst_3 = arith.constant 3.200000e+01 : f32
    %7 = vector.broadcast %cst_3 : f32 to vector<4x1xf32>
    %8 = arith.divf %6, %7 : vector<4x1xf32>
    %9 = vector.broadcast %8 : vector<4x1xf32> to vector<4x32xf32>
    %10 = arith.subf %1, %9 : vector<4x32xf32>
    %11 = arith.mulf %10, %10 : vector<4x32xf32>
    %cst_4 = arith.constant dense<0.000000e+00> : vector<4xf32>
    %12 = vector.multi_reduction <add>, %11, %cst_4 [1] : vector<4x32xf32> to vector<4xf32>
    %13 = vector.shape_cast %12 : vector<4xf32> to vector<4x1xf32>
    %cst_5 = arith.constant 3.200000e+01 : f32
    %14 = vector.broadcast %cst_5 : f32 to vector<4x1xf32>
    %15 = arith.divf %13, %14 : vector<4x1xf32>
    %16 = vector.broadcast %8 : vector<4x1xf32> to vector<4x32xf32>
    %17 = arith.subf %1, %16 : vector<4x32xf32>
    %cst_6 = arith.constant 9.99999974E-6 : f32
    %18 = vector.broadcast %cst_6 : f32 to vector<4x1xf32>
    %19 = arith.addf %15, %18 : vector<4x1xf32>
    %20 = math.rsqrt %19 : vector<4x1xf32>
    %21 = vector.broadcast %20 : vector<4x1xf32> to vector<4x32xf32>
    %22 = arith.mulf %17, %21 : vector<4x32xf32>
    %23 = vector.broadcast %3 : vector<1x32xf32> to vector<4x32xf32>
    %24 = arith.mulf %22, %23 : vector<4x32xf32>
    %25 = vector.broadcast %4 : vector<1x32xf32> to vector<4x32xf32>
    %26 = arith.addf %24, %25 : vector<4x32xf32>
    %27 = arith.truncf %26 : vector<4x32xf32> to vector<4x32xbf16>
    %c0_7 = arith.constant 0 : index
    %c0_8 = arith.constant 0 : index
    %28 = vector.load %arg3[%c0_7, %c0_8] : memref<32x96xbf16, #tpu.memory_space<vmem>>, vector<32x96xbf16>
    %cst_9 = arith.constant dense<0.000000e+00> : vector<4x96xf32>
    %29 = tpu.matmul %27, %28, %cst_9 {dimension_numbers = #tpu.dot_dimension_numbers<[1], [0], [0], [1], [0, 0, 1, 1], [], []>} : vector<4x32xbf16>, vector<32x96xbf16>, vector<4x96xf32> -> vector<4x96xf32>
    %c0_10 = arith.constant 0 : index
    %c0_11 = arith.constant 0 : index
    %30 = vector.load %arg4[%c0_10, %c0_11] : memref<1x96xf32, #tpu.memory_space<vmem>>, vector<1x96xf32>
    %31 = vector.broadcast %30 : vector<1x96xf32> to vector<4x96xf32>
    %32 = arith.addf %29, %31 : vector<4x96xf32>
    %33 = tpu.iota {dimensions = array<i32: 0>} : vector<4x1xi32>
    %34 = arith.sitofp %33 : vector<4x1xi32> to vector<4x1xf32>
    %35 = tpu.iota {dimensions = array<i32: 1>} : vector<1x4xi32>
    %36 = arith.sitofp %35 : vector<1x4xi32> to vector<1x4xf32>
    %cst_12 = arith.constant 5.000000e-01 : f32
    %37 = vector.broadcast %cst_12 : f32 to vector<4x1xf32>
    %38 = arith.addf %34, %37 : vector<4x1xf32>
    %cst_13 = arith.constant 5.000000e-01 : f32
    %39 = vector.broadcast %cst_13 : f32 to vector<4x1xf32>
    %40 = arith.mulf %38, %39 : vector<4x1xf32>
    %41 = math.floor %40 : vector<4x1xf32>
    %cst_14 = arith.constant 5.000000e-01 : f32
    %42 = vector.broadcast %cst_14 : f32 to vector<1x4xf32>
    %43 = arith.addf %36, %42 : vector<1x4xf32>
    %cst_15 = arith.constant 5.000000e-01 : f32
    %44 = vector.broadcast %cst_15 : f32 to vector<1x4xf32>
    %45 = arith.mulf %43, %44 : vector<1x4xf32>
    %46 = math.floor %45 : vector<1x4xf32>
    %47 = vector.broadcast %41 : vector<4x1xf32> to vector<4x4xf32>
    %48 = vector.broadcast %46 : vector<1x4xf32> to vector<4x4xf32>
    %49 = arith.cmpf oeq, %47, %48 : vector<4x4xf32>
    %c4_i32 = arith.constant 4 : i32
    %50 = arith.muli %arg0, %c4_i32 : i32
    %51 = arith.sitofp %50 : i32 to f32
    %52 = vector.broadcast %51 : f32 to vector<1x4xf32>
    %53 = arith.addf %36, %52 : vector<1x4xf32>
    %cst_16 = arith.constant 4.000000e+00 : f32
    %54 = vector.broadcast %cst_16 : f32 to vector<1x4xf32>
    %55 = arith.cmpf olt, %53, %54 : vector<1x4xf32>
    %56 = vector.broadcast %55 : vector<1x4xi1> to vector<4x4xi1>
    %57 = arith.andi %49, %56 : vector<4x4xi1>
    %58 = vector.extract_strided_slice %32 {offsets = [0, 0], sizes = [4, 16], strides = [1, 1]} : vector<4x96xf32> to vector<4x16xf32>
    %59 = arith.truncf %58 : vector<4x16xf32> to vector<4x16xbf16>
    %60 = vector.extract_strided_slice %32 {offsets = [0, 32], sizes = [4, 16], strides = [1, 1]} : vector<4x96xf32> to vector<4x16xf32>
    %61 = arith.truncf %60 : vector<4x16xf32> to vector<4x16xbf16>
    %62 = vector.extract_strided_slice %32 {offsets = [0, 64], sizes = [4, 16], strides = [1, 1]} : vector<4x96xf32> to vector<4x16xf32>
    %63 = arith.truncf %62 : vector<4x16xf32> to vector<4x16xbf16>
    %cst_17 = arith.constant dense<0.000000e+00> : vector<4x4xf32>
    %64 = tpu.matmul %59, %61, %cst_17 {dimension_numbers = #tpu.dot_dimension_numbers<[1], [1], [0], [0], [0, 0, 1, 0], [], []>} : vector<4x16xbf16>, vector<4x16xbf16>, vector<4x4xf32> -> vector<4x4xf32>
    %cst_18 = arith.constant 2.500000e-01 : f32
    %65 = vector.broadcast %cst_18 : f32 to vector<4x4xf32>
    %66 = arith.mulf %64, %65 : vector<4x4xf32>
    %cst_19 = arith.constant -1.000000e+30 : f32
    %67 = vector.broadcast %cst_19 : f32 to vector<4x4xf32>
    %68 = arith.select %57, %66, %67 : vector<4x4xi1>, vector<4x4xf32>
    %cst_20 = arith.constant dense<0xFF800000> : vector<4xf32>
    %69 = vector.multi_reduction <maximumf>, %68, %cst_20 [1] : vector<4x4xf32> to vector<4xf32>
    %70 = vector.shape_cast %69 : vector<4xf32> to vector<4x1xf32>
    %71 = vector.broadcast %70 : vector<4x1xf32> to vector<4x4xf32>
    %72 = arith.subf %68, %71 : vector<4x4xf32>
    %73 = math.exp %72 : vector<4x4xf32>
    %cst_21 = arith.constant dense<0.000000e+00> : vector<4xf32>
    %74 = vector.multi_reduction <add>, %73, %cst_21 [1] : vector<4x4xf32> to vector<4xf32>
    %75 = vector.shape_cast %74 : vector<4xf32> to vector<4x1xf32>
    %76 = tpu.reciprocal %75 {approx = true} : vector<4x1xf32> -> vector<4x1xf32>
    %77 = vector.broadcast %76 : vector<4x1xf32> to vector<4x4xf32>
    %78 = arith.mulf %73, %77 : vector<4x4xf32>
    %79 = arith.truncf %78 : vector<4x4xf32> to vector<4x4xbf16>
    %cst_22 = arith.constant dense<0.000000e+00> : vector<4x16xf32>
    %80 = tpu.matmul %79, %63, %cst_22 {dimension_numbers = #tpu.dot_dimension_numbers<[1], [0], [0], [1], [0, 0, 1, 1], [], []>} : vector<4x4xbf16>, vector<4x16xbf16>, vector<4x16xf32> -> vector<4x16xf32>
    %81 = arith.truncf %80 : vector<4x16xf32> to vector<4x16xbf16>
    %c0_23 = arith.constant 0 : index
    %c0_24 = arith.constant 0 : index
    %82 = vector.load %arg5[%c0_23, %c0_24] : memref<32x32xbf16, #tpu.memory_space<vmem>>, vector<16x32xbf16>
    %cst_25 = arith.constant dense<0.000000e+00> : vector<4x32xf32>
    %83 = tpu.matmul %81, %82, %cst_25 {dimension_numbers = #tpu.dot_dimension_numbers<[1], [0], [0], [1], [0, 0, 1, 1], [], []>} : vector<4x16xbf16>, vector<16x32xbf16>, vector<4x32xf32> -> vector<4x32xf32>
    %84 = arith.addf %1, %83 : vector<4x32xf32>
    %85 = vector.extract_strided_slice %32 {offsets = [0, 16], sizes = [4, 16], strides = [1, 1]} : vector<4x96xf32> to vector<4x16xf32>
    %86 = arith.truncf %85 : vector<4x16xf32> to vector<4x16xbf16>
    %87 = vector.extract_strided_slice %32 {offsets = [0, 48], sizes = [4, 16], strides = [1, 1]} : vector<4x96xf32> to vector<4x16xf32>
    %88 = arith.truncf %87 : vector<4x16xf32> to vector<4x16xbf16>
    %89 = vector.extract_strided_slice %32 {offsets = [0, 80], sizes = [4, 16], strides = [1, 1]} : vector<4x96xf32> to vector<4x16xf32>
    %90 = arith.truncf %89 : vector<4x16xf32> to vector<4x16xbf16>
    %cst_26 = arith.constant dense<0.000000e+00> : vector<4x4xf32>
    %91 = tpu.matmul %86, %88, %cst_26 {dimension_numbers = #tpu.dot_dimension_numbers<[1], [1], [0], [0], [0, 0, 1, 0], [], []>} : vector<4x16xbf16>, vector<4x16xbf16>, vector<4x4xf32> -> vector<4x4xf32>
    %cst_27 = arith.constant 2.500000e-01 : f32
    %92 = vector.broadcast %cst_27 : f32 to vector<4x4xf32>
    %93 = arith.mulf %91, %92 : vector<4x4xf32>
    %cst_28 = arith.constant -1.000000e+30 : f32
    %94 = vector.broadcast %cst_28 : f32 to vector<4x4xf32>
    %95 = arith.select %57, %93, %94 : vector<4x4xi1>, vector<4x4xf32>
    %cst_29 = arith.constant dense<0xFF800000> : vector<4xf32>
    %96 = vector.multi_reduction <maximumf>, %95, %cst_29 [1] : vector<4x4xf32> to vector<4xf32>
    %97 = vector.shape_cast %96 : vector<4xf32> to vector<4x1xf32>
    %98 = vector.broadcast %97 : vector<4x1xf32> to vector<4x4xf32>
    %99 = arith.subf %95, %98 : vector<4x4xf32>
    %100 = math.exp %99 : vector<4x4xf32>
    %cst_30 = arith.constant dense<0.000000e+00> : vector<4xf32>
    %101 = vector.multi_reduction <add>, %100, %cst_30 [1] : vector<4x4xf32> to vector<4xf32>
    %102 = vector.shape_cast %101 : vector<4xf32> to vector<4x1xf32>
    %103 = tpu.reciprocal %102 {approx = true} : vector<4x1xf32> -> vector<4x1xf32>
    %104 = vector.broadcast %103 : vector<4x1xf32> to vector<4x4xf32>
    %105 = arith.mulf %100, %104 : vector<4x4xf32>
    %106 = arith.truncf %105 : vector<4x4xf32> to vector<4x4xbf16>
    %cst_31 = arith.constant dense<0.000000e+00> : vector<4x16xf32>
    %107 = tpu.matmul %106, %90, %cst_31 {dimension_numbers = #tpu.dot_dimension_numbers<[1], [0], [0], [1], [0, 0, 1, 1], [], []>} : vector<4x4xbf16>, vector<4x16xbf16>, vector<4x16xf32> -> vector<4x16xf32>
    %108 = arith.truncf %107 : vector<4x16xf32> to vector<4x16xbf16>
    %c16 = arith.constant 16 : index
    %c0_32 = arith.constant 0 : index
    %109 = vector.load %arg5[%c16, %c0_32] : memref<32x32xbf16, #tpu.memory_space<vmem>>, vector<16x32xbf16>
    %cst_33 = arith.constant dense<0.000000e+00> : vector<4x32xf32>
    %110 = tpu.matmul %108, %109, %cst_33 {dimension_numbers = #tpu.dot_dimension_numbers<[1], [0], [0], [1], [0, 0, 1, 1], [], []>} : vector<4x16xbf16>, vector<16x32xbf16>, vector<4x32xf32> -> vector<4x32xf32>
    %111 = arith.addf %84, %110 : vector<4x32xf32>
    %c0_34 = arith.constant 0 : index
    %c0_35 = arith.constant 0 : index
    %112 = vector.load %arg6[%c0_34, %c0_35] : memref<1x32xf32, #tpu.memory_space<vmem>>, vector<1x32xf32>
    %113 = vector.broadcast %112 : vector<1x32xf32> to vector<4x32xf32>
    %114 = arith.addf %111, %113 : vector<4x32xf32>
    %115 = vector.extract_strided_slice %2 {offsets = [2, 0], sizes = [1, 32], strides = [1, 1]} : vector<4x32xf32> to vector<1x32xf32>
    %116 = vector.extract_strided_slice %2 {offsets = [3, 0], sizes = [1, 32], strides = [1, 1]} : vector<4x32xf32> to vector<1x32xf32>
    %cst_36 = arith.constant dense<0.000000e+00> : vector<4xf32>
    %117 = vector.multi_reduction <add>, %114, %cst_36 [1] : vector<4x32xf32> to vector<4xf32>
    %118 = vector.shape_cast %117 : vector<4xf32> to vector<4x1xf32>
    %cst_37 = arith.constant 3.200000e+01 : f32
    %119 = vector.broadcast %cst_37 : f32 to vector<4x1xf32>
    %120 = arith.divf %118, %119 : vector<4x1xf32>
    %121 = vector.broadcast %120 : vector<4x1xf32> to vector<4x32xf32>
    %122 = arith.subf %114, %121 : vector<4x32xf32>
    %123 = arith.mulf %122, %122 : vector<4x32xf32>
    %cst_38 = arith.constant dense<0.000000e+00> : vector<4xf32>
    %124 = vector.multi_reduction <add>, %123, %cst_38 [1] : vector<4x32xf32> to vector<4xf32>
    %125 = vector.shape_cast %124 : vector<4xf32> to vector<4x1xf32>
    %cst_39 = arith.constant 3.200000e+01 : f32
    %126 = vector.broadcast %cst_39 : f32 to vector<4x1xf32>
    %127 = arith.divf %125, %126 : vector<4x1xf32>
    %128 = vector.broadcast %120 : vector<4x1xf32> to vector<4x32xf32>
    %129 = arith.subf %114, %128 : vector<4x32xf32>
    %cst_40 = arith.constant 9.99999974E-6 : f32
    %130 = vector.broadcast %cst_40 : f32 to vector<4x1xf32>
    %131 = arith.addf %127, %130 : vector<4x1xf32>
    %132 = math.rsqrt %131 : vector<4x1xf32>
    %133 = vector.broadcast %132 : vector<4x1xf32> to vector<4x32xf32>
    %134 = arith.mulf %129, %133 : vector<4x32xf32>
    %135 = vector.broadcast %115 : vector<1x32xf32> to vector<4x32xf32>
    %136 = arith.mulf %134, %135 : vector<4x32xf32>
    %137 = vector.broadcast %116 : vector<1x32xf32> to vector<4x32xf32>
    %138 = arith.addf %136, %137 : vector<4x32xf32>
    %139 = arith.truncf %138 : vector<4x32xf32> to vector<4x32xbf16>
    %c0_41 = arith.constant 0 : index
    %c0_42 = arith.constant 0 : index
    %140 = vector.load %arg7[%c0_41, %c0_42] : memref<32x128xbf16, #tpu.memory_space<vmem>>, vector<32x128xbf16>
    %cst_43 = arith.constant dense<0.000000e+00> : vector<4x128xf32>
    %141 = tpu.matmul %139, %140, %cst_43 {dimension_numbers = #tpu.dot_dimension_numbers<[1], [0], [0], [1], [0, 0, 1, 1], [], []>} : vector<4x32xbf16>, vector<32x128xbf16>, vector<4x128xf32> -> vector<4x128xf32>
    %c0_44 = arith.constant 0 : index
    %c0_45 = arith.constant 0 : index
    %142 = vector.load %arg8[%c0_44, %c0_45] : memref<1x128xf32, #tpu.memory_space<vmem>>, vector<1x128xf32>
    %143 = vector.broadcast %142 : vector<1x128xf32> to vector<4x128xf32>
    %144 = arith.addf %141, %143 : vector<4x128xf32>
    %cst_46 = arith.constant 0.000000e+00 : f32
    %145 = vector.broadcast %cst_46 : f32 to vector<4x128xf32>
    %146 = arith.maximumf %144, %145 : vector<4x128xf32>
    %147 = arith.truncf %146 : vector<4x128xf32> to vector<4x128xbf16>
    %c0_47 = arith.constant 0 : index
    %c0_48 = arith.constant 0 : index
    %148 = vector.load %arg9[%c0_47, %c0_48] : memref<128x32xbf16, #tpu.memory_space<vmem>>, vector<128x32xbf16>
    %cst_49 = arith.constant dense<0.000000e+00> : vector<4x32xf32>
    %149 = tpu.matmul %147, %148, %cst_49 {dimension_numbers = #tpu.dot_dimension_numbers<[1], [0], [0], [1], [0, 0, 1, 1], [], []>} : vector<4x128xbf16>, vector<128x32xbf16>, vector<4x32xf32> -> vector<4x32xf32>
    %c0_50 = arith.constant 0 : index
    %c0_51 = arith.constant 0 : index
    %150 = vector.load %arg10[%c0_50, %c0_51] : memref<1x32xf32, #tpu.memory_space<vmem>>, vector<1x32xf32>
    %151 = vector.broadcast %150 : vector<1x32xf32> to vector<4x32xf32>
    %152 = arith.addf %149, %151 : vector<4x32xf32>
    %153 = arith.addf %114, %152 : vector<4x32xf32>
    %154 = arith.truncf %153 : vector<4x32xf32> to vector<4x32xbf16>
    %c0_52 = arith.constant 0 : index
    %c0_53 = arith.constant 0 : index
    %155 = vector.load %arg11[%c0_52, %c0_53] : memref<4x32xbf16, #tpu.memory_space<vmem>>, vector<4x32xbf16>
    tpu.vector_store %arg11[%c0_52, %c0_53], %154 {strides = array<i32>} : memref<4x32xbf16, #tpu.memory_space<vmem>>, vector<4x32xbf16>,
    return
  }
  func.func @transform_0(%arg0: i32) -> (i32, i32) {
    %c0_i32 = arith.constant 0 : i32
    %c0_i32_0 = arith.constant 0 : i32
    return %arg0, %c0_i32 : i32, i32
  }
  func.func @transform_1(%arg0: i32) -> (i32, i32) {
    %c0_i32 = arith.constant 0 : i32
    %c0_i32_0 = arith.constant 0 : i32
    %c0_i32_1 = arith.constant 0 : i32
    return %c0_i32, %c0_i32_0 : i32, i32
  }
  func.func @transform_2(%arg0: i32) -> (i32, i32) {
    %c0_i32 = arith.constant 0 : i32
    %c0_i32_0 = arith.constant 0 : i32
    %c0_i32_1 = arith.constant 0 : i32
    return %c0_i32, %c0_i32_0 : i32, i32
  }
  func.func @transform_3(%arg0: i32) -> (i32, i32) {
    %c0_i32 = arith.constant 0 : i32
    %c0_i32_0 = arith.constant 0 : i32
    %c0_i32_1 = arith.constant 0 : i32
    return %c0_i32, %c0_i32_0 : i32, i32
  }
  func.func @transform_4(%arg0: i32) -> (i32, i32) {
    %c0_i32 = arith.constant 0 : i32
    %c0_i32_0 = arith.constant 0 : i32
    %c0_i32_1 = arith.constant 0 : i32
    return %c0_i32, %c0_i32_0 : i32, i32
  }
  func.func @transform_5(%arg0: i32) -> (i32, i32) {
    %c0_i32 = arith.constant 0 : i32
    %c0_i32_0 = arith.constant 0 : i32
    %c0_i32_1 = arith.constant 0 : i32
    return %c0_i32, %c0_i32_0 : i32, i32
  }
  func.func @transform_6(%arg0: i32) -> (i32, i32) {
    %c0_i32 = arith.constant 0 : i32
    %c0_i32_0 = arith.constant 0 : i32
    %c0_i32_1 = arith.constant 0 : i32
    return %c0_i32, %c0_i32_0 : i32, i32
  }
  func.func @transform_7(%arg0: i32) -> (i32, i32) {
    %c0_i32 = arith.constant 0 : i32
    %c0_i32_0 = arith.constant 0 : i32
    %c0_i32_1 = arith.constant 0 : i32
    return %c0_i32, %c0_i32_0 : i32, i32
  }
  func.func @transform_8(%arg0: i32) -> (i32, i32) {
    %c0_i32 = arith.constant 0 : i32
    %c0_i32_0 = arith.constant 0 : i32
    %c0_i32_1 = arith.constant 0 : i32
    return %c0_i32, %c0_i32_0 : i32, i32
  }
  func.func @transform_9(%arg0: i32) -> (i32, i32) {
    %c0_i32 = arith.constant 0 : i32
    %c0_i32_0 = arith.constant 0 : i32
    %c0_i32_1 = arith.constant 0 : i32
    return %c0_i32, %c0_i32_0 : i32, i32
  }
  func.func @transform_10(%arg0: i32) -> (i32, i32) {
    %c0_i32 = arith.constant 0 : i32
    %c0_i32_0 = arith.constant 0 : i32
    return %arg0, %c0_i32 : i32, i32
  }
}

module attributes {stable_mosaic.version = 11 : i64} {
  func.func @_fft_h_kernel(%arg0: i32, %arg1: memref<1x6x32xbf16, #tpu.memory_space<vmem>>, %arg2: memref<3x32x32xbf16, #tpu.memory_space<vmem>>, %arg3: memref<1x32xf32, #tpu.memory_space<vmem>>, %arg4: memref<3x32x32xbf16, #tpu.memory_space<vmem>>, %arg5: memref<1x32xf32, #tpu.memory_space<vmem>>, %arg6: memref<1x2x32xbf16, #tpu.memory_space<vmem>>) attributes {dimension_semantics = [#tpu.dimension_semantics<parallel>], iteration_bounds = array<i64: 20>, scalar_prefetch = 0 : i64, scratch_operands = 0 : i64, tpu.core_type = #tpu.core_type<tc>, window_params = [{transform_indices = @transform_0, window_bounds = array<i64: 1, 6, 32>}, {pipeline_mode = #tpu.pipeline_mode<synchronous>, transform_indices = @transform_1, window_bounds = array<i64: 3, 32, 32>}, {pipeline_mode = #tpu.pipeline_mode<synchronous>, transform_indices = @transform_2, window_bounds = array<i64: 1, 32>}, {pipeline_mode = #tpu.pipeline_mode<synchronous>, transform_indices = @transform_3, window_bounds = array<i64: 3, 32, 32>}, {pipeline_mode = #tpu.pipeline_mode<synchronous>, transform_indices = @transform_4, window_bounds = array<i64: 1, 32>}, {transform_indices = @transform_5, window_bounds = array<i64: 1, 2, 32>}]} {
    %c0 = arith.constant 0 : index
    %c0_0 = arith.constant 0 : index
    %c0_1 = arith.constant 0 : index
    %0 = vector.load %arg1[%c0, %c0_0, %c0_1] : memref<1x6x32xbf16, #tpu.memory_space<vmem>>, vector<1x4x32xbf16>
    %1 = vector.shape_cast %0 : vector<1x4x32xbf16> to vector<4x32xbf16>
    %c0_2 = arith.constant 0 : index
    %c0_3 = arith.constant 0 : index
    %c0_4 = arith.constant 0 : index
    %2 = vector.load %arg2[%c0_2, %c0_3, %c0_4] : memref<3x32x32xbf16, #tpu.memory_space<vmem>>, vector<1x32x32xbf16>
    %3 = vector.shape_cast %2 : vector<1x32x32xbf16> to vector<32x32xbf16>
    %cst = arith.constant dense<0.000000e+00> : vector<4x32xf32>
    %4 = tpu.matmul %1, %3, %cst {dimension_numbers = #tpu.dot_dimension_numbers<[1], [0], [0], [1], [0, 0, 1, 1], [], []>} : vector<4x32xbf16>, vector<32x32xbf16>, vector<4x32xf32> -> vector<4x32xf32>
    %c0_5 = arith.constant 0 : index
    %c1 = arith.constant 1 : index
    %c0_6 = arith.constant 0 : index
    %5 = vector.load %arg1[%c0_5, %c1, %c0_6] : memref<1x6x32xbf16, #tpu.memory_space<vmem>>, vector<1x4x32xbf16>
    %6 = vector.shape_cast %5 : vector<1x4x32xbf16> to vector<4x32xbf16>
    %c1_7 = arith.constant 1 : index
    %c0_8 = arith.constant 0 : index
    %c0_9 = arith.constant 0 : index
    %7 = vector.load %arg2[%c1_7, %c0_8, %c0_9] : memref<3x32x32xbf16, #tpu.memory_space<vmem>>, vector<1x32x32xbf16>
    %8 = vector.shape_cast %7 : vector<1x32x32xbf16> to vector<32x32xbf16>
    %cst_10 = arith.constant dense<0.000000e+00> : vector<4x32xf32>
    %9 = tpu.matmul %6, %8, %cst_10 {dimension_numbers = #tpu.dot_dimension_numbers<[1], [0], [0], [1], [0, 0, 1, 1], [], []>} : vector<4x32xbf16>, vector<32x32xbf16>, vector<4x32xf32> -> vector<4x32xf32>
    %10 = arith.addf %4, %9 : vector<4x32xf32>
    %c0_11 = arith.constant 0 : index
    %c2 = arith.constant 2 : index
    %c0_12 = arith.constant 0 : index
    %11 = vector.load %arg1[%c0_11, %c2, %c0_12] : memref<1x6x32xbf16, #tpu.memory_space<vmem>>, vector<1x4x32xbf16>
    %12 = vector.shape_cast %11 : vector<1x4x32xbf16> to vector<4x32xbf16>
    %c2_13 = arith.constant 2 : index
    %c0_14 = arith.constant 0 : index
    %c0_15 = arith.constant 0 : index
    %13 = vector.load %arg2[%c2_13, %c0_14, %c0_15] : memref<3x32x32xbf16, #tpu.memory_space<vmem>>, vector<1x32x32xbf16>
    %14 = vector.shape_cast %13 : vector<1x32x32xbf16> to vector<32x32xbf16>
    %cst_16 = arith.constant dense<0.000000e+00> : vector<4x32xf32>
    %15 = tpu.matmul %12, %14, %cst_16 {dimension_numbers = #tpu.dot_dimension_numbers<[1], [0], [0], [1], [0, 0, 1, 1], [], []>} : vector<4x32xbf16>, vector<32x32xbf16>, vector<4x32xf32> -> vector<4x32xf32>
    %16 = arith.addf %10, %15 : vector<4x32xf32>
    %c0_17 = arith.constant 0 : index
    %c0_18 = arith.constant 0 : index
    %17 = vector.load %arg3[%c0_17, %c0_18] : memref<1x32xf32, #tpu.memory_space<vmem>>, vector<1x32xf32>
    %18 = vector.broadcast %17 : vector<1x32xf32> to vector<4x32xf32>
    %19 = arith.addf %16, %18 : vector<4x32xf32>
    %cst_19 = arith.constant 0.000000e+00 : f32
    %20 = vector.broadcast %cst_19 : f32 to vector<4x32xf32>
    %21 = arith.maximumf %19, %20 : vector<4x32xf32>
    %22 = tpu.iota {dimensions = array<i32: 0>} : vector<4x1xi32>
    %c1_i32 = arith.constant 1 : i32
    %23 = vector.broadcast %c1_i32 : i32 to vector<4x1xi32>
    %24 = arith.cmpi sge, %22, %23 : vector<4x1xi32>
    %c2_i32 = arith.constant 2 : i32
    %25 = vector.broadcast %c2_i32 : i32 to vector<4x1xi32>
    %26 = arith.cmpi sle, %22, %25 : vector<4x1xi32>
    %27 = arith.andi %24, %26 : vector<4x1xi1>
    %cst_20 = arith.constant 0.000000e+00 : f32
    %28 = vector.shape_cast %27 : vector<4x1xi1> to vector<4x1xi1>
    %29 = vector.broadcast %28 : vector<4x1xi1> to vector<4x32xi1>
    %30 = vector.broadcast %cst_20 : f32 to vector<4x32xf32>
    %31 = arith.select %29, %21, %30 : vector<4x32xi1>, vector<4x32xf32>
    %32 = arith.truncf %31 : vector<4x32xf32> to vector<4x32xbf16>
    %33 = vector.extract_strided_slice %32 {offsets = [0, 0], sizes = [2, 32], strides = [1, 1]} : vector<4x32xbf16> to vector<2x32xbf16>
    %c0_21 = arith.constant 0 : index
    %c0_22 = arith.constant 0 : index
    %c0_23 = arith.constant 0 : index
    %34 = vector.load %arg4[%c0_21, %c0_22, %c0_23] : memref<3x32x32xbf16, #tpu.memory_space<vmem>>, vector<1x32x32xbf16>
    %35 = vector.shape_cast %34 : vector<1x32x32xbf16> to vector<32x32xbf16>
    %cst_24 = arith.constant dense<0.000000e+00> : vector<2x32xf32>
    %36 = tpu.matmul %33, %35, %cst_24 {dimension_numbers = #tpu.dot_dimension_numbers<[1], [0], [0], [1], [0, 0, 1, 1], [], []>} : vector<2x32xbf16>, vector<32x32xbf16>, vector<2x32xf32> -> vector<2x32xf32>
    %37 = vector.extract_strided_slice %32 {offsets = [1, 0], sizes = [2, 32], strides = [1, 1]} : vector<4x32xbf16> to vector<2x32xbf16>
    %c1_25 = arith.constant 1 : index
    %c0_26 = arith.constant 0 : index
    %c0_27 = arith.constant 0 : index
    %38 = vector.load %arg4[%c1_25, %c0_26, %c0_27] : memref<3x32x32xbf16, #tpu.memory_space<vmem>>, vector<1x32x32xbf16>
    %39 = vector.shape_cast %38 : vector<1x32x32xbf16> to vector<32x32xbf16>
    %cst_28 = arith.constant dense<0.000000e+00> : vector<2x32xf32>
    %40 = tpu.matmul %37, %39, %cst_28 {dimension_numbers = #tpu.dot_dimension_numbers<[1], [0], [0], [1], [0, 0, 1, 1], [], []>} : vector<2x32xbf16>, vector<32x32xbf16>, vector<2x32xf32> -> vector<2x32xf32>
    %41 = arith.addf %36, %40 : vector<2x32xf32>
    %42 = vector.extract_strided_slice %32 {offsets = [2, 0], sizes = [2, 32], strides = [1, 1]} : vector<4x32xbf16> to vector<2x32xbf16>
    %c2_29 = arith.constant 2 : index
    %c0_30 = arith.constant 0 : index
    %c0_31 = arith.constant 0 : index
    %43 = vector.load %arg4[%c2_29, %c0_30, %c0_31] : memref<3x32x32xbf16, #tpu.memory_space<vmem>>, vector<1x32x32xbf16>
    %44 = vector.shape_cast %43 : vector<1x32x32xbf16> to vector<32x32xbf16>
    %cst_32 = arith.constant dense<0.000000e+00> : vector<2x32xf32>
    %45 = tpu.matmul %42, %44, %cst_32 {dimension_numbers = #tpu.dot_dimension_numbers<[1], [0], [0], [1], [0, 0, 1, 1], [], []>} : vector<2x32xbf16>, vector<32x32xbf16>, vector<2x32xf32> -> vector<2x32xf32>
    %46 = arith.addf %41, %45 : vector<2x32xf32>
    %c0_33 = arith.constant 0 : index
    %c0_34 = arith.constant 0 : index
    %47 = vector.load %arg5[%c0_33, %c0_34] : memref<1x32xf32, #tpu.memory_space<vmem>>, vector<1x32xf32>
    %48 = vector.broadcast %47 : vector<1x32xf32> to vector<2x32xf32>
    %49 = arith.addf %46, %48 : vector<2x32xf32>
    %50 = arith.truncf %49 : vector<2x32xf32> to vector<2x32xbf16>
    %c0_35 = arith.constant 0 : index
    %c0_36 = arith.constant 0 : index
    %c0_37 = arith.constant 0 : index
    %51 = vector.load %arg6[%c0_35, %c0_36, %c0_37] : memref<1x2x32xbf16, #tpu.memory_space<vmem>>, vector<1x2x32xbf16>
    %52 = vector.shape_cast %51 : vector<1x2x32xbf16> to vector<2x32xbf16>
    %53 = vector.shape_cast %50 : vector<2x32xbf16> to vector<1x2x32xbf16>
    tpu.vector_store %arg6[%c0_35, %c0_36, %c0_37], %53 {strides = array<i32>} : memref<1x2x32xbf16, #tpu.memory_space<vmem>>, vector<1x2x32xbf16>,
    return
  }
  func.func @transform_0(%arg0: i32) -> (i32, i32, i32) {
    %c0_i32 = arith.constant 0 : i32
    %c0_i32_0 = arith.constant 0 : i32
    %c0_i32_1 = arith.constant 0 : i32
    return %arg0, %c0_i32, %c0_i32_0 : i32, i32, i32
  }
  func.func @transform_1(%arg0: i32) -> (i32, i32, i32) {
    %c0_i32 = arith.constant 0 : i32
    %c0_i32_0 = arith.constant 0 : i32
    %c0_i32_1 = arith.constant 0 : i32
    %c0_i32_2 = arith.constant 0 : i32
    return %c0_i32, %c0_i32_0, %c0_i32_1 : i32, i32, i32
  }
  func.func @transform_2(%arg0: i32) -> (i32, i32) {
    %c0_i32 = arith.constant 0 : i32
    %c0_i32_0 = arith.constant 0 : i32
    %c0_i32_1 = arith.constant 0 : i32
    return %c0_i32, %c0_i32_0 : i32, i32
  }
  func.func @transform_3(%arg0: i32) -> (i32, i32, i32) {
    %c0_i32 = arith.constant 0 : i32
    %c0_i32_0 = arith.constant 0 : i32
    %c0_i32_1 = arith.constant 0 : i32
    %c0_i32_2 = arith.constant 0 : i32
    return %c0_i32, %c0_i32_0, %c0_i32_1 : i32, i32, i32
  }
  func.func @transform_4(%arg0: i32) -> (i32, i32) {
    %c0_i32 = arith.constant 0 : i32
    %c0_i32_0 = arith.constant 0 : i32
    %c0_i32_1 = arith.constant 0 : i32
    return %c0_i32, %c0_i32_0 : i32, i32
  }
  func.func @transform_5(%arg0: i32) -> (i32, i32, i32) {
    %c0_i32 = arith.constant 0 : i32
    %c0_i32_0 = arith.constant 0 : i32
    %c0_i32_1 = arith.constant 0 : i32
    return %arg0, %c0_i32, %c0_i32_0 : i32, i32, i32
  }
}

module attributes {stable_mosaic.version = 11 : i64} {
  func.func @_conv_taps_kernel(%arg0: i32, %arg1: memref<1x56x96xbf16, #tpu.memory_space<vmem>>, %arg2: memref<9x96x32xbf16, #tpu.memory_space<vmem>>, %arg3: memref<1x32xf32, #tpu.memory_space<vmem>>, %arg4: memref<1x40x32xbf16, #tpu.memory_space<vmem>>) attributes {dimension_semantics = [#tpu.dimension_semantics<parallel>], iteration_bounds = array<i64: 2>, scalar_prefetch = 0 : i64, scratch_operands = 0 : i64, tpu.core_type = #tpu.core_type<tc>, window_params = [{transform_indices = @transform_0, window_bounds = array<i64: 1, 56, 96>}, {pipeline_mode = #tpu.pipeline_mode<synchronous>, transform_indices = @transform_1, window_bounds = array<i64: 9, 96, 32>}, {pipeline_mode = #tpu.pipeline_mode<synchronous>, transform_indices = @transform_2, window_bounds = array<i64: 1, 32>}, {transform_indices = @transform_3, window_bounds = array<i64: 1, 40, 32>}]} {
    %c0 = arith.constant 0 : index
    %c0_0 = arith.constant 0 : index
    %c0_1 = arith.constant 0 : index
    %0 = vector.load %arg1[%c0, %c0_0, %c0_1] : memref<1x56x96xbf16, #tpu.memory_space<vmem>>, vector<1x40x96xbf16>
    %1 = vector.shape_cast %0 : vector<1x40x96xbf16> to vector<40x96xbf16>
    %c0_2 = arith.constant 0 : index
    %c0_3 = arith.constant 0 : index
    %c0_4 = arith.constant 0 : index
    %2 = vector.load %arg2[%c0_2, %c0_3, %c0_4] : memref<9x96x32xbf16, #tpu.memory_space<vmem>>, vector<1x96x32xbf16>
    %3 = vector.shape_cast %2 : vector<1x96x32xbf16> to vector<96x32xbf16>
    %cst = arith.constant dense<0.000000e+00> : vector<40x32xf32>
    %4 = tpu.matmul %1, %3, %cst {dimension_numbers = #tpu.dot_dimension_numbers<[1], [0], [0], [1], [0, 0, 1, 1], [], []>} : vector<40x96xbf16>, vector<96x32xbf16>, vector<40x32xf32> -> vector<40x32xf32>
    %c0_5 = arith.constant 0 : index
    %c1 = arith.constant 1 : index
    %c0_6 = arith.constant 0 : index
    %5 = vector.load %arg1[%c0_5, %c1, %c0_6] : memref<1x56x96xbf16, #tpu.memory_space<vmem>>, vector<1x40x96xbf16>
    %6 = vector.shape_cast %5 : vector<1x40x96xbf16> to vector<40x96xbf16>
    %c1_7 = arith.constant 1 : index
    %c0_8 = arith.constant 0 : index
    %c0_9 = arith.constant 0 : index
    %7 = vector.load %arg2[%c1_7, %c0_8, %c0_9] : memref<9x96x32xbf16, #tpu.memory_space<vmem>>, vector<1x96x32xbf16>
    %8 = vector.shape_cast %7 : vector<1x96x32xbf16> to vector<96x32xbf16>
    %cst_10 = arith.constant dense<0.000000e+00> : vector<40x32xf32>
    %9 = tpu.matmul %6, %8, %cst_10 {dimension_numbers = #tpu.dot_dimension_numbers<[1], [0], [0], [1], [0, 0, 1, 1], [], []>} : vector<40x96xbf16>, vector<96x32xbf16>, vector<40x32xf32> -> vector<40x32xf32>
    %10 = arith.addf %4, %9 : vector<40x32xf32>
    %c0_11 = arith.constant 0 : index
    %c2 = arith.constant 2 : index
    %c0_12 = arith.constant 0 : index
    %11 = vector.load %arg1[%c0_11, %c2, %c0_12] : memref<1x56x96xbf16, #tpu.memory_space<vmem>>, vector<1x40x96xbf16>
    %12 = vector.shape_cast %11 : vector<1x40x96xbf16> to vector<40x96xbf16>
    %c2_13 = arith.constant 2 : index
    %c0_14 = arith.constant 0 : index
    %c0_15 = arith.constant 0 : index
    %13 = vector.load %arg2[%c2_13, %c0_14, %c0_15] : memref<9x96x32xbf16, #tpu.memory_space<vmem>>, vector<1x96x32xbf16>
    %14 = vector.shape_cast %13 : vector<1x96x32xbf16> to vector<96x32xbf16>
    %cst_16 = arith.constant dense<0.000000e+00> : vector<40x32xf32>
    %15 = tpu.matmul %12, %14, %cst_16 {dimension_numbers = #tpu.dot_dimension_numbers<[1], [0], [0], [1], [0, 0, 1, 1], [], []>} : vector<40x96xbf16>, vector<96x32xbf16>, vector<40x32xf32> -> vector<40x32xf32>
    %16 = arith.addf %10, %15 : vector<40x32xf32>
    %c0_17 = arith.constant 0 : index
    %c4 = arith.constant 4 : index
    %c0_18 = arith.constant 0 : index
    %17 = vector.load %arg1[%c0_17, %c4, %c0_18] : memref<1x56x96xbf16, #tpu.memory_space<vmem>>, vector<1x40x96xbf16>
    %18 = vector.shape_cast %17 : vector<1x40x96xbf16> to vector<40x96xbf16>
    %c3 = arith.constant 3 : index
    %c0_19 = arith.constant 0 : index
    %c0_20 = arith.constant 0 : index
    %19 = vector.load %arg2[%c3, %c0_19, %c0_20] : memref<9x96x32xbf16, #tpu.memory_space<vmem>>, vector<1x96x32xbf16>
    %20 = vector.shape_cast %19 : vector<1x96x32xbf16> to vector<96x32xbf16>
    %cst_21 = arith.constant dense<0.000000e+00> : vector<40x32xf32>
    %21 = tpu.matmul %18, %20, %cst_21 {dimension_numbers = #tpu.dot_dimension_numbers<[1], [0], [0], [1], [0, 0, 1, 1], [], []>} : vector<40x96xbf16>, vector<96x32xbf16>, vector<40x32xf32> -> vector<40x32xf32>
    %22 = arith.addf %16, %21 : vector<40x32xf32>
    %c0_22 = arith.constant 0 : index
    %c5 = arith.constant 5 : index
    %c0_23 = arith.constant 0 : index
    %23 = vector.load %arg1[%c0_22, %c5, %c0_23] : memref<1x56x96xbf16, #tpu.memory_space<vmem>>, vector<1x40x96xbf16>
    %24 = vector.shape_cast %23 : vector<1x40x96xbf16> to vector<40x96xbf16>
    %c4_24 = arith.constant 4 : index
    %c0_25 = arith.constant 0 : index
    %c0_26 = arith.constant 0 : index
    %25 = vector.load %arg2[%c4_24, %c0_25, %c0_26] : memref<9x96x32xbf16, #tpu.memory_space<vmem>>, vector<1x96x32xbf16>
    %26 = vector.shape_cast %25 : vector<1x96x32xbf16> to vector<96x32xbf16>
    %cst_27 = arith.constant dense<0.000000e+00> : vector<40x32xf32>
    %27 = tpu.matmul %24, %26, %cst_27 {dimension_numbers = #tpu.dot_dimension_numbers<[1], [0], [0], [1], [0, 0, 1, 1], [], []>} : vector<40x96xbf16>, vector<96x32xbf16>, vector<40x32xf32> -> vector<40x32xf32>
    %28 = arith.addf %22, %27 : vector<40x32xf32>
    %c0_28 = arith.constant 0 : index
    %c6 = arith.constant 6 : index
    %c0_29 = arith.constant 0 : index
    %29 = vector.load %arg1[%c0_28, %c6, %c0_29] : memref<1x56x96xbf16, #tpu.memory_space<vmem>>, vector<1x40x96xbf16>
    %30 = vector.shape_cast %29 : vector<1x40x96xbf16> to vector<40x96xbf16>
    %c5_30 = arith.constant 5 : index
    %c0_31 = arith.constant 0 : index
    %c0_32 = arith.constant 0 : index
    %31 = vector.load %arg2[%c5_30, %c0_31, %c0_32] : memref<9x96x32xbf16, #tpu.memory_space<vmem>>, vector<1x96x32xbf16>
    %32 = vector.shape_cast %31 : vector<1x96x32xbf16> to vector<96x32xbf16>
    %cst_33 = arith.constant dense<0.000000e+00> : vector<40x32xf32>
    %33 = tpu.matmul %30, %32, %cst_33 {dimension_numbers = #tpu.dot_dimension_numbers<[1], [0], [0], [1], [0, 0, 1, 1], [], []>} : vector<40x96xbf16>, vector<96x32xbf16>, vector<40x32xf32> -> vector<40x32xf32>
    %34 = arith.addf %28, %33 : vector<40x32xf32>
    %c0_34 = arith.constant 0 : index
    %c8 = arith.constant 8 : index
    %c0_35 = arith.constant 0 : index
    %35 = vector.load %arg1[%c0_34, %c8, %c0_35] : memref<1x56x96xbf16, #tpu.memory_space<vmem>>, vector<1x40x96xbf16>
    %36 = vector.shape_cast %35 : vector<1x40x96xbf16> to vector<40x96xbf16>
    %c6_36 = arith.constant 6 : index
    %c0_37 = arith.constant 0 : index
    %c0_38 = arith.constant 0 : index
    %37 = vector.load %arg2[%c6_36, %c0_37, %c0_38] : memref<9x96x32xbf16, #tpu.memory_space<vmem>>, vector<1x96x32xbf16>
    %38 = vector.shape_cast %37 : vector<1x96x32xbf16> to vector<96x32xbf16>
    %cst_39 = arith.constant dense<0.000000e+00> : vector<40x32xf32>
    %39 = tpu.matmul %36, %38, %cst_39 {dimension_numbers = #tpu.dot_dimension_numbers<[1], [0], [0], [1], [0, 0, 1, 1], [], []>} : vector<40x96xbf16>, vector<96x32xbf16>, vector<40x32xf32> -> vector<40x32xf32>
    %40 = arith.addf %34, %39 : vector<40x32xf32>
    %c0_40 = arith.constant 0 : index
    %c9 = arith.constant 9 : index
    %c0_41 = arith.constant 0 : index
    %41 = vector.load %arg1[%c0_40, %c9, %c0_41] : memref<1x56x96xbf16, #tpu.memory_space<vmem>>, vector<1x40x96xbf16>
    %42 = vector.shape_cast %41 : vector<1x40x96xbf16> to vector<40x96xbf16>
    %c7 = arith.constant 7 : index
    %c0_42 = arith.constant 0 : index
    %c0_43 = arith.constant 0 : index
    %43 = vector.load %arg2[%c7, %c0_42, %c0_43] : memref<9x96x32xbf16, #tpu.memory_space<vmem>>, vector<1x96x32xbf16>
    %44 = vector.shape_cast %43 : vector<1x96x32xbf16> to vector<96x32xbf16>
    %cst_44 = arith.constant dense<0.000000e+00> : vector<40x32xf32>
    %45 = tpu.matmul %42, %44, %cst_44 {dimension_numbers = #tpu.dot_dimension_numbers<[1], [0], [0], [1], [0, 0, 1, 1], [], []>} : vector<40x96xbf16>, vector<96x32xbf16>, vector<40x32xf32> -> vector<40x32xf32>
    %46 = arith.addf %40, %45 : vector<40x32xf32>
    %c0_45 = arith.constant 0 : index
    %c10 = arith.constant 10 : index
    %c0_46 = arith.constant 0 : index
    %47 = vector.load %arg1[%c0_45, %c10, %c0_46] : memref<1x56x96xbf16, #tpu.memory_space<vmem>>, vector<1x40x96xbf16>
    %48 = vector.shape_cast %47 : vector<1x40x96xbf16> to vector<40x96xbf16>
    %c8_47 = arith.constant 8 : index
    %c0_48 = arith.constant 0 : index
    %c0_49 = arith.constant 0 : index
    %49 = vector.load %arg2[%c8_47, %c0_48, %c0_49] : memref<9x96x32xbf16, #tpu.memory_space<vmem>>, vector<1x96x32xbf16>
    %50 = vector.shape_cast %49 : vector<1x96x32xbf16> to vector<96x32xbf16>
    %cst_50 = arith.constant dense<0.000000e+00> : vector<40x32xf32>
    %51 = tpu.matmul %48, %50, %cst_50 {dimension_numbers = #tpu.dot_dimension_numbers<[1], [0], [0], [1], [0, 0, 1, 1], [], []>} : vector<40x96xbf16>, vector<96x32xbf16>, vector<40x32xf32> -> vector<40x32xf32>
    %52 = arith.addf %46, %51 : vector<40x32xf32>
    %c0_51 = arith.constant 0 : index
    %c0_52 = arith.constant 0 : index
    %53 = vector.load %arg3[%c0_51, %c0_52] : memref<1x32xf32, #tpu.memory_space<vmem>>, vector<1x32xf32>
    %54 = vector.broadcast %53 : vector<1x32xf32> to vector<40x32xf32>
    %55 = arith.addf %52, %54 : vector<40x32xf32>
    %cst_53 = arith.constant 0.000000e+00 : f32
    %56 = vector.broadcast %cst_53 : f32 to vector<40x32xf32>
    %57 = arith.maximumf %55, %56 : vector<40x32xf32>
    %58 = arith.truncf %57 : vector<40x32xf32> to vector<40x32xbf16>
    %c0_54 = arith.constant 0 : index
    %c0_55 = arith.constant 0 : index
    %c0_56 = arith.constant 0 : index
    %59 = vector.load %arg4[%c0_54, %c0_55, %c0_56] : memref<1x40x32xbf16, #tpu.memory_space<vmem>>, vector<1x40x32xbf16>
    %60 = vector.shape_cast %59 : vector<1x40x32xbf16> to vector<40x32xbf16>
    %61 = vector.shape_cast %58 : vector<40x32xbf16> to vector<1x40x32xbf16>
    tpu.vector_store %arg4[%c0_54, %c0_55, %c0_56], %61 {strides = array<i32>} : memref<1x40x32xbf16, #tpu.memory_space<vmem>>, vector<1x40x32xbf16>,
    return
  }
  func.func @transform_0(%arg0: i32) -> (i32, i32, i32) {
    %c0_i32 = arith.constant 0 : i32
    %c0_i32_0 = arith.constant 0 : i32
    %c0_i32_1 = arith.constant 0 : i32
    return %arg0, %c0_i32, %c0_i32_0 : i32, i32, i32
  }
  func.func @transform_1(%arg0: i32) -> (i32, i32, i32) {
    %c0_i32 = arith.constant 0 : i32
    %c0_i32_0 = arith.constant 0 : i32
    %c0_i32_1 = arith.constant 0 : i32
    %c0_i32_2 = arith.constant 0 : i32
    return %c0_i32, %c0_i32_0, %c0_i32_1 : i32, i32, i32
  }
  func.func @transform_2(%arg0: i32) -> (i32, i32) {
    %c0_i32 = arith.constant 0 : i32
    %c0_i32_0 = arith.constant 0 : i32
    %c0_i32_1 = arith.constant 0 : i32
    return %c0_i32, %c0_i32_0 : i32, i32
  }
  func.func @transform_3(%arg0: i32) -> (i32, i32, i32) {
    %c0_i32 = arith.constant 0 : i32
    %c0_i32_0 = arith.constant 0 : i32
    %c0_i32_1 = arith.constant 0 : i32
    return %arg0, %c0_i32, %c0_i32_0 : i32, i32, i32
  }
}

module attributes {stable_mosaic.version = 11 : i64} {
  func.func @_conv_taps_kernel(%arg0: i32, %arg1: memref<1x56x32xbf16, #tpu.memory_space<vmem>>, %arg2: memref<9x32x32xbf16, #tpu.memory_space<vmem>>, %arg3: memref<1x32xf32, #tpu.memory_space<vmem>>, %arg4: memref<1x40x32xbf16, #tpu.memory_space<vmem>>) attributes {dimension_semantics = [#tpu.dimension_semantics<parallel>], iteration_bounds = array<i64: 2>, scalar_prefetch = 0 : i64, scratch_operands = 0 : i64, tpu.core_type = #tpu.core_type<tc>, window_params = [{transform_indices = @transform_0, window_bounds = array<i64: 1, 56, 32>}, {pipeline_mode = #tpu.pipeline_mode<synchronous>, transform_indices = @transform_1, window_bounds = array<i64: 9, 32, 32>}, {pipeline_mode = #tpu.pipeline_mode<synchronous>, transform_indices = @transform_2, window_bounds = array<i64: 1, 32>}, {transform_indices = @transform_3, window_bounds = array<i64: 1, 40, 32>}]} {
    %c0 = arith.constant 0 : index
    %c0_0 = arith.constant 0 : index
    %c0_1 = arith.constant 0 : index
    %0 = vector.load %arg1[%c0, %c0_0, %c0_1] : memref<1x56x32xbf16, #tpu.memory_space<vmem>>, vector<1x40x32xbf16>
    %1 = vector.shape_cast %0 : vector<1x40x32xbf16> to vector<40x32xbf16>
    %c0_2 = arith.constant 0 : index
    %c0_3 = arith.constant 0 : index
    %c0_4 = arith.constant 0 : index
    %2 = vector.load %arg2[%c0_2, %c0_3, %c0_4] : memref<9x32x32xbf16, #tpu.memory_space<vmem>>, vector<1x32x32xbf16>
    %3 = vector.shape_cast %2 : vector<1x32x32xbf16> to vector<32x32xbf16>
    %cst = arith.constant dense<0.000000e+00> : vector<40x32xf32>
    %4 = tpu.matmul %1, %3, %cst {dimension_numbers = #tpu.dot_dimension_numbers<[1], [0], [0], [1], [0, 0, 1, 1], [], []>} : vector<40x32xbf16>, vector<32x32xbf16>, vector<40x32xf32> -> vector<40x32xf32>
    %c0_5 = arith.constant 0 : index
    %c1 = arith.constant 1 : index
    %c0_6 = arith.constant 0 : index
    %5 = vector.load %arg1[%c0_5, %c1, %c0_6] : memref<1x56x32xbf16, #tpu.memory_space<vmem>>, vector<1x40x32xbf16>
    %6 = vector.shape_cast %5 : vector<1x40x32xbf16> to vector<40x32xbf16>
    %c1_7 = arith.constant 1 : index
    %c0_8 = arith.constant 0 : index
    %c0_9 = arith.constant 0 : index
    %7 = vector.load %arg2[%c1_7, %c0_8, %c0_9] : memref<9x32x32xbf16, #tpu.memory_space<vmem>>, vector<1x32x32xbf16>
    %8 = vector.shape_cast %7 : vector<1x32x32xbf16> to vector<32x32xbf16>
    %cst_10 = arith.constant dense<0.000000e+00> : vector<40x32xf32>
    %9 = tpu.matmul %6, %8, %cst_10 {dimension_numbers = #tpu.dot_dimension_numbers<[1], [0], [0], [1], [0, 0, 1, 1], [], []>} : vector<40x32xbf16>, vector<32x32xbf16>, vector<40x32xf32> -> vector<40x32xf32>
    %10 = arith.addf %4, %9 : vector<40x32xf32>
    %c0_11 = arith.constant 0 : index
    %c2 = arith.constant 2 : index
    %c0_12 = arith.constant 0 : index
    %11 = vector.load %arg1[%c0_11, %c2, %c0_12] : memref<1x56x32xbf16, #tpu.memory_space<vmem>>, vector<1x40x32xbf16>
    %12 = vector.shape_cast %11 : vector<1x40x32xbf16> to vector<40x32xbf16>
    %c2_13 = arith.constant 2 : index
    %c0_14 = arith.constant 0 : index
    %c0_15 = arith.constant 0 : index
    %13 = vector.load %arg2[%c2_13, %c0_14, %c0_15] : memref<9x32x32xbf16, #tpu.memory_space<vmem>>, vector<1x32x32xbf16>
    %14 = vector.shape_cast %13 : vector<1x32x32xbf16> to vector<32x32xbf16>
    %cst_16 = arith.constant dense<0.000000e+00> : vector<40x32xf32>
    %15 = tpu.matmul %12, %14, %cst_16 {dimension_numbers = #tpu.dot_dimension_numbers<[1], [0], [0], [1], [0, 0, 1, 1], [], []>} : vector<40x32xbf16>, vector<32x32xbf16>, vector<40x32xf32> -> vector<40x32xf32>
    %16 = arith.addf %10, %15 : vector<40x32xf32>
    %c0_17 = arith.constant 0 : index
    %c4 = arith.constant 4 : index
    %c0_18 = arith.constant 0 : index
    %17 = vector.load %arg1[%c0_17, %c4, %c0_18] : memref<1x56x32xbf16, #tpu.memory_space<vmem>>, vector<1x40x32xbf16>
    %18 = vector.shape_cast %17 : vector<1x40x32xbf16> to vector<40x32xbf16>
    %c3 = arith.constant 3 : index
    %c0_19 = arith.constant 0 : index
    %c0_20 = arith.constant 0 : index
    %19 = vector.load %arg2[%c3, %c0_19, %c0_20] : memref<9x32x32xbf16, #tpu.memory_space<vmem>>, vector<1x32x32xbf16>
    %20 = vector.shape_cast %19 : vector<1x32x32xbf16> to vector<32x32xbf16>
    %cst_21 = arith.constant dense<0.000000e+00> : vector<40x32xf32>
    %21 = tpu.matmul %18, %20, %cst_21 {dimension_numbers = #tpu.dot_dimension_numbers<[1], [0], [0], [1], [0, 0, 1, 1], [], []>} : vector<40x32xbf16>, vector<32x32xbf16>, vector<40x32xf32> -> vector<40x32xf32>
    %22 = arith.addf %16, %21 : vector<40x32xf32>
    %c0_22 = arith.constant 0 : index
    %c5 = arith.constant 5 : index
    %c0_23 = arith.constant 0 : index
    %23 = vector.load %arg1[%c0_22, %c5, %c0_23] : memref<1x56x32xbf16, #tpu.memory_space<vmem>>, vector<1x40x32xbf16>
    %24 = vector.shape_cast %23 : vector<1x40x32xbf16> to vector<40x32xbf16>
    %c4_24 = arith.constant 4 : index
    %c0_25 = arith.constant 0 : index
    %c0_26 = arith.constant 0 : index
    %25 = vector.load %arg2[%c4_24, %c0_25, %c0_26] : memref<9x32x32xbf16, #tpu.memory_space<vmem>>, vector<1x32x32xbf16>
    %26 = vector.shape_cast %25 : vector<1x32x32xbf16> to vector<32x32xbf16>
    %cst_27 = arith.constant dense<0.000000e+00> : vector<40x32xf32>
    %27 = tpu.matmul %24, %26, %cst_27 {dimension_numbers = #tpu.dot_dimension_numbers<[1], [0], [0], [1], [0, 0, 1, 1], [], []>} : vector<40x32xbf16>, vector<32x32xbf16>, vector<40x32xf32> -> vector<40x32xf32>
    %28 = arith.addf %22, %27 : vector<40x32xf32>
    %c0_28 = arith.constant 0 : index
    %c6 = arith.constant 6 : index
    %c0_29 = arith.constant 0 : index
    %29 = vector.load %arg1[%c0_28, %c6, %c0_29] : memref<1x56x32xbf16, #tpu.memory_space<vmem>>, vector<1x40x32xbf16>
    %30 = vector.shape_cast %29 : vector<1x40x32xbf16> to vector<40x32xbf16>
    %c5_30 = arith.constant 5 : index
    %c0_31 = arith.constant 0 : index
    %c0_32 = arith.constant 0 : index
    %31 = vector.load %arg2[%c5_30, %c0_31, %c0_32] : memref<9x32x32xbf16, #tpu.memory_space<vmem>>, vector<1x32x32xbf16>
    %32 = vector.shape_cast %31 : vector<1x32x32xbf16> to vector<32x32xbf16>
    %cst_33 = arith.constant dense<0.000000e+00> : vector<40x32xf32>
    %33 = tpu.matmul %30, %32, %cst_33 {dimension_numbers = #tpu.dot_dimension_numbers<[1], [0], [0], [1], [0, 0, 1, 1], [], []>} : vector<40x32xbf16>, vector<32x32xbf16>, vector<40x32xf32> -> vector<40x32xf32>
    %34 = arith.addf %28, %33 : vector<40x32xf32>
    %c0_34 = arith.constant 0 : index
    %c8 = arith.constant 8 : index
    %c0_35 = arith.constant 0 : index
    %35 = vector.load %arg1[%c0_34, %c8, %c0_35] : memref<1x56x32xbf16, #tpu.memory_space<vmem>>, vector<1x40x32xbf16>
    %36 = vector.shape_cast %35 : vector<1x40x32xbf16> to vector<40x32xbf16>
    %c6_36 = arith.constant 6 : index
    %c0_37 = arith.constant 0 : index
    %c0_38 = arith.constant 0 : index
    %37 = vector.load %arg2[%c6_36, %c0_37, %c0_38] : memref<9x32x32xbf16, #tpu.memory_space<vmem>>, vector<1x32x32xbf16>
    %38 = vector.shape_cast %37 : vector<1x32x32xbf16> to vector<32x32xbf16>
    %cst_39 = arith.constant dense<0.000000e+00> : vector<40x32xf32>
    %39 = tpu.matmul %36, %38, %cst_39 {dimension_numbers = #tpu.dot_dimension_numbers<[1], [0], [0], [1], [0, 0, 1, 1], [], []>} : vector<40x32xbf16>, vector<32x32xbf16>, vector<40x32xf32> -> vector<40x32xf32>
    %40 = arith.addf %34, %39 : vector<40x32xf32>
    %c0_40 = arith.constant 0 : index
    %c9 = arith.constant 9 : index
    %c0_41 = arith.constant 0 : index
    %41 = vector.load %arg1[%c0_40, %c9, %c0_41] : memref<1x56x32xbf16, #tpu.memory_space<vmem>>, vector<1x40x32xbf16>
    %42 = vector.shape_cast %41 : vector<1x40x32xbf16> to vector<40x32xbf16>
    %c7 = arith.constant 7 : index
    %c0_42 = arith.constant 0 : index
    %c0_43 = arith.constant 0 : index
    %43 = vector.load %arg2[%c7, %c0_42, %c0_43] : memref<9x32x32xbf16, #tpu.memory_space<vmem>>, vector<1x32x32xbf16>
    %44 = vector.shape_cast %43 : vector<1x32x32xbf16> to vector<32x32xbf16>
    %cst_44 = arith.constant dense<0.000000e+00> : vector<40x32xf32>
    %45 = tpu.matmul %42, %44, %cst_44 {dimension_numbers = #tpu.dot_dimension_numbers<[1], [0], [0], [1], [0, 0, 1, 1], [], []>} : vector<40x32xbf16>, vector<32x32xbf16>, vector<40x32xf32> -> vector<40x32xf32>
    %46 = arith.addf %40, %45 : vector<40x32xf32>
    %c0_45 = arith.constant 0 : index
    %c10 = arith.constant 10 : index
    %c0_46 = arith.constant 0 : index
    %47 = vector.load %arg1[%c0_45, %c10, %c0_46] : memref<1x56x32xbf16, #tpu.memory_space<vmem>>, vector<1x40x32xbf16>
    %48 = vector.shape_cast %47 : vector<1x40x32xbf16> to vector<40x32xbf16>
    %c8_47 = arith.constant 8 : index
    %c0_48 = arith.constant 0 : index
    %c0_49 = arith.constant 0 : index
    %49 = vector.load %arg2[%c8_47, %c0_48, %c0_49] : memref<9x32x32xbf16, #tpu.memory_space<vmem>>, vector<1x32x32xbf16>
    %50 = vector.shape_cast %49 : vector<1x32x32xbf16> to vector<32x32xbf16>
    %cst_50 = arith.constant dense<0.000000e+00> : vector<40x32xf32>
    %51 = tpu.matmul %48, %50, %cst_50 {dimension_numbers = #tpu.dot_dimension_numbers<[1], [0], [0], [1], [0, 0, 1, 1], [], []>} : vector<40x32xbf16>, vector<32x32xbf16>, vector<40x32xf32> -> vector<40x32xf32>
    %52 = arith.addf %46, %51 : vector<40x32xf32>
    %c0_51 = arith.constant 0 : index
    %c0_52 = arith.constant 0 : index
    %53 = vector.load %arg3[%c0_51, %c0_52] : memref<1x32xf32, #tpu.memory_space<vmem>>, vector<1x32xf32>
    %54 = vector.broadcast %53 : vector<1x32xf32> to vector<40x32xf32>
    %55 = arith.addf %52, %54 : vector<40x32xf32>
    %56 = arith.truncf %55 : vector<40x32xf32> to vector<40x32xbf16>
    %c0_53 = arith.constant 0 : index
    %c0_54 = arith.constant 0 : index
    %c0_55 = arith.constant 0 : index
    %57 = vector.load %arg4[%c0_53, %c0_54, %c0_55] : memref<1x40x32xbf16, #tpu.memory_space<vmem>>, vector<1x40x32xbf16>
    %58 = vector.shape_cast %57 : vector<1x40x32xbf16> to vector<40x32xbf16>
    %59 = vector.shape_cast %56 : vector<40x32xbf16> to vector<1x40x32xbf16>
    tpu.vector_store %arg4[%c0_53, %c0_54, %c0_55], %59 {strides = array<i32>} : memref<1x40x32xbf16, #tpu.memory_space<vmem>>, vector<1x40x32xbf16>,
    return
  }
  func.func @transform_0(%arg0: i32) -> (i32, i32, i32) {
    %c0_i32 = arith.constant 0 : i32
    %c0_i32_0 = arith.constant 0 : i32
    %c0_i32_1 = arith.constant 0 : i32
    return %arg0, %c0_i32, %c0_i32_0 : i32, i32, i32
  }
  func.func @transform_1(%arg0: i32) -> (i32, i32, i32) {
    %c0_i32 = arith.constant 0 : i32
    %c0_i32_0 = arith.constant 0 : i32
    %c0_i32_1 = arith.constant 0 : i32
    %c0_i32_2 = arith.constant 0 : i32
    return %c0_i32, %c0_i32_0, %c0_i32_1 : i32, i32, i32
  }
  func.func @transform_2(%arg0: i32) -> (i32, i32) {
    %c0_i32 = arith.constant 0 : i32
    %c0_i32_0 = arith.constant 0 : i32
    %c0_i32_1 = arith.constant 0 : i32
    return %c0_i32, %c0_i32_0 : i32, i32
  }
  func.func @transform_3(%arg0: i32) -> (i32, i32, i32) {
    %c0_i32 = arith.constant 0 : i32
    %c0_i32_0 = arith.constant 0 : i32
    %c0_i32_1 = arith.constant 0 : i32
    return %arg0, %c0_i32, %c0_i32_0 : i32, i32, i32
  }
}

module attributes {stable_mosaic.version = 11 : i64} {
  func.func @_mm_kernel(%arg0: i32, %arg1: memref<24x32xbf16, #tpu.memory_space<vmem>>, %arg2: memref<32x128xbf16, #tpu.memory_space<vmem>>, %arg3: memref<1x128xf32, #tpu.memory_space<vmem>>, %arg4: memref<24x128xf32, #tpu.memory_space<vmem>>) attributes {dimension_semantics = [#tpu.dimension_semantics<parallel>], iteration_bounds = array<i64: 2>, scalar_prefetch = 0 : i64, scratch_operands = 0 : i64, tpu.core_type = #tpu.core_type<tc>, window_params = [{transform_indices = @transform_0, window_bounds = array<i64: 24, 32>}, {pipeline_mode = #tpu.pipeline_mode<synchronous>, transform_indices = @transform_1, window_bounds = array<i64: 32, 128>}, {pipeline_mode = #tpu.pipeline_mode<synchronous>, transform_indices = @transform_2, window_bounds = array<i64: 1, 128>}, {transform_indices = @transform_3, window_bounds = array<i64: 24, 128>}]} {
    %c0 = arith.constant 0 : index
    %c0_0 = arith.constant 0 : index
    %0 = vector.load %arg1[%c0, %c0_0] : memref<24x32xbf16, #tpu.memory_space<vmem>>, vector<24x32xbf16>
    %c0_1 = arith.constant 0 : index
    %c0_2 = arith.constant 0 : index
    %1 = vector.load %arg2[%c0_1, %c0_2] : memref<32x128xbf16, #tpu.memory_space<vmem>>, vector<32x128xbf16>
    %cst = arith.constant dense<0.000000e+00> : vector<24x128xf32>
    %2 = tpu.matmul %0, %1, %cst {dimension_numbers = #tpu.dot_dimension_numbers<[1], [0], [0], [1], [0, 0, 1, 1], [], []>} : vector<24x32xbf16>, vector<32x128xbf16>, vector<24x128xf32> -> vector<24x128xf32>
    %c0_3 = arith.constant 0 : index
    %c0_4 = arith.constant 0 : index
    %3 = vector.load %arg3[%c0_3, %c0_4] : memref<1x128xf32, #tpu.memory_space<vmem>>, vector<1x128xf32>
    %4 = vector.broadcast %3 : vector<1x128xf32> to vector<24x128xf32>
    %5 = arith.addf %2, %4 : vector<24x128xf32>
    %c0_5 = arith.constant 0 : index
    %c0_6 = arith.constant 0 : index
    %6 = vector.load %arg4[%c0_5, %c0_6] : memref<24x128xf32, #tpu.memory_space<vmem>>, vector<24x128xf32>
    tpu.vector_store %arg4[%c0_5, %c0_6], %5 {strides = array<i32>} : memref<24x128xf32, #tpu.memory_space<vmem>>, vector<24x128xf32>,
    return
  }
  func.func @transform_0(%arg0: i32) -> (i32, i32) {
    %c0_i32 = arith.constant 0 : i32
    %c0_i32_0 = arith.constant 0 : i32
    return %arg0, %c0_i32 : i32, i32
  }
  func.func @transform_1(%arg0: i32) -> (i32, i32) {
    %c0_i32 = arith.constant 0 : i32
    %c0_i32_0 = arith.constant 0 : i32
    %c0_i32_1 = arith.constant 0 : i32
    return %c0_i32, %c0_i32_0 : i32, i32
  }
  func.func @transform_2(%arg0: i32) -> (i32, i32) {
    %c0_i32 = arith.constant 0 : i32
    %c0_i32_0 = arith.constant 0 : i32
    %c0_i32_1 = arith.constant 0 : i32
    return %c0_i32, %c0_i32_0 : i32, i32
  }
  func.func @transform_3(%arg0: i32) -> (i32, i32) {
    %c0_i32 = arith.constant 0 : i32
    %c0_i32_0 = arith.constant 0 : i32
    return %arg0, %c0_i32 : i32, i32
  }
}

module attributes {stable_mosaic.version = 11 : i64} {
  func.func @_coupling_kernel(%arg0: i32, %arg1: memref<2x80x16xf32, #tpu.memory_space<vmem>>, %arg2: memref<2x80x16xf32, #tpu.memory_space<vmem>>, %arg3: memref<2x80x16xf32, #tpu.memory_space<vmem>>, %arg4: memref<2x1x16xf32, #tpu.memory_space<vmem>>, %arg5: memref<2x80x16xf32, #tpu.memory_space<vmem>>, %arg6: memref<2x1xf32, #tpu.memory_space<vmem>>) attributes {dimension_semantics = [#tpu.dimension_semantics<arbitrary>], iteration_bounds = array<i64: 1>, scalar_prefetch = 0 : i64, scratch_operands = 0 : i64, tpu.core_type = #tpu.core_type<tc>, window_params = [{transform_indices = @transform_0, window_bounds = array<i64: 2, 80, 16>}, {transform_indices = @transform_1, window_bounds = array<i64: 2, 80, 16>}, {transform_indices = @transform_2, window_bounds = array<i64: 2, 80, 16>}, {transform_indices = @transform_3, window_bounds = array<i64: 2, 1, 16>}, {transform_indices = @transform_4, window_bounds = array<i64: 2, 80, 16>}, {pipeline_mode = #tpu.pipeline_mode<synchronous>, transform_indices = @transform_5, window_bounds = array<i64: 2, 1>}]} {
    %c0_i32 = arith.constant 0 : i32
    %0 = arith.cmpi eq, %arg0, %c0_i32 : i32
    %1 = arith.extui %0 : i1 to i32
    %c0_i32_0 = arith.constant 0 : i32
    %2 = arith.cmpi ne, %1, %c0_i32_0 : i32
    scf.if %2 {
      %cst_22 = arith.constant 0.000000e+00 : f32
      %31 = vector.broadcast %cst_22 : f32 to vector<2x1xf32>
      %c0_23 = arith.constant 0 : index
      %c0_24 = arith.constant 0 : index
      %32 = vector.load %arg6[%c0_23, %c0_24] : memref<2x1xf32, #tpu.memory_space<vmem>>, vector<2x1xf32>
      tpu.vector_store %arg6[%c0_23, %c0_24], %31 {strides = array<i32>} : memref<2x1xf32, #tpu.memory_space<vmem>>, vector<2x1xf32>,
    } else {
    }
    %c0 = arith.constant 0 : index
    %c0_1 = arith.constant 0 : index
    %c0_2 = arith.constant 0 : index
    %3 = vector.load %arg1[%c0, %c0_1, %c0_2] : memref<2x80x16xf32, #tpu.memory_space<vmem>>, vector<2x80x16xf32>
    %c0_3 = arith.constant 0 : index
    %c0_4 = arith.constant 0 : index
    %c0_5 = arith.constant 0 : index
    %4 = vector.load %arg2[%c0_3, %c0_4, %c0_5] : memref<2x80x16xf32, #tpu.memory_space<vmem>>, vector<2x80x16xf32>
    %c0_6 = arith.constant 0 : index
    %c0_7 = arith.constant 0 : index
    %c0_8 = arith.constant 0 : index
    %5 = vector.load %arg3[%c0_6, %c0_7, %c0_8] : memref<2x80x16xf32, #tpu.memory_space<vmem>>, vector<2x80x16xf32>
    %c0_9 = arith.constant 0 : index
    %c0_10 = arith.constant 0 : index
    %c0_11 = arith.constant 0 : index
    %6 = vector.load %arg4[%c0_9, %c0_10, %c0_11] : memref<2x1x16xf32, #tpu.memory_space<vmem>>, vector<2x1x16xf32>
    %7 = tpu.iota {dimensions = array<i32: 2>} : vector<1x1x16xi32>
    %c16_i32 = arith.constant 16 : i32
    %8 = arith.muli %arg0, %c16_i32 : i32
    %9 = vector.broadcast %8 : i32 to vector<1x1x16xi32>
    %10 = arith.addi %7, %9 : vector<1x1x16xi32>
    %c16_i32_12 = arith.constant 16 : i32
    %11 = vector.broadcast %c16_i32_12 : i32 to vector<1x1x16xi32>
    %12 = arith.cmpi slt, %10, %11 : vector<1x1x16xi32>
    %13 = math.exp %5 : vector<2x80x16xf32>
    %14 = arith.mulf %13, %3 : vector<2x80x16xf32>
    %15 = arith.addf %4, %14 : vector<2x80x16xf32>
    %16 = vector.broadcast %6 : vector<2x1x16xf32> to vector<2x80x16xf32>
    %17 = arith.mulf %15, %16 : vector<2x80x16xf32>
    %18 = vector.broadcast %6 : vector<2x1x16xf32> to vector<2x80x16xf32>
    %19 = arith.mulf %5, %18 : vector<2x80x16xf32>
    %cst = arith.constant 0.000000e+00 : f32
    %20 = vector.shape_cast %12 : vector<1x1x16xi1> to vector<1x1x16xi1>
    %21 = vector.broadcast %20 : vector<1x1x16xi1> to vector<2x80x16xi1>
    %22 = vector.broadcast %cst : f32 to vector<2x80x16xf32>
    %23 = arith.select %21, %19, %22 : vector<2x80x16xi1>, vector<2x80x16xf32>
    %c0_13 = arith.constant 0 : index
    %c0_14 = arith.constant 0 : index
    %c0_15 = arith.constant 0 : index
    %24 = vector.load %arg5[%c0_13, %c0_14, %c0_15] : memref<2x80x16xf32, #tpu.memory_space<vmem>>, vector<2x80x16xf32>
    tpu.vector_store %arg5[%c0_13, %c0_14, %c0_15], %17 {strides = array<i32>} : memref<2x80x16xf32, #tpu.memory_space<vmem>>, vector<2x80x16xf32>,
    %cst_16 = arith.constant dense<0.000000e+00> : vector<2x80xf32>
    %25 = vector.multi_reduction <add>, %23, %cst_16 [2] : vector<2x80x16xf32> to vector<2x80xf32>
    %c0_17 = arith.constant 0 : index
    %c0_18 = arith.constant 0 : index
    %26 = vector.load %arg6[%c0_17, %c0_18] : memref<2x1xf32, #tpu.memory_space<vmem>>, vector<2x1xf32>
    %cst_19 = arith.constant dense<0.000000e+00> : vector<2xf32>
    %27 = vector.multi_reduction <add>, %25, %cst_19 [1] : vector<2x80xf32> to vector<2xf32>
    %28 = vector.shape_cast %27 : vector<2xf32> to vector<2x1xf32>
    %29 = arith.addf %26, %28 : vector<2x1xf32>
    %c0_20 = arith.constant 0 : index
    %c0_21 = arith.constant 0 : index
    %30 = vector.load %arg6[%c0_20, %c0_21] : memref<2x1xf32, #tpu.memory_space<vmem>>, vector<2x1xf32>
    tpu.vector_store %arg6[%c0_20, %c0_21], %29 {strides = array<i32>} : memref<2x1xf32, #tpu.memory_space<vmem>>, vector<2x1xf32>,
    return
  }
  func.func @transform_0(%arg0: i32) -> (i32, i32, i32) {
    %c0_i32 = arith.constant 0 : i32
    %c0_i32_0 = arith.constant 0 : i32
    %c0_i32_1 = arith.constant 0 : i32
    return %c0_i32, %c0_i32_0, %arg0 : i32, i32, i32
  }
  func.func @transform_1(%arg0: i32) -> (i32, i32, i32) {
    %c0_i32 = arith.constant 0 : i32
    %c0_i32_0 = arith.constant 0 : i32
    %c0_i32_1 = arith.constant 0 : i32
    return %c0_i32, %c0_i32_0, %arg0 : i32, i32, i32
  }
  func.func @transform_2(%arg0: i32) -> (i32, i32, i32) {
    %c0_i32 = arith.constant 0 : i32
    %c0_i32_0 = arith.constant 0 : i32
    %c0_i32_1 = arith.constant 0 : i32
    return %c0_i32, %c0_i32_0, %arg0 : i32, i32, i32
  }
  func.func @transform_3(%arg0: i32) -> (i32, i32, i32) {
    %c0_i32 = arith.constant 0 : i32
    %c0_i32_0 = arith.constant 0 : i32
    %c0_i32_1 = arith.constant 0 : i32
    return %c0_i32, %c0_i32_0, %arg0 : i32, i32, i32
  }
  func.func @transform_4(%arg0: i32) -> (i32, i32, i32) {
    %c0_i32 = arith.constant 0 : i32
    %c0_i32_0 = arith.constant 0 : i32
    %c0_i32_1 = arith.constant 0 : i32
    return %c0_i32, %c0_i32_0, %arg0 : i32, i32, i32
  }
  func.func @transform_5(%arg0: i32) -> (i32, i32) {
    %c0_i32 = arith.constant 0 : i32
    %c0_i32_0 = arith.constant 0 : i32
    %c0_i32_1 = arith.constant 0 : i32
    return %c0_i32, %c0_i32_0 : i32, i32
  }
}

</mosaic_0001>

<llo_original>
// kernel: freq_fft_coupling_forward.9
$region0: #{freq_fft_coupling_forward.9}
  #allocation0 [shape = 'u32[]', space=smem, size = 0x4, offset = 0x4, fixed_abs, tag = 'smem constant byte address 0x4 - core index']
  #allocation1 [shape = 'u32[144,128]{1,0:T(1,128)}', space=vmem, size = 0x12000, scoped, tag = 'internal scratch']
  %s0 = inlined_call_operand.vmem [shape: bf16[2,41,192], index: 0, kind: input, shape index: {}]
  %s1 = inlined_call_operand.vmem [shape: bf16[4,192,32], index: 1, kind: input, shape index: {}]
  %s2 = inlined_call_operand.vmem [shape: f32[1,32], index: 2, kind: input, shape index: {}]
  %s3 = inlined_call_operand.vmem [shape: bf16[2,30,32], index: 3, kind: output, shape index: {}]
  %s4 = sld [smem:[#allocation0]]
  $region45: #{freq_fft_coupling_forward.9} parent=0
    _
  %s6 = ssub.s32 1, %s4
  %s7 = scalar_select 0, %s6, %s4
  loop: start=0, step=1, limit=4
  $region2: #{freq_fft_coupling_forward.9} parent=0 // loop_pre_header
    _
  $region3: #{freq_fft_coupling_forward.9} parent=0 // loop_header
    %s9 = sphi 0, %s13
    %p10 = scmp.ge.s32.totalorder %s9, 4
    %s19 = sphi 0, %s21
    %s22 = sphi 0, %s19
    %s23 = sphi 0, %s22
    %s39 = sphi 0, %s23
    %s43 = sphi 0, %s43
    %s45 = sphi 0, %s43
    %s46 = sphi 0, %s45
    %s60 = sphi 0, %s46
    %s64 = sphi 0, %s64
    %s66 = sphi 0, %s64
    %s67 = sphi 0, %s66
    %s81 = sphi 0, %s67
    %s87 = sphi 0, %s89
    %s90 = sphi 0, %s87
    %s91 = sphi 0, %s90
    %s107 = sphi 0, %s91
  $region4: #{freq_fft_coupling_forward.9} parent=0 // loop_header_branch
    %12 = sbr.rel (%p10) target = $region8
  $region5: #{freq_fft_coupling_forward.9} parent=0 // loop_body
    %s14 = ssub.s32 %s9, 1
    %s15 = ssub.s32 %s9, 2
    %s16 = sadd.s32 %s9, 1
    %s17 = ssub.s32 %s9, %s16
    %p18 = scmp.eq.s32.totalorder %s17, 0
    %s20 = sadd.s32 %s19, 1
    %s21 = scalar_select %p18, %s19, %s20
    %p24 = pneg %p18
    %p25 = scmp.eq.s32.totalorder %s9, 1
    %p26 = por %p24, %p25
    %p27 = scmp.ne.s32.totalorder %s19, %s22
    %p28 = scmp.eq.s32.totalorder %s9, 0
    %p29 = por %p27, %p28
    %p30 = scmp.ne.s32.totalorder %s19, %s22
    %p31 = scmp.eq.s32.totalorder %s14, 1
    %p32 = por %p30, %p31
    %p33 = scmp.ne.s32.totalorder %s22, %s23
    %p34 = scmp.eq.s32.totalorder %s14, 0
    %p35 = por %p33, %p34
    %p36 = scmp.ne.s32.totalorder %s22, %s23
    %p37 = scmp.eq.s32.totalorder %s15, 1
    %p38 = por %p36, %p37
    %p40 = scmp.ne.s32.totalorder %s23, %s39
    %p41 = scmp.eq.s32.totalorder %s15, 0
    %p42 = por %p40, %p41
    %s44 = sadd.s32 %s43, 1
    %p47 = scmp.eq.s32.totalorder %s9, 1
    %p48 = scmp.ne.s32.totalorder %s43, %s45
    %p49 = scmp.eq.s32.totalorder %s9, 0
    %p50 = por %p48, %p49
    %p51 = scmp.ne.s32.totalorder %s43, %s45
    %p52 = scmp.eq.s32.totalorder %s14, 1
    %p53 = por %p51, %p52
    %p54 = scmp.ne.s32.totalorder %s45, %s46
    %p55 = scmp.eq.s32.totalorder %s14, 0
    %p56 = por %p54, %p55
    %p57 = scmp.ne.s32.totalorder %s45, %s46
    %p58 = scmp.eq.s32.totalorder %s15, 1
    %p59 = por %p57, %p58
    %p61 = scmp.ne.s32.totalorder %s46, %s60
    %p62 = scmp.eq.s32.totalorder %s15, 0
    %p63 = por %p61, %p62
    %s65 = sadd.s32 %s64, 1
    %p68 = scmp.eq.s32.totalorder %s9, 1
    %p69 = scmp.ne.s32.totalorder %s64, %s66
    %p70 = scmp.eq.s32.totalorder %s9, 0
    %p71 = por %p69, %p70
    %p72 = scmp.ne.s32.totalorder %s64, %s66
    %p73 = scmp.eq.s32.totalorder %s14, 1
    %p74 = por %p72, %p73
    %p75 = scmp.ne.s32.totalorder %s66, %s67
    %p76 = scmp.eq.s32.totalorder %s14, 0
    %p77 = por %p75, %p76
    %p78 = scmp.ne.s32.totalorder %s66, %s67
    %p79 = scmp.eq.s32.totalorder %s15, 1
    %p80 = por %p78, %p79
    %p82 = scmp.ne.s32.totalorder %s67, %s81
    %p83 = scmp.eq.s32.totalorder %s15, 0
    %p84 = por %p82, %p83
    %s85 = ssub.s32 %s9, %s16
    %p86 = scmp.eq.s32.totalorder %s85, 0
    %s88 = sadd.s32 %s87, 1
    %s89 = scalar_select %p86, %s87, %s88
    %p92 = pneg %p86
    %p93 = scmp.eq.s32.totalorder %s9, 1
    %p94 = por %p92, %p93
    %p95 = scmp.ne.s32.totalorder %s87, %s90
    %p96 = scmp.eq.s32.totalorder %s9, 0
    %p97 = por %p95, %p96
    %p98 = scmp.ne.s32.totalorder %s87, %s90
    %p99 = scmp.eq.s32.totalorder %s14, 1
    %p100 = por %p98, %p99
    %p101 = scmp.ne.s32.totalorder %s90, %s91
    %p102 = scmp.eq.s32.totalorder %s14, 0
    %p103 = por %p101, %p102
    %p104 = scmp.ne.s32.totalorder %s90, %s91
    %p105 = scmp.eq.s32.totalorder %s15, 1
    %p106 = por %p104, %p105
    %p108 = scmp.ne.s32.totalorder %s91, %s107
    %p109 = scmp.eq.s32.totalorder %s15, 0
    %p110 = por %p108, %p109
    %p111 = scmp.le.s32.totalorder 1, %s9
    %p112 = scmp.lt.s32.totalorder %s9, 3
    %p113 = pnand %p111, %p112
    %p114 = pneg %p113
    // Predicated region
    $region9: #{freq_fft_coupling_forward.9} parent=5 // pred_check
      _
    $region10: #{freq_fft_coupling_forward.9} parent=5 // pred_check_branch
      %116 = sbr.rel (%p113) target = $region12
    $region11: #{freq_fft_coupling_forward.9} parent=5 // pred_region
      %s117 = ssub.s32 %s9, 1
      // Predicated region
      $region13: #{freq_fft_coupling_forward.9} parent=11 // pred_check
        %p118 = pneg %p56
      $region14: #{freq_fft_coupling_forward.9} parent=11 // pred_check_branch
        %120 = sbr.rel (%p118) target = $region16
      $region15: #{freq_fft_coupling_forward.9} parent=11 // pred_region
        _
      $region16: #{freq_fft_coupling_forward.9} parent=11 // pred_fallthru
        _
      // Predicated region
      $region17: #{freq_fft_coupling_forward.9} parent=11 // pred_check
        %p121 = pneg %p77
      $region18: #{freq_fft_coupling_forward.9} parent=11 // pred_check_branch
        %123 = sbr.rel (%p121) target = $region20
      $region19: #{freq_fft_coupling_forward.9} parent=11 // pred_region
        _
      $region20: #{freq_fft_coupling_forward.9} parent=11 // pred_fallthru
        _
    $region12: #{freq_fft_coupling_forward.9} parent=5 // pred_fallthru
      _
    %p124 = scmp.lt.s32.totalorder %s9, 2
    // Predicated region
    $region21: #{freq_fft_coupling_forward.9} parent=5 // pred_check
      %p125 = pneg %p124
    $region22: #{freq_fft_coupling_forward.9} parent=5 // pred_check_branch
      %127 = sbr.rel (%p125) target = $region24
    $region23: #{freq_fft_coupling_forward.9} parent=5 // pred_region
      // Predicated region
      $region25: #{freq_fft_coupling_forward.9} parent=23 // pred_check
        %p128 = pneg %p29
      $region26: #{freq_fft_coupling_forward.9} parent=23 // pred_check_branch
        %130 = sbr.rel (%p128) target = $region28
      $region27: #{freq_fft_coupling_forward.9} parent=23 // pred_region
        %p131 = scmp.lt.s32.totalorder %s9, 1
        %s132 = scalar_select %p131, %s9, 1
        %s133 = smul.addr %s132, 12
        %s134 = smul.addr %s133, 4
        %s135 = scalar_lea.vmem %s0, %s134
      $region28: #{freq_fft_coupling_forward.9} parent=23 // pred_fallthru
        _
    $region24: #{freq_fft_coupling_forward.9} parent=5 // pred_fallthru
      _
    %p136 = scmp.le.s32.totalorder 1, %s9
    %p137 = scmp.lt.s32.totalorder %s9, 3
    %p138 = pnand %p136, %p137
    %p139 = pneg %p138
    // Predicated region
    $region29: #{freq_fft_coupling_forward.9} parent=5 // pred_check
      _
    $region30: #{freq_fft_coupling_forward.9} parent=5 // pred_check_branch
      %141 = sbr.rel (%p138) target = $region32
    $region31: #{freq_fft_coupling_forward.9} parent=5 // pred_region
      %s142 = ssub.s32 %s9, 1
      %p143 = scmp.lt.s32.totalorder %s14, 1
      %s144 = scalar_select %p143, %s14, 1
      %s145 = smul.addr %s144, 12
      %s146 = smul.addr %s145, 4
      %s147 = scalar_lea.vmem %s0, %s146
      %p148 = pneg %p35
      %p149 = pneg %p32
      %p150 = pneg %p56
      %p151 = pneg %p53
      %p152 = pneg %p77
      %p153 = pneg %p74
      %p154 = pneg %p103
      %p155 = pneg %p100
      %p156 = scmp.lt.s32.totalorder %s14, 1
      %s157 = scalar_select %p156, %s14, 1
      %s158 = smul.addr %s157, 4
      %s159 = smul.addr %s158, 4
      %s160 = scalar_lea.vmem %s3, %s159
      %p161 = scmp.lt.s32.totalorder %s14, 1
      %s162 = scalar_select %p161, %s14, 1
      %s163 = smul.addr %s162, 12
      %s164 = smul.addr %s163, 4
      %s165 = scalar_lea.vmem %s0, %s164
      %p166 = scmp.lt.s32.totalorder %s14, 1
      %s167 = scalar_select %p166, %s14, 1
      %s168 = smul.addr %s167, 4
      %s169 = smul.addr %s168, 4
      %s170 = scalar_lea.vmem %s3, %s169
      %v172 = vld [vmem:[%s165] sm:$0xff]
      %v173 = vld [vmem:[%s165 + $0x8] sm:$0xff]
      %v174 = vld [vmem:[%s165 + $0x10] sm:$0xff]
      %v175 = vld [vmem:[%s165 + $0x18] sm:$0x77]
      %v176 = vld [vmem:[%s1] sm:$0xf]
      %v177 = vld [vmem:[%s1 + $0x4] sm:$0xf]
      %v178 = vld [vmem:[%s1 + $0x8] sm:$0xf]
      %v179 = vld [vmem:[%s1 + $0xc] sm:$0xf]
      %v180 = vld [vmem:[%s1 + $0x10] sm:$0xf]
      %v181 = vld [vmem:[%s1 + $0x14] sm:$0xf]
      %v182 = vld [vmem:[%s1 + $0x18] sm:$0xf]
      %v183 = vld [vmem:[%s1 + $0x1c] sm:$0xf]
      %v184 = vld [vmem:[%s1 + $0x20] sm:$0xf]
      %v185 = vld [vmem:[%s1 + $0x24] sm:$0xf]
      %v186 = vld [vmem:[%s1 + $0x28] sm:$0xf]
      %v187 = vld [vmem:[%s1 + $0x2c] sm:$0xf]
      %v188 = vld [vmem:[%s1 + $0x30] sm:$0xf]
      %v189 = vld [vmem:[%s1 + $0x34] sm:$0xf]
      %v190 = vld [vmem:[%s1 + $0x38] sm:$0xf]
      %v191 = vld [vmem:[%s1 + $0x3c] sm:$0xf]
      %v192 = vld [vmem:[%s1 + $0x40] sm:$0xf]
      %v193 = vld [vmem:[%s1 + $0x44] sm:$0xf]
      %v194 = vld [vmem:[%s1 + $0x48] sm:$0xf]
      %v195 = vld [vmem:[%s1 + $0x4c] sm:$0xf]
      %v196 = vld [vmem:[%s1 + $0x50] sm:$0xf]
      %v197 = vld [vmem:[%s1 + $0x54] sm:$0xf]
      %v198 = vld [vmem:[%s1 + $0x58] sm:$0xf]
      %v199 = vld [vmem:[%s1 + $0x5c] sm:$0xf]
      %v200 = vld [vmem:[%s165 + $0x18] sm:$0xff]
      %s201 = scalar_lea.vmem %s1, 96
      %v202 = vld [vmem:[%s201] sm:$0xf]
      %v203 = vld [vmem:[%s201 + $0x4] sm:$0xf]
      %v204 = vld [vmem:[%s201 + $0x8] sm:$0xf]
      %v205 = vld [vmem:[%s201 + $0xc] sm:$0xf]
      %v206 = vld [vmem:[%s201 + $0x10] sm:$0xf]
      %v207 = vld [vmem:[%s201 + $0x14] sm:$0xf]
      %v208 = vld [vmem:[%s201 + $0x18] sm:$0xf]
      %v209 = vld [vmem:[%s201 + $0x1c] sm:$0xf]
      %v210 = vld [vmem:[%s201 + $0x20] sm:$0xf]
      %v211 = vld [vmem:[%s201 + $0x24] sm:$0xf]
      %v212 = vld [vmem:[%s201 + $0x28] sm:$0xf]
      %v213 = vld [vmem:[%s201 + $0x2c] sm:$0xf]
      %v214 = vld [vmem:[%s201 + $0x30] sm:$0xf]
      %v215 = vld [vmem:[%s201 + $0x34] sm:$0xf]
      %v216 = vld [vmem:[%s201 + $0x38] sm:$0xf]
      %v217 = vld [vmem:[%s201 + $0x3c] sm:$0xf]
      %v218 = vld [vmem:[%s201 + $0x40] sm:$0xf]
      %v219 = vld [vmem:[%s201 + $0x44] sm:$0xf]
      %v220 = vld [vmem:[%s201 + $0x48] sm:$0xf]
      %v221 = vld [vmem:[%s201 + $0x4c] sm:$0xf]
      %v222 = vld [vmem:[%s201 + $0x50] sm:$0xf]
      %v223 = vld [vmem:[%s201 + $0x54] sm:$0xf]
      %v224 = vld [vmem:[%s201 + $0x58] sm:$0xf]
      %v225 = vld [vmem:[%s201 + $0x5c] sm:$0xf]
      %v230 = vunpack.c.l.b16 %v172
      %v231 = vunpack.c.h.b16 %v172
      %v232 = vunpack.c.l.b16 %v173
      %v233 = vunpack.c.h.b16 %v173
      %v234 = vunpack.c.l.b16 %v174
      %v235 = vunpack.c.h.b16 %v174
      %v236 = vunpack.c.l.b16 %v200
      %v237 = vunpack.c.h.b16 %v200
      %v238 = vpack.c.b16 %v232, %v230
      %v239 = vpack.c.b16 %v233, %v231
      %v240 = vpack.c.b16 %v236, %v234
      %v241 = vpack.c.b16 %v237, %v235
      %vm242 = vsmask.f32 7424
      %v244 = vshrl.u32 %v238, 16
      %v246 = vshll.u32 %v238, 16
      %v248 = vrot.slane %v246, 1
      %v249 = vor.u32 %v244, %v248
      %v251 = vshll.u32 %v240, 16
      %v253 = vrot.slane %v251, 1
      %v254 = vsel %vm242, %v249, %v253
      %v256 = vshrl.u32 %v239, 16
      %v258 = vshll.u32 %v239, 16
      %v260 = vrot.slane %v258, 1
      %v261 = vor.u32 %v256, %v260
      %v263 = vshll.u32 %v241, 16
      %v265 = vrot.slane %v263, 1
      %v266 = vsel %vm242, %v261, %v265
      %v267 = vshrl.u32 %v240, 16
      %v269 = vor.u32 %v267, %v253
      %v270 = vshrl.u32 %v241, 16
      %v272 = vor.u32 %v270, %v265
      %v299 = vunpack.c.l.b16 %v202
      %v300 = vunpack.c.l.b16 %v203
      %v301 = vunpack.c.l.b16 %v204
      %v302 = vunpack.c.l.b16 %v205
      %v303 = vunpack.c.l.b16 %v206
      %v304 = vunpack.c.l.b16 %v207
      %v305 = vunpack.c.l.b16 %v208
      %v306 = vunpack.c.l.b16 %v209
      %v307 = vunpack.c.l.b16 %v210
      %v308 = vunpack.c.l.b16 %v211
      %v309 = vunpack.c.l.b16 %v212
      %v310 = vunpack.c.l.b16 %v213
      %v311 = vunpack.c.l.b16 %v214
      %v312 = vunpack.c.l.b16 %v215
      %v313 = vunpack.c.l.b16 %v216
      %v314 = vunpack.c.l.b16 %v217
      %v315 = vunpack.c.l.b16 %v218
      %v316 = vunpack.c.l.b16 %v219
      %v317 = vunpack.c.l.b16 %v220
      %v318 = vunpack.c.l.b16 %v221
      %v319 = vunpack.c.l.b16 %v222
      %v320 = vunpack.c.l.b16 %v223
      %v321 = vunpack.c.l.b16 %v224
      %v322 = vunpack.c.l.b16 %v225
      %v323 = vpack.c.b16 %v300, %v299
      %v324 = vpack.c.b16 %v302, %v301
      %v325 = vpack.c.b16 %v304, %v303
      %v326 = vpack.c.b16 %v306, %v305
      %v327 = vpack.c.b16 %v308, %v307
      %v328 = vpack.c.b16 %v310, %v309
      %v329 = vpack.c.b16 %v312, %v311
      %v330 = vpack.c.b16 %v314, %v313
      %v331 = vpack.c.b16 %v316, %v315
      %v332 = vpack.c.b16 %v318, %v317
      %v333 = vpack.c.b16 %v320, %v319
      %v334 = vpack.c.b16 %v322, %v321
      %vm347 = vcmask 523264
      %v349 = vsel %vm347, %v266, 0
      %v352 = vsel %vm347, %v272, 0
      %354 = vmatprep.subr.bf16.mxu0 0
      %355 = vmatpush1.bf16.msra.mxu0 %v330
      %356 = vmatprep.subr.bf16.mxu0 0
      %357 = vmatpush1.bf16.msra.mxu0 %v329
      %358 = vmatprep.subr.bf16.mxu0 0
      %359 = vmatpush1.bf16.msra.mxu0 %v328
      %360 = vmatprep.subr.bf16.mxu0 0
      %361 = vmatpush1.bf16.msra.mxu0 %v327
      %362 = vmatprep.subr.bf16.mxu0 0
      %363 = vmatpush1.bf16.msra.mxu0 %v326
      %364 = vmatprep.subr.bf16.mxu0 0
      %365 = vmatpush1.bf16.msra.mxu0 %v325
      %366 = vmatprep.subr.bf16.mxu0 0
      %367 = vmatpush1.bf16.msra.mxu0 %v324
      %368 = vmatprep.subr.bf16.mxu0 0
      %369 = vmatpush1.bf16.msra.mxu0 %v323
      %370 = vmatprep.subr.bf16.mxu0 0
      %371 = vmatpush2.bf16.msra.mxu0 0
      %372 = vmatprep.subr.bf16.mxu0 0
      %373 = vmatpush2.bf16.msra.mxu0 0
      %374 = vmatprep.subr.bf16.mxu0 0
      %375 = vmatpush2.bf16.msra.mxu0 0
      %376 = vmatprep.subr.bf16.mxu0 0
      %377 = vmatpush2.bf16.msra.mxu0 0
      %378 = vmatprep.subr.bf16.mxu0 0
      %379 = vmatpush2.bf16.msra.mxu0 %v334
      %380 = vmatprep.subr.bf16.mxu0 0
      %381 = vmatpush2.bf16.msra.mxu0 %v333
      %382 = vmatprep.subr.bf16.mxu0 0
      %383 = vmatpush2.bf16.msra.mxu0 %v332
      %384 = vmatprep.subr.bf16.mxu0 0
      %385 = vmatpush2.bf16.msra.mxu0 %v331
      %386 = vmatprep.mubr.bf16.mxu0 %v349
      %387 = vmatmul.mubr.bf16.gmra.mxu0 %v254
      %v388 = vpop.f32.mrf.mxu0
      %v389 = vadd.f32 0.0, %v388
      %v390 = vpop.f32.mrf.mxu0
      %v391 = vpop.f32.mrf.mxu0
      %v392 = vadd.f32 0.0, %v391
      %v393 = vpop.f32.mrf.mxu0
      %394 = vmatprep.mubr.bf16.mxu0 %v352
      %395 = vmatmul.mubr.bf16.gmra.mxu0 %v269
      %v396 = vpop.f32.mrf.mxu0
      %v397 = vadd.f32 0.0, %v396
      %v398 = vpop.f32.mrf.mxu0
      %v399 = vpop.f32.mrf.mxu0
      %v400 = vadd.f32 0.0, %v399
      %v401 = vpop.f32.mrf.mxu0
      %402 = vdwg.mxu0
      %v404 = vunpack.c.l.b16 %v175
      %v405 = vunpack.c.h.b16 %v175
      %v406 = vpack.c.b16 %v404, %v234
      %v407 = vpack.c.b16 %v405, %v235
      %v434 = vunpack.c.l.b16 %v176
      %v435 = vunpack.c.l.b16 %v177
      %v436 = vunpack.c.l.b16 %v178
      %v437 = vunpack.c.l.b16 %v179
      %v438 = vunpack.c.l.b16 %v180
      %v439 = vunpack.c.l.b16 %v181
      %v440 = vunpack.c.l.b16 %v182
      %v441 = vunpack.c.l.b16 %v183
      %v442 = vunpack.c.l.b16 %v184
      %v443 = vunpack.c.l.b16 %v185
      %v444 = vunpack.c.l.b16 %v186
      %v445 = vunpack.c.l.b16 %v187
      %v446 = vunpack.c.l.b16 %v188
      %v447 = vunpack.c.l.b16 %v189
      %v448 = vunpack.c.l.b16 %v190
      %v449 = vunpack.c.l.b16 %v191
      %v450 = vunpack.c.l.b16 %v192
      %v451 = vunpack.c.l.b16 %v193
      %v452 = vunpack.c.l.b16 %v194
      %v453 = vunpack.c.l.b16 %v195
      %v454 = vunpack.c.l.b16 %v196
      %v455 = vunpack.c.l.b16 %v197
      %v456 = vunpack.c.l.b16 %v198
      %v457 = vunpack.c.l.b16 %v199
      %v458 = vpack.c.b16 %v435, %v434
      %v459 = vpack.c.b16 %v437, %v436
      %v460 = vpack.c.b16 %v439, %v438
      %v461 = vpack.c.b16 %v441, %v440
      %v462 = vpack.c.b16 %v443, %v442
      %v463 = vpack.c.b16 %v445, %v444
      %v464 = vpack.c.b16 %v447, %v446
      %v465 = vpack.c.b16 %v449, %v448
      %v466 = vpack.c.b16 %v451, %v450
      %v467 = vpack.c.b16 %v453, %v452
      %v468 = vpack.c.b16 %v455, %v454
      %v469 = vpack.c.b16 %v457, %v456
      %v482 = vsel %vm347, %v239, 0
      %v485 = vsel %vm347, %v407, 0
      %487 = vmatprep.subr.bf16.mxu0 0
      %488 = vmatpush1.bf16.msra.mxu0 %v465
      %489 = vmatprep.subr.bf16.mxu0 0
      %490 = vmatpush1.bf16.msra.mxu0 %v464
      %491 = vmatprep.subr.bf16.mxu0 0
      %492 = vmatpush1.bf16.msra.mxu0 %v463
      %493 = vmatprep.subr.bf16.mxu0 0
      %494 = vmatpush1.bf16.msra.mxu0 %v462
      %495 = vmatprep.subr.bf16.mxu0 0
      %496 = vmatpush1.bf16.msra.mxu0 %v461
      %497 = vmatprep.subr.bf16.mxu0 0
      %498 = vmatpush1.bf16.msra.mxu0 %v460
      %499 = vmatprep.subr.bf16.mxu0 0
      %500 = vmatpush1.bf16.msra.mxu0 %v459
      %501 = vmatprep.subr.bf16.mxu0 0
      %502 = vmatpush1.bf16.msra.mxu0 %v458
      %503 = vmatprep.subr.bf16.mxu0 0
      %504 = vmatpush2.bf16.msra.mxu0 0
      %505 = vmatprep.subr.bf16.mxu0 0
      %506 = vmatpush2.bf16.msra.mxu0 0
      %507 = vmatprep.subr.bf16.mxu0 0
      %508 = vmatpush2.bf16.msra.mxu0 0
      %509 = vmatprep.subr.bf16.mxu0 0
      %510 = vmatpush2.bf16.msra.mxu0 0
      %511 = vmatprep.subr.bf16.mxu0 0
      %512 = vmatpush2.bf16.msra.mxu0 %v469
      %513 = vmatprep.subr.bf16.mxu0 0
      %514 = vmatpush2.bf16.msra.mxu0 %v468
      %515 = vmatprep.subr.bf16.mxu0 0
      %516 = vmatpush2.bf16.msra.mxu0 %v467
      %517 = vmatprep.subr.bf16.mxu0 0
      %518 = vmatpush2.bf16.msra.mxu0 %v466
      %519 = vmatprep.mubr.bf16.mxu0 %v482
      %520 = vmatmul.mubr.bf16.gmra.mxu0 %v238
      %v521 = vpop.f32.mrf.mxu0
      %v522 = vadd.f32 %v389, %v521
      %v523 = vpop.f32.mrf.mxu0
      %v524 = vpop.f32.mrf.mxu0
      %v525 = vadd.f32 %v392, %v524
      %v526 = vpop.f32.mrf.mxu0
      %527 = vmatprep.mubr.bf16.mxu0 %v485
      %528 = vmatmul.mubr.bf16.gmra.mxu0 %v406
      %v529 = vpop.f32.mrf.mxu0
      %v530 = vadd.f32 %v397, %v529
      %v531 = vpop.f32.mrf.mxu0
      %v532 = vpop.f32.mrf.mxu0
      %v533 = vadd.f32 %v400, %v532
      %v534 = vpop.f32.mrf.mxu0
      %535 = vdwg.mxu0
      %v536 = vld [vmem:[%s165] sm:$0xee]
      %v537 = vld [vmem:[%s165 + $0x8] sm:$0xff]
      %v538 = vld [vmem:[%s165 + $0x10] sm:$0xff]
      %v539 = vld [vmem:[%s165 + $0x18] sm:$0xff]
      %v540 = vld [vmem:[%s165 + $0x20] sm:$0x11]
      %s541 = scalar_lea.vmem %s1, 192
      %v542 = vld [vmem:[%s541] sm:$0xf]
      %v543 = vld [vmem:[%s541 + $0x4] sm:$0xf]
      %v544 = vld [vmem:[%s541 + $0x8] sm:$0xf]
      %v545 = vld [vmem:[%s541 + $0xc] sm:$0xf]
      %v546 = vld [vmem:[%s541 + $0x10] sm:$0xf]
      %v547 = vld [vmem:[%s541 + $0x14] sm:$0xf]
      %v548 = vld [vmem:[%s541 + $0x18] sm:$0xf]
      %v549 = vld [vmem:[%s541 + $0x1c] sm:$0xf]
      %v550 = vld [vmem:[%s541 + $0x20] sm:$0xf]
      %v551 = vld [vmem:[%s541 + $0x24] sm:$0xf]
      %v552 = vld [vmem:[%s541 + $0x28] sm:$0xf]
      %v553 = vld [vmem:[%s541 + $0x2c] sm:$0xf]
      %v554 = vld [vmem:[%s541 + $0x30] sm:$0xf]
      %v555 = vld [vmem:[%s541 + $0x34] sm:$0xf]
      %v556 = vld [vmem:[%s541 + $0x38] sm:$0xf]
      %v557 = vld [vmem:[%s541 + $0x3c] sm:$0xf]
      %v558 = vld [vmem:[%s541 + $0x40] sm:$0xf]
      %v559 = vld [vmem:[%s541 + $0x44] sm:$0xf]
      %v560 = vld [vmem:[%s541 + $0x48] sm:$0xf]
      %v561 = vld [vmem:[%s541 + $0x4c] sm:$0xf]
      %v562 = vld [vmem:[%s541 + $0x50] sm:$0xf]
      %v563 = vld [vmem:[%s541 + $0x54] sm:$0xf]
      %v564 = vld [vmem:[%s541 + $0x58] sm:$0xf]
      %v565 = vld [vmem:[%s541 + $0x5c] sm:$0xf]
      %v571 = vunpack.c.l.b16 %v536
      %v572 = vunpack.c.h.b16 %v536
      %v573 = vunpack.c.l.b16 %v537
      %v574 = vunpack.c.h.b16 %v537
      %v575 = vunpack.c.l.b16 %v538
      %v576 = vunpack.c.h.b16 %v538
      %v577 = vunpack.c.l.b16 %v539
      %v578 = vunpack.c.h.b16 %v539
      %v579 = vunpack.c.l.b16 %v540
      %v580 = vunpack.c.h.b16 %v540
      %v581 = vpack.c.b16 %v573, %v571
      %v582 = vpack.c.b16 %v574, %v572
      %v583 = vpack.c.b16 %v577, %v575
      %v584 = vpack.c.b16 %v578, %v576
      %v585 = vpack.c.b16 %v579, %v579
      %v586 = vpack.c.b16 %v580, %v580
      %vm587 = vsmask.f32 6400
      %v589 = vshrl.u32 %v581, 16
      %v591 = vrot.slane %v589, 1
      %v592 = vshll.u32 %v581, 16
      %v594 = vrot.slane %v592, 2
      %v595 = vor.u32 %v591, %v594
      %v597 = vshrl.u32 %v583, 16
      %v599 = vrot.slane %v597, 1
      %v600 = vshll.u32 %v583, 16
      %v602 = vrot.slane %v600, 2
      %v603 = vor.u32 %v599, %v602
      %v604 = vsel %vm587, %v595, %v603
      %v606 = vshrl.u32 %v582, 16
      %v608 = vrot.slane %v606, 1
      %v609 = vshll.u32 %v582, 16
      %v611 = vrot.slane %v609, 2
      %v612 = vor.u32 %v608, %v611
      %v614 = vshrl.u32 %v584, 16
      %v616 = vrot.slane %v614, 1
      %v617 = vshll.u32 %v584, 16
      %v619 = vrot.slane %v617, 2
      %v620 = vor.u32 %v616, %v619
      %v621 = vsel %vm587, %v612, %v620
      %v623 = vshll.u32 %v585, 16
      %v625 = vrot.slane %v623, 2
      %v626 = vsel %vm587, %v603, %v625
      %v628 = vshll.u32 %v586, 16
      %v630 = vrot.slane %v628, 2
      %v631 = vsel %vm587, %v620, %v630
      %v658 = vunpack.c.l.b16 %v542
      %v659 = vunpack.c.l.b16 %v543
      %v660 = vunpack.c.l.b16 %v544
      %v661 = vunpack.c.l.b16 %v545
      %v662 = vunpack.c.l.b16 %v546
      %v663 = vunpack.c.l.b16 %v547
      %v664 = vunpack.c.l.b16 %v548
      %v665 = vunpack.c.l.b16 %v549
      %v666 = vunpack.c.l.b16 %v550
      %v667 = vunpack.c.l.b16 %v551
      %v668 = vunpack.c.l.b16 %v552
      %v669 = vunpack.c.l.b16 %v553
      %v670 = vunpack.c.l.b16 %v554
      %v671 = vunpack.c.l.b16 %v555
      %v672 = vunpack.c.l.b16 %v556
      %v673 = vunpack.c.l.b16 %v557
      %v674 = vunpack.c.l.b16 %v558
      %v675 = vunpack.c.l.b16 %v559
      %v676 = vunpack.c.l.b16 %v560
      %v677 = vunpack.c.l.b16 %v561
      %v678 = vunpack.c.l.b16 %v562
      %v679 = vunpack.c.l.b16 %v563
      %v680 = vunpack.c.l.b16 %v564
      %v681 = vunpack.c.l.b16 %v565
      %v682 = vpack.c.b16 %v659, %v658
      %v683 = vpack.c.b16 %v661, %v660
      %v684 = vpack.c.b16 %v663, %v662
      %v685 = vpack.c.b16 %v665, %v664
      %v686 = vpack.c.b16 %v667, %v666
      %v687 = vpack.c.b16 %v669, %v668
      %v688 = vpack.c.b16 %v671, %v670
      %v689 = vpack.c.b16 %v673, %v672
      %v690 = vpack.c.b16 %v675, %v674
      %v691 = vpack.c.b16 %v677, %v676
      %v692 = vpack.c.b16 %v679, %v678
      %v693 = vpack.c.b16 %v681, %v680
      %v707 = vsel %vm347, %v621, 0
      %v710 = vsel %vm347, %v631, 0
      %712 = vmatprep.subr.bf16.mxu0 0
      %713 = vmatpush1.bf16.msra.mxu0 %v689
      %714 = vmatprep.subr.bf16.mxu0 0
      %715 = vmatpush1.bf16.msra.mxu0 %v688
      %716 = vmatprep.subr.bf16.mxu0 0
      %717 = vmatpush1.bf16.msra.mxu0 %v687
      %718 = vmatprep.subr.bf16.mxu0 0
      %719 = vmatpush1.bf16.msra.mxu0 %v686
      %720 = vmatprep.subr.bf16.mxu0 0
      %721 = vmatpush1.bf16.msra.mxu0 %v685
      %722 = vmatprep.subr.bf16.mxu0 0
      %723 = vmatpush1.bf16.msra.mxu0 %v684
      %724 = vmatprep.subr.bf16.mxu0 0
      %725 = vmatpush1.bf16.msra.mxu0 %v683
      %726 = vmatprep.subr.bf16.mxu0 0
      %727 = vmatpush1.bf16.msra.mxu0 %v682
      %728 = vmatprep.subr.bf16.mxu0 0
      %729 = vmatpush2.bf16.msra.mxu0 0
      %730 = vmatprep.subr.bf16.mxu0 0
      %731 = vmatpush2.bf16.msra.mxu0 0
      %732 = vmatprep.subr.bf16.mxu0 0
      %733 = vmatpush2.bf16.msra.mxu0 0
      %734 = vmatprep.subr.bf16.mxu0 0
      %735 = vmatpush2.bf16.msra.mxu0 0
      %736 = vmatprep.subr.bf16.mxu0 0
      %737 = vmatpush2.bf16.msra.mxu0 %v693
      %738 = vmatprep.subr.bf16.mxu0 0
      %739 = vmatpush2.bf16.msra.mxu0 %v692
      %740 = vmatprep.subr.bf16.mxu0 0
      %741 = vmatpush2.bf16.msra.mxu0 %v691
      %742 = vmatprep.subr.bf16.mxu0 0
      %743 = vmatpush2.bf16.msra.mxu0 %v690
      %744 = vmatprep.mubr.bf16.mxu0 %v707
      %745 = vmatmul.mubr.bf16.gmra.mxu0 %v604
      %v746 = vpop.f32.mrf.mxu0
      %v747 = vadd.f32 0.0, %v746
      %v748 = vpop.f32.mrf.mxu0
      %v749 = vpop.f32.mrf.mxu0
      %v750 = vadd.f32 0.0, %v749
      %v751 = vpop.f32.mrf.mxu0
      %752 = vmatprep.mubr.bf16.mxu0 %v710
      %753 = vmatmul.mubr.bf16.gmra.mxu0 %v626
      %v754 = vpop.f32.mrf.mxu0
      %v755 = vadd.f32 0.0, %v754
      %v756 = vpop.f32.mrf.mxu0
      %v757 = vpop.f32.mrf.mxu0
      %v758 = vadd.f32 0.0, %v757
      %v759 = vpop.f32.mrf.mxu0
      %760 = vdwg.mxu0
      %v761 = vadd.f32 %v522, %v747
      %v762 = vadd.f32 %v525, %v750
      %v763 = vadd.f32 %v530, %v755
      %v764 = vadd.f32 %v533, %v758
      %v765 = vld [vmem:[%s165] sm:$0xcc]
      %s766 = scalar_lea.vmem %s1, 288
      %v767 = vld [vmem:[%s766] sm:$0xf]
      %v768 = vld [vmem:[%s766 + $0x4] sm:$0xf]
      %v769 = vld [vmem:[%s766 + $0x8] sm:$0xf]
      %v770 = vld [vmem:[%s766 + $0xc] sm:$0xf]
      %v771 = vld [vmem:[%s766 + $0x10] sm:$0xf]
      %v772 = vld [vmem:[%s766 + $0x14] sm:$0xf]
      %v773 = vld [vmem:[%s766 + $0x18] sm:$0xf]
      %v774 = vld [vmem:[%s766 + $0x1c] sm:$0xf]
      %v775 = vld [vmem:[%s766 + $0x20] sm:$0xf]
      %v776 = vld [vmem:[%s766 + $0x24] sm:$0xf]
      %v777 = vld [vmem:[%s766 + $0x28] sm:$0xf]
      %v778 = vld [vmem:[%s766 + $0x2c] sm:$0xf]
      %v779 = vld [vmem:[%s766 + $0x30] sm:$0xf]
      %v780 = vld [vmem:[%s766 + $0x34] sm:$0xf]
      %v781 = vld [vmem:[%s766 + $0x38] sm:$0xf]
      %v782 = vld [vmem:[%s766 + $0x3c] sm:$0xf]
      %v783 = vld [vmem:[%s766 + $0x40] sm:$0xf]
      %v784 = vld [vmem:[%s766 + $0x44] sm:$0xf]
      %v785 = vld [vmem:[%s766 + $0x48] sm:$0xf]
      %v786 = vld [vmem:[%s766 + $0x4c] sm:$0xf]
      %v787 = vld [vmem:[%s766 + $0x50] sm:$0xf]
      %v788 = vld [vmem:[%s766 + $0x54] sm:$0xf]
      %v789 = vld [vmem:[%s766 + $0x58] sm:$0xf]
      %v790 = vld [vmem:[%s766 + $0x5c] sm:$0xf]
      %v792 = vunpack.c.l.b16 %v765
      %v793 = vunpack.c.h.b16 %v765
      %v794 = vpack.c.b16 %v573, %v792
      %v795 = vpack.c.b16 %v574, %v793
      %vm796 = vcmask 1045504
      %v797 = vrot.slane %v794, 2
      %v798 = vrot.slane %v583, 2
      %v799 = vsel %vm796, %v797, %v798
      %v800 = vrot.slane %v795, 2
      %v801 = vrot.slane %v584, 2
      %v802 = vsel %vm796, %v800, %v801
      %v803 = vrot.slane %v585, 2
      %v804 = vsel %vm796, %v798, %v803
      %v805 = vrot.slane %v586, 2
      %v806 = vsel %vm796, %v801, %v805
      %v833 = vunpack.c.l.b16 %v767
      %v834 = vunpack.c.l.b16 %v768
      %v835 = vunpack.c.l.b16 %v769
      %v836 = vunpack.c.l.b16 %v770
      %v837 = vunpack.c.l.b16 %v771
      %v838 = vunpack.c.l.b16 %v772
      %v839 = vunpack.c.l.b16 %v773
      %v840 = vunpack.c.l.b16 %v774
      %v841 = vunpack.c.l.b16 %v775
      %v842 = vunpack.c.l.b16 %v776
      %v843 = vunpack.c.l.b16 %v777
      %v844 = vunpack.c.l.b16 %v778
      %v845 = vunpack.c.l.b16 %v779
      %v846 = vunpack.c.l.b16 %v780
      %v847 = vunpack.c.l.b16 %v781
      %v848 = vunpack.c.l.b16 %v782
      %v849 = vunpack.c.l.b16 %v783
      %v850 = vunpack.c.l.b16 %v784
      %v851 = vunpack.c.l.b16 %v785
      %v852 = vunpack.c.l.b16 %v786
      %v853 = vunpack.c.l.b16 %v787
      %v854 = vunpack.c.l.b16 %v788
      %v855 = vunpack.c.l.b16 %v789
      %v856 = vunpack.c.l.b16 %v790
      %v857 = vpack.c.b16 %v834, %v833
      %v858 = vpack.c.b16 %v836, %v835
      %v859 = vpack.c.b16 %v838, %v837
      %v860 = vpack.c.b16 %v840, %v839
      %v861 = vpack.c.b16 %v842, %v841
      %v862 = vpack.c.b16 %v844, %v843
      %v863 = vpack.c.b16 %v846, %v845
      %v864 = vpack.c.b16 %v848, %v847
      %v865 = vpack.c.b16 %v850, %v849
      %v866 = vpack.c.b16 %v852, %v851
      %v867 = vpack.c.b16 %v854, %v853
      %v868 = vpack.c.b16 %v856, %v855
      %v882 = vsel %vm347, %v802, 0
      %v885 = vsel %vm347, %v806, 0
      %887 = vmatprep.subr.bf16.mxu0 0
      %888 = vmatpush1.bf16.msra.mxu0 %v864
      %889 = vmatprep.subr.bf16.mxu0 0
      %890 = vmatpush1.bf16.msra.mxu0 %v863
      %891 = vmatprep.subr.bf16.mxu0 0
      %892 = vmatpush1.bf16.msra.mxu0 %v862
      %893 = vmatprep.subr.bf16.mxu0 0
      %894 = vmatpush1.bf16.msra.mxu0 %v861
      %895 = vmatprep.subr.bf16.mxu0 0
      %896 = vmatpush1.bf16.msra.mxu0 %v860
      %897 = vmatprep.subr.bf16.mxu0 0
      %898 = vmatpush1.bf16.msra.mxu0 %v859
      %899 = vmatprep.subr.bf16.mxu0 0
      %900 = vmatpush1.bf16.msra.mxu0 %v858
      %901 = vmatprep.subr.bf16.mxu0 0
      %902 = vmatpush1.bf16.msra.mxu0 %v857
      %903 = vmatprep.subr.bf16.mxu0 0
      %904 = vmatpush2.bf16.msra.mxu0 0
      %905 = vmatprep.subr.bf16.mxu0 0
      %906 = vmatpush2.bf16.msra.mxu0 0
      %907 = vmatprep.subr.bf16.mxu0 0
      %908 = vmatpush2.bf16.msra.mxu0 0
      %909 = vmatprep.subr.bf16.mxu0 0
      %910 = vmatpush2.bf16.msra.mxu0 0
      %911 = vmatprep.subr.bf16.mxu0 0
      %912 = vmatpush2.bf16.msra.mxu0 %v868
      %913 = vmatprep.subr.bf16.mxu0 0
      %914 = vmatpush2.bf16.msra.mxu0 %v867
      %915 = vmatprep.subr.bf16.mxu0 0
      %916 = vmatpush2.bf16.msra.mxu0 %v866
      %917 = vmatprep.subr.bf16.mxu0 0
      %918 = vmatpush2.bf16.msra.mxu0 %v865
      %919 = vmatprep.mubr.bf16.mxu0 %v882
      %920 = vmatmul.mubr.bf16.gmra.mxu0 %v799
      %v921 = vpop.f32.mrf.mxu0
      %v922 = vadd.f32 0.0, %v921
      %v923 = vpop.f32.mrf.mxu0
      %v924 = vpop.f32.mrf.mxu0
      %v925 = vadd.f32 0.0, %v924
      %v926 = vpop.f32.mrf.mxu0
      %927 = vmatprep.mubr.bf16.mxu0 %v885
      %928 = vmatmul.mubr.bf16.gmra.mxu0 %v804
      %v929 = vpop.f32.mrf.mxu0
      %v930 = vadd.f32 0.0, %v929
      %v931 = vpop.f32.mrf.mxu0
      %v932 = vpop.f32.mrf.mxu0
      %v933 = vadd.f32 0.0, %v932
      %v934 = vpop.f32.mrf.mxu0
      %935 = vdwg.mxu0
      %v936 = vadd.f32 %v761, %v922
      %v937 = vadd.f32 %v762, %v925
      %v938 = vadd.f32 %v763, %v930
      %v939 = vadd.f32 %v764, %v933
      %v940 = vld [vmem:[%s2] sm:$0x1]
      %v942 = vlaneseq
      %v943 = vshrl.u32 %v942, 7
      %v944 = vsub.s32 0, %v943
      %v945 = vrot.slane %v940, %v944
      %v947 = vadd.f32 %v936, %v945
      %v948 = vadd.f32 %v937, %v945
      %v949 = vadd.f32 %v938, %v945
      %v950 = vadd.f32 %v939, %v945
      %v951 = vpack.c.bf16 %v948, %v947
      %v952 = vpack.c.bf16 %v950, %v949
      %v955 = vunpack.c.l.b16 %v951
      %v956 = vunpack.c.h.b16 %v951
      %v957 = vunpack.c.l.b16 %v952
      %v958 = vunpack.c.h.b16 %v952
      %v959 = vpack.c.b16 %v955, %v955
      %v960 = vpack.c.b16 %v956, %v956
      %v961 = vpack.c.b16 %v957, %v957
      %v962 = vpack.c.b16 %v958, %v958
      %vm967 = vcmask 257024
      %968 = vst.msk [vmem:[%s170] sm:$0xf] %vm967, %v959
      %969 = vst.msk [vmem:[%s170 + $0x4] sm:$0xf] %vm967, %v960
      %970 = vst.msk [vmem:[%s170 + $0x8] sm:$0xf] %vm967, %v961
      %vm971 = vcmask 256000
      %972 = vst.msk [vmem:[%s170 + $0xc] sm:$0x7] %vm971, %v962
      %p973 = scmp.lt.s32.totalorder %s14, 1
      %s974 = scalar_select %p973, %s14, 1
      %s975 = smul.addr %s974, 4
      %s976 = smul.addr %s975, 4
      %s977 = scalar_lea.vmem %s3, %s976
      // Predicated region
      $region33: #{freq_fft_coupling_forward.9} parent=31 // pred_check
        %p978 = pneg %p100
      $region34: #{freq_fft_coupling_forward.9} parent=31 // pred_check_branch
        %980 = sbr.rel (%p978) target = $region36
      $region35: #{freq_fft_coupling_forward.9} parent=31 // pred_region
        _
      $region36: #{freq_fft_coupling_forward.9} parent=31 // pred_fallthru
        _
    $region32: #{freq_fft_coupling_forward.9} parent=5 // pred_fallthru
      _
    %p981 = scmp.le.s32.totalorder 2, %s9
    // Predicated region
    $region37: #{freq_fft_coupling_forward.9} parent=5 // pred_check
      %p982 = pneg %p981
    $region38: #{freq_fft_coupling_forward.9} parent=5 // pred_check_branch
      %984 = sbr.rel (%p982) target = $region40
    $region39: #{freq_fft_coupling_forward.9} parent=5 // pred_region
      %s985 = ssub.s32 %s9, 2
      // Predicated region
      $region41: #{freq_fft_coupling_forward.9} parent=39 // pred_check
        %p986 = pneg %p106
      $region42: #{freq_fft_coupling_forward.9} parent=39 // pred_check_branch
        %988 = sbr.rel (%p986) target = $region44
      $region43: #{freq_fft_coupling_forward.9} parent=39 // pred_region
        %p989 = scmp.lt.s32.totalorder %s15, 1
        %s990 = scalar_select %p989, %s15, 1
        %s991 = smul.addr %s990, 4
        %s992 = smul.addr %s991, 4
        %s993 = scalar_lea.vmem %s3, %s992
      $region44: #{freq_fft_coupling_forward.9} parent=39 // pred_fallthru
        _
    $region40: #{freq_fft_coupling_forward.9} parent=5 // pred_fallthru
      _
  $region6: #{freq_fft_coupling_forward.9} parent=0 // loop_footer
    %s13 = sadd.s32 1, %s9
  $region7: #{freq_fft_coupling_forward.9} parent=0 // loop_footer_branch
    %8 = sbr.rel target = $region3
  $region8: #{freq_fft_coupling_forward.9} parent=0 // loop_exit
    _

// kernel: freq_fft_coupling_forward.10
$region0: #{freq_fft_coupling_forward.10}
  #allocation0 [shape = 'u32[]', space=smem, size = 0x4, offset = 0x4, fixed_abs, tag = 'smem constant byte address 0x4 - core index']
  #allocation1 [shape = 'u32[144,128]{1,0:T(1,128)}', space=vmem, size = 0x12000, scoped, tag = 'internal scratch']
  %s0 = inlined_call_operand.vmem [shape: bf16[40,32], index: 0, kind: input, shape index: {}]
  %s1 = inlined_call_operand.vmem [shape: f32[4,32], index: 1, kind: input, shape index: {}]
  %s2 = inlined_call_operand.vmem [shape: bf16[32,96], index: 2, kind: input, shape index: {}]
  %s3 = inlined_call_operand.vmem [shape: f32[1,96], index: 3, kind: input, shape index: {}]
  %s4 = inlined_call_operand.vmem [shape: bf16[32,32], index: 4, kind: input, shape index: {}]
  %s5 = inlined_call_operand.vmem [shape: f32[1,32], index: 5, kind: input, shape index: {}]
  %s6 = inlined_call_operand.vmem [shape: bf16[32,128], index: 6, kind: input, shape index: {}]
  %s7 = inlined_call_operand.vmem [shape: f32[1,128], index: 7, kind: input, shape index: {}]
  %s8 = inlined_call_operand.vmem [shape: bf16[128,32], index: 8, kind: input, shape index: {}]
  %s9 = inlined_call_operand.vmem [shape: f32[1,32], index: 9, kind: input, shape index: {}]
  %s10 = inlined_call_operand.vmem [shape: bf16[40,32], index: 10, kind: output, shape index: {}]
  %s11 = sld [smem:[#allocation0]]
  $region50: #{freq_fft_coupling_forward.10} parent=0
    _
  %s13 = ssub.s32 1, %s11
  %s14 = scalar_select 0, %s13, %s11
  // Predicated region
  $region2: #{freq_fft_coupling_forward.10} parent=0 // pred_check
    _
  $region3: #{freq_fft_coupling_forward.10} parent=0 // pred_check_branch
    %16 = sbr.rel (0) target = $region5
  $region4: #{freq_fft_coupling_forward.10} parent=0 // pred_region
    _
  $region5: #{freq_fft_coupling_forward.10} parent=0 // pred_fallthru
    _
  // Predicated region
  $region6: #{freq_fft_coupling_forward.10} parent=0 // pred_check
    _
  $region7: #{freq_fft_coupling_forward.10} parent=0 // pred_check_branch
    %18 = sbr.rel (0) target = $region9
  $region8: #{freq_fft_coupling_forward.10} parent=0 // pred_region
    _
  $region9: #{freq_fft_coupling_forward.10} parent=0 // pred_fallthru
    _
  // Predicated region
  $region10: #{freq_fft_coupling_forward.10} parent=0 // pred_check
    _
  $region11: #{freq_fft_coupling_forward.10} parent=0 // pred_check_branch
    %20 = sbr.rel (0) target = $region13
  $region12: #{freq_fft_coupling_forward.10} parent=0 // pred_region
    _
  $region13: #{freq_fft_coupling_forward.10} parent=0 // pred_fallthru
    _
  // Predicated region
  $region14: #{freq_fft_coupling_forward.10} parent=0 // pred_check
    _
  $region15: #{freq_fft_coupling_forward.10} parent=0 // pred_check_branch
    %22 = sbr.rel (0) target = $region17
  $region16: #{freq_fft_coupling_forward.10} parent=0 // pred_region
    _
  $region17: #{freq_fft_coupling_forward.10} parent=0 // pred_fallthru
    _
  // Predicated region
  $region18: #{freq_fft_coupling_forward.10} parent=0 // pred_check
    _
  $region19: #{freq_fft_coupling_forward.10} parent=0 // pred_check_branch
    %24 = sbr.rel (0) target = $region21
  $region20: #{freq_fft_coupling_forward.10} parent=0 // pred_region
    _
  $region21: #{freq_fft_coupling_forward.10} parent=0 // pred_fallthru
    _
  // Predicated region
  $region22: #{freq_fft_coupling_forward.10} parent=0 // pred_check
    _
  $region23: #{freq_fft_coupling_forward.10} parent=0 // pred_check_branch
    %26 = sbr.rel (0) target = $region25
  $region24: #{freq_fft_coupling_forward.10} parent=0 // pred_region
    _
  $region25: #{freq_fft_coupling_forward.10} parent=0 // pred_fallthru
    _
  // Predicated region
  $region26: #{freq_fft_coupling_forward.10} parent=0 // pred_check
    _
  $region27: #{freq_fft_coupling_forward.10} parent=0 // pred_check_branch
    %28 = sbr.rel (0) target = $region29
  $region28: #{freq_fft_coupling_forward.10} parent=0 // pred_region
    _
  $region29: #{freq_fft_coupling_forward.10} parent=0 // pred_fallthru
    _
  // Predicated region
  $region30: #{freq_fft_coupling_forward.10} parent=0 // pred_check
    _
  $region31: #{freq_fft_coupling_forward.10} parent=0 // pred_check_branch
    %30 = sbr.rel (0) target = $region33
  $region32: #{freq_fft_coupling_forward.10} parent=0 // pred_region
    _
  $region33: #{freq_fft_coupling_forward.10} parent=0 // pred_fallthru
    _
  // Predicated region
  $region34: #{freq_fft_coupling_forward.10} parent=0 // pred_check
    _
  $region35: #{freq_fft_coupling_forward.10} parent=0 // pred_check_branch
    %32 = sbr.rel (0) target = $region37
  $region36: #{freq_fft_coupling_forward.10} parent=0 // pred_region
    _
  $region37: #{freq_fft_coupling_forward.10} parent=0 // pred_fallthru
    _
  // Predicated region
  $region38: #{freq_fft_coupling_forward.10} parent=0 // pred_check
    _
  $region39: #{freq_fft_coupling_forward.10} parent=0 // pred_check_branch
    %34 = sbr.rel (0) target = $region41
  $region40: #{freq_fft_coupling_forward.10} parent=0 // pred_region
    _
  $region41: #{freq_fft_coupling_forward.10} parent=0 // pred_fallthru
    _
  %v36 = vld [vmem:[%s0] sm:$0xf]
  %v37 = vld [vmem:[%s0 + $0x4] sm:$0xf]
  %v38 = vld [vmem:[%s0 + $0x8] sm:$0xf]
  %v39 = vld [vmem:[%s0 + $0xc] sm:$0xf]
  %v40 = vld [vmem:[%s0 + $0x10] sm:$0xf]
  %v41 = vunpack.c.l.bf16 %v36
  %v42 = vunpack.c.l.bf16 %v37
  %v43 = vunpack.c.l.bf16 %v38
  %v44 = vunpack.c.l.bf16 %v39
  %v45 = vunpack.c.l.bf16 %v40
  %v46 = vld [vmem:[%s1] sm:$0xf]
  %vm47 = vcmask 261120
  %v48 = vsel %vm47, %v41, 0.0
  %49 = vadd.xlane.f32.xlu0 %v48
  %v50 = vpop.xlane.xlu0 %49
  %v51 = vsel %vm47, %v42, 0.0
  %52 = vadd.xlane.f32.xlu0 %v51
  %v53 = vpop.xlane.xlu0 %52
  %v54 = vsel %vm47, %v43, 0.0
  %55 = vadd.xlane.f32.xlu0 %v54
  %v56 = vpop.xlane.xlu0 %55
  %v57 = vsel %vm47, %v44, 0.0
  %58 = vadd.xlane.f32.xlu0 %v57
  %v59 = vpop.xlane.xlu0 %58
  %v60 = vsel %vm47, %v45, 0.0
  %61 = vadd.xlane.f32.xlu0 %v60
  %v62 = vpop.xlane.xlu0 %61
  %v63 = vrcp.pop 32.0
  %v64 = vmul.f32 %v50, %v63
  %v65 = vmul.f32 %v53, %v63
  %v66 = vmul.f32 %v56, %v63
  %v67 = vmul.f32 %v59, %v63
  %v68 = vmul.f32 %v62, %v63
  %v69 = vsub.f32 %v41, %v64
  %v70 = vsub.f32 %v42, %v65
  %v71 = vsub.f32 %v43, %v66
  %v72 = vsub.f32 %v44, %v67
  %v73 = vsub.f32 %v45, %v68
  %v74 = vmul.f32 %v69, %v69
  %v75 = vmul.f32 %v70, %v70
  %v76 = vmul.f32 %v71, %v71
  %v77 = vmul.f32 %v72, %v72
  %v78 = vmul.f32 %v73, %v73
  %v79 = vsel %vm47, %v74, 0.0
  %80 = vadd.xlane.f32.xlu0 %v79
  %v81 = vpop.xlane.xlu0 %80
  %v82 = vsel %vm47, %v75, 0.0
  %83 = vadd.xlane.f32.xlu0 %v82
  %v84 = vpop.xlane.xlu0 %83
  %v85 = vsel %vm47, %v76, 0.0
  %86 = vadd.xlane.f32.xlu0 %v85
  %v87 = vpop.xlane.xlu0 %86
  %v88 = vsel %vm47, %v77, 0.0
  %89 = vadd.xlane.f32.xlu0 %v88
  %v90 = vpop.xlane.xlu0 %89
  %v91 = vsel %vm47, %v78, 0.0
  %92 = vadd.xlane.f32.xlu0 %v91
  %v93 = vpop.xlane.xlu0 %92
  %v94 = vmul.f32 %v81, %v63
  %v95 = vmul.f32 %v84, %v63
  %v96 = vmul.f32 %v87, %v63
  %v97 = vmul.f32 %v90, %v63
  %v98 = vmul.f32 %v93, %v63
  %v99 = vadd.f32 %v94, 1e-05
  %v100 = vadd.f32 %v95, 1e-05
  %v101 = vadd.f32 %v96, 1e-05
  %v102 = vadd.f32 %v97, 1e-05
  %v103 = vadd.f32 %v98, 1e-05
  %v104 = vrsqrt.pop %v99
  %v105 = vrsqrt.pop %v100
  %v106 = vrsqrt.pop %v101
  %v107 = vrsqrt.pop %v102
  %v108 = vrsqrt.pop %v103
  %v109 = vmul.f32 %v69, %v104
  %v110 = vmul.f32 %v70, %v105
  %v111 = vmul.f32 %v71, %v106
  %v112 = vmul.f32 %v72, %v107
  %v113 = vmul.f32 %v73, %v108
  %v114 = vlaneseq
  %v115 = vshrl.u32 %v114, 7
  %v116 = vsub.s32 0, %v115
  %v117 = vrot.slane %v46, %v116
  %v118 = vmul.f32 %v109, %v117
  %v119 = vmul.f32 %v110, %v117
  %v120 = vmul.f32 %v111, %v117
  %v121 = vmul.f32 %v112, %v117
  %v122 = vmul.f32 %v113, %v117
  %v123 = vlaneseq
  %v124 = vshrl.u32 %v123, 7
  %v125 = vsub.s32 1, %v124
  %v126 = vrot.slane %v46, %v125
  %v127 = vadd.f32 %v118, %v126
  %v128 = vadd.f32 %v119, %v126
  %v129 = vadd.f32 %v120, %v126
  %v130 = vadd.f32 %v121, %v126
  %v131 = vadd.f32 %v122, %v126
  %v132 = vpack.c.bf16 %v128, %v127
  %v133 = vpack.c.bf16 %v130, %v129
  %v134 = vpack.c.bf16 %v131, %v131
  %v135 = vld [vmem:[%s2] sm:$0xf]
  %v136 = vld [vmem:[%s2 + $0x4] sm:$0xf]
  %v137 = vld [vmem:[%s2 + $0x8] sm:$0xf]
  %v138 = vld [vmem:[%s2 + $0xc] sm:$0xf]
  %v139 = vld [vmem:[%s3] sm:$0x1]
  %v141 = vlaneseq
  %v142 = vshrl.u32 %v141, 7
  %v143 = vsub.s32 0, %v142
  %v144 = vrot.slane %v139, %v143
  %v150 = vunpack.c.l.b16 %v135
  %v151 = vunpack.c.l.b16 %v136
  %v152 = vunpack.c.l.b16 %v137
  %v153 = vunpack.c.l.b16 %v138
  %v154 = vpack.c.b16 %v151, %v150
  %v155 = vpack.c.b16 %v153, %v152
  %v159 = vsel %vm47, %v132, 0
  %v162 = vsel %vm47, %v133, 0
  %v165 = vsel %vm47, %v134, 0
  %167 = vmatprep.subr.bf16.mxu0 0
  %168 = vmatpush1.bf16.msra.mxu0 0
  %169 = vmatprep.subr.bf16.mxu0 0
  %170 = vmatpush1.bf16.msra.mxu0 0
  %171 = vmatprep.subr.bf16.mxu0 0
  %172 = vmatpush1.bf16.msra.mxu0 0
  %173 = vmatprep.subr.bf16.mxu0 0
  %174 = vmatpush1.bf16.msra.mxu0 0
  %175 = vmatprep.subr.bf16.mxu0 0
  %176 = vmatpush1.bf16.msra.mxu0 0
  %177 = vmatprep.subr.bf16.mxu0 0
  %178 = vmatpush1.bf16.msra.mxu0 0
  %179 = vmatprep.subr.bf16.mxu0 0
  %180 = vmatpush1.bf16.msra.mxu0 %v155
  %181 = vmatprep.subr.bf16.mxu0 0
  %182 = vmatpush1.bf16.msra.mxu0 %v154
  %183 = vmatprep.subr.bf16.mxu0 0
  %184 = vmatpush2.bf16.msra.mxu0 0
  %185 = vmatprep.subr.bf16.mxu0 0
  %186 = vmatpush2.bf16.msra.mxu0 0
  %187 = vmatprep.subr.bf16.mxu0 0
  %188 = vmatpush2.bf16.msra.mxu0 0
  %189 = vmatprep.subr.bf16.mxu0 0
  %190 = vmatpush2.bf16.msra.mxu0 0
  %191 = vmatprep.subr.bf16.mxu0 0
  %192 = vmatpush2.bf16.msra.mxu0 0
  %193 = vmatprep.subr.bf16.mxu0 0
  %194 = vmatpush2.bf16.msra.mxu0 0
  %195 = vmatprep.subr.bf16.mxu0 0
  %196 = vmatpush2.bf16.msra.mxu0 0
  %197 = vmatprep.subr.bf16.mxu0 0
  %198 = vmatpush2.bf16.msra.mxu0 0
  %199 = vmatprep.mubr.bf16.mxu0 0
  %200 = vmatmul.mubr.bf16.gmra.mxu0 %v159
  %v201 = vpop.f32.mrf.mxu0
  %v202 = vadd.f32 %v144, %v201
  %v203 = vpop.f32.mrf.mxu0
  %v204 = vpop.f32.mrf.mxu0
  %v205 = vadd.f32 %v144, %v204
  %v206 = vpop.f32.mrf.mxu0
  %207 = vmatprep.mubr.bf16.mxu0 0
  %208 = vmatmul.mubr.bf16.gmra.mxu0 %v162
  %v209 = vpop.f32.mrf.mxu0
  %v210 = vadd.f32 %v144, %v209
  %v211 = vpop.f32.mrf.mxu0
  %v212 = vpop.f32.mrf.mxu0
  %v213 = vadd.f32 %v144, %v212
  %v214 = vpop.f32.mrf.mxu0
  %215 = vmatprep.mubr.bf16.mxu0 0
  %216 = vmatmul.mubr.bf16.gmra.mxu0 %v165
  %v217 = vpop.f32.mrf.mxu0
  %v218 = vadd.f32 %v144, %v217
  %v219 = vpop.f32.mrf.mxu0
  %v220 = vpop.f32.mrf.mxu0
  %v221 = vpop.f32.mrf.mxu0
  %222 = vdwg.mxu0
  %v223 = vlaneseq
  %v224 = vshrl.u32 %v223, 7
  %v225 = vadd.s32 %v224, 8
  %v226 = vadd.s32 %v224, 16
  %v227 = vadd.s32 %v224, 24
  %v228 = vadd.s32 %v224, 32
  %v229 = vcvt.s32.f32 %v224
  %v230 = vcvt.s32.f32 %v225
  %v231 = vcvt.s32.f32 %v226
  %v232 = vcvt.s32.f32 %v227
  %v233 = vcvt.s32.f32 %v228
  %v234 = vlaneseq
  %v235 = vand.u32 %v234, 127
  %v236 = vcvt.s32.f32 %v235
  %v237 = vadd.f32 %v229, 0.5
  %v238 = vadd.f32 %v230, 0.5
  %v239 = vadd.f32 %v231, 0.5
  %v240 = vadd.f32 %v232, 0.5
  %v241 = vadd.f32 %v233, 0.5
  %v242 = vmul.f32 %v237, 0.1
  %v243 = vmul.f32 %v238, 0.1
  %v244 = vmul.f32 %v239, 0.1
  %v245 = vmul.f32 %v240, 0.1
  %v246 = vmul.f32 %v241, 0.1
  %v247 = vfloor.f32 %v242
  %v248 = vfloor.f32 %v243
  %v249 = vfloor.f32 %v244
  %v250 = vfloor.f32 %v245
  %v251 = vfloor.f32 %v246
  %v252 = vadd.f32 %v236, 0.5
  %v253 = vmul.f32 %v252, 0.1
  %v254 = vfloor.f32 %v253
  %vm255 = vcmp.eq.f32.partialorder %v247, %v254
  %vm256 = vcmp.eq.f32.partialorder %v248, %v254
  %vm257 = vcmp.eq.f32.partialorder %v249, %v254
  %vm258 = vcmp.eq.f32.partialorder %v250, %v254
  %vm259 = vcmp.eq.f32.partialorder %v251, %v254
  %s260 = smul.u32 0, 40
  %s261 = scvt.s32.f32 %s260
  %v262 = vstv %s261
  %v263 = vadd.f32 %v236, %v262
  %vm264 = vcmp.lt.f32.partialorder %v263, 40.0
  %v265 = vsel %vm264, 1, 0
  %vm266 = vcmp.eq.s32.totalorder %v265, 1
  %vm267 = vmand %vm255, %vm266
  %vm268 = vmand %vm256, %vm266
  %vm269 = vmand %vm257, %vm266
  %vm270 = vmand %vm258, %vm266
  %vm271 = vmand %vm259, %vm266
  %v272 = vpack.c.bf16 %v205, %v202
  %v273 = vpack.c.bf16 %v213, %v210
  %v274 = vpack.c.bf16 %v218, %v218
  %278 = vrot.lane.b32.xlu0 %v272, 96
  %v279 = vpop.permute.xlu0 %278
  %280 = vrot.lane.b32.xlu0 %v273, 96
  %v281 = vpop.permute.xlu0 %280
  %282 = vrot.lane.b32.xlu0 %v274, 96
  %v283 = vpop.permute.xlu0 %282
  %vm284 = vcmask 130048
  %v286 = vsel %vm284, %v272, 0
  %v289 = vsel %vm284, %v273, 0
  %v292 = vsel %vm284, %v274, 0
  %v295 = vsel %vm284, %v279, 0
  %v298 = vsel %vm284, %v281, 0
  %v301 = vsel %vm284, %v283, 0
  %303 = vmatprep.subr.bf16.mxu0 0
  %304 = vmatpush1.bf16.xpose.msra.mxu0 0
  %305 = vmatprep.subr.bf16.mxu0 0
  %306 = vmatpush1.bf16.xpose.msra.mxu0 0
  %307 = vmatprep.subr.bf16.mxu0 0
  %308 = vmatpush1.bf16.xpose.msra.mxu0 0
  %309 = vmatprep.subr.bf16.mxu0 0
  %310 = vmatpush1.bf16.xpose.msra.mxu0 0
  %311 = vmatprep.subr.bf16.mxu0 0
  %312 = vmatpush1.bf16.xpose.msra.mxu0 0
  %313 = vmatprep.subr.bf16.mxu0 0
  %314 = vmatpush1.bf16.xpose.msra.mxu0 %v301
  %315 = vmatprep.subr.bf16.mxu0 0
  %316 = vmatpush1.bf16.xpose.msra.mxu0 %v298
  %317 = vmatprep.subr.bf16.mxu0 0
  %318 = vmatpush1.bf16.xpose.msra.mxu0 %v295
  %319 = vmatprep.subr.bf16.mxu0 0
  %320 = vmatpush2.bf16.xpose.msra.mxu0 0
  %321 = vmatprep.subr.bf16.mxu0 0
  %322 = vmatpush2.bf16.xpose.msra.mxu0 0
  %323 = vmatprep.subr.bf16.mxu0 0
  %324 = vmatpush2.bf16.xpose.msra.mxu0 0
  %325 = vmatprep.subr.bf16.mxu0 0
  %326 = vmatpush2.bf16.xpose.msra.mxu0 0
  %327 = vmatprep.subr.bf16.mxu0 0
  %328 = vmatpush2.bf16.xpose.msra.mxu0 0
  %329 = vmatprep.subr.bf16.mxu0 0
  %330 = vmatpush2.bf16.xpose.msra.mxu0 0
  %331 = vmatprep.subr.bf16.mxu0 0
  %332 = vmatpush2.bf16.xpose.msra.mxu0 0
  %333 = vmatprep.subr.bf16.mxu0 0
  %334 = vmatpush2.bf16.xpose.msra.mxu0 0
  %335 = vmatprep.mubr.bf16.mxu0 0
  %336 = vmatmul.mubr.bf16.gmra.mxu0 %v286
  %v337 = vpop.f32.mrf.mxu0
  %v338 = vadd.f32 0.0, %v337
  %v339 = vpop.f32.mrf.mxu0
  %v340 = vpop.f32.mrf.mxu0
  %v341 = vadd.f32 0.0, %v340
  %v342 = vpop.f32.mrf.mxu0
  %343 = vmatprep.mubr.bf16.mxu0 0
  %344 = vmatmul.mubr.bf16.gmra.mxu0 %v289
  %v345 = vpop.f32.mrf.mxu0
  %v346 = vadd.f32 0.0, %v345
  %v347 = vpop.f32.mrf.mxu0
  %v348 = vpop.f32.mrf.mxu0
  %v349 = vadd.f32 0.0, %v348
  %v350 = vpop.f32.mrf.mxu0
  %351 = vmatprep.mubr.bf16.mxu0 0
  %352 = vmatmul.mubr.bf16.gmra.mxu0 %v292
  %v353 = vpop.f32.mrf.mxu0
  %v354 = vadd.f32 0.0, %v353
  %v355 = vpop.f32.mrf.mxu0
  %v356 = vpop.f32.mrf.mxu0
  %v357 = vpop.f32.mrf.mxu0
  %358 = vdwg.mxu0
  %v359 = vmul.f32 %v338, 0.25
  %v360 = vmul.f32 %v341, 0.25
  %v361 = vmul.f32 %v346, 0.25
  %v362 = vmul.f32 %v349, 0.25
  %v363 = vmul.f32 %v354, 0.25
  %v364 = vsel %vm267, %v359, -1e+30
  %v365 = vsel %vm268, %v360, -1e+30
  %v366 = vsel %vm269, %v361, -1e+30
  %v367 = vsel %vm270, %v362, -1e+30
  %v368 = vsel %vm271, %v363, -1e+30
  %vm369 = vcmask 326656
  %v370 = vsel %vm369, %v364, -inf
  %371 = vmax.xlane.f32.xlu0 %v370
  %v372 = vpop.xlane.xlu0 %371
  %v373 = vsel %vm369, %v365, -inf
  %374 = vmax.xlane.f32.xlu0 %v373
  %v375 = vpop.xlane.xlu0 %374
  %v376 = vsel %vm369, %v366, -inf
  %377 = vmax.xlane.f32.xlu0 %v376
  %v378 = vpop.xlane.xlu0 %377
  %v379 = vsel %vm369, %v367, -inf
  %380 = vmax.xlane.f32.xlu0 %v379
  %v381 = vpop.xlane.xlu0 %380
  %v382 = vsel %vm369, %v368, -inf
  %383 = vmax.xlane.f32.xlu0 %v382
  %v384 = vpop.xlane.xlu0 %383
  %v385 = vsub.f32 %v364, %v372
  %v386 = vsub.f32 %v365, %v375
  %v387 = vsub.f32 %v366, %v378
  %v388 = vsub.f32 %v367, %v381
  %v389 = vsub.f32 %v368, %v384
  %v390 = vmul.f32 %v385, 1.442695
  %v391 = vpow.pop %v390
  %v392 = vmul.f32 %v386, 1.442695
  %v393 = vpow.pop %v392
  %v394 = vmul.f32 %v387, 1.442695
  %v395 = vpow.pop %v394
  %v396 = vmul.f32 %v388, 1.442695
  %v397 = vpow.pop %v396
  %v398 = vmul.f32 %v389, 1.442695
  %v399 = vpow.pop %v398
  %v400 = vsel %vm369, %v391, 0.0
  %401 = vadd.xlane.f32.xlu0 %v400
  %v402 = vpop.xlane.xlu0 %401
  %v403 = vsel %vm369, %v393, 0.0
  %404 = vadd.xlane.f32.xlu0 %v403
  %v405 = vpop.xlane.xlu0 %404
  %v406 = vsel %vm369, %v395, 0.0
  %407 = vadd.xlane.f32.xlu0 %v406
  %v408 = vpop.xlane.xlu0 %407
  %v409 = vsel %vm369, %v397, 0.0
  %410 = vadd.xlane.f32.xlu0 %v409
  %v411 = vpop.xlane.xlu0 %410
  %v412 = vsel %vm369, %v399, 0.0
  %413 = vadd.xlane.f32.xlu0 %v412
  %v414 = vpop.xlane.xlu0 %413
  %v415 = vrcp.pop %v402
  %v416 = vrcp.pop %v405
  %v417 = vrcp.pop %v408
  %v418 = vrcp.pop %v411
  %v419 = vrcp.pop %v414
  %v420 = vmul.f32 %v391, %v415
  %v421 = vmul.f32 %v393, %v416
  %v422 = vmul.f32 %v395, %v417
  %v423 = vmul.f32 %v397, %v418
  %v424 = vmul.f32 %v399, %v419
  %v425 = vpack.c.bf16 %v421, %v420
  %v426 = vpack.c.bf16 %v423, %v422
  %v427 = vpack.c.bf16 %v424, %v424
  %428 = vrot.lane.b32.xlu0 %v272, 64
  %v429 = vpop.permute.xlu0 %428
  %430 = vrot.lane.b32.xlu0 %v273, 64
  %v431 = vpop.permute.xlu0 %430
  %432 = vrot.lane.b32.xlu0 %v274, 64
  %v433 = vpop.permute.xlu0 %432
  %v437 = vsel %vm369, %v425, 0
  %v440 = vsel %vm369, %v426, 0
  %v443 = vsel %vm369, %v427, 0
  %vm445 = vcmask 1043456
  %v447 = vsel %vm445, %v433, 0
  %449 = vmatprep.subr.bf16.mxu0 0
  %450 = vmatpush1.bf16.msra.mxu0 0
  %451 = vmatprep.subr.bf16.mxu0 0
  %452 = vmatpush1.bf16.msra.mxu0 0
  %453 = vmatprep.subr.bf16.mxu0 0
  %454 = vmatpush1.bf16.msra.mxu0 0
  %455 = vmatprep.subr.bf16.mxu0 0
  %456 = vmatpush1.bf16.msra.mxu0 0
  %457 = vmatprep.subr.bf16.mxu0 0
  %458 = vmatpush1.bf16.msra.mxu0 0
  %459 = vmatprep.subr.bf16.mxu0 0
  %460 = vmatpush1.bf16.msra.mxu0 %v447
  %461 = vmatprep.subr.bf16.mxu0 0
  %462 = vmatpush1.bf16.msra.mxu0 %v431
  %463 = vmatprep.subr.bf16.mxu0 0
  %464 = vmatpush1.bf16.msra.mxu0 %v429
  %465 = vmatprep.subr.bf16.mxu0 0
  %466 = vmatpush2.bf16.msra.mxu0 0
  %467 = vmatprep.subr.bf16.mxu0 0
  %468 = vmatpush2.bf16.msra.mxu0 0
  %469 = vmatprep.subr.bf16.mxu0 0
  %470 = vmatpush2.bf16.msra.mxu0 0
  %471 = vmatprep.subr.bf16.mxu0 0
  %472 = vmatpush2.bf16.msra.mxu0 0
  %473 = vmatprep.subr.bf16.mxu0 0
  %474 = vmatpush2.bf16.msra.mxu0 0
  %475 = vmatprep.subr.bf16.mxu0 0
  %476 = vmatpush2.bf16.msra.mxu0 0
  %477 = vmatprep.subr.bf16.mxu0 0
  %478 = vmatpush2.bf16.msra.mxu0 0
  %479 = vmatprep.subr.bf16.mxu0 0
  %480 = vmatpush2.bf16.msra.mxu0 0
  %481 = vmatprep.mubr.bf16.mxu0 0
  %482 = vmatmul.mubr.bf16.gmra.mxu0 %v437
  %v483 = vpop.f32.mrf.mxu0
  %v484 = vadd.f32 0.0, %v483
  %v485 = vpop.f32.mrf.mxu0
  %v486 = vpop.f32.mrf.mxu0
  %v487 = vadd.f32 0.0, %v486
  %v488 = vpop.f32.mrf.mxu0
  %489 = vmatprep.mubr.bf16.mxu0 0
  %490 = vmatmul.mubr.bf16.gmra.mxu0 %v440
  %v491 = vpop.f32.mrf.mxu0
  %v492 = vadd.f32 0.0, %v491
  %v493 = vpop.f32.mrf.mxu0
  %v494 = vpop.f32.mrf.mxu0
  %v495 = vadd.f32 0.0, %v494
  %v496 = vpop.f32.mrf.mxu0
  %497 = vmatprep.mubr.bf16.mxu0 0
  %498 = vmatmul.mubr.bf16.gmra.mxu0 %v443
  %v499 = vpop.f32.mrf.mxu0
  %v500 = vadd.f32 0.0, %v499
  %v501 = vpop.f32.mrf.mxu0
  %v502 = vpop.f32.mrf.mxu0
  %v503 = vpop.f32.mrf.mxu0
  %504 = vdwg.mxu0
  %v505 = vpack.c.bf16 %v487, %v484
  %v506 = vpack.c.bf16 %v495, %v492
  %v507 = vpack.c.bf16 %v500, %v500
  %v508 = vld [vmem:[%s4] sm:$0xf]
  %v509 = vld [vmem:[%s4 + $0x4] sm:$0xf]
  %v512 = vunpack.c.l.b16 %v508
  %v513 = vunpack.c.l.b16 %v509
  %v514 = vpack.c.b16 %v513, %v512
  %v517 = vsel %vm284, %v505, 0
  %v520 = vsel %vm284, %v506, 0
  %v523 = vsel %vm284, %v507, 0
  %525 = vmatprep.subr.bf16.mxu0 0
  %526 = vmatpush1.bf16.msra.mxu0 0
  %527 = vmatprep.subr.bf16.mxu0 0
  %528 = vmatpush1.bf16.msra.mxu0 0
  %529 = vmatprep.subr.bf16.mxu0 0
  %530 = vmatpush1.bf16.msra.mxu0 0
  %531 = vmatprep.subr.bf16.mxu0 0
  %532 = vmatpush1.bf16.msra.mxu0 0
  %533 = vmatprep.subr.bf16.mxu0 0
  %534 = vmatpush1.bf16.msra.mxu0 0
  %535 = vmatprep.subr.bf16.mxu0 0
  %536 = vmatpush1.bf16.msra.mxu0 0
  %537 = vmatprep.subr.bf16.mxu0 0
  %538 = vmatpush1.bf16.msra.mxu0 0
  %539 = vmatprep.subr.bf16.mxu0 0
  %540 = vmatpush1.bf16.msra.mxu0 %v514
  %541 = vmatprep.subr.bf16.mxu0 0
  %542 = vmatpush2.bf16.msra.mxu0 0
  %543 = vmatprep.subr.bf16.mxu0 0
  %544 = vmatpush2.bf16.msra.mxu0 0
  %545 = vmatprep.subr.bf16.mxu0 0
  %546 = vmatpush2.bf16.msra.mxu0 0
  %547 = vmatprep.subr.bf16.mxu0 0
  %548 = vmatpush2.bf16.msra.mxu0 0
  %549 = vmatprep.subr.bf16.mxu0 0
  %550 = vmatpush2.bf16.msra.mxu0 0
  %551 = vmatprep.subr.bf16.mxu0 0
  %552 = vmatpush2.bf16.msra.mxu0 0
  %553 = vmatprep.subr.bf16.mxu0 0
  %554 = vmatpush2.bf16.msra.mxu0 0
  %555 = vmatprep.subr.bf16.mxu0 0
  %556 = vmatpush2.bf16.msra.mxu0 0
  %557 = vmatprep.mubr.bf16.mxu0 0
  %558 = vmatmul.mubr.bf16.gmra.mxu0 %v517
  %v559 = vpop.f32.mrf.mxu0
  %v560 = vadd.f32 0.0, %v559
  %v561 = vpop.f32.mrf.mxu0
  %v562 = vpop.f32.mrf.mxu0
  %v563 = vadd.f32 0.0, %v562
  %v564 = vpop.f32.mrf.mxu0
  %565 = vmatprep.mubr.bf16.mxu0 0
  %566 = vmatmul.mubr.bf16.gmra.mxu0 %v520
  %v567 = vpop.f32.mrf.mxu0
  %v568 = vadd.f32 0.0, %v567
  %v569 = vpop.f32.mrf.mxu0
  %v570 = vpop.f32.mrf.mxu0
  %v571 = vadd.f32 0.0, %v570
  %v572 = vpop.f32.mrf.mxu0
  %573 = vmatprep.mubr.bf16.mxu0 0
  %574 = vmatmul.mubr.bf16.gmra.mxu0 %v523
  %v575 = vpop.f32.mrf.mxu0
  %v576 = vadd.f32 0.0, %v575
  %v577 = vpop.f32.mrf.mxu0
  %v578 = vpop.f32.mrf.mxu0
  %v579 = vpop.f32.mrf.mxu0
  %580 = vdwg.mxu0
  %v581 = vadd.f32 %v41, %v560
  %v582 = vadd.f32 %v42, %v563
  %v583 = vadd.f32 %v43, %v568
  %v584 = vadd.f32 %v44, %v571
  %v585 = vadd.f32 %v45, %v576
  %586 = vrot.lane.b32.xlu0 %v272, 112
  %v587 = vpop.permute.xlu0 %586
  %588 = vrot.lane.b32.xlu0 %v273, 112
  %v589 = vpop.permute.xlu0 %588
  %590 = vrot.lane.b32.xlu0 %v274, 112
  %v591 = vpop.permute.xlu0 %590
  %592 = vrot.lane.b32.xlu0 %v272, 80
  %v593 = vpop.permute.xlu0 %592
  %594 = vrot.lane.b32.xlu0 %v273, 80
  %v595 = vpop.permute.xlu0 %594
  %596 = vrot.lane.b32.xlu0 %v274, 80
  %v597 = vpop.permute.xlu0 %596
  %v599 = vsel %vm284, %v587, 0
  %v602 = vsel %vm284, %v589, 0
  %v605 = vsel %vm284, %v591, 0
  %v608 = vsel %vm284, %v593, 0
  %v611 = vsel %vm284, %v595, 0
  %v614 = vsel %vm284, %v597, 0
  %616 = vmatprep.subr.bf16.mxu0 0
  %617 = vmatpush1.bf16.xpose.msra.mxu0 0
  %618 = vmatprep.subr.bf16.mxu0 0
  %619 = vmatpush1.bf16.xpose.msra.mxu0 0
  %620 = vmatprep.subr.bf16.mxu0 0
  %621 = vmatpush1.bf16.xpose.msra.mxu0 0
  %622 = vmatprep.subr.bf16.mxu0 0
  %623 = vmatpush1.bf16.xpose.msra.mxu0 0
  %624 = vmatprep.subr.bf16.mxu0 0
  %625 = vmatpush1.bf16.xpose.msra.mxu0 0
  %626 = vmatprep.subr.bf16.mxu0 0
  %627 = vmatpush1.bf16.xpose.msra.mxu0 %v614
  %628 = vmatprep.subr.bf16.mxu0 0
  %629 = vmatpush1.bf16.xpose.msra.mxu0 %v611
  %630 = vmatprep.subr.bf16.mxu0 0
  %631 = vmatpush1.bf16.xpose.msra.mxu0 %v608
  %632 = vmatprep.subr.bf16.mxu0 0
  %633 = vmatpush2.bf16.xpose.msra.mxu0 0
  %634 = vmatprep.subr.bf16.mxu0 0
  %635 = vmatpush2.bf16.xpose.msra.mxu0 0
  %636 = vmatprep.subr.bf16.mxu0 0
  %637 = vmatpush2.bf16.xpose.msra.mxu0 0
  %638 = vmatprep.subr.bf16.mxu0 0
  %639 = vmatpush2.bf16.xpose.msra.mxu0 0
  %640 = vmatprep.subr.bf16.mxu0 0
  %641 = vmatpush2.bf16.xpose.msra.mxu0 0
  %642 = vmatprep.subr.bf16.mxu0 0
  %643 = vmatpush2.bf16.xpose.msra.mxu0 0
  %644 = vmatprep.subr.bf16.mxu0 0
  %645 = vmatpush2.bf16.xpose.msra.mxu0 0
  %646 = vmatprep.subr.bf16.mxu0 0
  %647 = vmatpush2.bf16.xpose.msra.mxu0 0
  %648 = vmatprep.mubr.bf16.mxu0 0
  %649 = vmatmul.mubr.bf16.gmra.mxu0 %v599
  %v650 = vpop.f32.mrf.mxu0
  %v651 = vadd.f32 0.0, %v650
  %v652 = vpop.f32.mrf.mxu0
  %v653 = vpop.f32.mrf.mxu0
  %v654 = vadd.f32 0.0, %v653
  %v655 = vpop.f32.mrf.mxu0
  %656 = vmatprep.mubr.bf16.mxu0 0
  %657 = vmatmul.mubr.bf16.gmra.mxu0 %v602
  %v658 = vpop.f32.mrf.mxu0
  %v659 = vadd.f32 0.0, %v658
  %v660 = vpop.f32.mrf.mxu0
  %v661 = vpop.f32.mrf.mxu0
  %v662 = vadd.f32 0.0, %v661
  %v663 = vpop.f32.mrf.mxu0
  %664 = vmatprep.mubr.bf16.mxu0 0
  %665 = vmatmul.mubr.bf16.gmra.mxu0 %v605
  %v666 = vpop.f32.mrf.mxu0
  %v667 = vadd.f32 0.0, %v666
  %v668 = vpop.f32.mrf.mxu0
  %v669 = vpop.f32.mrf.mxu0
  %v670 = vpop.f32.mrf.mxu0
  %671 = vdwg.mxu0
  %v672 = vmul.f32 %v651, 0.25
  %v673 = vmul.f32 %v654, 0.25
  %v674 = vmul.f32 %v659, 0.25
  %v675 = vmul.f32 %v662, 0.25
  %v676 = vmul.f32 %v667, 0.25
  %v677 = vsel %vm267, %v672, -1e+30
  %v678 = vsel %vm268, %v673, -1e+30
  %v679 = vsel %vm269, %v674, -1e+30
  %v680 = vsel %vm270, %v675, -1e+30
  %v681 = vsel %vm271, %v676, -1e+30
  %v682 = vsel %vm369, %v677, -inf
  %683 = vmax.xlane.f32.xlu0 %v682
  %v684 = vpop.xlane.xlu0 %683
  %v685 = vsel %vm369, %v678, -inf
  %686 = vmax.xlane.f32.xlu0 %v685
  %v687 = vpop.xlane.xlu0 %686
  %v688 = vsel %vm369, %v679, -inf
  %689 = vmax.xlane.f32.xlu0 %v688
  %v690 = vpop.xlane.xlu0 %689
  %v691 = vsel %vm369, %v680, -inf
  %692 = vmax.xlane.f32.xlu0 %v691
  %v693 = vpop.xlane.xlu0 %692
  %v694 = vsel %vm369, %v681, -inf
  %695 = vmax.xlane.f32.xlu0 %v694
  %v696 = vpop.xlane.xlu0 %695
  %v697 = vsub.f32 %v677, %v684
  %v698 = vsub.f32 %v678, %v687
  %v699 = vsub.f32 %v679, %v690
  %v700 = vsub.f32 %v680, %v693
  %v701 = vsub.f32 %v681, %v696
  %v702 = vmul.f32 %v697, 1.442695
  %v703 = vpow.pop %v702
  %v704 = vmul.f32 %v698, 1.442695
  %v705 = vpow.pop %v704
  %v706 = vmul.f32 %v699, 1.442695
  %v707 = vpow.pop %v706
  %v708 = vmul.f32 %v700, 1.442695
  %v709 = vpow.pop %v708
  %v710 = vmul.f32 %v701, 1.442695
  %v711 = vpow.pop %v710
  %v712 = vsel %vm369, %v703, 0.0
  %713 = vadd.xlane.f32.xlu0 %v712
  %v714 = vpop.xlane.xlu0 %713
  %v715 = vsel %vm369, %v705, 0.0
  %716 = vadd.xlane.f32.xlu0 %v715
  %v717 = vpop.xlane.xlu0 %716
  %v718 = vsel %vm369, %v707, 0.0
  %719 = vadd.xlane.f32.xlu0 %v718
  %v720 = vpop.xlane.xlu0 %719
  %v721 = vsel %vm369, %v709, 0.0
  %722 = vadd.xlane.f32.xlu0 %v721
  %v723 = vpop.xlane.xlu0 %722
  %v724 = vsel %vm369, %v711, 0.0
  %725 = vadd.xlane.f32.xlu0 %v724
  %v726 = vpop.xlane.xlu0 %725
  %v727 = vrcp.pop %v714
  %v728 = vrcp.pop %v717
  %v729 = vrcp.pop %v720
  %v730 = vrcp.pop %v723
  %v731 = vrcp.pop %v726
  %v732 = vmul.f32 %v703, %v727
  %v733 = vmul.f32 %v705, %v728
  %v734 = vmul.f32 %v707, %v729
  %v735 = vmul.f32 %v709, %v730
  %v736 = vmul.f32 %v711, %v731
  %v737 = vpack.c.bf16 %v733, %v732
  %v738 = vpack.c.bf16 %v735, %v734
  %v739 = vpack.c.bf16 %v736, %v736
  %740 = vrot.lane.b32.xlu0 %v272, 48
  %v741 = vpop.permute.xlu0 %740
  %742 = vrot.lane.b32.xlu0 %v273, 48
  %v743 = vpop.permute.xlu0 %742
  %744 = vrot.lane.b32.xlu0 %v274, 48
  %v745 = vpop.permute.xlu0 %744
  %v749 = vsel %vm369, %v737, 0
  %v752 = vsel %vm369, %v738, 0
  %v755 = vsel %vm369, %v739, 0
  %v758 = vsel %vm445, %v745, 0
  %760 = vmatprep.subr.bf16.mxu0 0
  %761 = vmatpush1.bf16.msra.mxu0 0
  %762 = vmatprep.subr.bf16.mxu0 0
  %763 = vmatpush1.bf16.msra.mxu0 0
  %764 = vmatprep.subr.bf16.mxu0 0
  %765 = vmatpush1.bf16.msra.mxu0 0
  %766 = vmatprep.subr.bf16.mxu0 0
  %767 = vmatpush1.bf16.msra.mxu0 0
  %768 = vmatprep.subr.bf16.mxu0 0
  %769 = vmatpush1.bf16.msra.mxu0 0
  %770 = vmatprep.subr.bf16.mxu0 0
  %771 = vmatpush1.bf16.msra.mxu0 %v758
  %772 = vmatprep.subr.bf16.mxu0 0
  %773 = vmatpush1.bf16.msra.mxu0 %v743
  %774 = vmatprep.subr.bf16.mxu0 0
  %775 = vmatpush1.bf16.msra.mxu0 %v741
  %776 = vmatprep.subr.bf16.mxu0 0
  %777 = vmatpush2.bf16.msra.mxu0 0
  %778 = vmatprep.subr.bf16.mxu0 0
  %779 = vmatpush2.bf16.msra.mxu0 0
  %780 = vmatprep.subr.bf16.mxu0 0
  %781 = vmatpush2.bf16.msra.mxu0 0
  %782 = vmatprep.subr.bf16.mxu0 0
  %783 = vmatpush2.bf16.msra.mxu0 0
  %784 = vmatprep.subr.bf16.mxu0 0
  %785 = vmatpush2.bf16.msra.mxu0 0
  %786 = vmatprep.subr.bf16.mxu0 0
  %787 = vmatpush2.bf16.msra.mxu0 0
  %788 = vmatprep.subr.bf16.mxu0 0
  %789 = vmatpush2.bf16.msra.mxu0 0
  %790 = vmatprep.subr.bf16.mxu0 0
  %791 = vmatpush2.bf16.msra.mxu0 0
  %792 = vmatprep.mubr.bf16.mxu0 0
  %793 = vmatmul.mubr.bf16.gmra.mxu0 %v749
  %v794 = vpop.f32.mrf.mxu0
  %v795 = vadd.f32 0.0, %v794
  %v796 = vpop.f32.mrf.mxu0
  %v797 = vpop.f32.mrf.mxu0
  %v798 = vadd.f32 0.0, %v797
  %v799 = vpop.f32.mrf.mxu0
  %800 = vmatprep.mubr.bf16.mxu0 0
  %801 = vmatmul.mubr.bf16.gmra.mxu0 %v752
  %v802 = vpop.f32.mrf.mxu0
  %v803 = vadd.f32 0.0, %v802
  %v804 = vpop.f32.mrf.mxu0
  %v805 = vpop.f32.mrf.mxu0
  %v806 = vadd.f32 0.0, %v805
  %v807 = vpop.f32.mrf.mxu0
  %808 = vmatprep.mubr.bf16.mxu0 0
  %809 = vmatmul.mubr.bf16.gmra.mxu0 %v755
  %v810 = vpop.f32.mrf.mxu0
  %v811 = vadd.f32 0.0, %v810
  %v812 = vpop.f32.mrf.mxu0
  %v813 = vpop.f32.mrf.mxu0
  %v814 = vpop.f32.mrf.mxu0
  %815 = vdwg.mxu0
  %v816 = vpack.c.bf16 %v798, %v795
  %v817 = vpack.c.bf16 %v806, %v803
  %v818 = vpack.c.bf16 %v811, %v811
  %v819 = vld [vmem:[%s4 + $0x8] sm:$0xf]
  %v820 = vld [vmem:[%s4 + $0xc] sm:$0xf]
  %v823 = vunpack.c.l.b16 %v819
  %v824 = vunpack.c.l.b16 %v820
  %v825 = vpack.c.b16 %v824, %v823
  %v828 = vsel %vm284, %v816, 0
  %v831 = vsel %vm284, %v817, 0
  %v834 = vsel %vm284, %v818, 0
  %836 = vmatprep.subr.bf16.mxu0 0
  %837 = vmatpush1.bf16.msra.mxu0 0
  %838 = vmatprep.subr.bf16.mxu0 0
  %839 = vmatpush1.bf16.msra.mxu0 0
  %840 = vmatprep.subr.bf16.mxu0 0
  %841 = vmatpush1.bf16.msra.mxu0 0
  %842 = vmatprep.subr.bf16.mxu0 0
  %843 = vmatpush1.bf16.msra.mxu0 0
  %844 = vmatprep.subr.bf16.mxu0 0
  %845 = vmatpush1.bf16.msra.mxu0 0
  %846 = vmatprep.subr.bf16.mxu0 0
  %847 = vmatpush1.bf16.msra.mxu0 0
  %848 = vmatprep.subr.bf16.mxu0 0
  %849 = vmatpush1.bf16.msra.mxu0 0
  %850 = vmatprep.subr.bf16.mxu0 0
  %851 = vmatpush1.bf16.msra.mxu0 %v825
  %852 = vmatprep.subr.bf16.mxu0 0
  %853 = vmatpush2.bf16.msra.mxu0 0
  %854 = vmatprep.subr.bf16.mxu0 0
  %855 = vmatpush2.bf16.msra.mxu0 0
  %856 = vmatprep.subr.bf16.mxu0 0
  %857 = vmatpush2.bf16.msra.mxu0 0
  %858 = vmatprep.subr.bf16.mxu0 0
  %859 = vmatpush2.bf16.msra.mxu0 0
  %860 = vmatprep.subr.bf16.mxu0 0
  %861 = vmatpush2.bf16.msra.mxu0 0
  %862 = vmatprep.subr.bf16.mxu0 0
  %863 = vmatpush2.bf16.msra.mxu0 0
  %864 = vmatprep.subr.bf16.mxu0 0
  %865 = vmatpush2.bf16.msra.mxu0 0
  %866 = vmatprep.subr.bf16.mxu0 0
  %867 = vmatpush2.bf16.msra.mxu0 0
  %868 = vmatprep.mubr.bf16.mxu0 0
  %869 = vmatmul.mubr.bf16.gmra.mxu0 %v828
  %v870 = vpop.f32.mrf.mxu0
  %v871 = vadd.f32 0.0, %v870
  %v872 = vpop.f32.mrf.mxu0
  %v873 = vpop.f32.mrf.mxu0
  %v874 = vadd.f32 0.0, %v873
  %v875 = vpop.f32.mrf.mxu0
  %876 = vmatprep.mubr.bf16.mxu0 0
  %877 = vmatmul.mubr.bf16.gmra.mxu0 %v831
  %v878 = vpop.f32.mrf.mxu0
  %v879 = vadd.f32 0.0, %v878
  %v880 = vpop.f32.mrf.mxu0
  %v881 = vpop.f32.mrf.mxu0
  %v882 = vadd.f32 0.0, %v881
  %v883 = vpop.f32.mrf.mxu0
  %884 = vmatprep.mubr.bf16.mxu0 0
  %885 = vmatmul.mubr.bf16.gmra.mxu0 %v834
  %v886 = vpop.f32.mrf.mxu0
  %v887 = vadd.f32 0.0, %v886
  %v888 = vpop.f32.mrf.mxu0
  %v889 = vpop.f32.mrf.mxu0
  %v890 = vpop.f32.mrf.mxu0
  %891 = vdwg.mxu0
  %v892 = vadd.f32 %v581, %v871
  %v893 = vadd.f32 %v582, %v874
  %v894 = vadd.f32 %v583, %v879
  %v895 = vadd.f32 %v584, %v882
  %v896 = vadd.f32 %v585, %v887
  %v897 = vld [vmem:[%s5] sm:$0x1]
  %v899 = vlaneseq
  %v900 = vshrl.u32 %v899, 7
  %v901 = vsub.s32 0, %v900
  %v902 = vrot.slane %v897, %v901
  %v904 = vadd.f32 %v892, %v902
  %v905 = vadd.f32 %v893, %v902
  %v906 = vadd.f32 %v894, %v902
  %v907 = vadd.f32 %v895, %v902
  %v908 = vadd.f32 %v896, %v902
  %v909 = vsel %vm47, %v904, 0.0
  %910 = vadd.xlane.f32.xlu0 %v909
  %v911 = vpop.xlane.xlu0 %910
  %v912 = vsel %vm47, %v905, 0.0
  %913 = vadd.xlane.f32.xlu0 %v912
  %v914 = vpop.xlane.xlu0 %913
  %v915 = vsel %vm47, %v906, 0.0
  %916 = vadd.xlane.f32.xlu0 %v915
  %v917 = vpop.xlane.xlu0 %916
  %v918 = vsel %vm47, %v907, 0.0
  %919 = vadd.xlane.f32.xlu0 %v918
  %v920 = vpop.xlane.xlu0 %919
  %v921 = vsel %vm47, %v908, 0.0
  %922 = vadd.xlane.f32.xlu0 %v921
  %v923 = vpop.xlane.xlu0 %922
  %v924 = vmul.f32 %v911, %v63
  %v925 = vmul.f32 %v914, %v63
  %v926 = vmul.f32 %v917, %v63
  %v927 = vmul.f32 %v920, %v63
  %v928 = vmul.f32 %v923, %v63
  %v929 = vsub.f32 %v904, %v924
  %v930 = vsub.f32 %v905, %v925
  %v931 = vsub.f32 %v906, %v926
  %v932 = vsub.f32 %v907, %v927
  %v933 = vsub.f32 %v908, %v928
  %v934 = vmul.f32 %v929, %v929
  %v935 = vmul.f32 %v930, %v930
  %v936 = vmul.f32 %v931, %v931
  %v937 = vmul.f32 %v932, %v932
  %v938 = vmul.f32 %v933, %v933
  %v939 = vsel %vm47, %v934, 0.0
  %940 = vadd.xlane.f32.xlu0 %v939
  %v941 = vpop.xlane.xlu0 %940
  %v942 = vsel %vm47, %v935, 0.0
  %943 = vadd.xlane.f32.xlu0 %v942
  %v944 = vpop.xlane.xlu0 %943
  %v945 = vsel %vm47, %v936, 0.0
  %946 = vadd.xlane.f32.xlu0 %v945
  %v947 = vpop.xlane.xlu0 %946
  %v948 = vsel %vm47, %v937, 0.0
  %949 = vadd.xlane.f32.xlu0 %v948
  %v950 = vpop.xlane.xlu0 %949
  %v951 = vsel %vm47, %v938, 0.0
  %952 = vadd.xlane.f32.xlu0 %v951
  %v953 = vpop.xlane.xlu0 %952
  %v954 = vmul.f32 %v941, %v63
  %v955 = vmul.f32 %v944, %v63
  %v956 = vmul.f32 %v947, %v63
  %v957 = vmul.f32 %v950, %v63
  %v958 = vmul.f32 %v953, %v63
  %v959 = vadd.f32 %v954, 1e-05
  %v960 = vadd.f32 %v955, 1e-05
  %v961 = vadd.f32 %v956, 1e-05
  %v962 = vadd.f32 %v957, 1e-05
  %v963 = vadd.f32 %v958, 1e-05
  %v964 = vrsqrt.pop %v959
  %v965 = vrsqrt.pop %v960
  %v966 = vrsqrt.pop %v961
  %v967 = vrsqrt.pop %v962
  %v968 = vrsqrt.pop %v963
  %v969 = vmul.f32 %v929, %v964
  %v970 = vmul.f32 %v930, %v965
  %v971 = vmul.f32 %v931, %v966
  %v972 = vmul.f32 %v932, %v967
  %v973 = vmul.f32 %v933, %v968
  %v974 = vlaneseq
  %v975 = vshrl.u32 %v974, 7
  %v976 = vsub.s32 2, %v975
  %v977 = vrot.slane %v46, %v976
  %v978 = vmul.f32 %v969, %v977
  %v979 = vmul.f32 %v970, %v977
  %v980 = vmul.f32 %v971, %v977
  %v981 = vmul.f32 %v972, %v977
  %v982 = vmul.f32 %v973, %v977
  %v983 = vlaneseq
  %v984 = vshrl.u32 %v983, 7
  %v985 = vsub.s32 3, %v984
  %v986 = vrot.slane %v46, %v985
  %v987 = vadd.f32 %v978, %v986
  %v988 = vadd.f32 %v979, %v986
  %v989 = vadd.f32 %v980, %v986
  %v990 = vadd.f32 %v981, %v986
  %v991 = vadd.f32 %v982, %v986
  %v992 = vpack.c.bf16 %v988, %v987
  %v993 = vpack.c.bf16 %v990, %v989
  %v994 = vpack.c.bf16 %v991, %v991
  %v995 = vld [vmem:[%s6] sm:$0xf]
  %v996 = vld [vmem:[%s6 + $0x4] sm:$0xf]
  %v997 = vld [vmem:[%s6 + $0x8] sm:$0xf]
  %v998 = vld [vmem:[%s6 + $0xc] sm:$0xf]
  %v999 = vld [vmem:[%s7] sm:$0x1]
  %v1001 = vlaneseq
  %v1002 = vshrl.u32 %v1001, 7
  %v1003 = vsub.s32 0, %v1002
  %v1004 = vrot.slane %v999, %v1003
  %v1010 = vunpack.c.l.b16 %v995
  %v1011 = vunpack.c.l.b16 %v996
  %v1012 = vunpack.c.l.b16 %v997
  %v1013 = vunpack.c.l.b16 %v998
  %v1014 = vpack.c.b16 %v1011, %v1010
  %v1015 = vpack.c.b16 %v1013, %v1012
  %v1019 = vsel %vm47, %v992, 0
  %v1022 = vsel %vm47, %v993, 0
  %v1025 = vsel %vm47, %v994, 0
  %1027 = vmatprep.subr.bf16.mxu0 0
  %1028 = vmatpush1.bf16.msra.mxu0 0
  %1029 = vmatprep.subr.bf16.mxu0 0
  %1030 = vmatpush1.bf16.msra.mxu0 0
  %1031 = vmatprep.subr.bf16.mxu0 0
  %1032 = vmatpush1.bf16.msra.mxu0 0
  %1033 = vmatprep.subr.bf16.mxu0 0
  %1034 = vmatpush1.bf16.msra.mxu0 0
  %1035 = vmatprep.subr.bf16.mxu0 0
  %1036 = vmatpush1.bf16.msra.mxu0 0
  %1037 = vmatprep.subr.bf16.mxu0 0
  %1038 = vmatpush1.bf16.msra.mxu0 0
  %1039 = vmatprep.subr.bf16.mxu0 0
  %1040 = vmatpush1.bf16.msra.mxu0 %v1015
  %1041 = vmatprep.subr.bf16.mxu0 0
  %1042 = vmatpush1.bf16.msra.mxu0 %v1014
  %1043 = vmatprep.subr.bf16.mxu0 0
  %1044 = vmatpush2.bf16.msra.mxu0 0
  %1045 = vmatprep.subr.bf16.mxu0 0
  %1046 = vmatpush2.bf16.msra.mxu0 0
  %1047 = vmatprep.subr.bf16.mxu0 0
  %1048 = vmatpush2.bf16.msra.mxu0 0
  %1049 = vmatprep.subr.bf16.mxu0 0
  %1050 = vmatpush2.bf16.msra.mxu0 0
  %1051 = vmatprep.subr.bf16.mxu0 0
  %1052 = vmatpush2.bf16.msra.mxu0 0
  %1053 = vmatprep.subr.bf16.mxu0 0
  %1054 = vmatpush2.bf16.msra.mxu0 0
  %1055 = vmatprep.subr.bf16.mxu0 0
  %1056 = vmatpush2.bf16.msra.mxu0 0
  %1057 = vmatprep.subr.bf16.mxu0 0
  %1058 = vmatpush2.bf16.msra.mxu0 0
  %1059 = vmatprep.mubr.bf16.mxu0 0
  %1060 = vmatmul.mubr.bf16.gmra.mxu0 %v1019
  %v1061 = vpop.f32.mrf.mxu0
  %v1062 = vadd.f32 %v1004, %v1061
  %v1063 = vpop.f32.mrf.mxu0
  %v1064 = vpop.f32.mrf.mxu0
  %v1065 = vadd.f32 %v1004, %v1064
  %v1066 = vpop.f32.mrf.mxu0
  %1067 = vmatprep.mubr.bf16.mxu0 0
  %1068 = vmatmul.mubr.bf16.gmra.mxu0 %v1022
  %v1069 = vpop.f32.mrf.mxu0
  %v1070 = vadd.f32 %v1004, %v1069
  %v1071 = vpop.f32.mrf.mxu0
  %v1072 = vpop.f32.mrf.mxu0
  %v1073 = vadd.f32 %v1004, %v1072
  %v1074 = vpop.f32.mrf.mxu0
  %1075 = vmatprep.mubr.bf16.mxu0 0
  %1076 = vmatmul.mubr.bf16.gmra.mxu0 %v1025
  %v1077 = vpop.f32.mrf.mxu0
  %v1078 = vadd.f32 %v1004, %v1077
  %v1079 = vpop.f32.mrf.mxu0
  %v1080 = vpop.f32.mrf.mxu0
  %v1081 = vpop.f32.mrf.mxu0
  %1082 = vdwg.mxu0
  %v1083 = vmax.f32 %v1062, 0.0
  %v1084 = vmax.f32 %v1065, 0.0
  %v1085 = vmax.f32 %v1070, 0.0
  %v1086 = vmax.f32 %v1073, 0.0
  %v1087 = vmax.f32 %v1078, 0.0
  %v1088 = vpack.c.bf16 %v1084, %v1083
  %v1089 = vpack.c.bf16 %v1086, %v1085
  %v1090 = vpack.c.bf16 %v1087, %v1087
  %v1091 = vld [vmem:[%s8] sm:$0xf]
  %v1092 = vld [vmem:[%s8 + $0x4] sm:$0xf]
  %v1093 = vld [vmem:[%s8 + $0x8] sm:$0xf]
  %v1094 = vld [vmem:[%s8 + $0xc] sm:$0xf]
  %v1095 = vld [vmem:[%s8 + $0x10] sm:$0xf]
  %v1096 = vld [vmem:[%s8 + $0x14] sm:$0xf]
  %v1097 = vld [vmem:[%s8 + $0x18] sm:$0xf]
  %v1098 = vld [vmem:[%s8 + $0x1c] sm:$0xf]
  %v1099 = vld [vmem:[%s8 + $0x20] sm:$0xf]
  %v1100 = vld [vmem:[%s8 + $0x24] sm:$0xf]
  %v1101 = vld [vmem:[%s8 + $0x28] sm:$0xf]
  %v1102 = vld [vmem:[%s8 + $0x2c] sm:$0xf]
  %v1103 = vld [vmem:[%s8 + $0x30] sm:$0xf]
  %v1104 = vld [vmem:[%s8 + $0x34] sm:$0xf]
  %v1105 = vld [vmem:[%s8 + $0x38] sm:$0xf]
  %v1106 = vld [vmem:[%s8 + $0x3c] sm:$0xf]
  %v1107 = vld [vmem:[%s9] sm:$0x1]
  %v1109 = vlaneseq
  %v1110 = vshrl.u32 %v1109, 7
  %v1111 = vsub.s32 0, %v1110
  %v1112 = vrot.slane %v1107, %v1111
  %v1130 = vunpack.c.l.b16 %v1091
  %v1131 = vunpack.c.l.b16 %v1092
  %v1132 = vunpack.c.l.b16 %v1093
  %v1133 = vunpack.c.l.b16 %v1094
  %v1134 = vunpack.c.l.b16 %v1095
  %v1135 = vunpack.c.l.b16 %v1096
  %v1136 = vunpack.c.l.b16 %v1097
  %v1137 = vunpack.c.l.b16 %v1098
  %v1138 = vunpack.c.l.b16 %v1099
  %v1139 = vunpack.c.l.b16 %v1100
  %v1140 = vunpack.c.l.b16 %v1101
  %v1141 = vunpack.c.l.b16 %v1102
  %v1142 = vunpack.c.l.b16 %v1103
  %v1143 = vunpack.c.l.b16 %v1104
  %v1144 = vunpack.c.l.b16 %v1105
  %v1145 = vunpack.c.l.b16 %v1106
  %v1146 = vpack.c.b16 %v1131, %v1130
  %v1147 = vpack.c.b16 %v1133, %v1132
  %v1148 = vpack.c.b16 %v1135, %v1134
  %v1149 = vpack.c.b16 %v1137, %v1136
  %v1150 = vpack.c.b16 %v1139, %v1138
  %v1151 = vpack.c.b16 %v1141, %v1140
  %v1152 = vpack.c.b16 %v1143, %v1142
  %v1153 = vpack.c.b16 %v1145, %v1144
  %1162 = vmatprep.subr.bf16.mxu0 0
  %1163 = vmatpush1.bf16.msra.mxu0 %v1153
  %1164 = vmatprep.subr.bf16.mxu0 0
  %1165 = vmatpush1.bf16.msra.mxu0 %v1152
  %1166 = vmatprep.subr.bf16.mxu0 0
  %1167 = vmatpush1.bf16.msra.mxu0 %v1151
  %1168 = vmatprep.subr.bf16.mxu0 0
  %1169 = vmatpush1.bf16.msra.mxu0 %v1150
  %1170 = vmatprep.subr.bf16.mxu0 0
  %1171 = vmatpush1.bf16.msra.mxu0 %v1149
  %1172 = vmatprep.subr.bf16.mxu0 0
  %1173 = vmatpush1.bf16.msra.mxu0 %v1148
  %1174 = vmatprep.subr.bf16.mxu0 0
  %1175 = vmatpush1.bf16.msra.mxu0 %v1147
  %1176 = vmatprep.subr.bf16.mxu0 0
  %1177 = vmatpush1.bf16.msra.mxu0 %v1146
  %1178 = vmatprep.subr.bf16.mxu0 0
  %1179 = vmatpush2.bf16.msra.mxu0 0
  %1180 = vmatprep.subr.bf16.mxu0 0
  %1181 = vmatpush2.bf16.msra.mxu0 0
  %1182 = vmatprep.subr.bf16.mxu0 0
  %1183 = vmatpush2.bf16.msra.mxu0 0
  %1184 = vmatprep.subr.bf16.mxu0 0
  %1185 = vmatpush2.bf16.msra.mxu0 0
  %1186 = vmatprep.subr.bf16.mxu0 0
  %1187 = vmatpush2.bf16.msra.mxu0 0
  %1188 = vmatprep.subr.bf16.mxu0 0
  %1189 = vmatpush2.bf16.msra.mxu0 0
  %1190 = vmatprep.subr.bf16.mxu0 0
  %1191 = vmatpush2.bf16.msra.mxu0 0
  %1192 = vmatprep.subr.bf16.mxu0 0
  %1193 = vmatpush2.bf16.msra.mxu0 0
  %1194 = vmatprep.mubr.bf16.mxu0 0
  %1195 = vmatmul.mubr.bf16.gmra.mxu0 %v1088
  %v1196 = vpop.f32.mrf.mxu0
  %v1197 = vadd.f32 %v1112, %v1196
  %v1198 = vpop.f32.mrf.mxu0
  %v1199 = vpop.f32.mrf.mxu0
  %v1200 = vadd.f32 %v1112, %v1199
  %v1201 = vpop.f32.mrf.mxu0
  %1202 = vmatprep.mubr.bf16.mxu0 0
  %1203 = vmatmul.mubr.bf16.gmra.mxu0 %v1089
  %v1204 = vpop.f32.mrf.mxu0
  %v1205 = vadd.f32 %v1112, %v1204
  %v1206 = vpop.f32.mrf.mxu0
  %v1207 = vpop.f32.mrf.mxu0
  %v1208 = vadd.f32 %v1112, %v1207
  %v1209 = vpop.f32.mrf.mxu0
  %1210 = vmatprep.mubr.bf16.mxu0 0
  %1211 = vmatmul.mubr.bf16.gmra.mxu0 %v1090
  %v1212 = vpop.f32.mrf.mxu0
  %v1213 = vadd.f32 %v1112, %v1212
  %v1214 = vpop.f32.mrf.mxu0
  %v1215 = vpop.f32.mrf.mxu0
  %v1216 = vpop.f32.mrf.mxu0
  %1217 = vdwg.mxu0
  %v1218 = vadd.f32 %v904, %v1197
  %v1219 = vadd.f32 %v905, %v1200
  %v1220 = vadd.f32 %v906, %v1205
  %v1221 = vadd.f32 %v907, %v1208
  %v1222 = vadd.f32 %v908, %v1213
  %v1223 = vpack.c.bf16 %v1219, %v1218
  %v1224 = vpack.c.bf16 %v1221, %v1220
  %v1225 = vpack.c.bf16 %v1222, %v1222
  %v1229 = vunpack.c.l.b16 %v1223
  %v1230 = vunpack.c.h.b16 %v1223
  %v1231 = vunpack.c.l.b16 %v1224
  %v1232 = vunpack.c.h.b16 %v1224
  %v1233 = vunpack.c.l.b16 %v1225
  %v1234 = vpack.c.b16 %v1229, %v1229
  %v1235 = vpack.c.b16 %v1230, %v1230
  %v1236 = vpack.c.b16 %v1231, %v1231
  %v1237 = vpack.c.b16 %v1232, %v1232
  %v1238 = vpack.c.b16 %v1233, %v1233
  %vm1244 = vcmask 257024
  %1245 = vst.msk [vmem:[%s10] sm:$0xf] %vm1244, %v1234
  %1246 = vst.msk [vmem:[%s10 + $0x4] sm:$0xf] %vm1244, %v1235
  %1247 = vst.msk [vmem:[%s10 + $0x8] sm:$0xf] %vm1244, %v1236
  %1248 = vst.msk [vmem:[%s10 + $0xc] sm:$0xf] %vm1244, %v1237
  %1249 = vst.msk [vmem:[%s10 + $0x10] sm:$0xf] %vm1244, %v1238
  // Predicated region
  $region42: #{freq_fft_coupling_forward.10} parent=0 // pred_check
    _
  $region43: #{freq_fft_coupling_forward.10} parent=0 // pred_check_branch
    %1251 = sbr.rel (0) target = $region45
  $region44: #{freq_fft_coupling_forward.10} parent=0 // pred_region
    _
  $region45: #{freq_fft_coupling_forward.10} parent=0 // pred_fallthru
    _
  // Predicated region
  $region46: #{freq_fft_coupling_forward.10} parent=0 // pred_check
    _
  $region47: #{freq_fft_coupling_forward.10} parent=0 // pred_check_branch
    %1253 = sbr.rel (0) target = $region49
  $region48: #{freq_fft_coupling_forward.10} parent=0 // pred_region
    _
  $region49: #{freq_fft_coupling_forward.10} parent=0 // pred_fallthru
    _

// kernel: freq_fft_coupling_forward.12
$region0: #{freq_fft_coupling_forward.12}
  #allocation0 [shape = 'u32[]', space=smem, size = 0x4, offset = 0x4, fixed_abs, tag = 'smem constant byte address 0x4 - core index']
  #allocation1 [shape = 'u32[144,128]{1,0:T(1,128)}', space=vmem, size = 0x12000, scoped, tag = 'internal scratch']
  %s0 = inlined_call_operand.vmem [shape: bf16[2,3,128], index: 0, kind: input, shape index: {}]
  %s1 = inlined_call_operand.vmem [shape: bf16[2,128,32], index: 1, kind: input, shape index: {}]
  %s2 = inlined_call_operand.vmem [shape: f32[1,32], index: 2, kind: input, shape index: {}]
  %s3 = inlined_call_operand.vmem [shape: bf16[2,2,32], index: 3, kind: output, shape index: {}]
  %s4 = sld [smem:[#allocation0]]
  $region45: #{freq_fft_coupling_forward.12} parent=0
    _
  %s6 = ssub.s32 1, %s4
  %s7 = scalar_select 0, %s6, %s4
  loop: start=0, step=1, limit=4
  $region2: #{freq_fft_coupling_forward.12} parent=0 // loop_pre_header
    _
  $region3: #{freq_fft_coupling_forward.12} parent=0 // loop_header
    %s9 = sphi 0, %s13
    %p10 = scmp.ge.s32.totalorder %s9, 4
    %s19 = sphi 0, %s21
    %s22 = sphi 0, %s19
    %s23 = sphi 0, %s22
    %s39 = sphi 0, %s23
    %s43 = sphi 0, %s43
    %s45 = sphi 0, %s43
    %s46 = sphi 0, %s45
    %s60 = sphi 0, %s46
    %s64 = sphi 0, %s64
    %s66 = sphi 0, %s64
    %s67 = sphi 0, %s66
    %s81 = sphi 0, %s67
    %s87 = sphi 0, %s89
    %s90 = sphi 0, %s87
    %s91 = sphi 0, %s90
    %s107 = sphi 0, %s91
  $region4: #{freq_fft_coupling_forward.12} parent=0 // loop_header_branch
    %12 = sbr.rel (%p10) target = $region8
  $region5: #{freq_fft_coupling_forward.12} parent=0 // loop_body
    %s14 = ssub.s32 %s9, 1
    %s15 = ssub.s32 %s9, 2
    %s16 = sadd.s32 %s9, 1
    %s17 = ssub.s32 %s9, %s16
    %p18 = scmp.eq.s32.totalorder %s17, 0
    %s20 = sadd.s32 %s19, 1
    %s21 = scalar_select %p18, %s19, %s20
    %p24 = pneg %p18
    %p25 = scmp.eq.s32.totalorder %s9, 1
    %p26 = por %p24, %p25
    %p27 = scmp.ne.s32.totalorder %s19, %s22
    %p28 = scmp.eq.s32.totalorder %s9, 0
    %p29 = por %p27, %p28
    %p30 = scmp.ne.s32.totalorder %s19, %s22
    %p31 = scmp.eq.s32.totalorder %s14, 1
    %p32 = por %p30, %p31
    %p33 = scmp.ne.s32.totalorder %s22, %s23
    %p34 = scmp.eq.s32.totalorder %s14, 0
    %p35 = por %p33, %p34
    %p36 = scmp.ne.s32.totalorder %s22, %s23
    %p37 = scmp.eq.s32.totalorder %s15, 1
    %p38 = por %p36, %p37
    %p40 = scmp.ne.s32.totalorder %s23, %s39
    %p41 = scmp.eq.s32.totalorder %s15, 0
    %p42 = por %p40, %p41
    %s44 = sadd.s32 %s43, 1
    %p47 = scmp.eq.s32.totalorder %s9, 1
    %p48 = scmp.ne.s32.totalorder %s43, %s45
    %p49 = scmp.eq.s32.totalorder %s9, 0
    %p50 = por %p48, %p49
    %p51 = scmp.ne.s32.totalorder %s43, %s45
    %p52 = scmp.eq.s32.totalorder %s14, 1
    %p53 = por %p51, %p52
    %p54 = scmp.ne.s32.totalorder %s45, %s46
    %p55 = scmp.eq.s32.totalorder %s14, 0
    %p56 = por %p54, %p55
    %p57 = scmp.ne.s32.totalorder %s45, %s46
    %p58 = scmp.eq.s32.totalorder %s15, 1
    %p59 = por %p57, %p58
    %p61 = scmp.ne.s32.totalorder %s46, %s60
    %p62 = scmp.eq.s32.totalorder %s15, 0
    %p63 = por %p61, %p62
    %s65 = sadd.s32 %s64, 1
    %p68 = scmp.eq.s32.totalorder %s9, 1
    %p69 = scmp.ne.s32.totalorder %s64, %s66
    %p70 = scmp.eq.s32.totalorder %s9, 0
    %p71 = por %p69, %p70
    %p72 = scmp.ne.s32.totalorder %s64, %s66
    %p73 = scmp.eq.s32.totalorder %s14, 1
    %p74 = por %p72, %p73
    %p75 = scmp.ne.s32.totalorder %s66, %s67
    %p76 = scmp.eq.s32.totalorder %s14, 0
    %p77 = por %p75, %p76
    %p78 = scmp.ne.s32.totalorder %s66, %s67
    %p79 = scmp.eq.s32.totalorder %s15, 1
    %p80 = por %p78, %p79
    %p82 = scmp.ne.s32.totalorder %s67, %s81
    %p83 = scmp.eq.s32.totalorder %s15, 0
    %p84 = por %p82, %p83
    %s85 = ssub.s32 %s9, %s16
    %p86 = scmp.eq.s32.totalorder %s85, 0
    %s88 = sadd.s32 %s87, 1
    %s89 = scalar_select %p86, %s87, %s88
    %p92 = pneg %p86
    %p93 = scmp.eq.s32.totalorder %s9, 1
    %p94 = por %p92, %p93
    %p95 = scmp.ne.s32.totalorder %s87, %s90
    %p96 = scmp.eq.s32.totalorder %s9, 0
    %p97 = por %p95, %p96
    %p98 = scmp.ne.s32.totalorder %s87, %s90
    %p99 = scmp.eq.s32.totalorder %s14, 1
    %p100 = por %p98, %p99
    %p101 = scmp.ne.s32.totalorder %s90, %s91
    %p102 = scmp.eq.s32.totalorder %s14, 0
    %p103 = por %p101, %p102
    %p104 = scmp.ne.s32.totalorder %s90, %s91
    %p105 = scmp.eq.s32.totalorder %s15, 1
    %p106 = por %p104, %p105
    %p108 = scmp.ne.s32.totalorder %s91, %s107
    %p109 = scmp.eq.s32.totalorder %s15, 0
    %p110 = por %p108, %p109
    %p111 = scmp.le.s32.totalorder 1, %s9
    %p112 = scmp.lt.s32.totalorder %s9, 3
    %p113 = pnand %p111, %p112
    %p114 = pneg %p113
    // Predicated region
    $region9: #{freq_fft_coupling_forward.12} parent=5 // pred_check
      _
    $region10: #{freq_fft_coupling_forward.12} parent=5 // pred_check_branch
      %116 = sbr.rel (%p113) target = $region12
    $region11: #{freq_fft_coupling_forward.12} parent=5 // pred_region
      %s117 = ssub.s32 %s9, 1
      // Predicated region
      $region13: #{freq_fft_coupling_forward.12} parent=11 // pred_check
        %p118 = pneg %p56
      $region14: #{freq_fft_coupling_forward.12} parent=11 // pred_check_branch
        %120 = sbr.rel (%p118) target = $region16
      $region15: #{freq_fft_coupling_forward.12} parent=11 // pred_region
        _
      $region16: #{freq_fft_coupling_forward.12} parent=11 // pred_fallthru
        _
      // Predicated region
      $region17: #{freq_fft_coupling_forward.12} parent=11 // pred_check
        %p121 = pneg %p77
      $region18: #{freq_fft_coupling_forward.12} parent=11 // pred_check_branch
        %123 = sbr.rel (%p121) target = $region20
      $region19: #{freq_fft_coupling_forward.12} parent=11 // pred_region
        _
      $region20: #{freq_fft_coupling_forward.12} parent=11 // pred_fallthru
        _
    $region12: #{freq_fft_coupling_forward.12} parent=5 // pred_fallthru
      _
    %p124 = scmp.lt.s32.totalorder %s9, 2
    // Predicated region
    $region21: #{freq_fft_coupling_forward.12} parent=5 // pred_check
      %p125 = pneg %p124
    $region22: #{freq_fft_coupling_forward.12} parent=5 // pred_check_branch
      %127 = sbr.rel (%p125) target = $region24
    $region23: #{freq_fft_coupling_forward.12} parent=5 // pred_region
      // Predicated region
      $region25: #{freq_fft_coupling_forward.12} parent=23 // pred_check
        %p128 = pneg %p29
      $region26: #{freq_fft_coupling_forward.12} parent=23 // pred_check_branch
        %130 = sbr.rel (%p128) target = $region28
      $region27: #{freq_fft_coupling_forward.12} parent=23 // pred_region
        %p131 = scmp.lt.s32.totalorder %s9, 1
        %s132 = scalar_select %p131, %s9, 1
        %s133 = smul.addr %s132, 2
        %s134 = scalar_lea.vmem %s0, %s133
      $region28: #{freq_fft_coupling_forward.12} parent=23 // pred_fallthru
        _
    $region24: #{freq_fft_coupling_forward.12} parent=5 // pred_fallthru
      _
    %p135 = scmp.le.s32.totalorder 1, %s9
    %p136 = scmp.lt.s32.totalorder %s9, 3
    %p137 = pnand %p135, %p136
    %p138 = pneg %p137
    // Predicated region
    $region29: #{freq_fft_coupling_forward.12} parent=5 // pred_check
      _
    $region30: #{freq_fft_coupling_forward.12} parent=5 // pred_check_branch
      %140 = sbr.rel (%p137) target = $region32
    $region31: #{freq_fft_coupling_forward.12} parent=5 // pred_region
      %s141 = ssub.s32 %s9, 1
      %p142 = scmp.lt.s32.totalorder %s14, 1
      %s143 = scalar_select %p142, %s14, 1
      %s144 = smul.addr %s143, 2
      %s145 = scalar_lea.vmem %s0, %s144
      %p146 = pneg %p35
      %p147 = pneg %p32
      %p148 = pneg %p56
      %p149 = pneg %p53
      %p150 = pneg %p77
      %p151 = pneg %p74
      %p152 = pneg %p103
      %p153 = pneg %p100
      %p154 = scmp.lt.s32.totalorder %s14, 1
      %s155 = scalar_select %p154, %s14, 1
      %s156 = scalar_lea.vmem %s3, %s155
      %p157 = scmp.lt.s32.totalorder %s14, 1
      %s158 = scalar_select %p157, %s14, 1
      %s159 = smul.addr %s158, 2
      %s160 = scalar_lea.vmem %s0, %s159
      %p161 = scmp.lt.s32.totalorder %s14, 1
      %s162 = scalar_select %p161, %s14, 1
      %s163 = scalar_lea.vmem %s3, %s162
      %v165 = vld [vmem:[%s160] sm:$0x1]
      %v166 = vld [vmem:[%s1] sm:$0xf]
      %v167 = vld [vmem:[%s1 + $0x4] sm:$0xf]
      %v168 = vld [vmem:[%s1 + $0x8] sm:$0xf]
      %v169 = vld [vmem:[%s1 + $0xc] sm:$0xf]
      %v170 = vld [vmem:[%s1 + $0x10] sm:$0xf]
      %v171 = vld [vmem:[%s1 + $0x14] sm:$0xf]
      %v172 = vld [vmem:[%s1 + $0x18] sm:$0xf]
      %v173 = vld [vmem:[%s1 + $0x1c] sm:$0xf]
      %v174 = vld [vmem:[%s1 + $0x20] sm:$0xf]
      %v175 = vld [vmem:[%s1 + $0x24] sm:$0xf]
      %v176 = vld [vmem:[%s1 + $0x28] sm:$0xf]
      %v177 = vld [vmem:[%s1 + $0x2c] sm:$0xf]
      %v178 = vld [vmem:[%s1 + $0x30] sm:$0xf]
      %v179 = vld [vmem:[%s1 + $0x34] sm:$0xf]
      %v180 = vld [vmem:[%s1 + $0x38] sm:$0xf]
      %v181 = vld [vmem:[%s1 + $0x3c] sm:$0xf]
      %v182 = vld [vmem:[%s160] sm:$0x3]
      %s183 = scalar_lea.vmem %s1, 64
      %v184 = vld [vmem:[%s183] sm:$0xf]
      %v185 = vld [vmem:[%s183 + $0x4] sm:$0xf]
      %v186 = vld [vmem:[%s183 + $0x8] sm:$0xf]
      %v187 = vld [vmem:[%s183 + $0xc] sm:$0xf]
      %v188 = vld [vmem:[%s183 + $0x10] sm:$0xf]
      %v189 = vld [vmem:[%s183 + $0x14] sm:$0xf]
      %v190 = vld [vmem:[%s183 + $0x18] sm:$0xf]
      %v191 = vld [vmem:[%s183 + $0x1c] sm:$0xf]
      %v192 = vld [vmem:[%s183 + $0x20] sm:$0xf]
      %v193 = vld [vmem:[%s183 + $0x24] sm:$0xf]
      %v194 = vld [vmem:[%s183 + $0x28] sm:$0xf]
      %v195 = vld [vmem:[%s183 + $0x2c] sm:$0xf]
      %v196 = vld [vmem:[%s183 + $0x30] sm:$0xf]
      %v197 = vld [vmem:[%s183 + $0x34] sm:$0xf]
      %v198 = vld [vmem:[%s183 + $0x38] sm:$0xf]
      %v199 = vld [vmem:[%s183 + $0x3c] sm:$0xf]
      %v202 = vunpack.c.l.s4 1983009808
      %v203 = vunpack.c.0.s8 %v202
      %v204 = vlaneseq
      %v205 = vshrl.u32 %v204, 7
      %v206 = vsub.s32 %v203, %v205
      %v207 = vrot.slane %v182, %v206
      %v209 = vshrl.u32 %v207, 16
      %v211 = vshll.u32 %v207, 16
      %v213 = vrot.slane %v211, 1
      %v214 = vor.u32 %v209, %v213
      %v232 = vunpack.c.l.b16 %v184
      %v233 = vunpack.c.l.b16 %v185
      %v234 = vunpack.c.l.b16 %v186
      %v235 = vunpack.c.l.b16 %v187
      %v236 = vunpack.c.l.b16 %v188
      %v237 = vunpack.c.l.b16 %v189
      %v238 = vunpack.c.l.b16 %v190
      %v239 = vunpack.c.l.b16 %v191
      %v240 = vunpack.c.l.b16 %v192
      %v241 = vunpack.c.l.b16 %v193
      %v242 = vunpack.c.l.b16 %v194
      %v243 = vunpack.c.l.b16 %v195
      %v244 = vunpack.c.l.b16 %v196
      %v245 = vunpack.c.l.b16 %v197
      %v246 = vunpack.c.l.b16 %v198
      %v247 = vunpack.c.l.b16 %v199
      %v248 = vpack.c.b16 %v233, %v232
      %v249 = vpack.c.b16 %v235, %v234
      %v250 = vpack.c.b16 %v237, %v236
      %v251 = vpack.c.b16 %v239, %v238
      %v252 = vpack.c.b16 %v241, %v240
      %v253 = vpack.c.b16 %v243, %v242
      %v254 = vpack.c.b16 %v245, %v244
      %v255 = vpack.c.b16 %v247, %v246
      %264 = vmatprep.subr.bf16.mxu0 0
      %265 = vmatpush1.bf16.msra.mxu0 %v255
      %266 = vmatprep.subr.bf16.mxu0 0
      %267 = vmatpush1.bf16.msra.mxu0 %v254
      %268 = vmatprep.subr.bf16.mxu0 0
      %269 = vmatpush1.bf16.msra.mxu0 %v253
      %270 = vmatprep.subr.bf16.mxu0 0
      %271 = vmatpush1.bf16.msra.mxu0 %v252
      %272 = vmatprep.subr.bf16.mxu0 0
      %273 = vmatpush1.bf16.msra.mxu0 %v251
      %274 = vmatprep.subr.bf16.mxu0 0
      %275 = vmatpush1.bf16.msra.mxu0 %v250
      %276 = vmatprep.subr.bf16.mxu0 0
      %277 = vmatpush1.bf16.msra.mxu0 %v249
      %278 = vmatprep.subr.bf16.mxu0 0
      %279 = vmatpush1.bf16.msra.mxu0 %v248
      %280 = vmatprep.subr.bf16.mxu0 0
      %281 = vmatpush2.bf16.msra.mxu0 0
      %282 = vmatprep.subr.bf16.mxu0 0
      %283 = vmatpush2.bf16.msra.mxu0 0
      %284 = vmatprep.subr.bf16.mxu0 0
      %285 = vmatpush2.bf16.msra.mxu0 0
      %286 = vmatprep.subr.bf16.mxu0 0
      %287 = vmatpush2.bf16.msra.mxu0 0
      %288 = vmatprep.subr.bf16.mxu0 0
      %289 = vmatpush2.bf16.msra.mxu0 0
      %290 = vmatprep.subr.bf16.mxu0 0
      %291 = vmatpush2.bf16.msra.mxu0 0
      %292 = vmatprep.subr.bf16.mxu0 0
      %293 = vmatpush2.bf16.msra.mxu0 0
      %294 = vmatprep.subr.bf16.mxu0 0
      %295 = vmatpush2.bf16.msra.mxu0 0
      %296 = vmatprep.mubr.bf16.mxu0 0
      %297 = vmatmul.mubr.bf16.gmra.mxu0 %v214
      %v298 = vpop.f32.mrf.mxu0
      %v299 = vadd.f32 0.0, %v298
      %v300 = vpop.f32.mrf.mxu0
      %v301 = vpop.f32.mrf.mxu0
      %v302 = vpop.f32.mrf.mxu0
      %303 = vdwg.mxu0
      %v320 = vunpack.c.l.b16 %v166
      %v321 = vunpack.c.l.b16 %v167
      %v322 = vunpack.c.l.b16 %v168
      %v323 = vunpack.c.l.b16 %v169
      %v324 = vunpack.c.l.b16 %v170
      %v325 = vunpack.c.l.b16 %v171
      %v326 = vunpack.c.l.b16 %v172
      %v327 = vunpack.c.l.b16 %v173
      %v328 = vunpack.c.l.b16 %v174
      %v329 = vunpack.c.l.b16 %v175
      %v330 = vunpack.c.l.b16 %v176
      %v331 = vunpack.c.l.b16 %v177
      %v332 = vunpack.c.l.b16 %v178
      %v333 = vunpack.c.l.b16 %v179
      %v334 = vunpack.c.l.b16 %v180
      %v335 = vunpack.c.l.b16 %v181
      %v336 = vpack.c.b16 %v321, %v320
      %v337 = vpack.c.b16 %v323, %v322
      %v338 = vpack.c.b16 %v325, %v324
      %v339 = vpack.c.b16 %v327, %v326
      %v340 = vpack.c.b16 %v329, %v328
      %v341 = vpack.c.b16 %v331, %v330
      %v342 = vpack.c.b16 %v333, %v332
      %v343 = vpack.c.b16 %v335, %v334
      %352 = vmatprep.subr.bf16.mxu0 0
      %353 = vmatpush1.bf16.msra.mxu0 %v343
      %354 = vmatprep.subr.bf16.mxu0 0
      %355 = vmatpush1.bf16.msra.mxu0 %v342
      %356 = vmatprep.subr.bf16.mxu0 0
      %357 = vmatpush1.bf16.msra.mxu0 %v341
      %358 = vmatprep.subr.bf16.mxu0 0
      %359 = vmatpush1.bf16.msra.mxu0 %v340
      %360 = vmatprep.subr.bf16.mxu0 0
      %361 = vmatpush1.bf16.msra.mxu0 %v339
      %362 = vmatprep.subr.bf16.mxu0 0
      %363 = vmatpush1.bf16.msra.mxu0 %v338
      %364 = vmatprep.subr.bf16.mxu0 0
      %365 = vmatpush1.bf16.msra.mxu0 %v337
      %366 = vmatprep.subr.bf16.mxu0 0
      %367 = vmatpush1.bf16.msra.mxu0 %v336
      %368 = vmatprep.subr.bf16.mxu0 0
      %369 = vmatpush2.bf16.msra.mxu0 0
      %370 = vmatprep.subr.bf16.mxu0 0
      %371 = vmatpush2.bf16.msra.mxu0 0
      %372 = vmatprep.subr.bf16.mxu0 0
      %373 = vmatpush2.bf16.msra.mxu0 0
      %374 = vmatprep.subr.bf16.mxu0 0
      %375 = vmatpush2.bf16.msra.mxu0 0
      %376 = vmatprep.subr.bf16.mxu0 0
      %377 = vmatpush2.bf16.msra.mxu0 0
      %378 = vmatprep.subr.bf16.mxu0 0
      %379 = vmatpush2.bf16.msra.mxu0 0
      %380 = vmatprep.subr.bf16.mxu0 0
      %381 = vmatpush2.bf16.msra.mxu0 0
      %382 = vmatprep.subr.bf16.mxu0 0
      %383 = vmatpush2.bf16.msra.mxu0 0
      %384 = vmatprep.mubr.bf16.mxu0 0
      %385 = vmatmul.mubr.bf16.gmra.mxu0 %v165
      %v386 = vpop.f32.mrf.mxu0
      %v387 = vadd.f32 %v299, %v386
      %v388 = vpop.f32.mrf.mxu0
      %v389 = vpop.f32.mrf.mxu0
      %v390 = vpop.f32.mrf.mxu0
      %391 = vdwg.mxu0
      %v392 = vld [vmem:[%s2] sm:$0x1]
      %v394 = vlaneseq
      %v395 = vshrl.u32 %v394, 7
      %v396 = vsub.s32 0, %v395
      %v397 = vrot.slane %v392, %v396
      %v399 = vadd.f32 %v387, %v397
      %v400 = vpack.c.bf16 %v399, %v399
      %vm401 = vcmask 253952
      %402 = vst.msk [vmem:[%s163] sm:$0x1] %vm401, %v400
      %p403 = scmp.lt.s32.totalorder %s14, 1
      %s404 = scalar_select %p403, %s14, 1
      %s405 = scalar_lea.vmem %s3, %s404
      // Predicated region
      $region33: #{freq_fft_coupling_forward.12} parent=31 // pred_check
        %p406 = pneg %p100
      $region34: #{freq_fft_coupling_forward.12} parent=31 // pred_check_branch
        %408 = sbr.rel (%p406) target = $region36
      $region35: #{freq_fft_coupling_forward.12} parent=31 // pred_region
        _
      $region36: #{freq_fft_coupling_forward.12} parent=31 // pred_fallthru
        _
    $region32: #{freq_fft_coupling_forward.12} parent=5 // pred_fallthru
      _
    %p409 = scmp.le.s32.totalorder 2, %s9
    // Predicated region
    $region37: #{freq_fft_coupling_forward.12} parent=5 // pred_check
      %p410 = pneg %p409
    $region38: #{freq_fft_coupling_forward.12} parent=5 // pred_check_branch
      %412 = sbr.rel (%p410) target = $region40
    $region39: #{freq_fft_coupling_forward.12} parent=5 // pred_region
      %s413 = ssub.s32 %s9, 2
      // Predicated region
      $region41: #{freq_fft_coupling_forward.12} parent=39 // pred_check
        %p414 = pneg %p106
      $region42: #{freq_fft_coupling_forward.12} parent=39 // pred_check_branch
        %416 = sbr.rel (%p414) target = $region44
      $region43: #{freq_fft_coupling_forward.12} parent=39 // pred_region
        %p417 = scmp.lt.s32.totalorder %s15, 1
        %s418 = scalar_select %p417, %s15, 1
        %s419 = scalar_lea.vmem %s3, %s418
      $region44: #{freq_fft_coupling_forward.12} parent=39 // pred_fallthru
        _
    $region40: #{freq_fft_coupling_forward.12} parent=5 // pred_fallthru
      _
  $region6: #{freq_fft_coupling_forward.12} parent=0 // loop_footer
    %s13 = sadd.s32 1, %s9
  $region7: #{freq_fft_coupling_forward.12} parent=0 // loop_footer_branch
    %8 = sbr.rel target = $region3
  $region8: #{freq_fft_coupling_forward.12} parent=0 // loop_exit
    _

// kernel: freq_fft_coupling_forward.13
$region0: #{freq_fft_coupling_forward.13}
  #allocation0 [shape = 'u32[]', space=smem, size = 0x4, offset = 0x4, fixed_abs, tag = 'smem constant byte address 0x4 - core index']
  #allocation1 [shape = 'u32[144,128]{1,0:T(1,128)}', space=vmem, size = 0x12000, scoped, tag = 'internal scratch']
  %s0 = inlined_call_operand.vmem [shape: bf16[4,32], index: 0, kind: input, shape index: {}]
  %s1 = inlined_call_operand.vmem [shape: f32[4,32], index: 1, kind: input, shape index: {}]
  %s2 = inlined_call_operand.vmem [shape: bf16[32,96], index: 2, kind: input, shape index: {}]
  %s3 = inlined_call_operand.vmem [shape: f32[1,96], index: 3, kind: input, shape index: {}]
  %s4 = inlined_call_operand.vmem [shape: bf16[32,32], index: 4, kind: input, shape index: {}]
  %s5 = inlined_call_operand.vmem [shape: f32[1,32], index: 5, kind: input, shape index: {}]
  %s6 = inlined_call_operand.vmem [shape: bf16[32,128], index: 6, kind: input, shape index: {}]
  %s7 = inlined_call_operand.vmem [shape: f32[1,128], index: 7, kind: input, shape index: {}]
  %s8 = inlined_call_operand.vmem [shape: bf16[128,32], index: 8, kind: input, shape index: {}]
  %s9 = inlined_call_operand.vmem [shape: f32[1,32], index: 9, kind: input, shape index: {}]
  %s10 = inlined_call_operand.vmem [shape: bf16[4,32], index: 10, kind: output, shape index: {}]
  %s11 = sld [smem:[#allocation0]]
  $region50: #{freq_fft_coupling_forward.13} parent=0
    _
  %s13 = ssub.s32 1, %s11
  %s14 = scalar_select 0, %s13, %s11
  // Predicated region
  $region2: #{freq_fft_coupling_forward.13} parent=0 // pred_check
    _
  $region3: #{freq_fft_coupling_forward.13} parent=0 // pred_check_branch
    %16 = sbr.rel (0) target = $region5
  $region4: #{freq_fft_coupling_forward.13} parent=0 // pred_region
    _
  $region5: #{freq_fft_coupling_forward.13} parent=0 // pred_fallthru
    _
  // Predicated region
  $region6: #{freq_fft_coupling_forward.13} parent=0 // pred_check
    _
  $region7: #{freq_fft_coupling_forward.13} parent=0 // pred_check_branch
    %18 = sbr.rel (0) target = $region9
  $region8: #{freq_fft_coupling_forward.13} parent=0 // pred_region
    _
  $region9: #{freq_fft_coupling_forward.13} parent=0 // pred_fallthru
    _
  // Predicated region
  $region10: #{freq_fft_coupling_forward.13} parent=0 // pred_check
    _
  $region11: #{freq_fft_coupling_forward.13} parent=0 // pred_check_branch
    %20 = sbr.rel (0) target = $region13
  $region12: #{freq_fft_coupling_forward.13} parent=0 // pred_region
    _
  $region13: #{freq_fft_coupling_forward.13} parent=0 // pred_fallthru
    _
  // Predicated region
  $region14: #{freq_fft_coupling_forward.13} parent=0 // pred_check
    _
  $region15: #{freq_fft_coupling_forward.13} parent=0 // pred_check_branch
    %22 = sbr.rel (0) target = $region17
  $region16: #{freq_fft_coupling_forward.13} parent=0 // pred_region
    _
  $region17: #{freq_fft_coupling_forward.13} parent=0 // pred_fallthru
    _
  // Predicated region
  $region18: #{freq_fft_coupling_forward.13} parent=0 // pred_check
    _
  $region19: #{freq_fft_coupling_forward.13} parent=0 // pred_check_branch
    %24 = sbr.rel (0) target = $region21
  $region20: #{freq_fft_coupling_forward.13} parent=0 // pred_region
    _
  $region21: #{freq_fft_coupling_forward.13} parent=0 // pred_fallthru
    _
  // Predicated region
  $region22: #{freq_fft_coupling_forward.13} parent=0 // pred_check
    _
  $region23: #{freq_fft_coupling_forward.13} parent=0 // pred_check_branch
    %26 = sbr.rel (0) target = $region25
  $region24: #{freq_fft_coupling_forward.13} parent=0 // pred_region
    _
  $region25: #{freq_fft_coupling_forward.13} parent=0 // pred_fallthru
    _
  // Predicated region
  $region26: #{freq_fft_coupling_forward.13} parent=0 // pred_check
    _
  $region27: #{freq_fft_coupling_forward.13} parent=0 // pred_check_branch
    %28 = sbr.rel (0) target = $region29
  $region28: #{freq_fft_coupling_forward.13} parent=0 // pred_region
    _
  $region29: #{freq_fft_coupling_forward.13} parent=0 // pred_fallthru
    _
  // Predicated region
  $region30: #{freq_fft_coupling_forward.13} parent=0 // pred_check
    _
  $region31: #{freq_fft_coupling_forward.13} parent=0 // pred_check_branch
    %30 = sbr.rel (0) target = $region33
  $region32: #{freq_fft_coupling_forward.13} parent=0 // pred_region
    _
  $region33: #{freq_fft_coupling_forward.13} parent=0 // pred_fallthru
    _
  // Predicated region
  $region34: #{freq_fft_coupling_forward.13} parent=0 // pred_check
    _
  $region35: #{freq_fft_coupling_forward.13} parent=0 // pred_check_branch
    %32 = sbr.rel (0) target = $region37
  $region36: #{freq_fft_coupling_forward.13} parent=0 // pred_region
    _
  $region37: #{freq_fft_coupling_forward.13} parent=0 // pred_fallthru
    _
  // Predicated region
  $region38: #{freq_fft_coupling_forward.13} parent=0 // pred_check
    _
  $region39: #{freq_fft_coupling_forward.13} parent=0 // pred_check_branch
    %34 = sbr.rel (0) target = $region41
  $region40: #{freq_fft_coupling_forward.13} parent=0 // pred_region
    _
  $region41: #{freq_fft_coupling_forward.13} parent=0 // pred_fallthru
    _
  %v36 = vld [vmem:[%s0] sm:$0x3]
  %v37 = vunpack.c.l.bf16 %v36
  %v38 = vld [vmem:[%s1] sm:$0xf]
  %vm39 = vcmask 257024
  %v40 = vsel %vm39, %v37, 0.0
  %41 = vadd.xlane.f32.xlu0 %v40
  %v42 = vpop.xlane.xlu0 %41
  %v43 = vrcp.pop 32.0
  %v44 = vmul.f32 %v42, %v43
  %v45 = vsub.f32 %v37, %v44
  %v46 = vmul.f32 %v45, %v45
  %v47 = vsel %vm39, %v46, 0.0
  %48 = vadd.xlane.f32.xlu0 %v47
  %v49 = vpop.xlane.xlu0 %48
  %v50 = vmul.f32 %v49, %v43
  %v51 = vadd.f32 %v50, 1e-05
  %v52 = vrsqrt.pop %v51
  %v53 = vmul.f32 %v45, %v52
  %v54 = vlaneseq
  %v55 = vshrl.u32 %v54, 7
  %v56 = vsub.s32 0, %v55
  %v57 = vrot.slane %v38, %v56
  %v58 = vmul.f32 %v53, %v57
  %v59 = vlaneseq
  %v60 = vshrl.u32 %v59, 7
  %v61 = vsub.s32 1, %v60
  %v62 = vrot.slane %v38, %v61
  %v63 = vadd.f32 %v58, %v62
  %v64 = vpack.c.bf16 %v63, %v63
  %v65 = vld [vmem:[%s2] sm:$0xf]
  %v66 = vld [vmem:[%s2 + $0x4] sm:$0xf]
  %v67 = vld [vmem:[%s2 + $0x8] sm:$0xf]
  %v68 = vld [vmem:[%s2 + $0xc] sm:$0xf]
  %v69 = vld [vmem:[%s3] sm:$0x1]
  %v71 = vlaneseq
  %v72 = vshrl.u32 %v71, 7
  %v73 = vsub.s32 0, %v72
  %v74 = vrot.slane %v69, %v73
  %v80 = vunpack.c.l.b16 %v65
  %v81 = vunpack.c.l.b16 %v66
  %v82 = vunpack.c.l.b16 %v67
  %v83 = vunpack.c.l.b16 %v68
  %v84 = vpack.c.b16 %v81, %v80
  %v85 = vpack.c.b16 %v83, %v82
  %vm88 = vcmask 261120
  %v90 = vsel %vm88, %v64, 0
  %92 = vmatprep.subr.bf16.mxu0 0
  %93 = vmatpush1.bf16.msra.mxu0 0
  %94 = vmatprep.subr.bf16.mxu0 0
  %95 = vmatpush1.bf16.msra.mxu0 0
  %96 = vmatprep.subr.bf16.mxu0 0
  %97 = vmatpush1.bf16.msra.mxu0 0
  %98 = vmatprep.subr.bf16.mxu0 0
  %99 = vmatpush1.bf16.msra.mxu0 0
  %100 = vmatprep.subr.bf16.mxu0 0
  %101 = vmatpush1.bf16.msra.mxu0 0
  %102 = vmatprep.subr.bf16.mxu0 0
  %103 = vmatpush1.bf16.msra.mxu0 0
  %104 = vmatprep.subr.bf16.mxu0 0
  %105 = vmatpush1.bf16.msra.mxu0 %v85
  %106 = vmatprep.subr.bf16.mxu0 0
  %107 = vmatpush1.bf16.msra.mxu0 %v84
  %108 = vmatprep.subr.bf16.mxu0 0
  %109 = vmatpush2.bf16.msra.mxu0 0
  %110 = vmatprep.subr.bf16.mxu0 0
  %111 = vmatpush2.bf16.msra.mxu0 0
  %112 = vmatprep.subr.bf16.mxu0 0
  %113 = vmatpush2.bf16.msra.mxu0 0
  %114 = vmatprep.subr.bf16.mxu0 0
  %115 = vmatpush2.bf16.msra.mxu0 0
  %116 = vmatprep.subr.bf16.mxu0 0
  %117 = vmatpush2.bf16.msra.mxu0 0
  %118 = vmatprep.subr.bf16.mxu0 0
  %119 = vmatpush2.bf16.msra.mxu0 0
  %120 = vmatprep.subr.bf16.mxu0 0
  %121 = vmatpush2.bf16.msra.mxu0 0
  %122 = vmatprep.subr.bf16.mxu0 0
  %123 = vmatpush2.bf16.msra.mxu0 0
  %124 = vmatprep.mubr.bf16.mxu0 0
  %125 = vmatmul.mubr.bf16.gmra.mxu0 %v90
  %v126 = vpop.f32.mrf.mxu0
  %v127 = vadd.f32 %v74, %v126
  %v128 = vpop.f32.mrf.mxu0
  %v129 = vpop.f32.mrf.mxu0
  %v130 = vpop.f32.mrf.mxu0
  %131 = vdwg.mxu0
  %v132 = vlaneseq
  %v133 = vshrl.u32 %v132, 7
  %v134 = vcvt.s32.f32 %v133
  %v135 = vlaneseq
  %v136 = vand.u32 %v135, 127
  %v137 = vcvt.s32.f32 %v136
  %v138 = vadd.f32 %v134, 0.5
  %v139 = vmul.f32 %v138, 0.5
  %v140 = vfloor.f32 %v139
  %v141 = vadd.f32 %v137, 0.5
  %v142 = vmul.f32 %v141, 0.5
  %v143 = vfloor.f32 %v142
  %vm144 = vcmp.eq.f32.partialorder %v140, %v143
  %s145 = smul.u32 0, 4
  %s146 = scvt.s32.f32 %s145
  %v147 = vstv %s146
  %v148 = vadd.f32 %v137, %v147
  %vm149 = vcmp.lt.f32.partialorder %v148, 4.0
  %v150 = vsel %vm149, 1, 0
  %vm151 = vcmp.eq.s32.totalorder %v150, 1
  %vm152 = vmand %vm144, %vm151
  %v153 = vpack.c.bf16 %v127, %v127
  %155 = vrot.lane.b32.xlu0 %v153, 96
  %v156 = vpop.permute.xlu0 %155
  %vm157 = vcmask 130048
  %v159 = vsel %vm157, %v153, 0
  %v162 = vsel %vm157, %v156, 0
  %164 = vmatprep.subr.bf16.mxu0 0
  %165 = vmatpush1.bf16.xpose.msra.mxu0 0
  %166 = vmatprep.subr.bf16.mxu0 0
  %167 = vmatpush1.bf16.xpose.msra.mxu0 0
  %168 = vmatprep.subr.bf16.mxu0 0
  %169 = vmatpush1.bf16.xpose.msra.mxu0 0
  %170 = vmatprep.subr.bf16.mxu0 0
  %171 = vmatpush1.bf16.xpose.msra.mxu0 0
  %172 = vmatprep.subr.bf16.mxu0 0
  %173 = vmatpush1.bf16.xpose.msra.mxu0 0
  %174 = vmatprep.subr.bf16.mxu0 0
  %175 = vmatpush1.bf16.xpose.msra.mxu0 0
  %176 = vmatprep.subr.bf16.mxu0 0
  %177 = vmatpush1.bf16.xpose.msra.mxu0 0
  %178 = vmatprep.subr.bf16.mxu0 0
  %179 = vmatpush1.bf16.xpose.msra.mxu0 %v162
  %180 = vmatprep.subr.bf16.mxu0 0
  %181 = vmatpush2.bf16.xpose.msra.mxu0 0
  %182 = vmatprep.subr.bf16.mxu0 0
  %183 = vmatpush2.bf16.xpose.msra.mxu0 0
  %184 = vmatprep.subr.bf16.mxu0 0
  %185 = vmatpush2.bf16.xpose.msra.mxu0 0
  %186 = vmatprep.subr.bf16.mxu0 0
  %187 = vmatpush2.bf16.xpose.msra.mxu0 0
  %188 = vmatprep.subr.bf16.mxu0 0
  %189 = vmatpush2.bf16.xpose.msra.mxu0 0
  %190 = vmatprep.subr.bf16.mxu0 0
  %191 = vmatpush2.bf16.xpose.msra.mxu0 0
  %192 = vmatprep.subr.bf16.mxu0 0
  %193 = vmatpush2.bf16.xpose.msra.mxu0 0
  %194 = vmatprep.subr.bf16.mxu0 0
  %195 = vmatpush2.bf16.xpose.msra.mxu0 0
  %196 = vmatprep.mubr.bf16.mxu0 0
  %197 = vmatmul.mubr.bf16.gmra.mxu0 %v159
  %v198 = vpop.f32.mrf.mxu0
  %v199 = vadd.f32 0.0, %v198
  %v200 = vpop.f32.mrf.mxu0
  %v201 = vpop.f32.mrf.mxu0
  %v202 = vpop.f32.mrf.mxu0
  %203 = vdwg.mxu0
  %v204 = vmul.f32 %v199, 0.25
  %v205 = vsel %vm152, %v204, -1e+30
  %vm206 = vcmask 27648
  %v207 = vsel %vm206, %v205, -inf
  %208 = vmax.xlane.f32.xlu0 %v207
  %v209 = vpop.xlane.xlu0 %208
  %v210 = vsub.f32 %v205, %v209
  %v211 = vmul.f32 %v210, 1.442695
  %v212 = vpow.pop %v211
  %v213 = vsel %vm206, %v212, 0.0
  %214 = vadd.xlane.f32.xlu0 %v213
  %v215 = vpop.xlane.xlu0 %214
  %v216 = vrcp.pop %v215
  %v217 = vmul.f32 %v212, %v216
  %v218 = vpack.c.bf16 %v217, %v217
  %219 = vrot.lane.b32.xlu0 %v153, 64
  %v220 = vpop.permute.xlu0 %219
  %vm221 = vcmask 31744
  %v223 = vsel %vm221, %v218, 0
  %vm225 = vcmask 1041408
  %v227 = vsel %vm225, %v220, 0
  %229 = vmatprep.subr.bf16.mxu0 0
  %230 = vmatpush1.bf16.msra.mxu0 0
  %231 = vmatprep.subr.bf16.mxu0 0
  %232 = vmatpush1.bf16.msra.mxu0 0
  %233 = vmatprep.subr.bf16.mxu0 0
  %234 = vmatpush1.bf16.msra.mxu0 0
  %235 = vmatprep.subr.bf16.mxu0 0
  %236 = vmatpush1.bf16.msra.mxu0 0
  %237 = vmatprep.subr.bf16.mxu0 0
  %238 = vmatpush1.bf16.msra.mxu0 0
  %239 = vmatprep.subr.bf16.mxu0 0
  %240 = vmatpush1.bf16.msra.mxu0 0
  %241 = vmatprep.subr.bf16.mxu0 0
  %242 = vmatpush1.bf16.msra.mxu0 0
  %243 = vmatprep.subr.bf16.mxu0 0
  %244 = vmatpush1.bf16.msra.mxu0 %v227
  %245 = vmatprep.subr.bf16.mxu0 0
  %246 = vmatpush2.bf16.msra.mxu0 0
  %247 = vmatprep.subr.bf16.mxu0 0
  %248 = vmatpush2.bf16.msra.mxu0 0
  %249 = vmatprep.subr.bf16.mxu0 0
  %250 = vmatpush2.bf16.msra.mxu0 0
  %251 = vmatprep.subr.bf16.mxu0 0
  %252 = vmatpush2.bf16.msra.mxu0 0
  %253 = vmatprep.subr.bf16.mxu0 0
  %254 = vmatpush2.bf16.msra.mxu0 0
  %255 = vmatprep.subr.bf16.mxu0 0
  %256 = vmatpush2.bf16.msra.mxu0 0
  %257 = vmatprep.subr.bf16.mxu0 0
  %258 = vmatpush2.bf16.msra.mxu0 0
  %259 = vmatprep.subr.bf16.mxu0 0
  %260 = vmatpush2.bf16.msra.mxu0 0
  %261 = vmatprep.mubr.bf16.mxu0 0
  %262 = vmatmul.mubr.bf16.gmra.mxu0 %v223
  %v263 = vpop.f32.mrf.mxu0
  %v264 = vadd.f32 0.0, %v263
  %v265 = vpop.f32.mrf.mxu0
  %v266 = vpop.f32.mrf.mxu0
  %v267 = vpop.f32.mrf.mxu0
  %268 = vdwg.mxu0
  %v269 = vpack.c.bf16 %v264, %v264
  %v270 = vld [vmem:[%s4] sm:$0xf]
  %v271 = vld [vmem:[%s4 + $0x4] sm:$0xf]
  %v274 = vunpack.c.l.b16 %v270
  %v275 = vunpack.c.l.b16 %v271
  %v276 = vpack.c.b16 %v275, %v274
  %v279 = vsel %vm157, %v269, 0
  %281 = vmatprep.subr.bf16.mxu0 0
  %282 = vmatpush1.bf16.msra.mxu0 0
  %283 = vmatprep.subr.bf16.mxu0 0
  %284 = vmatpush1.bf16.msra.mxu0 0
  %285 = vmatprep.subr.bf16.mxu0 0
  %286 = vmatpush1.bf16.msra.mxu0 0
  %287 = vmatprep.subr.bf16.mxu0 0
  %288 = vmatpush1.bf16.msra.mxu0 0
  %289 = vmatprep.subr.bf16.mxu0 0
  %290 = vmatpush1.bf16.msra.mxu0 0
  %291 = vmatprep.subr.bf16.mxu0 0
  %292 = vmatpush1.bf16.msra.mxu0 0
  %293 = vmatprep.subr.bf16.mxu0 0
  %294 = vmatpush1.bf16.msra.mxu0 0
  %295 = vmatprep.subr.bf16.mxu0 0
  %296 = vmatpush1.bf16.msra.mxu0 %v276
  %297 = vmatprep.subr.bf16.mxu0 0
  %298 = vmatpush2.bf16.msra.mxu0 0
  %299 = vmatprep.subr.bf16.mxu0 0
  %300 = vmatpush2.bf16.msra.mxu0 0
  %301 = vmatprep.subr.bf16.mxu0 0
  %302 = vmatpush2.bf16.msra.mxu0 0
  %303 = vmatprep.subr.bf16.mxu0 0
  %304 = vmatpush2.bf16.msra.mxu0 0
  %305 = vmatprep.subr.bf16.mxu0 0
  %306 = vmatpush2.bf16.msra.mxu0 0
  %307 = vmatprep.subr.bf16.mxu0 0
  %308 = vmatpush2.bf16.msra.mxu0 0
  %309 = vmatprep.subr.bf16.mxu0 0
  %310 = vmatpush2.bf16.msra.mxu0 0
  %311 = vmatprep.subr.bf16.mxu0 0
  %312 = vmatpush2.bf16.msra.mxu0 0
  %313 = vmatprep.mubr.bf16.mxu0 0
  %314 = vmatmul.mubr.bf16.gmra.mxu0 %v279
  %v315 = vpop.f32.mrf.mxu0
  %v316 = vadd.f32 0.0, %v315
  %v317 = vpop.f32.mrf.mxu0
  %v318 = vpop.f32.mrf.mxu0
  %v319 = vpop.f32.mrf.mxu0
  %320 = vdwg.mxu0
  %v321 = vadd.f32 %v37, %v316
  %322 = vrot.lane.b32.xlu0 %v153, 112
  %v323 = vpop.permute.xlu0 %322
  %324 = vrot.lane.b32.xlu0 %v153, 80
  %v325 = vpop.permute.xlu0 %324
  %v327 = vsel %vm157, %v323, 0
  %v330 = vsel %vm157, %v325, 0
  %332 = vmatprep.subr.bf16.mxu0 0
  %333 = vmatpush1.bf16.xpose.msra.mxu0 0
  %334 = vmatprep.subr.bf16.mxu0 0
  %335 = vmatpush1.bf16.xpose.msra.mxu0 0
  %336 = vmatprep.subr.bf16.mxu0 0
  %337 = vmatpush1.bf16.xpose.msra.mxu0 0
  %338 = vmatprep.subr.bf16.mxu0 0
  %339 = vmatpush1.bf16.xpose.msra.mxu0 0
  %340 = vmatprep.subr.bf16.mxu0 0
  %341 = vmatpush1.bf16.xpose.msra.mxu0 0
  %342 = vmatprep.subr.bf16.mxu0 0
  %343 = vmatpush1.bf16.xpose.msra.mxu0 0
  %344 = vmatprep.subr.bf16.mxu0 0
  %345 = vmatpush1.bf16.xpose.msra.mxu0 0
  %346 = vmatprep.subr.bf16.mxu0 0
  %347 = vmatpush1.bf16.xpose.msra.mxu0 %v330
  %348 = vmatprep.subr.bf16.mxu0 0
  %349 = vmatpush2.bf16.xpose.msra.mxu0 0
  %350 = vmatprep.subr.bf16.mxu0 0
  %351 = vmatpush2.bf16.xpose.msra.mxu0 0
  %352 = vmatprep.subr.bf16.mxu0 0
  %353 = vmatpush2.bf16.xpose.msra.mxu0 0
  %354 = vmatprep.subr.bf16.mxu0 0
  %355 = vmatpush2.bf16.xpose.msra.mxu0 0
  %356 = vmatprep.subr.bf16.mxu0 0
  %357 = vmatpush2.bf16.xpose.msra.mxu0 0
  %358 = vmatprep.subr.bf16.mxu0 0
  %359 = vmatpush2.bf16.xpose.msra.mxu0 0
  %360 = vmatprep.subr.bf16.mxu0 0
  %361 = vmatpush2.bf16.xpose.msra.mxu0 0
  %362 = vmatprep.subr.bf16.mxu0 0
  %363 = vmatpush2.bf16.xpose.msra.mxu0 0
  %364 = vmatprep.mubr.bf16.mxu0 0
  %365 = vmatmul.mubr.bf16.gmra.mxu0 %v327
  %v366 = vpop.f32.mrf.mxu0
  %v367 = vadd.f32 0.0, %v366
  %v368 = vpop.f32.mrf.mxu0
  %v369 = vpop.f32.mrf.mxu0
  %v370 = vpop.f32.mrf.mxu0
  %371 = vdwg.mxu0
  %v372 = vmul.f32 %v367, 0.25
  %v373 = vsel %vm152, %v372, -1e+30
  %v374 = vsel %vm206, %v373, -inf
  %375 = vmax.xlane.f32.xlu0 %v374
  %v376 = vpop.xlane.xlu0 %375
  %v377 = vsub.f32 %v373, %v376
  %v378 = vmul.f32 %v377, 1.442695
  %v379 = vpow.pop %v378
  %v380 = vsel %vm206, %v379, 0.0
  %381 = vadd.xlane.f32.xlu0 %v380
  %v382 = vpop.xlane.xlu0 %381
  %v383 = vrcp.pop %v382
  %v384 = vmul.f32 %v379, %v383
  %v385 = vpack.c.bf16 %v384, %v384
  %386 = vrot.lane.b32.xlu0 %v153, 48
  %v387 = vpop.permute.xlu0 %386
  %v389 = vsel %vm221, %v385, 0
  %v392 = vsel %vm225, %v387, 0
  %394 = vmatprep.subr.bf16.mxu0 0
  %395 = vmatpush1.bf16.msra.mxu0 0
  %396 = vmatprep.subr.bf16.mxu0 0
  %397 = vmatpush1.bf16.msra.mxu0 0
  %398 = vmatprep.subr.bf16.mxu0 0
  %399 = vmatpush1.bf16.msra.mxu0 0
  %400 = vmatprep.subr.bf16.mxu0 0
  %401 = vmatpush1.bf16.msra.mxu0 0
  %402 = vmatprep.subr.bf16.mxu0 0
  %403 = vmatpush1.bf16.msra.mxu0 0
  %404 = vmatprep.subr.bf16.mxu0 0
  %405 = vmatpush1.bf16.msra.mxu0 0
  %406 = vmatprep.subr.bf16.mxu0 0
  %407 = vmatpush1.bf16.msra.mxu0 0
  %408 = vmatprep.subr.bf16.mxu0 0
  %409 = vmatpush1.bf16.msra.mxu0 %v392
  %410 = vmatprep.subr.bf16.mxu0 0
  %411 = vmatpush2.bf16.msra.mxu0 0
  %412 = vmatprep.subr.bf16.mxu0 0
  %413 = vmatpush2.bf16.msra.mxu0 0
  %414 = vmatprep.subr.bf16.mxu0 0
  %415 = vmatpush2.bf16.msra.mxu0 0
  %416 = vmatprep.subr.bf16.mxu0 0
  %417 = vmatpush2.bf16.msra.mxu0 0
  %418 = vmatprep.subr.bf16.mxu0 0
  %419 = vmatpush2.bf16.msra.mxu0 0
  %420 = vmatprep.subr.bf16.mxu0 0
  %421 = vmatpush2.bf16.msra.mxu0 0
  %422 = vmatprep.subr.bf16.mxu0 0
  %423 = vmatpush2.bf16.msra.mxu0 0
  %424 = vmatprep.subr.bf16.mxu0 0
  %425 = vmatpush2.bf16.msra.mxu0 0
  %426 = vmatprep.mubr.bf16.mxu0 0
  %427 = vmatmul.mubr.bf16.gmra.mxu0 %v389
  %v428 = vpop.f32.mrf.mxu0
  %v429 = vadd.f32 0.0, %v428
  %v430 = vpop.f32.mrf.mxu0
  %v431 = vpop.f32.mrf.mxu0
  %v432 = vpop.f32.mrf.mxu0
  %433 = vdwg.mxu0
  %v434 = vpack.c.bf16 %v429, %v429
  %v435 = vld [vmem:[%s4 + $0x8] sm:$0xf]
  %v436 = vld [vmem:[%s4 + $0xc] sm:$0xf]
  %v439 = vunpack.c.l.b16 %v435
  %v440 = vunpack.c.l.b16 %v436
  %v441 = vpack.c.b16 %v440, %v439
  %v444 = vsel %vm157, %v434, 0
  %446 = vmatprep.subr.bf16.mxu0 0
  %447 = vmatpush1.bf16.msra.mxu0 0
  %448 = vmatprep.subr.bf16.mxu0 0
  %449 = vmatpush1.bf16.msra.mxu0 0
  %450 = vmatprep.subr.bf16.mxu0 0
  %451 = vmatpush1.bf16.msra.mxu0 0
  %452 = vmatprep.subr.bf16.mxu0 0
  %453 = vmatpush1.bf16.msra.mxu0 0
  %454 = vmatprep.subr.bf16.mxu0 0
  %455 = vmatpush1.bf16.msra.mxu0 0
  %456 = vmatprep.subr.bf16.mxu0 0
  %457 = vmatpush1.bf16.msra.mxu0 0
  %458 = vmatprep.subr.bf16.mxu0 0
  %459 = vmatpush1.bf16.msra.mxu0 0
  %460 = vmatprep.subr.bf16.mxu0 0
  %461 = vmatpush1.bf16.msra.mxu0 %v441
  %462 = vmatprep.subr.bf16.mxu0 0
  %463 = vmatpush2.bf16.msra.mxu0 0
  %464 = vmatprep.subr.bf16.mxu0 0
  %465 = vmatpush2.bf16.msra.mxu0 0
  %466 = vmatprep.subr.bf16.mxu0 0
  %467 = vmatpush2.bf16.msra.mxu0 0
  %468 = vmatprep.subr.bf16.mxu0 0
  %469 = vmatpush2.bf16.msra.mxu0 0
  %470 = vmatprep.subr.bf16.mxu0 0
  %471 = vmatpush2.bf16.msra.mxu0 0
  %472 = vmatprep.subr.bf16.mxu0 0
  %473 = vmatpush2.bf16.msra.mxu0 0
  %474 = vmatprep.subr.bf16.mxu0 0
  %475 = vmatpush2.bf16.msra.mxu0 0
  %476 = vmatprep.subr.bf16.mxu0 0
  %477 = vmatpush2.bf16.msra.mxu0 0
  %478 = vmatprep.mubr.bf16.mxu0 0
  %479 = vmatmul.mubr.bf16.gmra.mxu0 %v444
  %v480 = vpop.f32.mrf.mxu0
  %v481 = vadd.f32 0.0, %v480
  %v482 = vpop.f32.mrf.mxu0
  %v483 = vpop.f32.mrf.mxu0
  %v484 = vpop.f32.mrf.mxu0
  %485 = vdwg.mxu0
  %v486 = vadd.f32 %v321, %v481
  %v487 = vld [vmem:[%s5] sm:$0x1]
  %v489 = vlaneseq
  %v490 = vshrl.u32 %v489, 7
  %v491 = vsub.s32 0, %v490
  %v492 = vrot.slane %v487, %v491
  %v494 = vadd.f32 %v486, %v492
  %v495 = vsel %vm39, %v494, 0.0
  %496 = vadd.xlane.f32.xlu0 %v495
  %v497 = vpop.xlane.xlu0 %496
  %v498 = vmul.f32 %v497, %v43
  %v499 = vsub.f32 %v494, %v498
  %v500 = vmul.f32 %v499, %v499
  %v501 = vsel %vm39, %v500, 0.0
  %502 = vadd.xlane.f32.xlu0 %v501
  %v503 = vpop.xlane.xlu0 %502
  %v504 = vmul.f32 %v503, %v43
  %v505 = vadd.f32 %v504, 1e-05
  %v506 = vrsqrt.pop %v505
  %v507 = vmul.f32 %v499, %v506
  %v508 = vlaneseq
  %v509 = vshrl.u32 %v508, 7
  %v510 = vsub.s32 2, %v509
  %v511 = vrot.slane %v38, %v510
  %v512 = vmul.f32 %v507, %v511
  %v513 = vlaneseq
  %v514 = vshrl.u32 %v513, 7
  %v515 = vsub.s32 3, %v514
  %v516 = vrot.slane %v38, %v515
  %v517 = vadd.f32 %v512, %v516
  %v518 = vpack.c.bf16 %v517, %v517
  %v519 = vld [vmem:[%s6] sm:$0xf]
  %v520 = vld [vmem:[%s6 + $0x4] sm:$0xf]
  %v521 = vld [vmem:[%s6 + $0x8] sm:$0xf]
  %v522 = vld [vmem:[%s6 + $0xc] sm:$0xf]
  %v523 = vld [vmem:[%s7] sm:$0x1]
  %v525 = vlaneseq
  %v526 = vshrl.u32 %v525, 7
  %v527 = vsub.s32 0, %v526
  %v528 = vrot.slane %v523, %v527
  %v534 = vunpack.c.l.b16 %v519
  %v535 = vunpack.c.l.b16 %v520
  %v536 = vunpack.c.l.b16 %v521
  %v537 = vunpack.c.l.b16 %v522
  %v538 = vpack.c.b16 %v535, %v534
  %v539 = vpack.c.b16 %v537, %v536
  %v543 = vsel %vm88, %v518, 0
  %545 = vmatprep.subr.bf16.mxu0 0
  %546 = vmatpush1.bf16.msra.mxu0 0
  %547 = vmatprep.subr.bf16.mxu0 0
  %548 = vmatpush1.bf16.msra.mxu0 0
  %549 = vmatprep.subr.bf16.mxu0 0
  %550 = vmatpush1.bf16.msra.mxu0 0
  %551 = vmatprep.subr.bf16.mxu0 0
  %552 = vmatpush1.bf16.msra.mxu0 0
  %553 = vmatprep.subr.bf16.mxu0 0
  %554 = vmatpush1.bf16.msra.mxu0 0
  %555 = vmatprep.subr.bf16.mxu0 0
  %556 = vmatpush1.bf16.msra.mxu0 0
  %557 = vmatprep.subr.bf16.mxu0 0
  %558 = vmatpush1.bf16.msra.mxu0 %v539
  %559 = vmatprep.subr.bf16.mxu0 0
  %560 = vmatpush1.bf16.msra.mxu0 %v538
  %561 = vmatprep.subr.bf16.mxu0 0
  %562 = vmatpush2.bf16.msra.mxu0 0
  %563 = vmatprep.subr.bf16.mxu0 0
  %564 = vmatpush2.bf16.msra.mxu0 0
  %565 = vmatprep.subr.bf16.mxu0 0
  %566 = vmatpush2.bf16.msra.mxu0 0
  %567 = vmatprep.subr.bf16.mxu0 0
  %568 = vmatpush2.bf16.msra.mxu0 0
  %569 = vmatprep.subr.bf16.mxu0 0
  %570 = vmatpush2.bf16.msra.mxu0 0
  %571 = vmatprep.subr.bf16.mxu0 0
  %572 = vmatpush2.bf16.msra.mxu0 0
  %573 = vmatprep.subr.bf16.mxu0 0
  %574 = vmatpush2.bf16.msra.mxu0 0
  %575 = vmatprep.subr.bf16.mxu0 0
  %576 = vmatpush2.bf16.msra.mxu0 0
  %577 = vmatprep.mubr.bf16.mxu0 0
  %578 = vmatmul.mubr.bf16.gmra.mxu0 %v543
  %v579 = vpop.f32.mrf.mxu0
  %v580 = vadd.f32 %v528, %v579
  %v581 = vpop.f32.mrf.mxu0
  %v582 = vpop.f32.mrf.mxu0
  %v583 = vpop.f32.mrf.mxu0
  %584 = vdwg.mxu0
  %v585 = vmax.f32 %v580, 0.0
  %v586 = vpack.c.bf16 %v585, %v585
  %v587 = vld [vmem:[%s8] sm:$0xf]
  %v588 = vld [vmem:[%s8 + $0x4] sm:$0xf]
  %v589 = vld [vmem:[%s8 + $0x8] sm:$0xf]
  %v590 = vld [vmem:[%s8 + $0xc] sm:$0xf]
  %v591 = vld [vmem:[%s8 + $0x10] sm:$0xf]
  %v592 = vld [vmem:[%s8 + $0x14] sm:$0xf]
  %v593 = vld [vmem:[%s8 + $0x18] sm:$0xf]
  %v594 = vld [vmem:[%s8 + $0x1c] sm:$0xf]
  %v595 = vld [vmem:[%s8 + $0x20] sm:$0xf]
  %v596 = vld [vmem:[%s8 + $0x24] sm:$0xf]
  %v597 = vld [vmem:[%s8 + $0x28] sm:$0xf]
  %v598 = vld [vmem:[%s8 + $0x2c] sm:$0xf]
  %v599 = vld [vmem:[%s8 + $0x30] sm:$0xf]
  %v600 = vld [vmem:[%s8 + $0x34] sm:$0xf]
  %v601 = vld [vmem:[%s8 + $0x38] sm:$0xf]
  %v602 = vld [vmem:[%s8 + $0x3c] sm:$0xf]
  %v603 = vld [vmem:[%s9] sm:$0x1]
  %v605 = vlaneseq
  %v606 = vshrl.u32 %v605, 7
  %v607 = vsub.s32 0, %v606
  %v608 = vrot.slane %v603, %v607
  %v626 = vunpack.c.l.b16 %v587
  %v627 = vunpack.c.l.b16 %v588
  %v628 = vunpack.c.l.b16 %v589
  %v629 = vunpack.c.l.b16 %v590
  %v630 = vunpack.c.l.b16 %v591
  %v631 = vunpack.c.l.b16 %v592
  %v632 = vunpack.c.l.b16 %v593
  %v633 = vunpack.c.l.b16 %v594
  %v634 = vunpack.c.l.b16 %v595
  %v635 = vunpack.c.l.b16 %v596
  %v636 = vunpack.c.l.b16 %v597
  %v637 = vunpack.c.l.b16 %v598
  %v638 = vunpack.c.l.b16 %v599
  %v639 = vunpack.c.l.b16 %v600
  %v640 = vunpack.c.l.b16 %v601
  %v641 = vunpack.c.l.b16 %v602
  %v642 = vpack.c.b16 %v627, %v626
  %v643 = vpack.c.b16 %v629, %v628
  %v644 = vpack.c.b16 %v631, %v630
  %v645 = vpack.c.b16 %v633, %v632
  %v646 = vpack.c.b16 %v635, %v634
  %v647 = vpack.c.b16 %v637, %v636
  %v648 = vpack.c.b16 %v639, %v638
  %v649 = vpack.c.b16 %v641, %v640
  %658 = vmatprep.subr.bf16.mxu0 0
  %659 = vmatpush1.bf16.msra.mxu0 %v649
  %660 = vmatprep.subr.bf16.mxu0 0
  %661 = vmatpush1.bf16.msra.mxu0 %v648
  %662 = vmatprep.subr.bf16.mxu0 0
  %663 = vmatpush1.bf16.msra.mxu0 %v647
  %664 = vmatprep.subr.bf16.mxu0 0
  %665 = vmatpush1.bf16.msra.mxu0 %v646
  %666 = vmatprep.subr.bf16.mxu0 0
  %667 = vmatpush1.bf16.msra.mxu0 %v645
  %668 = vmatprep.subr.bf16.mxu0 0
  %669 = vmatpush1.bf16.msra.mxu0 %v644
  %670 = vmatprep.subr.bf16.mxu0 0
  %671 = vmatpush1.bf16.msra.mxu0 %v643
  %672 = vmatprep.subr.bf16.mxu0 0
  %673 = vmatpush1.bf16.msra.mxu0 %v642
  %674 = vmatprep.subr.bf16.mxu0 0
  %675 = vmatpush2.bf16.msra.mxu0 0
  %676 = vmatprep.subr.bf16.mxu0 0
  %677 = vmatpush2.bf16.msra.mxu0 0
  %678 = vmatprep.subr.bf16.mxu0 0
  %679 = vmatpush2.bf16.msra.mxu0 0
  %680 = vmatprep.subr.bf16.mxu0 0
  %681 = vmatpush2.bf16.msra.mxu0 0
  %682 = vmatprep.subr.bf16.mxu0 0
  %683 = vmatpush2.bf16.msra.mxu0 0
  %684 = vmatprep.subr.bf16.mxu0 0
  %685 = vmatpush2.bf16.msra.mxu0 0
  %686 = vmatprep.subr.bf16.mxu0 0
  %687 = vmatpush2.bf16.msra.mxu0 0
  %688 = vmatprep.subr.bf16.mxu0 0
  %689 = vmatpush2.bf16.msra.mxu0 0
  %690 = vmatprep.mubr.bf16.mxu0 0
  %691 = vmatmul.mubr.bf16.gmra.mxu0 %v586
  %v692 = vpop.f32.mrf.mxu0
  %v693 = vadd.f32 %v608, %v692
  %v694 = vpop.f32.mrf.mxu0
  %v695 = vpop.f32.mrf.mxu0
  %v696 = vpop.f32.mrf.mxu0
  %697 = vdwg.mxu0
  %v698 = vadd.f32 %v494, %v693
  %v699 = vpack.c.bf16 %v698, %v698
  %vm700 = vcmask 254976
  %701 = vst.msk [vmem:[%s10] sm:$0x3] %vm700, %v699
  // Predicated region
  $region42: #{freq_fft_coupling_forward.13} parent=0 // pred_check
    _
  $region43: #{freq_fft_coupling_forward.13} parent=0 // pred_check_branch
    %703 = sbr.rel (0) target = $region45
  $region44: #{freq_fft_coupling_forward.13} parent=0 // pred_region
    _
  $region45: #{freq_fft_coupling_forward.13} parent=0 // pred_fallthru
    _
  // Predicated region
  $region46: #{freq_fft_coupling_forward.13} parent=0 // pred_check
    _
  $region47: #{freq_fft_coupling_forward.13} parent=0 // pred_check_branch
    %705 = sbr.rel (0) target = $region49
  $region48: #{freq_fft_coupling_forward.13} parent=0 // pred_region
    _
  $region49: #{freq_fft_coupling_forward.13} parent=0 // pred_fallthru
    _

// kernel: freq_fft_coupling_forward.11
$region0: #{freq_fft_coupling_forward.11}
  #allocation0 [shape = 'u32[]', space=smem, size = 0x4, offset = 0x4, fixed_abs, tag = 'smem constant byte address 0x4 - core index']
  #allocation1 [shape = 'u32[144,128]{1,0:T(1,128)}', space=vmem, size = 0x12000, scoped, tag = 'internal scratch']
  %s0 = inlined_call_operand.vmem [shape: bf16[20,6,32], index: 0, kind: input, shape index: {}]
  %s1 = inlined_call_operand.vmem [shape: bf16[3,32,32], index: 1, kind: input, shape index: {}]
  %s2 = inlined_call_operand.vmem [shape: f32[1,32], index: 2, kind: input, shape index: {}]
  %s3 = inlined_call_operand.vmem [shape: bf16[3,32,32], index: 3, kind: input, shape index: {}]
  %s4 = inlined_call_operand.vmem [shape: f32[1,32], index: 4, kind: input, shape index: {}]
  %s5 = inlined_call_operand.vmem [shape: bf16[20,2,32], index: 5, kind: output, shape index: {}]
  %s6 = sld [smem:[#allocation0]]
  $region53: #{freq_fft_coupling_forward.11} parent=0
    _
  %s8 = ssub.s32 1, %s6
  %s9 = scalar_select 0, %s8, %s6
  loop: start=0, step=1, limit=22
  $region2: #{freq_fft_coupling_forward.11} parent=0 // loop_pre_header
    _
  $region3: #{freq_fft_coupling_forward.11} parent=0 // loop_header
    %s11 = sphi 0, %s15
    %p12 = scmp.ge.s32.totalorder %s11, 22
    %s21 = sphi 0, %s23
    %s24 = sphi 0, %s21
    %s25 = sphi 0, %s24
    %s41 = sphi 0, %s25
    %s45 = sphi 0, %s45
    %s47 = sphi 0, %s45
    %s48 = sphi 0, %s47
    %s62 = sphi 0, %s48
    %s66 = sphi 0, %s66
    %s68 = sphi 0, %s66
    %s69 = sphi 0, %s68
    %s83 = sphi 0, %s69
    %s87 = sphi 0, %s87
    %s89 = sphi 0, %s87
    %s90 = sphi 0, %s89
    %s104 = sphi 0, %s90
    %s108 = sphi 0, %s108
    %s110 = sphi 0, %s108
    %s111 = sphi 0, %s110
    %s125 = sphi 0, %s111
    %s131 = sphi 0, %s133
    %s134 = sphi 0, %s131
    %s135 = sphi 0, %s134
    %s151 = sphi 0, %s135
  $region4: #{freq_fft_coupling_forward.11} parent=0 // loop_header_branch
    %14 = sbr.rel (%p12) target = $region8
  $region5: #{freq_fft_coupling_forward.11} parent=0 // loop_body
    %s16 = ssub.s32 %s11, 1
    %s17 = ssub.s32 %s11, 2
    %s18 = sadd.s32 %s11, 1
    %s19 = ssub.s32 %s11, %s18
    %p20 = scmp.eq.s32.totalorder %s19, 0
    %s22 = sadd.s32 %s21, 1
    %s23 = scalar_select %p20, %s21, %s22
    %p26 = pneg %p20
    %p27 = scmp.eq.s32.totalorder %s11, 19
    %p28 = por %p26, %p27
    %p29 = scmp.ne.s32.totalorder %s21, %s24
    %p30 = scmp.eq.s32.totalorder %s11, 0
    %p31 = por %p29, %p30
    %p32 = scmp.ne.s32.totalorder %s21, %s24
    %p33 = scmp.eq.s32.totalorder %s16, 19
    %p34 = por %p32, %p33
    %p35 = scmp.ne.s32.totalorder %s24, %s25
    %p36 = scmp.eq.s32.totalorder %s16, 0
    %p37 = por %p35, %p36
    %p38 = scmp.ne.s32.totalorder %s24, %s25
    %p39 = scmp.eq.s32.totalorder %s17, 19
    %p40 = por %p38, %p39
    %p42 = scmp.ne.s32.totalorder %s25, %s41
    %p43 = scmp.eq.s32.totalorder %s17, 0
    %p44 = por %p42, %p43
    %s46 = sadd.s32 %s45, 1
    %p49 = scmp.eq.s32.totalorder %s11, 19
    %p50 = scmp.ne.s32.totalorder %s45, %s47
    %p51 = scmp.eq.s32.totalorder %s11, 0
    %p52 = por %p50, %p51
    %p53 = scmp.ne.s32.totalorder %s45, %s47
    %p54 = scmp.eq.s32.totalorder %s16, 19
    %p55 = por %p53, %p54
    %p56 = scmp.ne.s32.totalorder %s47, %s48
    %p57 = scmp.eq.s32.totalorder %s16, 0
    %p58 = por %p56, %p57
    %p59 = scmp.ne.s32.totalorder %s47, %s48
    %p60 = scmp.eq.s32.totalorder %s17, 19
    %p61 = por %p59, %p60
    %p63 = scmp.ne.s32.totalorder %s48, %s62
    %p64 = scmp.eq.s32.totalorder %s17, 0
    %p65 = por %p63, %p64
    %s67 = sadd.s32 %s66, 1
    %p70 = scmp.eq.s32.totalorder %s11, 19
    %p71 = scmp.ne.s32.totalorder %s66, %s68
    %p72 = scmp.eq.s32.totalorder %s11, 0
    %p73 = por %p71, %p72
    %p74 = scmp.ne.s32.totalorder %s66, %s68
    %p75 = scmp.eq.s32.totalorder %s16, 19
    %p76 = por %p74, %p75
    %p77 = scmp.ne.s32.totalorder %s68, %s69
    %p78 = scmp.eq.s32.totalorder %s16, 0
    %p79 = por %p77, %p78
    %p80 = scmp.ne.s32.totalorder %s68, %s69
    %p81 = scmp.eq.s32.totalorder %s17, 19
    %p82 = por %p80, %p81
    %p84 = scmp.ne.s32.totalorder %s69, %s83
    %p85 = scmp.eq.s32.totalorder %s17, 0
    %p86 = por %p84, %p85
    %s88 = sadd.s32 %s87, 1
    %p91 = scmp.eq.s32.totalorder %s11, 19
    %p92 = scmp.ne.s32.totalorder %s87, %s89
    %p93 = scmp.eq.s32.totalorder %s11, 0
    %p94 = por %p92, %p93
    %p95 = scmp.ne.s32.totalorder %s87, %s89
    %p96 = scmp.eq.s32.totalorder %s16, 19
    %p97 = por %p95, %p96
    %p98 = scmp.ne.s32.totalorder %s89, %s90
    %p99 = scmp.eq.s32.totalorder %s16, 0
    %p100 = por %p98, %p99
    %p101 = scmp.ne.s32.totalorder %s89, %s90
    %p102 = scmp.eq.s32.totalorder %s17, 19
    %p103 = por %p101, %p102
    %p105 = scmp.ne.s32.totalorder %s90, %s104
    %p106 = scmp.eq.s32.totalorder %s17, 0
    %p107 = por %p105, %p106
    %s109 = sadd.s32 %s108, 1
    %p112 = scmp.eq.s32.totalorder %s11, 19
    %p113 = scmp.ne.s32.totalorder %s108, %s110
    %p114 = scmp.eq.s32.totalorder %s11, 0
    %p115 = por %p113, %p114
    %p116 = scmp.ne.s32.totalorder %s108, %s110
    %p117 = scmp.eq.s32.totalorder %s16, 19
    %p118 = por %p116, %p117
    %p119 = scmp.ne.s32.totalorder %s110, %s111
    %p120 = scmp.eq.s32.totalorder %s16, 0
    %p121 = por %p119, %p120
    %p122 = scmp.ne.s32.totalorder %s110, %s111
    %p123 = scmp.eq.s32.totalorder %s17, 19
    %p124 = por %p122, %p123
    %p126 = scmp.ne.s32.totalorder %s111, %s125
    %p127 = scmp.eq.s32.totalorder %s17, 0
    %p128 = por %p126, %p127
    %s129 = ssub.s32 %s11, %s18
    %p130 = scmp.eq.s32.totalorder %s129, 0
    %s132 = sadd.s32 %s131, 1
    %s133 = scalar_select %p130, %s131, %s132
    %p136 = pneg %p130
    %p137 = scmp.eq.s32.totalorder %s11, 19
    %p138 = por %p136, %p137
    %p139 = scmp.ne.s32.totalorder %s131, %s134
    %p140 = scmp.eq.s32.totalorder %s11, 0
    %p141 = por %p139, %p140
    %p142 = scmp.ne.s32.totalorder %s131, %s134
    %p143 = scmp.eq.s32.totalorder %s16, 19
    %p144 = por %p142, %p143
    %p145 = scmp.ne.s32.totalorder %s134, %s135
    %p146 = scmp.eq.s32.totalorder %s16, 0
    %p147 = por %p145, %p146
    %p148 = scmp.ne.s32.totalorder %s134, %s135
    %p149 = scmp.eq.s32.totalorder %s17, 19
    %p150 = por %p148, %p149
    %p152 = scmp.ne.s32.totalorder %s135, %s151
    %p153 = scmp.eq.s32.totalorder %s17, 0
    %p154 = por %p152, %p153
    %p155 = scmp.le.s32.totalorder 1, %s11
    %p156 = scmp.lt.s32.totalorder %s11, 21
    %p157 = pnand %p155, %p156
    %p158 = pneg %p157
    // Predicated region
    $region9: #{freq_fft_coupling_forward.11} parent=5 // pred_check
      _
    $region10: #{freq_fft_coupling_forward.11} parent=5 // pred_check_branch
      %160 = sbr.rel (%p157) target = $region12
    $region11: #{freq_fft_coupling_forward.11} parent=5 // pred_region
      %s161 = ssub.s32 %s11, 1
      // Predicated region
      $region13: #{freq_fft_coupling_forward.11} parent=11 // pred_check
        %p162 = pneg %p58
      $region14: #{freq_fft_coupling_forward.11} parent=11 // pred_check_branch
        %164 = sbr.rel (%p162) target = $region16
      $region15: #{freq_fft_coupling_forward.11} parent=11 // pred_region
        _
      $region16: #{freq_fft_coupling_forward.11} parent=11 // pred_fallthru
        _
      // Predicated region
      $region17: #{freq_fft_coupling_forward.11} parent=11 // pred_check
        %p165 = pneg %p79
      $region18: #{freq_fft_coupling_forward.11} parent=11 // pred_check_branch
        %167 = sbr.rel (%p165) target = $region20
      $region19: #{freq_fft_coupling_forward.11} parent=11 // pred_region
        _
      $region20: #{freq_fft_coupling_forward.11} parent=11 // pred_fallthru
        _
      // Predicated region
      $region21: #{freq_fft_coupling_forward.11} parent=11 // pred_check
        %p168 = pneg %p100
      $region22: #{freq_fft_coupling_forward.11} parent=11 // pred_check_branch
        %170 = sbr.rel (%p168) target = $region24
      $region23: #{freq_fft_coupling_forward.11} parent=11 // pred_region
        _
      $region24: #{freq_fft_coupling_forward.11} parent=11 // pred_fallthru
        _
      // Predicated region
      $region25: #{freq_fft_coupling_forward.11} parent=11 // pred_check
        %p171 = pneg %p121
      $region26: #{freq_fft_coupling_forward.11} parent=11 // pred_check_branch
        %173 = sbr.rel (%p171) target = $region28
      $region27: #{freq_fft_coupling_forward.11} parent=11 // pred_region
        _
      $region28: #{freq_fft_coupling_forward.11} parent=11 // pred_fallthru
        _
    $region12: #{freq_fft_coupling_forward.11} parent=5 // pred_fallthru
      _
    %p174 = scmp.lt.s32.totalorder %s11, 20
    // Predicated region
    $region29: #{freq_fft_coupling_forward.11} parent=5 // pred_check
      %p175 = pneg %p174
    $region30: #{freq_fft_coupling_forward.11} parent=5 // pred_check_branch
      %177 = sbr.rel (%p175) target = $region32
    $region31: #{freq_fft_coupling_forward.11} parent=5 // pred_region
      // Predicated region
      $region33: #{freq_fft_coupling_forward.11} parent=31 // pred_check
        %p178 = pneg %p31
      $region34: #{freq_fft_coupling_forward.11} parent=31 // pred_check_branch
        %180 = sbr.rel (%p178) target = $region36
      $region35: #{freq_fft_coupling_forward.11} parent=31 // pred_region
        %p181 = scmp.lt.s32.totalorder %s11, 19
        %s182 = scalar_select %p181, %s11, 19
        %s183 = smul.addr %s182, 4
        %s184 = scalar_lea.vmem %s0, %s183
      $region36: #{freq_fft_coupling_forward.11} parent=31 // pred_fallthru
        _
    $region32: #{freq_fft_coupling_forward.11} parent=5 // pred_fallthru
      _
    %p185 = scmp.le.s32.totalorder 1, %s11
    %p186 = scmp.lt.s32.totalorder %s11, 21
    %p187 = pnand %p185, %p186
    %p188 = pneg %p187
    // Predicated region
    $region37: #{freq_fft_coupling_forward.11} parent=5 // pred_check
      _
    $region38: #{freq_fft_coupling_forward.11} parent=5 // pred_check_branch
      %190 = sbr.rel (%p187) target = $region40
    $region39: #{freq_fft_coupling_forward.11} parent=5 // pred_region
      %s191 = ssub.s32 %s11, 1
      %p192 = scmp.lt.s32.totalorder %s16, 19
      %s193 = scalar_select %p192, %s16, 19
      %s194 = smul.addr %s193, 4
      %s195 = scalar_lea.vmem %s0, %s194
      %p196 = pneg %p37
      %p197 = pneg %p34
      %p198 = pneg %p58
      %p199 = pneg %p55
      %p200 = pneg %p79
      %p201 = pneg %p76
      %p202 = pneg %p100
      %p203 = pneg %p97
      %p204 = pneg %p121
      %p205 = pneg %p118
      %p206 = pneg %p147
      %p207 = pneg %p144
      %p208 = scmp.lt.s32.totalorder %s16, 19
      %s209 = scalar_select %p208, %s16, 19
      %s210 = scalar_lea.vmem %s5, %s209
      %p211 = scmp.lt.s32.totalorder %s16, 19
      %s212 = scalar_select %p211, %s16, 19
      %s213 = smul.addr %s212, 4
      %s214 = scalar_lea.vmem %s0, %s213
      %p215 = scmp.lt.s32.totalorder %s16, 19
      %s216 = scalar_select %p215, %s16, 19
      %s217 = scalar_lea.vmem %s5, %s216
      %v219 = vld [vmem:[%s214] sm:$0x3]
      %v220 = vld [vmem:[%s1] sm:$0xf]
      %v221 = vld [vmem:[%s1 + $0x4] sm:$0xf]
      %v222 = vld [vmem:[%s1 + $0x8] sm:$0xf]
      %v223 = vld [vmem:[%s1 + $0xc] sm:$0xf]
      %v224 = vld [vmem:[%s214] sm:$0x7]
      %s225 = scalar_lea.vmem %s1, 16
      %v226 = vld [vmem:[%s225] sm:$0xf]
      %v227 = vld [vmem:[%s225 + $0x4] sm:$0xf]
      %v228 = vld [vmem:[%s225 + $0x8] sm:$0xf]
      %v229 = vld [vmem:[%s225 + $0xc] sm:$0xf]
      %v231 = vunpack.c.l.b16 %v224
      %v232 = vpack.c.b16 %v231, %v231
      %v234 = vshrl.u32 %v232, 16
      %v236 = vshll.u32 %v232, 16
      %v238 = vrot.slane %v236, 1
      %v239 = vor.u32 %v234, %v238
      %v244 = vunpack.c.l.b16 %v226
      %v245 = vunpack.c.l.b16 %v227
      %v246 = vunpack.c.l.b16 %v228
      %v247 = vunpack.c.l.b16 %v229
      %v248 = vpack.c.b16 %v245, %v244
      %v249 = vpack.c.b16 %v247, %v246
      %vm252 = vcmask 261120
      %v254 = vsel %vm252, %v239, 0
      %256 = vmatprep.subr.bf16.mxu0 0
      %257 = vmatpush1.bf16.msra.mxu0 0
      %258 = vmatprep.subr.bf16.mxu0 0
      %259 = vmatpush1.bf16.msra.mxu0 0
      %260 = vmatprep.subr.bf16.mxu0 0
      %261 = vmatpush1.bf16.msra.mxu0 0
      %262 = vmatprep.subr.bf16.mxu0 0
      %263 = vmatpush1.bf16.msra.mxu0 0
      %264 = vmatprep.subr.bf16.mxu0 0
      %265 = vmatpush1.bf16.msra.mxu0 0
      %266 = vmatprep.subr.bf16.mxu0 0
      %267 = vmatpush1.bf16.msra.mxu0 0
      %268 = vmatprep.subr.bf16.mxu0 0
      %269 = vmatpush1.bf16.msra.mxu0 %v249
      %270 = vmatprep.subr.bf16.mxu0 0
      %271 = vmatpush1.bf16.msra.mxu0 %v248
      %272 = vmatprep.subr.bf16.mxu0 0
      %273 = vmatpush2.bf16.msra.mxu0 0
      %274 = vmatprep.subr.bf16.mxu0 0
      %275 = vmatpush2.bf16.msra.mxu0 0
      %276 = vmatprep.subr.bf16.mxu0 0
      %277 = vmatpush2.bf16.msra.mxu0 0
      %278 = vmatprep.subr.bf16.mxu0 0
      %279 = vmatpush2.bf16.msra.mxu0 0
      %280 = vmatprep.subr.bf16.mxu0 0
      %281 = vmatpush2.bf16.msra.mxu0 0
      %282 = vmatprep.subr.bf16.mxu0 0
      %283 = vmatpush2.bf16.msra.mxu0 0
      %284 = vmatprep.subr.bf16.mxu0 0
      %285 = vmatpush2.bf16.msra.mxu0 0
      %286 = vmatprep.subr.bf16.mxu0 0
      %287 = vmatpush2.bf16.msra.mxu0 0
      %288 = vmatprep.mubr.bf16.mxu0 0
      %289 = vmatmul.mubr.bf16.gmra.mxu0 %v254
      %v290 = vpop.f32.mrf.mxu0
      %v291 = vadd.f32 0.0, %v290
      %v292 = vpop.f32.mrf.mxu0
      %v293 = vpop.f32.mrf.mxu0
      %v294 = vpop.f32.mrf.mxu0
      %295 = vdwg.mxu0
      %v300 = vunpack.c.l.b16 %v220
      %v301 = vunpack.c.l.b16 %v221
      %v302 = vunpack.c.l.b16 %v222
      %v303 = vunpack.c.l.b16 %v223
      %v304 = vpack.c.b16 %v301, %v300
      %v305 = vpack.c.b16 %v303, %v302
      %v309 = vsel %vm252, %v219, 0
      %311 = vmatprep.subr.bf16.mxu0 0
      %312 = vmatpush1.bf16.msra.mxu0 0
      %313 = vmatprep.subr.bf16.mxu0 0
      %314 = vmatpush1.bf16.msra.mxu0 0
      %315 = vmatprep.subr.bf16.mxu0 0
      %316 = vmatpush1.bf16.msra.mxu0 0
      %317 = vmatprep.subr.bf16.mxu0 0
      %318 = vmatpush1.bf16.msra.mxu0 0
      %319 = vmatprep.subr.bf16.mxu0 0
      %320 = vmatpush1.bf16.msra.mxu0 0
      %321 = vmatprep.subr.bf16.mxu0 0
      %322 = vmatpush1.bf16.msra.mxu0 0
      %323 = vmatprep.subr.bf16.mxu0 0
      %324 = vmatpush1.bf16.msra.mxu0 %v305
      %325 = vmatprep.subr.bf16.mxu0 0
      %326 = vmatpush1.bf16.msra.mxu0 %v304
      %327 = vmatprep.subr.bf16.mxu0 0
      %328 = vmatpush2.bf16.msra.mxu0 0
      %329 = vmatprep.subr.bf16.mxu0 0
      %330 = vmatpush2.bf16.msra.mxu0 0
      %331 = vmatprep.subr.bf16.mxu0 0
      %332 = vmatpush2.bf16.msra.mxu0 0
      %333 = vmatprep.subr.bf16.mxu0 0
      %334 = vmatpush2.bf16.msra.mxu0 0
      %335 = vmatprep.subr.bf16.mxu0 0
      %336 = vmatpush2.bf16.msra.mxu0 0
      %337 = vmatprep.subr.bf16.mxu0 0
      %338 = vmatpush2.bf16.msra.mxu0 0
      %339 = vmatprep.subr.bf16.mxu0 0
      %340 = vmatpush2.bf16.msra.mxu0 0
      %341 = vmatprep.subr.bf16.mxu0 0
      %342 = vmatpush2.bf16.msra.mxu0 0
      %343 = vmatprep.mubr.bf16.mxu0 0
      %344 = vmatmul.mubr.bf16.gmra.mxu0 %v309
      %v345 = vpop.f32.mrf.mxu0
      %v346 = vadd.f32 %v291, %v345
      %v347 = vpop.f32.mrf.mxu0
      %v348 = vpop.f32.mrf.mxu0
      %v349 = vpop.f32.mrf.mxu0
      %350 = vdwg.mxu0
      %v351 = vld [vmem:[%s214] sm:$0x6]
      %s352 = scalar_lea.vmem %s1, 32
      %v353 = vld [vmem:[%s352] sm:$0xf]
      %v354 = vld [vmem:[%s352 + $0x4] sm:$0xf]
      %v355 = vld [vmem:[%s352 + $0x8] sm:$0xf]
      %v356 = vld [vmem:[%s352 + $0xc] sm:$0xf]
      %v358 = vunpack.c.l.b16 %v351
      %v359 = vpack.c.b16 %v358, %v358
      %v360 = vrot.slane %v359, 1
      %v365 = vunpack.c.l.b16 %v353
      %v366 = vunpack.c.l.b16 %v354
      %v367 = vunpack.c.l.b16 %v355
      %v368 = vunpack.c.l.b16 %v356
      %v369 = vpack.c.b16 %v366, %v365
      %v370 = vpack.c.b16 %v368, %v367
      %v374 = vsel %vm252, %v360, 0
      %376 = vmatprep.subr.bf16.mxu0 0
      %377 = vmatpush1.bf16.msra.mxu0 0
      %378 = vmatprep.subr.bf16.mxu0 0
      %379 = vmatpush1.bf16.msra.mxu0 0
      %380 = vmatprep.subr.bf16.mxu0 0
      %381 = vmatpush1.bf16.msra.mxu0 0
      %382 = vmatprep.subr.bf16.mxu0 0
      %383 = vmatpush1.bf16.msra.mxu0 0
      %384 = vmatprep.subr.bf16.mxu0 0
      %385 = vmatpush1.bf16.msra.mxu0 0
      %386 = vmatprep.subr.bf16.mxu0 0
      %387 = vmatpush1.bf16.msra.mxu0 0
      %388 = vmatprep.subr.bf16.mxu0 0
      %389 = vmatpush1.bf16.msra.mxu0 %v370
      %390 = vmatprep.subr.bf16.mxu0 0
      %391 = vmatpush1.bf16.msra.mxu0 %v369
      %392 = vmatprep.subr.bf16.mxu0 0
      %393 = vmatpush2.bf16.msra.mxu0 0
      %394 = vmatprep.subr.bf16.mxu0 0
      %395 = vmatpush2.bf16.msra.mxu0 0
      %396 = vmatprep.subr.bf16.mxu0 0
      %397 = vmatpush2.bf16.msra.mxu0 0
      %398 = vmatprep.subr.bf16.mxu0 0
      %399 = vmatpush2.bf16.msra.mxu0 0
      %400 = vmatprep.subr.bf16.mxu0 0
      %401 = vmatpush2.bf16.msra.mxu0 0
      %402 = vmatprep.subr.bf16.mxu0 0
      %403 = vmatpush2.bf16.msra.mxu0 0
      %404 = vmatprep.subr.bf16.mxu0 0
      %405 = vmatpush2.bf16.msra.mxu0 0
      %406 = vmatprep.subr.bf16.mxu0 0
      %407 = vmatpush2.bf16.msra.mxu0 0
      %408 = vmatprep.mubr.bf16.mxu0 0
      %409 = vmatmul.mubr.bf16.gmra.mxu0 %v374
      %v410 = vpop.f32.mrf.mxu0
      %v411 = vadd.f32 0.0, %v410
      %v412 = vpop.f32.mrf.mxu0
      %v413 = vpop.f32.mrf.mxu0
      %v414 = vpop.f32.mrf.mxu0
      %415 = vdwg.mxu0
      %v416 = vadd.f32 %v346, %v411
      %v417 = vld [vmem:[%s2] sm:$0x1]
      %v419 = vlaneseq
      %v420 = vshrl.u32 %v419, 7
      %v421 = vsub.s32 0, %v420
      %v422 = vrot.slane %v417, %v421
      %v424 = vadd.f32 %v416, %v422
      %v425 = vmax.f32 %v424, 0.0
      %v426 = vlaneseq
      %v427 = vshrl.u32 %v426, 7
      %vm428 = vcmp.ge.s32.totalorder %v427, 1
      %vm429 = vcmp.le.s32.totalorder %v427, 2
      %vm430 = vmand %vm428, %vm429
      %v431 = vsel %vm430, 1, 0
      %vm432 = vcmp.eq.s32.totalorder %v431, 1
      %v433 = vsel %vm432, %v425, 0.0
      %v434 = vpack.c.bf16 %v433, %v433
      %v435 = vld [vmem:[%s3] sm:$0xf]
      %v436 = vld [vmem:[%s3 + $0x4] sm:$0xf]
      %v437 = vld [vmem:[%s3 + $0x8] sm:$0xf]
      %v438 = vld [vmem:[%s3 + $0xc] sm:$0xf]
      %s439 = scalar_lea.vmem %s3, 16
      %v440 = vld [vmem:[%s439] sm:$0xf]
      %v441 = vld [vmem:[%s439 + $0x4] sm:$0xf]
      %v442 = vld [vmem:[%s439 + $0x8] sm:$0xf]
      %v443 = vld [vmem:[%s439 + $0xc] sm:$0xf]
      %v445 = vshrl.u32 %v434, 16
      %v447 = vshll.u32 %v434, 16
      %v449 = vrot.slane %v447, 1
      %v450 = vor.u32 %v445, %v449
      %v455 = vunpack.c.l.b16 %v440
      %v456 = vunpack.c.l.b16 %v441
      %v457 = vunpack.c.l.b16 %v442
      %v458 = vunpack.c.l.b16 %v443
      %v459 = vpack.c.b16 %v456, %v455
      %v460 = vpack.c.b16 %v458, %v457
      %v464 = vsel %vm252, %v450, 0
      %466 = vmatprep.subr.bf16.mxu0 0
      %467 = vmatpush1.bf16.msra.mxu0 0
      %468 = vmatprep.subr.bf16.mxu0 0
      %469 = vmatpush1.bf16.msra.mxu0 0
      %470 = vmatprep.subr.bf16.mxu0 0
      %471 = vmatpush1.bf16.msra.mxu0 0
      %472 = vmatprep.subr.bf16.mxu0 0
      %473 = vmatpush1.bf16.msra.mxu0 0
      %474 = vmatprep.subr.bf16.mxu0 0
      %475 = vmatpush1.bf16.msra.mxu0 0
      %476 = vmatprep.subr.bf16.mxu0 0
      %477 = vmatpush1.bf16.msra.mxu0 0
      %478 = vmatprep.subr.bf16.mxu0 0
      %479 = vmatpush1.bf16.msra.mxu0 %v460
      %480 = vmatprep.subr.bf16.mxu0 0
      %481 = vmatpush1.bf16.msra.mxu0 %v459
      %482 = vmatprep.subr.bf16.mxu0 0
      %483 = vmatpush2.bf16.msra.mxu0 0
      %484 = vmatprep.subr.bf16.mxu0 0
      %485 = vmatpush2.bf16.msra.mxu0 0
      %486 = vmatprep.subr.bf16.mxu0 0
      %487 = vmatpush2.bf16.msra.mxu0 0
      %488 = vmatprep.subr.bf16.mxu0 0
      %489 = vmatpush2.bf16.msra.mxu0 0
      %490 = vmatprep.subr.bf16.mxu0 0
      %491 = vmatpush2.bf16.msra.mxu0 0
      %492 = vmatprep.subr.bf16.mxu0 0
      %493 = vmatpush2.bf16.msra.mxu0 0
      %494 = vmatprep.subr.bf16.mxu0 0
      %495 = vmatpush2.bf16.msra.mxu0 0
      %496 = vmatprep.subr.bf16.mxu0 0
      %497 = vmatpush2.bf16.msra.mxu0 0
      %498 = vmatprep.mubr.bf16.mxu0 0
      %499 = vmatmul.mubr.bf16.gmra.mxu0 %v464
      %v500 = vpop.f32.mrf.mxu0
      %v501 = vadd.f32 0.0, %v500
      %v502 = vpop.f32.mrf.mxu0
      %v503 = vpop.f32.mrf.mxu0
      %v504 = vpop.f32.mrf.mxu0
      %505 = vdwg.mxu0
      %v510 = vunpack.c.l.b16 %v435
      %v511 = vunpack.c.l.b16 %v436
      %v512 = vunpack.c.l.b16 %v437
      %v513 = vunpack.c.l.b16 %v438
      %v514 = vpack.c.b16 %v511, %v510
      %v515 = vpack.c.b16 %v513, %v512
      %v518 = vsel %vm252, %v434, 0
      %520 = vmatprep.subr.bf16.mxu0 0
      %521 = vmatpush1.bf16.msra.mxu0 0
      %522 = vmatprep.subr.bf16.mxu0 0
      %523 = vmatpush1.bf16.msra.mxu0 0
      %524 = vmatprep.subr.bf16.mxu0 0
      %525 = vmatpush1.bf16.msra.mxu0 0
      %526 = vmatprep.subr.bf16.mxu0 0
      %527 = vmatpush1.bf16.msra.mxu0 0
      %528 = vmatprep.subr.bf16.mxu0 0
      %529 = vmatpush1.bf16.msra.mxu0 0
      %530 = vmatprep.subr.bf16.mxu0 0
      %531 = vmatpush1.bf16.msra.mxu0 0
      %532 = vmatprep.subr.bf16.mxu0 0
      %533 = vmatpush1.bf16.msra.mxu0 %v515
      %534 = vmatprep.subr.bf16.mxu0 0
      %535 = vmatpush1.bf16.msra.mxu0 %v514
      %536 = vmatprep.subr.bf16.mxu0 0
      %537 = vmatpush2.bf16.msra.mxu0 0
      %538 = vmatprep.subr.bf16.mxu0 0
      %539 = vmatpush2.bf16.msra.mxu0 0
      %540 = vmatprep.subr.bf16.mxu0 0
      %541 = vmatpush2.bf16.msra.mxu0 0
      %542 = vmatprep.subr.bf16.mxu0 0
      %543 = vmatpush2.bf16.msra.mxu0 0
      %544 = vmatprep.subr.bf16.mxu0 0
      %545 = vmatpush2.bf16.msra.mxu0 0
      %546 = vmatprep.subr.bf16.mxu0 0
      %547 = vmatpush2.bf16.msra.mxu0 0
      %548 = vmatprep.subr.bf16.mxu0 0
      %549 = vmatpush2.bf16.msra.mxu0 0
      %550 = vmatprep.subr.bf16.mxu0 0
      %551 = vmatpush2.bf16.msra.mxu0 0
      %552 = vmatprep.mubr.bf16.mxu0 0
      %553 = vmatmul.mubr.bf16.gmra.mxu0 %v518
      %v554 = vpop.f32.mrf.mxu0
      %v555 = vadd.f32 %v501, %v554
      %v556 = vpop.f32.mrf.mxu0
      %v557 = vpop.f32.mrf.mxu0
      %v558 = vpop.f32.mrf.mxu0
      %559 = vdwg.mxu0
      %s560 = scalar_lea.vmem %s3, 32
      %v561 = vld [vmem:[%s560] sm:$0xf]
      %v562 = vld [vmem:[%s560 + $0x4] sm:$0xf]
      %v563 = vld [vmem:[%s560 + $0x8] sm:$0xf]
      %v564 = vld [vmem:[%s560 + $0xc] sm:$0xf]
      %v566 = vrot.slane %v434, 1
      %v571 = vunpack.c.l.b16 %v561
      %v572 = vunpack.c.l.b16 %v562
      %v573 = vunpack.c.l.b16 %v563
      %v574 = vunpack.c.l.b16 %v564
      %v575 = vpack.c.b16 %v572, %v571
      %v576 = vpack.c.b16 %v574, %v573
      %v580 = vsel %vm252, %v566, 0
      %582 = vmatprep.subr.bf16.mxu0 0
      %583 = vmatpush1.bf16.msra.mxu0 0
      %584 = vmatprep.subr.bf16.mxu0 0
      %585 = vmatpush1.bf16.msra.mxu0 0
      %586 = vmatprep.subr.bf16.mxu0 0
      %587 = vmatpush1.bf16.msra.mxu0 0
      %588 = vmatprep.subr.bf16.mxu0 0
      %589 = vmatpush1.bf16.msra.mxu0 0
      %590 = vmatprep.subr.bf16.mxu0 0
      %591 = vmatpush1.bf16.msra.mxu0 0
      %592 = vmatprep.subr.bf16.mxu0 0
      %593 = vmatpush1.bf16.msra.mxu0 0
      %594 = vmatprep.subr.bf16.mxu0 0
      %595 = vmatpush1.bf16.msra.mxu0 %v576
      %596 = vmatprep.subr.bf16.mxu0 0
      %597 = vmatpush1.bf16.msra.mxu0 %v575
      %598 = vmatprep.subr.bf16.mxu0 0
      %599 = vmatpush2.bf16.msra.mxu0 0
      %600 = vmatprep.subr.bf16.mxu0 0
      %601 = vmatpush2.bf16.msra.mxu0 0
      %602 = vmatprep.subr.bf16.mxu0 0
      %603 = vmatpush2.bf16.msra.mxu0 0
      %604 = vmatprep.subr.bf16.mxu0 0
      %605 = vmatpush2.bf16.msra.mxu0 0
      %606 = vmatprep.subr.bf16.mxu0 0
      %607 = vmatpush2.bf16.msra.mxu0 0
      %608 = vmatprep.subr.bf16.mxu0 0
      %609 = vmatpush2.bf16.msra.mxu0 0
      %610 = vmatprep.subr.bf16.mxu0 0
      %611 = vmatpush2.bf16.msra.mxu0 0
      %612 = vmatprep.subr.bf16.mxu0 0
      %613 = vmatpush2.bf16.msra.mxu0 0
      %614 = vmatprep.mubr.bf16.mxu0 0
      %615 = vmatmul.mubr.bf16.gmra.mxu0 %v580
      %v616 = vpop.f32.mrf.mxu0
      %v617 = vadd.f32 0.0, %v616
      %v618 = vpop.f32.mrf.mxu0
      %v619 = vpop.f32.mrf.mxu0
      %v620 = vpop.f32.mrf.mxu0
      %621 = vdwg.mxu0
      %v622 = vadd.f32 %v555, %v617
      %v623 = vld [vmem:[%s4] sm:$0x1]
      %v625 = vlaneseq
      %v626 = vshrl.u32 %v625, 7
      %v627 = vsub.s32 0, %v626
      %v628 = vrot.slane %v623, %v627
      %v630 = vadd.f32 %v622, %v628
      %v631 = vpack.c.bf16 %v630, %v630
      %vm632 = vcmask 253952
      %633 = vst.msk [vmem:[%s217] sm:$0x1] %vm632, %v631
      %p634 = scmp.lt.s32.totalorder %s16, 19
      %s635 = scalar_select %p634, %s16, 19
      %s636 = scalar_lea.vmem %s5, %s635
      // Predicated region
      $region41: #{freq_fft_coupling_forward.11} parent=39 // pred_check
        %p637 = pneg %p144
      $region42: #{freq_fft_coupling_forward.11} parent=39 // pred_check_branch
        %639 = sbr.rel (%p637) target = $region44
      $region43: #{freq_fft_coupling_forward.11} parent=39 // pred_region
        _
      $region44: #{freq_fft_coupling_forward.11} parent=39 // pred_fallthru
        _
    $region40: #{freq_fft_coupling_forward.11} parent=5 // pred_fallthru
      _
    %p640 = scmp.le.s32.totalorder 2, %s11
    // Predicated region
    $region45: #{freq_fft_coupling_forward.11} parent=5 // pred_check
      %p641 = pneg %p640
    $region46: #{freq_fft_coupling_forward.11} parent=5 // pred_check_branch
      %643 = sbr.rel (%p641) target = $region48
    $region47: #{freq_fft_coupling_forward.11} parent=5 // pred_region
      %s644 = ssub.s32 %s11, 2
      // Predicated region
      $region49: #{freq_fft_coupling_forward.11} parent=47 // pred_check
        %p645 = pneg %p150
      $region50: #{freq_fft_coupling_forward.11} parent=47 // pred_check_branch
        %647 = sbr.rel (%p645) target = $region52
      $region51: #{freq_fft_coupling_forward.11} parent=47 // pred_region
        %p648 = scmp.lt.s32.totalorder %s17, 19
        %s649 = scalar_select %p648, %s17, 19
        %s650 = scalar_lea.vmem %s5, %s649
      $region52: #{freq_fft_coupling_forward.11} parent=47 // pred_fallthru
        _
    $region48: #{freq_fft_coupling_forward.11} parent=5 // pred_fallthru
      _
  $region6: #{freq_fft_coupling_forward.11} parent=0 // loop_footer
    %s15 = sadd.s32 1, %s11
  $region7: #{freq_fft_coupling_forward.11} parent=0 // loop_footer_branch
    %10 = sbr.rel target = $region3
  $region8: #{freq_fft_coupling_forward.11} parent=0 // loop_exit
    _

// kernel: freq_fft_coupling_forward.14
$region0: #{freq_fft_coupling_forward.14}
  #allocation0 [shape = 'u32[]', space=smem, size = 0x4, offset = 0x4, fixed_abs, tag = 'smem constant byte address 0x4 - core index']
  #allocation1 [shape = 'u32[144,128]{1,0:T(1,128)}', space=vmem, size = 0x12000, scoped, tag = 'internal scratch']
  %s0 = inlined_call_operand.vmem [shape: bf16[2,56,96], index: 0, kind: input, shape index: {}]
  %s1 = inlined_call_operand.vmem [shape: bf16[9,96,32], index: 1, kind: input, shape index: {}]
  %s2 = inlined_call_operand.vmem [shape: f32[1,32], index: 2, kind: input, shape index: {}]
  %s3 = inlined_call_operand.vmem [shape: bf16[2,40,32], index: 3, kind: output, shape index: {}]
  %s4 = sld [smem:[#allocation0]]
  $region45: #{freq_fft_coupling_forward.14} parent=0
    _
  %s6 = ssub.s32 1, %s4
  %s7 = scalar_select 0, %s6, %s4
  loop: start=0, step=1, limit=4
  $region2: #{freq_fft_coupling_forward.14} parent=0 // loop_pre_header
    _
  $region3: #{freq_fft_coupling_forward.14} parent=0 // loop_header
    %s9 = sphi 0, %s13
    %p10 = scmp.ge.s32.totalorder %s9, 4
    %s19 = sphi 0, %s21
    %s22 = sphi 0, %s19
    %s23 = sphi 0, %s22
    %s39 = sphi 0, %s23
    %s43 = sphi 0, %s43
    %s45 = sphi 0, %s43
    %s46 = sphi 0, %s45
    %s60 = sphi 0, %s46
    %s64 = sphi 0, %s64
    %s66 = sphi 0, %s64
    %s67 = sphi 0, %s66
    %s81 = sphi 0, %s67
    %s87 = sphi 0, %s89
    %s90 = sphi 0, %s87
    %s91 = sphi 0, %s90
    %s107 = sphi 0, %s91
  $region4: #{freq_fft_coupling_forward.14} parent=0 // loop_header_branch
    %12 = sbr.rel (%p10) target = $region8
  $region5: #{freq_fft_coupling_forward.14} parent=0 // loop_body
    %s14 = ssub.s32 %s9, 1
    %s15 = ssub.s32 %s9, 2
    %s16 = sadd.s32 %s9, 1
    %s17 = ssub.s32 %s9, %s16
    %p18 = scmp.eq.s32.totalorder %s17, 0
    %s20 = sadd.s32 %s19, 1
    %s21 = scalar_select %p18, %s19, %s20
    %p24 = pneg %p18
    %p25 = scmp.eq.s32.totalorder %s9, 1
    %p26 = por %p24, %p25
    %p27 = scmp.ne.s32.totalorder %s19, %s22
    %p28 = scmp.eq.s32.totalorder %s9, 0
    %p29 = por %p27, %p28
    %p30 = scmp.ne.s32.totalorder %s19, %s22
    %p31 = scmp.eq.s32.totalorder %s14, 1
    %p32 = por %p30, %p31
    %p33 = scmp.ne.s32.totalorder %s22, %s23
    %p34 = scmp.eq.s32.totalorder %s14, 0
    %p35 = por %p33, %p34
    %p36 = scmp.ne.s32.totalorder %s22, %s23
    %p37 = scmp.eq.s32.totalorder %s15, 1
    %p38 = por %p36, %p37
    %p40 = scmp.ne.s32.totalorder %s23, %s39
    %p41 = scmp.eq.s32.totalorder %s15, 0
    %p42 = por %p40, %p41
    %s44 = sadd.s32 %s43, 1
    %p47 = scmp.eq.s32.totalorder %s9, 1
    %p48 = scmp.ne.s32.totalorder %s43, %s45
    %p49 = scmp.eq.s32.totalorder %s9, 0
    %p50 = por %p48, %p49
    %p51 = scmp.ne.s32.totalorder %s43, %s45
    %p52 = scmp.eq.s32.totalorder %s14, 1
    %p53 = por %p51, %p52
    %p54 = scmp.ne.s32.totalorder %s45, %s46
    %p55 = scmp.eq.s32.totalorder %s14, 0
    %p56 = por %p54, %p55
    %p57 = scmp.ne.s32.totalorder %s45, %s46
    %p58 = scmp.eq.s32.totalorder %s15, 1
    %p59 = por %p57, %p58
    %p61 = scmp.ne.s32.totalorder %s46, %s60
    %p62 = scmp.eq.s32.totalorder %s15, 0
    %p63 = por %p61, %p62
    %s65 = sadd.s32 %s64, 1
    %p68 = scmp.eq.s32.totalorder %s9, 1
    %p69 = scmp.ne.s32.totalorder %s64, %s66
    %p70 = scmp.eq.s32.totalorder %s9, 0
    %p71 = por %p69, %p70
    %p72 = scmp.ne.s32.totalorder %s64, %s66
    %p73 = scmp.eq.s32.totalorder %s14, 1
    %p74 = por %p72, %p73
    %p75 = scmp.ne.s32.totalorder %s66, %s67
    %p76 = scmp.eq.s32.totalorder %s14, 0
    %p77 = por %p75, %p76
    %p78 = scmp.ne.s32.totalorder %s66, %s67
    %p79 = scmp.eq.s32.totalorder %s15, 1
    %p80 = por %p78, %p79
    %p82 = scmp.ne.s32.totalorder %s67, %s81
    %p83 = scmp.eq.s32.totalorder %s15, 0
    %p84 = por %p82, %p83
    %s85 = ssub.s32 %s9, %s16
    %p86 = scmp.eq.s32.totalorder %s85, 0
    %s88 = sadd.s32 %s87, 1
    %s89 = scalar_select %p86, %s87, %s88
    %p92 = pneg %p86
    %p93 = scmp.eq.s32.totalorder %s9, 1
    %p94 = por %p92, %p93
    %p95 = scmp.ne.s32.totalorder %s87, %s90
    %p96 = scmp.eq.s32.totalorder %s9, 0
    %p97 = por %p95, %p96
    %p98 = scmp.ne.s32.totalorder %s87, %s90
    %p99 = scmp.eq.s32.totalorder %s14, 1
    %p100 = por %p98, %p99
    %p101 = scmp.ne.s32.totalorder %s90, %s91
    %p102 = scmp.eq.s32.totalorder %s14, 0
    %p103 = por %p101, %p102
    %p104 = scmp.ne.s32.totalorder %s90, %s91
    %p105 = scmp.eq.s32.totalorder %s15, 1
    %p106 = por %p104, %p105
    %p108 = scmp.ne.s32.totalorder %s91, %s107
    %p109 = scmp.eq.s32.totalorder %s15, 0
    %p110 = por %p108, %p109
    %p111 = scmp.le.s32.totalorder 1, %s9
    %p112 = scmp.lt.s32.totalorder %s9, 3
    %p113 = pnand %p111, %p112
    %p114 = pneg %p113
    // Predicated region
    $region9: #{freq_fft_coupling_forward.14} parent=5 // pred_check
      _
    $region10: #{freq_fft_coupling_forward.14} parent=5 // pred_check_branch
      %116 = sbr.rel (%p113) target = $region12
    $region11: #{freq_fft_coupling_forward.14} parent=5 // pred_region
      %s117 = ssub.s32 %s9, 1
      // Predicated region
      $region13: #{freq_fft_coupling_forward.14} parent=11 // pred_check
        %p118 = pneg %p56
      $region14: #{freq_fft_coupling_forward.14} parent=11 // pred_check_branch
        %120 = sbr.rel (%p118) target = $region16
      $region15: #{freq_fft_coupling_forward.14} parent=11 // pred_region
        _
      $region16: #{freq_fft_coupling_forward.14} parent=11 // pred_fallthru
        _
      // Predicated region
      $region17: #{freq_fft_coupling_forward.14} parent=11 // pred_check
        %p121 = pneg %p77
      $region18: #{freq_fft_coupling_forward.14} parent=11 // pred_check_branch
        %123 = sbr.rel (%p121) target = $region20
      $region19: #{freq_fft_coupling_forward.14} parent=11 // pred_region
        _
      $region20: #{freq_fft_coupling_forward.14} parent=11 // pred_fallthru
        _
    $region12: #{freq_fft_coupling_forward.14} parent=5 // pred_fallthru
      _
    %p124 = scmp.lt.s32.totalorder %s9, 2
    // Predicated region
    $region21: #{freq_fft_coupling_forward.14} parent=5 // pred_check
      %p125 = pneg %p124
    $region22: #{freq_fft_coupling_forward.14} parent=5 // pred_check_branch
      %127 = sbr.rel (%p125) target = $region24
    $region23: #{freq_fft_coupling_forward.14} parent=5 // pred_region
      // Predicated region
      $region25: #{freq_fft_coupling_forward.14} parent=23 // pred_check
        %p128 = pneg %p29
      $region26: #{freq_fft_coupling_forward.14} parent=23 // pred_check_branch
        %130 = sbr.rel (%p128) target = $region28
      $region27: #{freq_fft_coupling_forward.14} parent=23 // pred_region
        %p131 = scmp.lt.s32.totalorder %s9, 1
        %s132 = scalar_select %p131, %s9, 1
        %s133 = smul.addr %s132, 7
        %s134 = smul.addr %s133, 4
        %s135 = scalar_lea.vmem %s0, %s134
      $region28: #{freq_fft_coupling_forward.14} parent=23 // pred_fallthru
        _
    $region24: #{freq_fft_coupling_forward.14} parent=5 // pred_fallthru
      _
    %p136 = scmp.le.s32.totalorder 1, %s9
    %p137 = scmp.lt.s32.totalorder %s9, 3
    %p138 = pnand %p136, %p137
    %p139 = pneg %p138
    // Predicated region
    $region29: #{freq_fft_coupling_forward.14} parent=5 // pred_check
      _
    $region30: #{freq_fft_coupling_forward.14} parent=5 // pred_check_branch
      %141 = sbr.rel (%p138) target = $region32
    $region31: #{freq_fft_coupling_forward.14} parent=5 // pred_region
      %s142 = ssub.s32 %s9, 1
      %p143 = scmp.lt.s32.totalorder %s14, 1
      %s144 = scalar_select %p143, %s14, 1
      %s145 = smul.addr %s144, 7
      %s146 = smul.addr %s145, 4
      %s147 = scalar_lea.vmem %s0, %s146
      %p148 = pneg %p35
      %p149 = pneg %p32
      %p150 = pneg %p56
      %p151 = pneg %p53
      %p152 = pneg %p77
      %p153 = pneg %p74
      %p154 = pneg %p103
      %p155 = pneg %p100
      %p156 = scmp.lt.s32.totalorder %s14, 1
      %s157 = scalar_select %p156, %s14, 1
      %s158 = smul.addr %s157, 5
      %s159 = smul.addr %s158, 4
      %s160 = scalar_lea.vmem %s3, %s159
      %p161 = scmp.lt.s32.totalorder %s14, 1
      %s162 = scalar_select %p161, %s14, 1
      %s163 = smul.addr %s162, 7
      %s164 = smul.addr %s163, 4
      %s165 = scalar_lea.vmem %s0, %s164
      %p166 = scmp.lt.s32.totalorder %s14, 1
      %s167 = scalar_select %p166, %s14, 1
      %s168 = smul.addr %s167, 5
      %s169 = smul.addr %s168, 4
      %s170 = scalar_lea.vmem %s3, %s169
      %v172 = vld [vmem:[%s165] sm:$0xf]
      %v173 = vld [vmem:[%s165 + $0x4] sm:$0xf]
      %v174 = vld [vmem:[%s165 + $0x8] sm:$0xf]
      %v175 = vld [vmem:[%s165 + $0xc] sm:$0xf]
      %v176 = vld [vmem:[%s165 + $0x10] sm:$0xf]
      %v177 = vld [vmem:[%s1] sm:$0xf]
      %v178 = vld [vmem:[%s1 + $0x4] sm:$0xf]
      %v179 = vld [vmem:[%s1 + $0x8] sm:$0xf]
      %v180 = vld [vmem:[%s1 + $0xc] sm:$0xf]
      %v181 = vld [vmem:[%s1 + $0x10] sm:$0xf]
      %v182 = vld [vmem:[%s1 + $0x14] sm:$0xf]
      %v183 = vld [vmem:[%s1 + $0x18] sm:$0xf]
      %v184 = vld [vmem:[%s1 + $0x1c] sm:$0xf]
      %v185 = vld [vmem:[%s1 + $0x20] sm:$0xf]
      %v186 = vld [vmem:[%s1 + $0x24] sm:$0xf]
      %v187 = vld [vmem:[%s1 + $0x28] sm:$0xf]
      %v188 = vld [vmem:[%s1 + $0x2c] sm:$0xf]
      %v189 = vld [vmem:[%s165 + $0x14] sm:$0x1]
      %s190 = scalar_lea.vmem %s1, 48
      %v191 = vld [vmem:[%s190] sm:$0xf]
      %v192 = vld [vmem:[%s190 + $0x4] sm:$0xf]
      %v193 = vld [vmem:[%s190 + $0x8] sm:$0xf]
      %v194 = vld [vmem:[%s190 + $0xc] sm:$0xf]
      %v195 = vld [vmem:[%s190 + $0x10] sm:$0xf]
      %v196 = vld [vmem:[%s190 + $0x14] sm:$0xf]
      %v197 = vld [vmem:[%s190 + $0x18] sm:$0xf]
      %v198 = vld [vmem:[%s190 + $0x1c] sm:$0xf]
      %v199 = vld [vmem:[%s190 + $0x20] sm:$0xf]
      %v200 = vld [vmem:[%s190 + $0x24] sm:$0xf]
      %v201 = vld [vmem:[%s190 + $0x28] sm:$0xf]
      %v202 = vld [vmem:[%s190 + $0x2c] sm:$0xf]
      %v209 = vunpack.c.l.b16 %v172
      %v210 = vunpack.c.l.b16 %v173
      %v211 = vunpack.c.l.b16 %v174
      %v212 = vunpack.c.l.b16 %v175
      %v213 = vunpack.c.l.b16 %v176
      %v214 = vunpack.c.l.b16 %v189
      %v215 = vpack.c.b16 %v210, %v209
      %v216 = vpack.c.b16 %v212, %v211
      %v217 = vpack.c.b16 %v214, %v213
      %vm218 = vsmask.f32 7424
      %v220 = vshrl.u32 %v215, 16
      %v222 = vshll.u32 %v215, 16
      %v224 = vrot.slane %v222, 1
      %v225 = vor.u32 %v220, %v224
      %v227 = vshll.u32 %v216, 16
      %v229 = vrot.slane %v227, 1
      %v230 = vsel %vm218, %v225, %v229
      %v231 = vshrl.u32 %v216, 16
      %v233 = vor.u32 %v231, %v229
      %v235 = vshll.u32 %v217, 16
      %v237 = vrot.slane %v235, 1
      %v238 = vsel %vm218, %v233, %v237
      %v239 = vshrl.u32 %v217, 16
      %v241 = vor.u32 %v239, %v237
      %v254 = vunpack.c.l.b16 %v191
      %v255 = vunpack.c.l.b16 %v192
      %v256 = vunpack.c.l.b16 %v193
      %v257 = vunpack.c.l.b16 %v194
      %v258 = vunpack.c.l.b16 %v195
      %v259 = vunpack.c.l.b16 %v196
      %v260 = vunpack.c.l.b16 %v197
      %v261 = vunpack.c.l.b16 %v198
      %v262 = vunpack.c.l.b16 %v199
      %v263 = vunpack.c.l.b16 %v200
      %v264 = vunpack.c.l.b16 %v201
      %v265 = vunpack.c.l.b16 %v202
      %v266 = vpack.c.b16 %v255, %v254
      %v267 = vpack.c.b16 %v257, %v256
      %v268 = vpack.c.b16 %v259, %v258
      %v269 = vpack.c.b16 %v261, %v260
      %v270 = vpack.c.b16 %v263, %v262
      %v271 = vpack.c.b16 %v265, %v264
      %vm278 = vcmask 785408
      %v280 = vsel %vm278, %v230, 0
      %v283 = vsel %vm278, %v238, 0
      %v286 = vsel %vm278, %v241, 0
      %288 = vmatprep.subr.bf16.mxu0 0
      %289 = vmatpush1.bf16.msra.mxu0 0
      %290 = vmatprep.subr.bf16.mxu0 0
      %291 = vmatpush1.bf16.msra.mxu0 0
      %292 = vmatprep.subr.bf16.mxu0 0
      %293 = vmatpush1.bf16.msra.mxu0 %v271
      %294 = vmatprep.subr.bf16.mxu0 0
      %295 = vmatpush1.bf16.msra.mxu0 %v270
      %296 = vmatprep.subr.bf16.mxu0 0
      %297 = vmatpush1.bf16.msra.mxu0 %v269
      %298 = vmatprep.subr.bf16.mxu0 0
      %299 = vmatpush1.bf16.msra.mxu0 %v268
      %300 = vmatprep.subr.bf16.mxu0 0
      %301 = vmatpush1.bf16.msra.mxu0 %v267
      %302 = vmatprep.subr.bf16.mxu0 0
      %303 = vmatpush1.bf16.msra.mxu0 %v266
      %304 = vmatprep.subr.bf16.mxu0 0
      %305 = vmatpush2.bf16.msra.mxu0 0
      %306 = vmatprep.subr.bf16.mxu0 0
      %307 = vmatpush2.bf16.msra.mxu0 0
      %308 = vmatprep.subr.bf16.mxu0 0
      %309 = vmatpush2.bf16.msra.mxu0 0
      %310 = vmatprep.subr.bf16.mxu0 0
      %311 = vmatpush2.bf16.msra.mxu0 0
      %312 = vmatprep.subr.bf16.mxu0 0
      %313 = vmatpush2.bf16.msra.mxu0 0
      %314 = vmatprep.subr.bf16.mxu0 0
      %315 = vmatpush2.bf16.msra.mxu0 0
      %316 = vmatprep.subr.bf16.mxu0 0
      %317 = vmatpush2.bf16.msra.mxu0 0
      %318 = vmatprep.subr.bf16.mxu0 0
      %319 = vmatpush2.bf16.msra.mxu0 0
      %320 = vmatprep.mubr.bf16.mxu0 0
      %321 = vmatmul.mubr.bf16.gmra.mxu0 %v280
      %v322 = vpop.f32.mrf.mxu0
      %v323 = vadd.f32 0.0, %v322
      %v324 = vpop.f32.mrf.mxu0
      %v325 = vpop.f32.mrf.mxu0
      %v326 = vadd.f32 0.0, %v325
      %v327 = vpop.f32.mrf.mxu0
      %328 = vmatprep.mubr.bf16.mxu0 0
      %329 = vmatmul.mubr.bf16.gmra.mxu0 %v283
      %v330 = vpop.f32.mrf.mxu0
      %v331 = vadd.f32 0.0, %v330
      %v332 = vpop.f32.mrf.mxu0
      %v333 = vpop.f32.mrf.mxu0
      %v334 = vadd.f32 0.0, %v333
      %v335 = vpop.f32.mrf.mxu0
      %336 = vmatprep.mubr.bf16.mxu0 0
      %337 = vmatmul.mubr.bf16.gmra.mxu0 %v286
      %v338 = vpop.f32.mrf.mxu0
      %v339 = vadd.f32 0.0, %v338
      %v340 = vpop.f32.mrf.mxu0
      %v341 = vpop.f32.mrf.mxu0
      %v342 = vpop.f32.mrf.mxu0
      %343 = vdwg.mxu0
      %v344 = vpack.c.b16 %v213, %v213
      %v357 = vunpack.c.l.b16 %v177
      %v358 = vunpack.c.l.b16 %v178
      %v359 = vunpack.c.l.b16 %v179
      %v360 = vunpack.c.l.b16 %v180
      %v361 = vunpack.c.l.b16 %v181
      %v362 = vunpack.c.l.b16 %v182
      %v363 = vunpack.c.l.b16 %v183
      %v364 = vunpack.c.l.b16 %v184
      %v365 = vunpack.c.l.b16 %v185
      %v366 = vunpack.c.l.b16 %v186
      %v367 = vunpack.c.l.b16 %v187
      %v368 = vunpack.c.l.b16 %v188
      %v369 = vpack.c.b16 %v358, %v357
      %v370 = vpack.c.b16 %v360, %v359
      %v371 = vpack.c.b16 %v362, %v361
      %v372 = vpack.c.b16 %v364, %v363
      %v373 = vpack.c.b16 %v366, %v365
      %v374 = vpack.c.b16 %v368, %v367
      %v381 = vsel %vm278, %v215, 0
      %v383 = vsel %vm278, %v216, 0
      %v386 = vsel %vm278, %v344, 0
      %388 = vmatprep.subr.bf16.mxu0 0
      %389 = vmatpush1.bf16.msra.mxu0 0
      %390 = vmatprep.subr.bf16.mxu0 0
      %391 = vmatpush1.bf16.msra.mxu0 0
      %392 = vmatprep.subr.bf16.mxu0 0
      %393 = vmatpush1.bf16.msra.mxu0 %v374
      %394 = vmatprep.subr.bf16.mxu0 0
      %395 = vmatpush1.bf16.msra.mxu0 %v373
      %396 = vmatprep.subr.bf16.mxu0 0
      %397 = vmatpush1.bf16.msra.mxu0 %v372
      %398 = vmatprep.subr.bf16.mxu0 0
      %399 = vmatpush1.bf16.msra.mxu0 %v371
      %400 = vmatprep.subr.bf16.mxu0 0
      %401 = vmatpush1.bf16.msra.mxu0 %v370
      %402 = vmatprep.subr.bf16.mxu0 0
      %403 = vmatpush1.bf16.msra.mxu0 %v369
      %404 = vmatprep.subr.bf16.mxu0 0
      %405 = vmatpush2.bf16.msra.mxu0 0
      %406 = vmatprep.subr.bf16.mxu0 0
      %407 = vmatpush2.bf16.msra.mxu0 0
      %408 = vmatprep.subr.bf16.mxu0 0
      %409 = vmatpush2.bf16.msra.mxu0 0
      %410 = vmatprep.subr.bf16.mxu0 0
      %411 = vmatpush2.bf16.msra.mxu0 0
      %412 = vmatprep.subr.bf16.mxu0 0
      %413 = vmatpush2.bf16.msra.mxu0 0
      %414 = vmatprep.subr.bf16.mxu0 0
      %415 = vmatpush2.bf16.msra.mxu0 0
      %416 = vmatprep.subr.bf16.mxu0 0
      %417 = vmatpush2.bf16.msra.mxu0 0
      %418 = vmatprep.subr.bf16.mxu0 0
      %419 = vmatpush2.bf16.msra.mxu0 0
      %420 = vmatprep.mubr.bf16.mxu0 0
      %421 = vmatmul.mubr.bf16.gmra.mxu0 %v381
      %v422 = vpop.f32.mrf.mxu0
      %v423 = vadd.f32 %v323, %v422
      %v424 = vpop.f32.mrf.mxu0
      %v425 = vpop.f32.mrf.mxu0
      %v426 = vadd.f32 %v326, %v425
      %v427 = vpop.f32.mrf.mxu0
      %428 = vmatprep.mubr.bf16.mxu0 0
      %429 = vmatmul.mubr.bf16.gmra.mxu0 %v383
      %v430 = vpop.f32.mrf.mxu0
      %v431 = vadd.f32 %v331, %v430
      %v432 = vpop.f32.mrf.mxu0
      %v433 = vpop.f32.mrf.mxu0
      %v434 = vadd.f32 %v334, %v433
      %v435 = vpop.f32.mrf.mxu0
      %436 = vmatprep.mubr.bf16.mxu0 0
      %437 = vmatmul.mubr.bf16.gmra.mxu0 %v386
      %v438 = vpop.f32.mrf.mxu0
      %v439 = vadd.f32 %v339, %v438
      %v440 = vpop.f32.mrf.mxu0
      %v441 = vpop.f32.mrf.mxu0
      %v442 = vpop.f32.mrf.mxu0
      %443 = vdwg.mxu0
      %v444 = vld [vmem:[%s165] sm:$0xe]
      %s445 = scalar_lea.vmem %s1, 96
      %v446 = vld [vmem:[%s445] sm:$0xf]
      %v447 = vld [vmem:[%s445 + $0x4] sm:$0xf]
      %v448 = vld [vmem:[%s445 + $0x8] sm:$0xf]
      %v449 = vld [vmem:[%s445 + $0xc] sm:$0xf]
      %v450 = vld [vmem:[%s445 + $0x10] sm:$0xf]
      %v451 = vld [vmem:[%s445 + $0x14] sm:$0xf]
      %v452 = vld [vmem:[%s445 + $0x18] sm:$0xf]
      %v453 = vld [vmem:[%s445 + $0x1c] sm:$0xf]
      %v454 = vld [vmem:[%s445 + $0x20] sm:$0xf]
      %v455 = vld [vmem:[%s445 + $0x24] sm:$0xf]
      %v456 = vld [vmem:[%s445 + $0x28] sm:$0xf]
      %v457 = vld [vmem:[%s445 + $0x2c] sm:$0xf]
      %v459 = vunpack.c.l.b16 %v444
      %v460 = vpack.c.b16 %v210, %v459
      %vm461 = vcmask 1046528
      %v462 = vrot.slane %v460, 1
      %v463 = vrot.slane %v216, 1
      %v464 = vsel %vm461, %v462, %v463
      %v465 = vrot.slane %v217, 1
      %v466 = vsel %vm461, %v463, %v465
      %v479 = vunpack.c.l.b16 %v446
      %v480 = vunpack.c.l.b16 %v447
      %v481 = vunpack.c.l.b16 %v448
      %v482 = vunpack.c.l.b16 %v449
      %v483 = vunpack.c.l.b16 %v450
      %v484 = vunpack.c.l.b16 %v451
      %v485 = vunpack.c.l.b16 %v452
      %v486 = vunpack.c.l.b16 %v453
      %v487 = vunpack.c.l.b16 %v454
      %v488 = vunpack.c.l.b16 %v455
      %v489 = vunpack.c.l.b16 %v456
      %v490 = vunpack.c.l.b16 %v457
      %v491 = vpack.c.b16 %v480, %v479
      %v492 = vpack.c.b16 %v482, %v481
      %v493 = vpack.c.b16 %v484, %v483
      %v494 = vpack.c.b16 %v486, %v485
      %v495 = vpack.c.b16 %v488, %v487
      %v496 = vpack.c.b16 %v490, %v489
      %v504 = vsel %vm278, %v464, 0
      %v507 = vsel %vm278, %v466, 0
      %v510 = vsel %vm278, %v465, 0
      %512 = vmatprep.subr.bf16.mxu0 0
      %513 = vmatpush1.bf16.msra.mxu0 0
      %514 = vmatprep.subr.bf16.mxu0 0
      %515 = vmatpush1.bf16.msra.mxu0 0
      %516 = vmatprep.subr.bf16.mxu0 0
      %517 = vmatpush1.bf16.msra.mxu0 %v496
      %518 = vmatprep.subr.bf16.mxu0 0
      %519 = vmatpush1.bf16.msra.mxu0 %v495
      %520 = vmatprep.subr.bf16.mxu0 0
      %521 = vmatpush1.bf16.msra.mxu0 %v494
      %522 = vmatprep.subr.bf16.mxu0 0
      %523 = vmatpush1.bf16.msra.mxu0 %v493
      %524 = vmatprep.subr.bf16.mxu0 0
      %525 = vmatpush1.bf16.msra.mxu0 %v492
      %526 = vmatprep.subr.bf16.mxu0 0
      %527 = vmatpush1.bf16.msra.mxu0 %v491
      %528 = vmatprep.subr.bf16.mxu0 0
      %529 = vmatpush2.bf16.msra.mxu0 0
      %530 = vmatprep.subr.bf16.mxu0 0
      %531 = vmatpush2.bf16.msra.mxu0 0
      %532 = vmatprep.subr.bf16.mxu0 0
      %533 = vmatpush2.bf16.msra.mxu0 0
      %534 = vmatprep.subr.bf16.mxu0 0
      %535 = vmatpush2.bf16.msra.mxu0 0
      %536 = vmatprep.subr.bf16.mxu0 0
      %537 = vmatpush2.bf16.msra.mxu0 0
      %538 = vmatprep.subr.bf16.mxu0 0
      %539 = vmatpush2.bf16.msra.mxu0 0
      %540 = vmatprep.subr.bf16.mxu0 0
      %541 = vmatpush2.bf16.msra.mxu0 0
      %542 = vmatprep.subr.bf16.mxu0 0
      %543 = vmatpush2.bf16.msra.mxu0 0
      %544 = vmatprep.mubr.bf16.mxu0 0
      %545 = vmatmul.mubr.bf16.gmra.mxu0 %v504
      %v546 = vpop.f32.mrf.mxu0
      %v547 = vadd.f32 0.0, %v546
      %v548 = vpop.f32.mrf.mxu0
      %v549 = vpop.f32.mrf.mxu0
      %v550 = vadd.f32 0.0, %v549
      %v551 = vpop.f32.mrf.mxu0
      %552 = vmatprep.mubr.bf16.mxu0 0
      %553 = vmatmul.mubr.bf16.gmra.mxu0 %v507
      %v554 = vpop.f32.mrf.mxu0
      %v555 = vadd.f32 0.0, %v554
      %v556 = vpop.f32.mrf.mxu0
      %v557 = vpop.f32.mrf.mxu0
      %v558 = vadd.f32 0.0, %v557
      %v559 = vpop.f32.mrf.mxu0
      %560 = vmatprep.mubr.bf16.mxu0 0
      %561 = vmatmul.mubr.bf16.gmra.mxu0 %v510
      %v562 = vpop.f32.mrf.mxu0
      %v563 = vadd.f32 0.0, %v562
      %v564 = vpop.f32.mrf.mxu0
      %v565 = vpop.f32.mrf.mxu0
      %v566 = vpop.f32.mrf.mxu0
      %567 = vdwg.mxu0
      %v568 = vadd.f32 %v423, %v547
      %v569 = vadd.f32 %v426, %v550
      %v570 = vadd.f32 %v431, %v555
      %v571 = vadd.f32 %v434, %v558
      %v572 = vadd.f32 %v439, %v563
      %v573 = vld [vmem:[%s165] sm:$0xc]
      %v574 = vld [vmem:[%s165 + $0x14] sm:$0x3]
      %s575 = scalar_lea.vmem %s1, 144
      %v576 = vld [vmem:[%s575] sm:$0xf]
      %v577 = vld [vmem:[%s575 + $0x4] sm:$0xf]
      %v578 = vld [vmem:[%s575 + $0x8] sm:$0xf]
      %v579 = vld [vmem:[%s575 + $0xc] sm:$0xf]
      %v580 = vld [vmem:[%s575 + $0x10] sm:$0xf]
      %v581 = vld [vmem:[%s575 + $0x14] sm:$0xf]
      %v582 = vld [vmem:[%s575 + $0x18] sm:$0xf]
      %v583 = vld [vmem:[%s575 + $0x1c] sm:$0xf]
      %v584 = vld [vmem:[%s575 + $0x20] sm:$0xf]
      %v585 = vld [vmem:[%s575 + $0x24] sm:$0xf]
      %v586 = vld [vmem:[%s575 + $0x28] sm:$0xf]
      %v587 = vld [vmem:[%s575 + $0x2c] sm:$0xf]
      %v590 = vunpack.c.l.b16 %v573
      %v591 = vunpack.c.l.b16 %v574
      %v592 = vpack.c.b16 %v210, %v590
      %v593 = vpack.c.b16 %v591, %v213
      %vm594 = vcmask 1045504
      %v595 = vrot.slane %v592, 2
      %v596 = vrot.slane %v216, 2
      %v597 = vsel %vm594, %v595, %v596
      %v598 = vrot.slane %v593, 2
      %v599 = vsel %vm594, %v596, %v598
      %v612 = vunpack.c.l.b16 %v576
      %v613 = vunpack.c.l.b16 %v577
      %v614 = vunpack.c.l.b16 %v578
      %v615 = vunpack.c.l.b16 %v579
      %v616 = vunpack.c.l.b16 %v580
      %v617 = vunpack.c.l.b16 %v581
      %v618 = vunpack.c.l.b16 %v582
      %v619 = vunpack.c.l.b16 %v583
      %v620 = vunpack.c.l.b16 %v584
      %v621 = vunpack.c.l.b16 %v585
      %v622 = vunpack.c.l.b16 %v586
      %v623 = vunpack.c.l.b16 %v587
      %v624 = vpack.c.b16 %v613, %v612
      %v625 = vpack.c.b16 %v615, %v614
      %v626 = vpack.c.b16 %v617, %v616
      %v627 = vpack.c.b16 %v619, %v618
      %v628 = vpack.c.b16 %v621, %v620
      %v629 = vpack.c.b16 %v623, %v622
      %v637 = vsel %vm278, %v597, 0
      %v640 = vsel %vm278, %v599, 0
      %v643 = vsel %vm278, %v598, 0
      %645 = vmatprep.subr.bf16.mxu0 0
      %646 = vmatpush1.bf16.msra.mxu0 0
      %647 = vmatprep.subr.bf16.mxu0 0
      %648 = vmatpush1.bf16.msra.mxu0 0
      %649 = vmatprep.subr.bf16.mxu0 0
      %650 = vmatpush1.bf16.msra.mxu0 %v629
      %651 = vmatprep.subr.bf16.mxu0 0
      %652 = vmatpush1.bf16.msra.mxu0 %v628
      %653 = vmatprep.subr.bf16.mxu0 0
      %654 = vmatpush1.bf16.msra.mxu0 %v627
      %655 = vmatprep.subr.bf16.mxu0 0
      %656 = vmatpush1.bf16.msra.mxu0 %v626
      %657 = vmatprep.subr.bf16.mxu0 0
      %658 = vmatpush1.bf16.msra.mxu0 %v625
      %659 = vmatprep.subr.bf16.mxu0 0
      %660 = vmatpush1.bf16.msra.mxu0 %v624
      %661 = vmatprep.subr.bf16.mxu0 0
      %662 = vmatpush2.bf16.msra.mxu0 0
      %663 = vmatprep.subr.bf16.mxu0 0
      %664 = vmatpush2.bf16.msra.mxu0 0
      %665 = vmatprep.subr.bf16.mxu0 0
      %666 = vmatpush2.bf16.msra.mxu0 0
      %667 = vmatprep.subr.bf16.mxu0 0
      %668 = vmatpush2.bf16.msra.mxu0 0
      %669 = vmatprep.subr.bf16.mxu0 0
      %670 = vmatpush2.bf16.msra.mxu0 0
      %671 = vmatprep.subr.bf16.mxu0 0
      %672 = vmatpush2.bf16.msra.mxu0 0
      %673 = vmatprep.subr.bf16.mxu0 0
      %674 = vmatpush2.bf16.msra.mxu0 0
      %675 = vmatprep.subr.bf16.mxu0 0
      %676 = vmatpush2.bf16.msra.mxu0 0
      %677 = vmatprep.mubr.bf16.mxu0 0
      %678 = vmatmul.mubr.bf16.gmra.mxu0 %v637
      %v679 = vpop.f32.mrf.mxu0
      %v680 = vadd.f32 0.0, %v679
      %v681 = vpop.f32.mrf.mxu0
      %v682 = vpop.f32.mrf.mxu0
      %v683 = vadd.f32 0.0, %v682
      %v684 = vpop.f32.mrf.mxu0
      %685 = vmatprep.mubr.bf16.mxu0 0
      %686 = vmatmul.mubr.bf16.gmra.mxu0 %v640
      %v687 = vpop.f32.mrf.mxu0
      %v688 = vadd.f32 0.0, %v687
      %v689 = vpop.f32.mrf.mxu0
      %v690 = vpop.f32.mrf.mxu0
      %v691 = vadd.f32 0.0, %v690
      %v692 = vpop.f32.mrf.mxu0
      %693 = vmatprep.mubr.bf16.mxu0 0
      %694 = vmatmul.mubr.bf16.gmra.mxu0 %v643
      %v695 = vpop.f32.mrf.mxu0
      %v696 = vadd.f32 0.0, %v695
      %v697 = vpop.f32.mrf.mxu0
      %v698 = vpop.f32.mrf.mxu0
      %v699 = vpop.f32.mrf.mxu0
      %700 = vdwg.mxu0
      %v701 = vadd.f32 %v568, %v680
      %v702 = vadd.f32 %v569, %v683
      %v703 = vadd.f32 %v570, %v688
      %v704 = vadd.f32 %v571, %v691
      %v705 = vadd.f32 %v572, %v696
      %v706 = vld [vmem:[%s165 + $0x14] sm:$0x7]
      %s707 = scalar_lea.vmem %s1, 192
      %v708 = vld [vmem:[%s707] sm:$0xf]
      %v709 = vld [vmem:[%s707 + $0x4] sm:$0xf]
      %v710 = vld [vmem:[%s707 + $0x8] sm:$0xf]
      %v711 = vld [vmem:[%s707 + $0xc] sm:$0xf]
      %v712 = vld [vmem:[%s707 + $0x10] sm:$0xf]
      %v713 = vld [vmem:[%s707 + $0x14] sm:$0xf]
      %v714 = vld [vmem:[%s707 + $0x18] sm:$0xf]
      %v715 = vld [vmem:[%s707 + $0x1c] sm:$0xf]
      %v716 = vld [vmem:[%s707 + $0x20] sm:$0xf]
      %v717 = vld [vmem:[%s707 + $0x24] sm:$0xf]
      %v718 = vld [vmem:[%s707 + $0x28] sm:$0xf]
      %v719 = vld [vmem:[%s707 + $0x2c] sm:$0xf]
      %v721 = vunpack.c.l.b16 %v706
      %v722 = vpack.c.b16 %v721, %v213
      %vm723 = vsmask.f32 5376
      %v725 = vshrl.u32 %v592, 16
      %v727 = vrot.slane %v725, 2
      %v728 = vshll.u32 %v592, 16
      %v730 = vrot.slane %v728, 3
      %v731 = vor.u32 %v727, %v730
      %v732 = vrot.slane %v231, 2
      %v733 = vrot.slane %v227, 3
      %v734 = vor.u32 %v732, %v733
      %v735 = vsel %vm723, %v731, %v734
      %v737 = vshrl.u32 %v722, 16
      %v739 = vrot.slane %v737, 2
      %v740 = vshll.u32 %v722, 16
      %v742 = vrot.slane %v740, 3
      %v743 = vor.u32 %v739, %v742
      %v744 = vsel %vm723, %v734, %v743
      %v757 = vunpack.c.l.b16 %v708
      %v758 = vunpack.c.l.b16 %v709
      %v759 = vunpack.c.l.b16 %v710
      %v760 = vunpack.c.l.b16 %v711
      %v761 = vunpack.c.l.b16 %v712
      %v762 = vunpack.c.l.b16 %v713
      %v763 = vunpack.c.l.b16 %v714
      %v764 = vunpack.c.l.b16 %v715
      %v765 = vunpack.c.l.b16 %v716
      %v766 = vunpack.c.l.b16 %v717
      %v767 = vunpack.c.l.b16 %v718
      %v768 = vunpack.c.l.b16 %v719
      %v769 = vpack.c.b16 %v758, %v757
      %v770 = vpack.c.b16 %v760, %v759
      %v771 = vpack.c.b16 %v762, %v761
      %v772 = vpack.c.b16 %v764, %v763
      %v773 = vpack.c.b16 %v766, %v765
      %v774 = vpack.c.b16 %v768, %v767
      %v782 = vsel %vm278, %v735, 0
      %v785 = vsel %vm278, %v744, 0
      %v788 = vsel %vm278, %v743, 0
      %790 = vmatprep.subr.bf16.mxu0 0
      %791 = vmatpush1.bf16.msra.mxu0 0
      %792 = vmatprep.subr.bf16.mxu0 0
      %793 = vmatpush1.bf16.msra.mxu0 0
      %794 = vmatprep.subr.bf16.mxu0 0
      %795 = vmatpush1.bf16.msra.mxu0 %v774
      %796 = vmatprep.subr.bf16.mxu0 0
      %797 = vmatpush1.bf16.msra.mxu0 %v773
      %798 = vmatprep.subr.bf16.mxu0 0
      %799 = vmatpush1.bf16.msra.mxu0 %v772
      %800 = vmatprep.subr.bf16.mxu0 0
      %801 = vmatpush1.bf16.msra.mxu0 %v771
      %802 = vmatprep.subr.bf16.mxu0 0
      %803 = vmatpush1.bf16.msra.mxu0 %v770
      %804 = vmatprep.subr.bf16.mxu0 0
      %805 = vmatpush1.bf16.msra.mxu0 %v769
      %806 = vmatprep.subr.bf16.mxu0 0
      %807 = vmatpush2.bf16.msra.mxu0 0
      %808 = vmatprep.subr.bf16.mxu0 0
      %809 = vmatpush2.bf16.msra.mxu0 0
      %810 = vmatprep.subr.bf16.mxu0 0
      %811 = vmatpush2.bf16.msra.mxu0 0
      %812 = vmatprep.subr.bf16.mxu0 0
      %813 = vmatpush2.bf16.msra.mxu0 0
      %814 = vmatprep.subr.bf16.mxu0 0
      %815 = vmatpush2.bf16.msra.mxu0 0
      %816 = vmatprep.subr.bf16.mxu0 0
      %817 = vmatpush2.bf16.msra.mxu0 0
      %818 = vmatprep.subr.bf16.mxu0 0
      %819 = vmatpush2.bf16.msra.mxu0 0
      %820 = vmatprep.subr.bf16.mxu0 0
      %821 = vmatpush2.bf16.msra.mxu0 0
      %822 = vmatprep.mubr.bf16.mxu0 0
      %823 = vmatmul.mubr.bf16.gmra.mxu0 %v782
      %v824 = vpop.f32.mrf.mxu0
      %v825 = vadd.f32 0.0, %v824
      %v826 = vpop.f32.mrf.mxu0
      %v827 = vpop.f32.mrf.mxu0
      %v828 = vadd.f32 0.0, %v827
      %v829 = vpop.f32.mrf.mxu0
      %830 = vmatprep.mubr.bf16.mxu0 0
      %831 = vmatmul.mubr.bf16.gmra.mxu0 %v785
      %v832 = vpop.f32.mrf.mxu0
      %v833 = vadd.f32 0.0, %v832
      %v834 = vpop.f32.mrf.mxu0
      %v835 = vpop.f32.mrf.mxu0
      %v836 = vadd.f32 0.0, %v835
      %v837 = vpop.f32.mrf.mxu0
      %838 = vmatprep.mubr.bf16.mxu0 0
      %839 = vmatmul.mubr.bf16.gmra.mxu0 %v788
      %v840 = vpop.f32.mrf.mxu0
      %v841 = vadd.f32 0.0, %v840
      %v842 = vpop.f32.mrf.mxu0
      %v843 = vpop.f32.mrf.mxu0
      %v844 = vpop.f32.mrf.mxu0
      %845 = vdwg.mxu0
      %v846 = vadd.f32 %v701, %v825
      %v847 = vadd.f32 %v702, %v828
      %v848 = vadd.f32 %v703, %v833
      %v849 = vadd.f32 %v704, %v836
      %v850 = vadd.f32 %v705, %v841
      %v851 = vld [vmem:[%s165] sm:$0x8]
      %s852 = scalar_lea.vmem %s1, 240
      %v853 = vld [vmem:[%s852] sm:$0xf]
      %v854 = vld [vmem:[%s852 + $0x4] sm:$0xf]
      %v855 = vld [vmem:[%s852 + $0x8] sm:$0xf]
      %v856 = vld [vmem:[%s852 + $0xc] sm:$0xf]
      %v857 = vld [vmem:[%s852 + $0x10] sm:$0xf]
      %v858 = vld [vmem:[%s852 + $0x14] sm:$0xf]
      %v859 = vld [vmem:[%s852 + $0x18] sm:$0xf]
      %v860 = vld [vmem:[%s852 + $0x1c] sm:$0xf]
      %v861 = vld [vmem:[%s852 + $0x20] sm:$0xf]
      %v862 = vld [vmem:[%s852 + $0x24] sm:$0xf]
      %v863 = vld [vmem:[%s852 + $0x28] sm:$0xf]
      %v864 = vld [vmem:[%s852 + $0x2c] sm:$0xf]
      %v866 = vunpack.c.l.b16 %v851
      %v867 = vpack.c.b16 %v210, %v866
      %vm868 = vcmask 1044480
      %v869 = vrot.slane %v867, 3
      %v870 = vrot.slane %v216, 3
      %v871 = vsel %vm868, %v869, %v870
      %v872 = vrot.slane %v722, 3
      %v873 = vsel %vm868, %v870, %v872
      %v886 = vunpack.c.l.b16 %v853
      %v887 = vunpack.c.l.b16 %v854
      %v888 = vunpack.c.l.b16 %v855
      %v889 = vunpack.c.l.b16 %v856
      %v890 = vunpack.c.l.b16 %v857
      %v891 = vunpack.c.l.b16 %v858
      %v892 = vunpack.c.l.b16 %v859
      %v893 = vunpack.c.l.b16 %v860
      %v894 = vunpack.c.l.b16 %v861
      %v895 = vunpack.c.l.b16 %v862
      %v896 = vunpack.c.l.b16 %v863
      %v897 = vunpack.c.l.b16 %v864
      %v898 = vpack.c.b16 %v887, %v886
      %v899 = vpack.c.b16 %v889, %v888
      %v900 = vpack.c.b16 %v891, %v890
      %v901 = vpack.c.b16 %v893, %v892
      %v902 = vpack.c.b16 %v895, %v894
      %v903 = vpack.c.b16 %v897, %v896
      %v911 = vsel %vm278, %v871, 0
      %v914 = vsel %vm278, %v873, 0
      %v917 = vsel %vm278, %v872, 0
      %919 = vmatprep.subr.bf16.mxu0 0
      %920 = vmatpush1.bf16.msra.mxu0 0
      %921 = vmatprep.subr.bf16.mxu0 0
      %922 = vmatpush1.bf16.msra.mxu0 0
      %923 = vmatprep.subr.bf16.mxu0 0
      %924 = vmatpush1.bf16.msra.mxu0 %v903
      %925 = vmatprep.subr.bf16.mxu0 0
      %926 = vmatpush1.bf16.msra.mxu0 %v902
      %927 = vmatprep.subr.bf16.mxu0 0
      %928 = vmatpush1.bf16.msra.mxu0 %v901
      %929 = vmatprep.subr.bf16.mxu0 0
      %930 = vmatpush1.bf16.msra.mxu0 %v900
      %931 = vmatprep.subr.bf16.mxu0 0
      %932 = vmatpush1.bf16.msra.mxu0 %v899
      %933 = vmatprep.subr.bf16.mxu0 0
      %934 = vmatpush1.bf16.msra.mxu0 %v898
      %935 = vmatprep.subr.bf16.mxu0 0
      %936 = vmatpush2.bf16.msra.mxu0 0
      %937 = vmatprep.subr.bf16.mxu0 0
      %938 = vmatpush2.bf16.msra.mxu0 0
      %939 = vmatprep.subr.bf16.mxu0 0
      %940 = vmatpush2.bf16.msra.mxu0 0
      %941 = vmatprep.subr.bf16.mxu0 0
      %942 = vmatpush2.bf16.msra.mxu0 0
      %943 = vmatprep.subr.bf16.mxu0 0
      %944 = vmatpush2.bf16.msra.mxu0 0
      %945 = vmatprep.subr.bf16.mxu0 0
      %946 = vmatpush2.bf16.msra.mxu0 0
      %947 = vmatprep.subr.bf16.mxu0 0
      %948 = vmatpush2.bf16.msra.mxu0 0
      %949 = vmatprep.subr.bf16.mxu0 0
      %950 = vmatpush2.bf16.msra.mxu0 0
      %951 = vmatprep.mubr.bf16.mxu0 0
      %952 = vmatmul.mubr.bf16.gmra.mxu0 %v911
      %v953 = vpop.f32.mrf.mxu0
      %v954 = vadd.f32 0.0, %v953
      %v955 = vpop.f32.mrf.mxu0
      %v956 = vpop.f32.mrf.mxu0
      %v957 = vadd.f32 0.0, %v956
      %v958 = vpop.f32.mrf.mxu0
      %959 = vmatprep.mubr.bf16.mxu0 0
      %960 = vmatmul.mubr.bf16.gmra.mxu0 %v914
      %v961 = vpop.f32.mrf.mxu0
      %v962 = vadd.f32 0.0, %v961
      %v963 = vpop.f32.mrf.mxu0
      %v964 = vpop.f32.mrf.mxu0
      %v965 = vadd.f32 0.0, %v964
      %v966 = vpop.f32.mrf.mxu0
      %967 = vmatprep.mubr.bf16.mxu0 0
      %968 = vmatmul.mubr.bf16.gmra.mxu0 %v917
      %v969 = vpop.f32.mrf.mxu0
      %v970 = vadd.f32 0.0, %v969
      %v971 = vpop.f32.mrf.mxu0
      %v972 = vpop.f32.mrf.mxu0
      %v973 = vpop.f32.mrf.mxu0
      %974 = vdwg.mxu0
      %v975 = vadd.f32 %v846, %v954
      %v976 = vadd.f32 %v847, %v957
      %v977 = vadd.f32 %v848, %v962
      %v978 = vadd.f32 %v849, %v965
      %v979 = vadd.f32 %v850, %v970
      %v980 = vld [vmem:[%s165 + $0x14] sm:$0xf]
      %s981 = scalar_lea.vmem %s1, 288
      %v982 = vld [vmem:[%s981] sm:$0xf]
      %v983 = vld [vmem:[%s981 + $0x4] sm:$0xf]
      %v984 = vld [vmem:[%s981 + $0x8] sm:$0xf]
      %v985 = vld [vmem:[%s981 + $0xc] sm:$0xf]
      %v986 = vld [vmem:[%s981 + $0x10] sm:$0xf]
      %v987 = vld [vmem:[%s981 + $0x14] sm:$0xf]
      %v988 = vld [vmem:[%s981 + $0x18] sm:$0xf]
      %v989 = vld [vmem:[%s981 + $0x1c] sm:$0xf]
      %v990 = vld [vmem:[%s981 + $0x20] sm:$0xf]
      %v991 = vld [vmem:[%s981 + $0x24] sm:$0xf]
      %v992 = vld [vmem:[%s981 + $0x28] sm:$0xf]
      %v993 = vld [vmem:[%s981 + $0x2c] sm:$0xf]
      %v995 = vunpack.c.l.b16 %v980
      %v996 = vpack.c.b16 %v211, %v210
      %v997 = vpack.c.b16 %v213, %v212
      %v998 = vpack.c.b16 %v995, %v995
      %v1011 = vunpack.c.l.b16 %v982
      %v1012 = vunpack.c.l.b16 %v983
      %v1013 = vunpack.c.l.b16 %v984
      %v1014 = vunpack.c.l.b16 %v985
      %v1015 = vunpack.c.l.b16 %v986
      %v1016 = vunpack.c.l.b16 %v987
      %v1017 = vunpack.c.l.b16 %v988
      %v1018 = vunpack.c.l.b16 %v989
      %v1019 = vunpack.c.l.b16 %v990
      %v1020 = vunpack.c.l.b16 %v991
      %v1021 = vunpack.c.l.b16 %v992
      %v1022 = vunpack.c.l.b16 %v993
      %v1023 = vpack.c.b16 %v1012, %v1011
      %v1024 = vpack.c.b16 %v1014, %v1013
      %v1025 = vpack.c.b16 %v1016, %v1015
      %v1026 = vpack.c.b16 %v1018, %v1017
      %v1027 = vpack.c.b16 %v1020, %v1019
      %v1028 = vpack.c.b16 %v1022, %v1021
      %v1036 = vsel %vm278, %v996, 0
      %v1039 = vsel %vm278, %v997, 0
      %v1042 = vsel %vm278, %v998, 0
      %1044 = vmatprep.subr.bf16.mxu0 0
      %1045 = vmatpush1.bf16.msra.mxu0 0
      %1046 = vmatprep.subr.bf16.mxu0 0
      %1047 = vmatpush1.bf16.msra.mxu0 0
      %1048 = vmatprep.subr.bf16.mxu0 0
      %1049 = vmatpush1.bf16.msra.mxu0 %v1028
      %1050 = vmatprep.subr.bf16.mxu0 0
      %1051 = vmatpush1.bf16.msra.mxu0 %v1027
      %1052 = vmatprep.subr.bf16.mxu0 0
      %1053 = vmatpush1.bf16.msra.mxu0 %v1026
      %1054 = vmatprep.subr.bf16.mxu0 0
      %1055 = vmatpush1.bf16.msra.mxu0 %v1025
      %1056 = vmatprep.subr.bf16.mxu0 0
      %1057 = vmatpush1.bf16.msra.mxu0 %v1024
      %1058 = vmatprep.subr.bf16.mxu0 0
      %1059 = vmatpush1.bf16.msra.mxu0 %v1023
      %1060 = vmatprep.subr.bf16.mxu0 0
      %1061 = vmatpush2.bf16.msra.mxu0 0
      %1062 = vmatprep.subr.bf16.mxu0 0
      %1063 = vmatpush2.bf16.msra.mxu0 0
      %1064 = vmatprep.subr.bf16.mxu0 0
      %1065 = vmatpush2.bf16.msra.mxu0 0
      %1066 = vmatprep.subr.bf16.mxu0 0
      %1067 = vmatpush2.bf16.msra.mxu0 0
      %1068 = vmatprep.subr.bf16.mxu0 0
      %1069 = vmatpush2.bf16.msra.mxu0 0
      %1070 = vmatprep.subr.bf16.mxu0 0
      %1071 = vmatpush2.bf16.msra.mxu0 0
      %1072 = vmatprep.subr.bf16.mxu0 0
      %1073 = vmatpush2.bf16.msra.mxu0 0
      %1074 = vmatprep.subr.bf16.mxu0 0
      %1075 = vmatpush2.bf16.msra.mxu0 0
      %1076 = vmatprep.mubr.bf16.mxu0 0
      %1077 = vmatmul.mubr.bf16.gmra.mxu0 %v1036
      %v1078 = vpop.f32.mrf.mxu0
      %v1079 = vadd.f32 0.0, %v1078
      %v1080 = vpop.f32.mrf.mxu0
      %v1081 = vpop.f32.mrf.mxu0
      %v1082 = vadd.f32 0.0, %v1081
      %v1083 = vpop.f32.mrf.mxu0
      %1084 = vmatprep.mubr.bf16.mxu0 0
      %1085 = vmatmul.mubr.bf16.gmra.mxu0 %v1039
      %v1086 = vpop.f32.mrf.mxu0
      %v1087 = vadd.f32 0.0, %v1086
      %v1088 = vpop.f32.mrf.mxu0
      %v1089 = vpop.f32.mrf.mxu0
      %v1090 = vadd.f32 0.0, %v1089
      %v1091 = vpop.f32.mrf.mxu0
      %1092 = vmatprep.mubr.bf16.mxu0 0
      %1093 = vmatmul.mubr.bf16.gmra.mxu0 %v1042
      %v1094 = vpop.f32.mrf.mxu0
      %v1095 = vadd.f32 0.0, %v1094
      %v1096 = vpop.f32.mrf.mxu0
      %v1097 = vpop.f32.mrf.mxu0
      %v1098 = vpop.f32.mrf.mxu0
      %1099 = vdwg.mxu0
      %v1100 = vadd.f32 %v975, %v1079
      %v1101 = vadd.f32 %v976, %v1082
      %v1102 = vadd.f32 %v977, %v1087
      %v1103 = vadd.f32 %v978, %v1090
      %v1104 = vadd.f32 %v979, %v1095
      %v1105 = vld [vmem:[%s165 + $0x4] sm:$0xf]
      %v1106 = vld [vmem:[%s165 + $0x8] sm:$0xf]
      %v1107 = vld [vmem:[%s165 + $0xc] sm:$0xf]
      %v1108 = vld [vmem:[%s165 + $0x10] sm:$0xf]
      %v1109 = vld [vmem:[%s165 + $0x14] sm:$0xf]
      %v1110 = vld [vmem:[%s165 + $0x18] sm:$0x1]
      %s1111 = scalar_lea.vmem %s1, 336
      %v1112 = vld [vmem:[%s1111] sm:$0xf]
      %v1113 = vld [vmem:[%s1111 + $0x4] sm:$0xf]
      %v1114 = vld [vmem:[%s1111 + $0x8] sm:$0xf]
      %v1115 = vld [vmem:[%s1111 + $0xc] sm:$0xf]
      %v1116 = vld [vmem:[%s1111 + $0x10] sm:$0xf]
      %v1117 = vld [vmem:[%s1111 + $0x14] sm:$0xf]
      %v1118 = vld [vmem:[%s1111 + $0x18] sm:$0xf]
      %v1119 = vld [vmem:[%s1111 + $0x1c] sm:$0xf]
      %v1120 = vld [vmem:[%s1111 + $0x20] sm:$0xf]
      %v1121 = vld [vmem:[%s1111 + $0x24] sm:$0xf]
      %v1122 = vld [vmem:[%s1111 + $0x28] sm:$0xf]
      %v1123 = vld [vmem:[%s1111 + $0x2c] sm:$0xf]
      %v1130 = vunpack.c.l.b16 %v1105
      %v1131 = vunpack.c.l.b16 %v1106
      %v1132 = vunpack.c.l.b16 %v1107
      %v1133 = vunpack.c.l.b16 %v1108
      %v1134 = vunpack.c.l.b16 %v1109
      %v1135 = vunpack.c.l.b16 %v1110
      %v1136 = vpack.c.b16 %v1131, %v1130
      %v1137 = vpack.c.b16 %v1133, %v1132
      %v1138 = vpack.c.b16 %v1135, %v1134
      %v1140 = vshrl.u32 %v1136, 16
      %v1142 = vshll.u32 %v1136, 16
      %v1144 = vrot.slane %v1142, 1
      %v1145 = vor.u32 %v1140, %v1144
      %v1147 = vshll.u32 %v1137, 16
      %v1149 = vrot.slane %v1147, 1
      %v1150 = vsel %vm218, %v1145, %v1149
      %v1151 = vshrl.u32 %v1137, 16
      %v1153 = vor.u32 %v1151, %v1149
      %v1155 = vshll.u32 %v1138, 16
      %v1157 = vrot.slane %v1155, 1
      %v1158 = vsel %vm218, %v1153, %v1157
      %v1159 = vshrl.u32 %v1138, 16
      %v1161 = vor.u32 %v1159, %v1157
      %v1174 = vunpack.c.l.b16 %v1112
      %v1175 = vunpack.c.l.b16 %v1113
      %v1176 = vunpack.c.l.b16 %v1114
      %v1177 = vunpack.c.l.b16 %v1115
      %v1178 = vunpack.c.l.b16 %v1116
      %v1179 = vunpack.c.l.b16 %v1117
      %v1180 = vunpack.c.l.b16 %v1118
      %v1181 = vunpack.c.l.b16 %v1119
      %v1182 = vunpack.c.l.b16 %v1120
      %v1183 = vunpack.c.l.b16 %v1121
      %v1184 = vunpack.c.l.b16 %v1122
      %v1185 = vunpack.c.l.b16 %v1123
      %v1186 = vpack.c.b16 %v1175, %v1174
      %v1187 = vpack.c.b16 %v1177, %v1176
      %v1188 = vpack.c.b16 %v1179, %v1178
      %v1189 = vpack.c.b16 %v1181, %v1180
      %v1190 = vpack.c.b16 %v1183, %v1182
      %v1191 = vpack.c.b16 %v1185, %v1184
      %v1199 = vsel %vm278, %v1150, 0
      %v1202 = vsel %vm278, %v1158, 0
      %v1205 = vsel %vm278, %v1161, 0
      %1207 = vmatprep.subr.bf16.mxu0 0
      %1208 = vmatpush1.bf16.msra.mxu0 0
      %1209 = vmatprep.subr.bf16.mxu0 0
      %1210 = vmatpush1.bf16.msra.mxu0 0
      %1211 = vmatprep.subr.bf16.mxu0 0
      %1212 = vmatpush1.bf16.msra.mxu0 %v1191
      %1213 = vmatprep.subr.bf16.mxu0 0
      %1214 = vmatpush1.bf16.msra.mxu0 %v1190
      %1215 = vmatprep.subr.bf16.mxu0 0
      %1216 = vmatpush1.bf16.msra.mxu0 %v1189
      %1217 = vmatprep.subr.bf16.mxu0 0
      %1218 = vmatpush1.bf16.msra.mxu0 %v1188
      %1219 = vmatprep.subr.bf16.mxu0 0
      %1220 = vmatpush1.bf16.msra.mxu0 %v1187
      %1221 = vmatprep.subr.bf16.mxu0 0
      %1222 = vmatpush1.bf16.msra.mxu0 %v1186
      %1223 = vmatprep.subr.bf16.mxu0 0
      %1224 = vmatpush2.bf16.msra.mxu0 0
      %1225 = vmatprep.subr.bf16.mxu0 0
      %1226 = vmatpush2.bf16.msra.mxu0 0
      %1227 = vmatprep.subr.bf16.mxu0 0
      %1228 = vmatpush2.bf16.msra.mxu0 0
      %1229 = vmatprep.subr.bf16.mxu0 0
      %1230 = vmatpush2.bf16.msra.mxu0 0
      %1231 = vmatprep.subr.bf16.mxu0 0
      %1232 = vmatpush2.bf16.msra.mxu0 0
      %1233 = vmatprep.subr.bf16.mxu0 0
      %1234 = vmatpush2.bf16.msra.mxu0 0
      %1235 = vmatprep.subr.bf16.mxu0 0
      %1236 = vmatpush2.bf16.msra.mxu0 0
      %1237 = vmatprep.subr.bf16.mxu0 0
      %1238 = vmatpush2.bf16.msra.mxu0 0
      %1239 = vmatprep.mubr.bf16.mxu0 0
      %1240 = vmatmul.mubr.bf16.gmra.mxu0 %v1199
      %v1241 = vpop.f32.mrf.mxu0
      %v1242 = vadd.f32 0.0, %v1241
      %v1243 = vpop.f32.mrf.mxu0
      %v1244 = vpop.f32.mrf.mxu0
      %v1245 = vadd.f32 0.0, %v1244
      %v1246 = vpop.f32.mrf.mxu0
      %1247 = vmatprep.mubr.bf16.mxu0 0
      %1248 = vmatmul.mubr.bf16.gmra.mxu0 %v1202
      %v1249 = vpop.f32.mrf.mxu0
      %v1250 = vadd.f32 0.0, %v1249
      %v1251 = vpop.f32.mrf.mxu0
      %v1252 = vpop.f32.mrf.mxu0
      %v1253 = vadd.f32 0.0, %v1252
      %v1254 = vpop.f32.mrf.mxu0
      %1255 = vmatprep.mubr.bf16.mxu0 0
      %1256 = vmatmul.mubr.bf16.gmra.mxu0 %v1205
      %v1257 = vpop.f32.mrf.mxu0
      %v1258 = vadd.f32 0.0, %v1257
      %v1259 = vpop.f32.mrf.mxu0
      %v1260 = vpop.f32.mrf.mxu0
      %v1261 = vpop.f32.mrf.mxu0
      %1262 = vdwg.mxu0
      %v1263 = vadd.f32 %v1100, %v1242
      %v1264 = vadd.f32 %v1101, %v1245
      %v1265 = vadd.f32 %v1102, %v1250
      %v1266 = vadd.f32 %v1103, %v1253
      %v1267 = vadd.f32 %v1104, %v1258
      %v1268 = vld [vmem:[%s165 + $0x4] sm:$0xe]
      %s1269 = scalar_lea.vmem %s1, 384
      %v1270 = vld [vmem:[%s1269] sm:$0xf]
      %v1271 = vld [vmem:[%s1269 + $0x4] sm:$0xf]
      %v1272 = vld [vmem:[%s1269 + $0x8] sm:$0xf]
      %v1273 = vld [vmem:[%s1269 + $0xc] sm:$0xf]
      %v1274 = vld [vmem:[%s1269 + $0x10] sm:$0xf]
      %v1275 = vld [vmem:[%s1269 + $0x14] sm:$0xf]
      %v1276 = vld [vmem:[%s1269 + $0x18] sm:$0xf]
      %v1277 = vld [vmem:[%s1269 + $0x1c] sm:$0xf]
      %v1278 = vld [vmem:[%s1269 + $0x20] sm:$0xf]
      %v1279 = vld [vmem:[%s1269 + $0x24] sm:$0xf]
      %v1280 = vld [vmem:[%s1269 + $0x28] sm:$0xf]
      %v1281 = vld [vmem:[%s1269 + $0x2c] sm:$0xf]
      %v1283 = vunpack.c.l.b16 %v1268
      %v1284 = vpack.c.b16 %v1131, %v1283
      %v1285 = vrot.slane %v1284, 1
      %v1286 = vrot.slane %v1137, 1
      %v1287 = vsel %vm461, %v1285, %v1286
      %v1288 = vrot.slane %v1138, 1
      %v1289 = vsel %vm461, %v1286, %v1288
      %v1302 = vunpack.c.l.b16 %v1270
      %v1303 = vunpack.c.l.b16 %v1271
      %v1304 = vunpack.c.l.b16 %v1272
      %v1305 = vunpack.c.l.b16 %v1273
      %v1306 = vunpack.c.l.b16 %v1274
      %v1307 = vunpack.c.l.b16 %v1275
      %v1308 = vunpack.c.l.b16 %v1276
      %v1309 = vunpack.c.l.b16 %v1277
      %v1310 = vunpack.c.l.b16 %v1278
      %v1311 = vunpack.c.l.b16 %v1279
      %v1312 = vunpack.c.l.b16 %v1280
      %v1313 = vunpack.c.l.b16 %v1281
      %v1314 = vpack.c.b16 %v1303, %v1302
      %v1315 = vpack.c.b16 %v1305, %v1304
      %v1316 = vpack.c.b16 %v1307, %v1306
      %v1317 = vpack.c.b16 %v1309, %v1308
      %v1318 = vpack.c.b16 %v1311, %v1310
      %v1319 = vpack.c.b16 %v1313, %v1312
      %v1327 = vsel %vm278, %v1287, 0
      %v1330 = vsel %vm278, %v1289, 0
      %v1333 = vsel %vm278, %v1288, 0
      %1335 = vmatprep.subr.bf16.mxu0 0
      %1336 = vmatpush1.bf16.msra.mxu0 0
      %1337 = vmatprep.subr.bf16.mxu0 0
      %1338 = vmatpush1.bf16.msra.mxu0 0
      %1339 = vmatprep.subr.bf16.mxu0 0
      %1340 = vmatpush1.bf16.msra.mxu0 %v1319
      %1341 = vmatprep.subr.bf16.mxu0 0
      %1342 = vmatpush1.bf16.msra.mxu0 %v1318
      %1343 = vmatprep.subr.bf16.mxu0 0
      %1344 = vmatpush1.bf16.msra.mxu0 %v1317
      %1345 = vmatprep.subr.bf16.mxu0 0
      %1346 = vmatpush1.bf16.msra.mxu0 %v1316
      %1347 = vmatprep.subr.bf16.mxu0 0
      %1348 = vmatpush1.bf16.msra.mxu0 %v1315
      %1349 = vmatprep.subr.bf16.mxu0 0
      %1350 = vmatpush1.bf16.msra.mxu0 %v1314
      %1351 = vmatprep.subr.bf16.mxu0 0
      %1352 = vmatpush2.bf16.msra.mxu0 0
      %1353 = vmatprep.subr.bf16.mxu0 0
      %1354 = vmatpush2.bf16.msra.mxu0 0
      %1355 = vmatprep.subr.bf16.mxu0 0
      %1356 = vmatpush2.bf16.msra.mxu0 0
      %1357 = vmatprep.subr.bf16.mxu0 0
      %1358 = vmatpush2.bf16.msra.mxu0 0
      %1359 = vmatprep.subr.bf16.mxu0 0
      %1360 = vmatpush2.bf16.msra.mxu0 0
      %1361 = vmatprep.subr.bf16.mxu0 0
      %1362 = vmatpush2.bf16.msra.mxu0 0
      %1363 = vmatprep.subr.bf16.mxu0 0
      %1364 = vmatpush2.bf16.msra.mxu0 0
      %1365 = vmatprep.subr.bf16.mxu0 0
      %1366 = vmatpush2.bf16.msra.mxu0 0
      %1367 = vmatprep.mubr.bf16.mxu0 0
      %1368 = vmatmul.mubr.bf16.gmra.mxu0 %v1327
      %v1369 = vpop.f32.mrf.mxu0
      %v1370 = vadd.f32 0.0, %v1369
      %v1371 = vpop.f32.mrf.mxu0
      %v1372 = vpop.f32.mrf.mxu0
      %v1373 = vadd.f32 0.0, %v1372
      %v1374 = vpop.f32.mrf.mxu0
      %1375 = vmatprep.mubr.bf16.mxu0 0
      %1376 = vmatmul.mubr.bf16.gmra.mxu0 %v1330
      %v1377 = vpop.f32.mrf.mxu0
      %v1378 = vadd.f32 0.0, %v1377
      %v1379 = vpop.f32.mrf.mxu0
      %v1380 = vpop.f32.mrf.mxu0
      %v1381 = vadd.f32 0.0, %v1380
      %v1382 = vpop.f32.mrf.mxu0
      %1383 = vmatprep.mubr.bf16.mxu0 0
      %1384 = vmatmul.mubr.bf16.gmra.mxu0 %v1333
      %v1385 = vpop.f32.mrf.mxu0
      %v1386 = vadd.f32 0.0, %v1385
      %v1387 = vpop.f32.mrf.mxu0
      %v1388 = vpop.f32.mrf.mxu0
      %v1389 = vpop.f32.mrf.mxu0
      %1390 = vdwg.mxu0
      %v1391 = vadd.f32 %v1263, %v1370
      %v1392 = vadd.f32 %v1264, %v1373
      %v1393 = vadd.f32 %v1265, %v1378
      %v1394 = vadd.f32 %v1266, %v1381
      %v1395 = vadd.f32 %v1267, %v1386
      %v1396 = vld [vmem:[%s2] sm:$0x1]
      %v1398 = vlaneseq
      %v1399 = vshrl.u32 %v1398, 7
      %v1400 = vsub.s32 0, %v1399
      %v1401 = vrot.slane %v1396, %v1400
      %v1403 = vadd.f32 %v1391, %v1401
      %v1404 = vadd.f32 %v1392, %v1401
      %v1405 = vadd.f32 %v1393, %v1401
      %v1406 = vadd.f32 %v1394, %v1401
      %v1407 = vadd.f32 %v1395, %v1401
      %v1408 = vmax.f32 %v1403, 0.0
      %v1409 = vmax.f32 %v1404, 0.0
      %v1410 = vmax.f32 %v1405, 0.0
      %v1411 = vmax.f32 %v1406, 0.0
      %v1412 = vmax.f32 %v1407, 0.0
      %v1413 = vpack.c.bf16 %v1409, %v1408
      %v1414 = vpack.c.bf16 %v1411, %v1410
      %v1415 = vpack.c.bf16 %v1412, %v1412
      %v1419 = vunpack.c.l.b16 %v1413
      %v1420 = vunpack.c.h.b16 %v1413
      %v1421 = vunpack.c.l.b16 %v1414
      %v1422 = vunpack.c.h.b16 %v1414
      %v1423 = vunpack.c.l.b16 %v1415
      %v1424 = vpack.c.b16 %v1419, %v1419
      %v1425 = vpack.c.b16 %v1420, %v1420
      %v1426 = vpack.c.b16 %v1421, %v1421
      %v1427 = vpack.c.b16 %v1422, %v1422
      %v1428 = vpack.c.b16 %v1423, %v1423
      %vm1434 = vcmask 257024
      %1435 = vst.msk [vmem:[%s170] sm:$0xf] %vm1434, %v1424
      %1436 = vst.msk [vmem:[%s170 + $0x4] sm:$0xf] %vm1434, %v1425
      %1437 = vst.msk [vmem:[%s170 + $0x8] sm:$0xf] %vm1434, %v1426
      %1438 = vst.msk [vmem:[%s170 + $0xc] sm:$0xf] %vm1434, %v1427
      %1439 = vst.msk [vmem:[%s170 + $0x10] sm:$0xf] %vm1434, %v1428
      %p1440 = scmp.lt.s32.totalorder %s14, 1
      %s1441 = scalar_select %p1440, %s14, 1
      %s1442 = smul.addr %s1441, 5
      %s1443 = smul.addr %s1442, 4
      %s1444 = scalar_lea.vmem %s3, %s1443
      // Predicated region
      $region33: #{freq_fft_coupling_forward.14} parent=31 // pred_check
        %p1445 = pneg %p100
      $region34: #{freq_fft_coupling_forward.14} parent=31 // pred_check_branch
        %1447 = sbr.rel (%p1445) target = $region36
      $region35: #{freq_fft_coupling_forward.14} parent=31 // pred_region
        _
      $region36: #{freq_fft_coupling_forward.14} parent=31 // pred_fallthru
        _
    $region32: #{freq_fft_coupling_forward.14} parent=5 // pred_fallthru
      _
    %p1448 = scmp.le.s32.totalorder 2, %s9
    // Predicated region
    $region37: #{freq_fft_coupling_forward.14} parent=5 // pred_check
      %p1449 = pneg %p1448
    $region38: #{freq_fft_coupling_forward.14} parent=5 // pred_check_branch
      %1451 = sbr.rel (%p1449) target = $region40
    $region39: #{freq_fft_coupling_forward.14} parent=5 // pred_region
      %s1452 = ssub.s32 %s9, 2
      // Predicated region
      $region41: #{freq_fft_coupling_forward.14} parent=39 // pred_check
        %p1453 = pneg %p106
      $region42: #{freq_fft_coupling_forward.14} parent=39 // pred_check_branch
        %1455 = sbr.rel (%p1453) target = $region44
      $region43: #{freq_fft_coupling_forward.14} parent=39 // pred_region
        %p1456 = scmp.lt.s32.totalorder %s15, 1
        %s1457 = scalar_select %p1456, %s15, 1
        %s1458 = smul.addr %s1457, 5
        %s1459 = smul.addr %s1458, 4
        %s1460 = scalar_lea.vmem %s3, %s1459
      $region44: #{freq_fft_coupling_forward.14} parent=39 // pred_fallthru
        _
    $region40: #{freq_fft_coupling_forward.14} parent=5 // pred_fallthru
      _
  $region6: #{freq_fft_coupling_forward.14} parent=0 // loop_footer
    %s13 = sadd.s32 1, %s9
  $region7: #{freq_fft_coupling_forward.14} parent=0 // loop_footer_branch
    %8 = sbr.rel target = $region3
  $region8: #{freq_fft_coupling_forward.14} parent=0 // loop_exit
    _

// kernel: freq_fft_coupling_forward.16
$region0: #{freq_fft_coupling_forward.16}
  #allocation0 [shape = 'u32[]', space=smem, size = 0x4, offset = 0x4, fixed_abs, tag = 'smem constant byte address 0x4 - core index']
  #allocation1 [shape = 'u32[144,128]{1,0:T(1,128)}', space=vmem, size = 0x12000, scoped, tag = 'internal scratch']
  %s0 = inlined_call_operand.vmem [shape: bf16[40,32], index: 0, kind: input, shape index: {}]
  %s1 = inlined_call_operand.vmem [shape: bf16[32,128], index: 1, kind: input, shape index: {}]
  %s2 = inlined_call_operand.vmem [shape: f32[1,128], index: 2, kind: input, shape index: {}]
  %s3 = inlined_call_operand.vmem [shape: f32[40,128], index: 3, kind: output, shape index: {}]
  %s4 = sld [smem:[#allocation0]]
  $region93: #{freq_fft_coupling_forward.16} parent=0
    _
  %s6 = ssub.s32 1, %s4
  %s7 = scalar_select 0, %s6, %s4
  $region1: #{freq_fft_coupling_forward.16} parent=0
    #allocation2 [shape = 'u8[24576]{0}', space=vmem, size = 0x6000, scoped, tag = 'output window, operand 0']
    loop: start=0, step=1, limit=4
    $region2: #{freq_fft_coupling_forward.16} parent=1 // loop_pre_header
      _
    $region3: #{freq_fft_coupling_forward.16} parent=1 // loop_header
      %s9 = sphi 0, %s13
      %p10 = scmp.ge.s32.totalorder %s9, 4
      %s19 = sphi 0, %s21
      %s22 = sphi 0, %s19
      %s23 = sphi 0, %s22
      %s39 = sphi 0, %s23
      %s43 = sphi 0, %s43
      %s45 = sphi 0, %s43
      %s46 = sphi 0, %s45
      %s60 = sphi 0, %s46
      %s64 = sphi 0, %s64
      %s66 = sphi 0, %s64
      %s67 = sphi 0, %s66
      %s81 = sphi 0, %s67
      %s87 = sphi 0, %s89
      %s90 = sphi 0, %s87
      %s91 = sphi 0, %s90
      %s107 = sphi 0, %s91
    $region4: #{freq_fft_coupling_forward.16} parent=1 // loop_header_branch
      %12 = sbr.rel (%p10) target = $region8
    $region5: #{freq_fft_coupling_forward.16} parent=1 // loop_body
      %s14 = ssub.s32 %s9, 1
      %s15 = ssub.s32 %s9, 2
      %s16 = sadd.s32 %s9, 1
      %s17 = ssub.s32 %s9, %s16
      %p18 = scmp.eq.s32.totalorder %s17, 0
      %s20 = sadd.s32 %s19, 1
      %s21 = scalar_select %p18, %s19, %s20
      %p24 = pneg %p18
      %p25 = scmp.eq.s32.totalorder %s9, 1
      %p26 = por %p24, %p25
      %p27 = scmp.ne.s32.totalorder %s19, %s22
      %p28 = scmp.eq.s32.totalorder %s9, 0
      %p29 = por %p27, %p28
      %p30 = scmp.ne.s32.totalorder %s19, %s22
      %p31 = scmp.eq.s32.totalorder %s14, 1
      %p32 = por %p30, %p31
      %p33 = scmp.ne.s32.totalorder %s22, %s23
      %p34 = scmp.eq.s32.totalorder %s14, 0
      %p35 = por %p33, %p34
      %p36 = scmp.ne.s32.totalorder %s22, %s23
      %p37 = scmp.eq.s32.totalorder %s15, 1
      %p38 = por %p36, %p37
      %p40 = scmp.ne.s32.totalorder %s23, %s39
      %p41 = scmp.eq.s32.totalorder %s15, 0
      %p42 = por %p40, %p41
      %s44 = sadd.s32 %s43, 1
      %p47 = scmp.eq.s32.totalorder %s9, 1
      %p48 = scmp.ne.s32.totalorder %s43, %s45
      %p49 = scmp.eq.s32.totalorder %s9, 0
      %p50 = por %p48, %p49
      %p51 = scmp.ne.s32.totalorder %s43, %s45
      %p52 = scmp.eq.s32.totalorder %s14, 1
      %p53 = por %p51, %p52
      %p54 = scmp.ne.s32.totalorder %s45, %s46
      %p55 = scmp.eq.s32.totalorder %s14, 0
      %p56 = por %p54, %p55
      %p57 = scmp.ne.s32.totalorder %s45, %s46
      %p58 = scmp.eq.s32.totalorder %s15, 1
      %p59 = por %p57, %p58
      %p61 = scmp.ne.s32.totalorder %s46, %s60
      %p62 = scmp.eq.s32.totalorder %s15, 0
      %p63 = por %p61, %p62
      %s65 = sadd.s32 %s64, 1
      %p68 = scmp.eq.s32.totalorder %s9, 1
      %p69 = scmp.ne.s32.totalorder %s64, %s66
      %p70 = scmp.eq.s32.totalorder %s9, 0
      %p71 = por %p69, %p70
      %p72 = scmp.ne.s32.totalorder %s64, %s66
      %p73 = scmp.eq.s32.totalorder %s14, 1
      %p74 = por %p72, %p73
      %p75 = scmp.ne.s32.totalorder %s66, %s67
      %p76 = scmp.eq.s32.totalorder %s14, 0
      %p77 = por %p75, %p76
      %p78 = scmp.ne.s32.totalorder %s66, %s67
      %p79 = scmp.eq.s32.totalorder %s15, 1
      %p80 = por %p78, %p79
      %p82 = scmp.ne.s32.totalorder %s67, %s81
      %p83 = scmp.eq.s32.totalorder %s15, 0
      %p84 = por %p82, %p83
      %s85 = ssub.s32 %s9, %s16
      %p86 = scmp.eq.s32.totalorder %s85, 0
      %s88 = sadd.s32 %s87, 1
      %s89 = scalar_select %p86, %s87, %s88
      %p92 = pneg %p86
      %p93 = scmp.eq.s32.totalorder %s9, 1
      %p94 = por %p92, %p93
      %p95 = scmp.ne.s32.totalorder %s87, %s90
      %p96 = scmp.eq.s32.totalorder %s9, 0
      %p97 = por %p95, %p96
      %p98 = scmp.ne.s32.totalorder %s87, %s90
      %p99 = scmp.eq.s32.totalorder %s14, 1
      %p100 = por %p98, %p99
      %p101 = scmp.ne.s32.totalorder %s90, %s91
      %p102 = scmp.eq.s32.totalorder %s14, 0
      %p103 = por %p101, %p102
      %p104 = scmp.ne.s32.totalorder %s90, %s91
      %p105 = scmp.eq.s32.totalorder %s15, 1
      %p106 = por %p104, %p105
      %p108 = scmp.ne.s32.totalorder %s91, %s107
      %p109 = scmp.eq.s32.totalorder %s15, 0
      %p110 = por %p108, %p109
      %p111 = scmp.le.s32.totalorder 1, %s9
      %p112 = scmp.lt.s32.totalorder %s9, 3
      %p113 = pnand %p111, %p112
      %p114 = pneg %p113
      // Predicated region
      $region9: #{freq_fft_coupling_forward.16} parent=5 // pred_check
        _
      $region10: #{freq_fft_coupling_forward.16} parent=5 // pred_check_branch
        %116 = sbr.rel (%p113) target = $region12
      $region11: #{freq_fft_coupling_forward.16} parent=5 // pred_region
        %s117 = ssub.s32 %s9, 1
        // Predicated region
        $region13: #{freq_fft_coupling_forward.16} parent=11 // pred_check
          %p118 = pneg %p56
        $region14: #{freq_fft_coupling_forward.16} parent=11 // pred_check_branch
          %120 = sbr.rel (%p118) target = $region16
        $region15: #{freq_fft_coupling_forward.16} parent=11 // pred_region
          _
        $region16: #{freq_fft_coupling_forward.16} parent=11 // pred_fallthru
          _
        // Predicated region
        $region17: #{freq_fft_coupling_forward.16} parent=11 // pred_check
          %p121 = pneg %p77
        $region18: #{freq_fft_coupling_forward.16} parent=11 // pred_check_branch
          %123 = sbr.rel (%p121) target = $region20
        $region19: #{freq_fft_coupling_forward.16} parent=11 // pred_region
          _
        $region20: #{freq_fft_coupling_forward.16} parent=11 // pred_fallthru
          _
      $region12: #{freq_fft_coupling_forward.16} parent=5 // pred_fallthru
        _
      %p124 = scmp.lt.s32.totalorder %s9, 2
      // Predicated region
      $region21: #{freq_fft_coupling_forward.16} parent=5 // pred_check
        %p125 = pneg %p124
      $region22: #{freq_fft_coupling_forward.16} parent=5 // pred_check_branch
        %127 = sbr.rel (%p125) target = $region24
      $region23: #{freq_fft_coupling_forward.16} parent=5 // pred_region
        // Predicated region
        $region25: #{freq_fft_coupling_forward.16} parent=23 // pred_check
          %p128 = pneg %p29
        $region26: #{freq_fft_coupling_forward.16} parent=23 // pred_check_branch
          %130 = sbr.rel (%p128) target = $region28
        $region27: #{freq_fft_coupling_forward.16} parent=23 // pred_region
          %s131 = smul.u32 3, %s9
          %s132 = ssub.s32 5, %s131
          %p133 = scmp.lt.s32.totalorder %s132, 3
          %s134 = scalar_select %p133, %s132, 3
          %s135 = smul.u32 64, %s134
          %p136 = scmp.lt.s32.totalorder %s131, 4
          %s137 = scalar_select %p136, %s131, 4
          %s138 = smul.addr %s137, 4
          %s139 = scalar_lea.vmem %s0, %s138
          %s140 = smul.u32 3, %s9
          %s141 = ssub.s32 5, %s140
          %p142 = scmp.lt.s32.totalorder %s141, 3
          %s143 = scalar_select %p142, %s141, 3
          %s144 = smul.u32 64, %s143
        $region28: #{freq_fft_coupling_forward.16} parent=23 // pred_fallthru
          _
      $region24: #{freq_fft_coupling_forward.16} parent=5 // pred_fallthru
        _
      %p145 = scmp.le.s32.totalorder 1, %s9
      %p146 = scmp.lt.s32.totalorder %s9, 3
      %p147 = pnand %p145, %p146
      %p148 = pneg %p147
      // Predicated region
      $region29: #{freq_fft_coupling_forward.16} parent=5 // pred_check
        _
      $region30: #{freq_fft_coupling_forward.16} parent=5 // pred_check_branch
        %150 = sbr.rel (%p147) target = $region32
      $region31: #{freq_fft_coupling_forward.16} parent=5 // pred_region
        %s151 = ssub.s32 %s9, 1
        %s152 = smul.u32 3, %s14
        %s153 = ssub.s32 5, %s152
        %p154 = scmp.lt.s32.totalorder %s153, 3
        %s155 = scalar_select %p154, %s153, 3
        %s156 = smul.u32 64, %s155
        %p157 = scmp.lt.s32.totalorder %s152, 4
        %s158 = scalar_select %p157, %s152, 4
        %s159 = smul.addr %s158, 4
        %s160 = scalar_lea.vmem %s0, %s159
        %p161 = pneg %p35
        %p162 = pneg %p32
        %p163 = pneg %p56
        %p164 = pneg %p53
        %p165 = pneg %p77
        %p166 = pneg %p74
        %p167 = pneg %p103
        %p168 = pneg %p100
        %s169 = sand.u32 %s90, 1
        %s170 = sand.u32 %s90, 1
        %s171 = smul.addr %s170, 24
        %s172 = scalar_lea.vmem [#allocation2], %s171
        %s173 = smul.u32 3, %s14
        %s174 = ssub.s32 5, %s173
        %p175 = scmp.lt.s32.totalorder %s174, 3
        %s176 = scalar_select %p175, %s174, 3
        %s177 = smul.u32 64, %s176
        %p178 = scmp.lt.s32.totalorder %s173, 4
        %s179 = scalar_select %p178, %s173, 4
        %s180 = smul.addr %s179, 4
        %s181 = scalar_lea.vmem %s0, %s180
        %s182 = smul.u32 3, %s14
        %s183 = ssub.s32 5, %s182
        %p184 = scmp.lt.s32.totalorder %s183, 3
        %s185 = scalar_select %p184, %s183, 3
        %s186 = smul.u32 64, %s185
        %s187 = smul.u32 3, %s14
        %s188 = ssub.s32 5, %s187
        %p189 = scmp.lt.s32.totalorder %s188, 3
        %s190 = scalar_select %p189, %s188, 3
        %s191 = smul.u32 128, %s190
        %v193 = vld [vmem:[%s181] sm:$0xf]
        %v194 = vld [vmem:[%s181 + $0x4] sm:$0xf]
        %v195 = vld [vmem:[%s181 + $0x8] sm:$0xf]
        %v196 = vld [vmem:[%s1] sm:$0xf]
        %v197 = vld [vmem:[%s1 + $0x4] sm:$0xf]
        %v198 = vld [vmem:[%s1 + $0x8] sm:$0xf]
        %v199 = vld [vmem:[%s1 + $0xc] sm:$0xf]
        %v200 = vld [vmem:[%s2] sm:$0x1]
        %v202 = vlaneseq
        %v203 = vshrl.u32 %v202, 7
        %v204 = vsub.s32 0, %v203
        %v205 = vrot.slane %v200, %v204
        %v210 = vunpack.c.l.b16 %v193
        %v211 = vunpack.c.l.b16 %v194
        %v212 = vunpack.c.l.b16 %v195
        %v213 = vpack.c.b16 %v211, %v210
        %v214 = vpack.c.b16 %v212, %v212
        %v219 = vunpack.c.l.b16 %v196
        %v220 = vunpack.c.l.b16 %v197
        %v221 = vunpack.c.l.b16 %v198
        %v222 = vunpack.c.l.b16 %v199
        %v223 = vpack.c.b16 %v220, %v219
        %v224 = vpack.c.b16 %v222, %v221
        %vm227 = vcmask 261120
        %v229 = vsel %vm227, %v213, 0
        %v232 = vsel %vm227, %v214, 0
        %234 = vmatprep.subr.bf16.mxu0 0
        %235 = vmatpush1.bf16.msra.mxu0 0
        %236 = vmatprep.subr.bf16.mxu0 0
        %237 = vmatpush1.bf16.msra.mxu0 0
        %238 = vmatprep.subr.bf16.mxu0 0
        %239 = vmatpush1.bf16.msra.mxu0 0
        %240 = vmatprep.subr.bf16.mxu0 0
        %241 = vmatpush1.bf16.msra.mxu0 0
        %242 = vmatprep.subr.bf16.mxu0 0
        %243 = vmatpush1.bf16.msra.mxu0 0
        %244 = vmatprep.subr.bf16.mxu0 0
        %245 = vmatpush1.bf16.msra.mxu0 0
        %246 = vmatprep.subr.bf16.mxu0 0
        %247 = vmatpush1.bf16.msra.mxu0 %v224
        %248 = vmatprep.subr.bf16.mxu0 0
        %249 = vmatpush1.bf16.msra.mxu0 %v223
        %250 = vmatprep.subr.bf16.mxu0 0
        %251 = vmatpush2.bf16.msra.mxu0 0
        %252 = vmatprep.subr.bf16.mxu0 0
        %253 = vmatpush2.bf16.msra.mxu0 0
        %254 = vmatprep.subr.bf16.mxu0 0
        %255 = vmatpush2.bf16.msra.mxu0 0
        %256 = vmatprep.subr.bf16.mxu0 0
        %257 = vmatpush2.bf16.msra.mxu0 0
        %258 = vmatprep.subr.bf16.mxu0 0
        %259 = vmatpush2.bf16.msra.mxu0 0
        %260 = vmatprep.subr.bf16.mxu0 0
        %261 = vmatpush2.bf16.msra.mxu0 0
        %262 = vmatprep.subr.bf16.mxu0 0
        %263 = vmatpush2.bf16.msra.mxu0 0
        %264 = vmatprep.subr.bf16.mxu0 0
        %265 = vmatpush2.bf16.msra.mxu0 0
        %266 = vmatprep.mubr.bf16.mxu0 0
        %267 = vmatmul.mubr.bf16.gmra.mxu0 %v229
        %v268 = vpop.f32.mrf.mxu0
        %v269 = vadd.f32 %v205, %v268
        %v270 = vpop.f32.mrf.mxu0
        %v271 = vpop.f32.mrf.mxu0
        %v272 = vadd.f32 %v205, %v271
        %v273 = vpop.f32.mrf.mxu0
        %274 = vmatprep.mubr.bf16.mxu0 0
        %275 = vmatmul.mubr.bf16.gmra.mxu0 %v232
        %v276 = vpop.f32.mrf.mxu0
        %v277 = vadd.f32 %v205, %v276
        %v278 = vpop.f32.mrf.mxu0
        %v279 = vpop.f32.mrf.mxu0
        %v280 = vpop.f32.mrf.mxu0
        %281 = vdwg.mxu0
        %282 = vst [vmem:[%s172] sm:$0xff] %v269
        %283 = vst [vmem:[%s172 + $0x8] sm:$0xff] %v272
        %284 = vst [vmem:[%s172 + $0x10] sm:$0xff] %v277
        %s285 = sand.u32 %s90, 1
        %s286 = sand.u32 %s90, 1
        %s287 = smul.addr %s286, 24
        %s288 = scalar_lea.vmem [#allocation2], %s287
        // Predicated region
        $region33: #{freq_fft_coupling_forward.16} parent=31 // pred_check
          %p289 = pneg %p100
        $region34: #{freq_fft_coupling_forward.16} parent=31 // pred_check_branch
          %291 = sbr.rel (%p289) target = $region36
        $region35: #{freq_fft_coupling_forward.16} parent=31 // pred_region
          %s292 = smul.u32 3, %s14
          %s293 = ssub.s32 5, %s292
          %p294 = scmp.lt.s32.totalorder %s293, 3
          %s295 = scalar_select %p294, %s293, 3
          %s296 = smul.u32 128, %s295
          %p297 = scmp.ne.s32.totalorder 0, %s296
          %s298 = smul.addr %s292, 8
          %s299 = scalar_lea.vmem %s3, %s298
          // Predicated region
          $region37: #{freq_fft_coupling_forward.16} parent=35 // pred_check
            %p300 = pneg %p297
          $region38: #{freq_fft_coupling_forward.16} parent=35 // pred_check_branch
            %302 = sbr.rel (%p300) target = $region40
          $region39: #{freq_fft_coupling_forward.16} parent=35 // pred_region
            // Predicated region
            $region41: #{freq_fft_coupling_forward.16} parent=39 // pred_check
              _
            $region42: #{freq_fft_coupling_forward.16} parent=39 // pred_check_branch
              %304 = sbr.rel (0) target = $region44
            $region43: #{freq_fft_coupling_forward.16} parent=39 // pred_region
              // Predicated region
              $region63: #{freq_fft_coupling_forward.16} parent=43 // pred_check
                _
              $region64: #{freq_fft_coupling_forward.16} parent=43 // pred_check_branch
                %359 = sbr.rel (0) target = $region66
              $region65: #{freq_fft_coupling_forward.16} parent=43 // pred_region
                %s360 = sdiv.u32.pop %s295, 3
                %s361 = srem.u32.pop %s295, 3
                // While loop
                $region67: #{freq_fft_coupling_forward.16} parent=65 // loop_pre_header
                  _
                $region68: #{freq_fft_coupling_forward.16} parent=65 // loop_header
                  %s363 = sphi 0, %s365
                  %p364 = scmp.ge.s32.totalorder %s363, %s360
                  %s368 = sphi 0, %s379
                  %s369 = sphi %s288, %s382
                  %s370 = sphi %s299, %s383
                $region69: #{freq_fft_coupling_forward.16} parent=65 // loop_header_branch
                  %367 = sbr.rel (%p364) target = $region73
                $region70: #{freq_fft_coupling_forward.16} parent=65 // loop_body
                  %v371 = vld [vmem:[%s369] sm:$0xff]
                  %372 = vst [vmem:[%s370] sm:$0xff] %v371
                  %v373 = vld [vmem:[%s369 + $0x8] sm:$0xff]
                  %374 = vst [vmem:[%s370 + $0x8] sm:$0xff] %v373
                  %v375 = vld [vmem:[%s369 + $0x10] sm:$0xff]
                  %376 = vst [vmem:[%s370 + $0x10] sm:$0xff] %v375
                  %s377 = sadd.s32 1, %s368
                  %p378 = scmp.ge.s32.totalorder %s377, %s360
                  %s379 = scalar_select %p378, 0, %s377
                  %s380 = smul.u32 %s379, 24
                  %s381 = smul.u32 %s379, 24
                  %s382 = scalar_lea.vmem %s288, %s380 [#allocation2]
                  %s383 = scalar_lea.vmem %s299, %s381
                $region71: #{freq_fft_coupling_forward.16} parent=65 // loop_footer
                  %s365 = sadd.s32 %s363, 1
                $region72: #{freq_fft_coupling_forward.16} parent=65 // loop_footer_branch
                  %362 = sbr.rel target = $region68
                $region73: #{freq_fft_coupling_forward.16} parent=65 // loop_exit
                  _
                %s384 = sdiv.u32.pop %s295, 3
                %s385 = srem.u32.pop %s295, 3
                %s386 = smul.u32 %s384, 3
                %s387 = smul.u32 8, %s386
                %s388 = scalar_lea.vmem %s288, %s387 [#allocation2]
                %s389 = smul.u32 8, %s386
                %s390 = scalar_lea.vmem %s299, %s389
                // While loop
                $region74: #{freq_fft_coupling_forward.16} parent=65 // loop_pre_header
                  _
                $region75: #{freq_fft_coupling_forward.16} parent=65 // loop_header
                  %s392 = sphi 0, %s394
                  %p393 = scmp.ge.s32.totalorder %s392, %s385
                  %s397 = sphi 0, %s404
                  %s398 = sphi %s388, %s407
                  %s399 = sphi %s390, %s408
                $region76: #{freq_fft_coupling_forward.16} parent=65 // loop_header_branch
                  %396 = sbr.rel (%p393) target = $region80
                $region77: #{freq_fft_coupling_forward.16} parent=65 // loop_body
                  %v400 = vld [vmem:[%s398] sm:$0xff]
                  %401 = vst [vmem:[%s399] sm:$0xff] %v400
                  %s402 = sadd.s32 1, %s397
                  %p403 = scmp.ge.s32.totalorder %s402, %s385
                  %s404 = scalar_select %p403, 0, %s402
                  %s405 = smul.u32 %s404, 8
                  %s406 = smul.u32 %s404, 8
                  %s407 = scalar_lea.vmem %s388, %s405 [#allocation2]
                  %s408 = scalar_lea.vmem %s390, %s406
                $region78: #{freq_fft_coupling_forward.16} parent=65 // loop_footer
                  %s394 = sadd.s32 %s392, 1
                $region79: #{freq_fft_coupling_forward.16} parent=65 // loop_footer_branch
                  %391 = sbr.rel target = $region75
                $region80: #{freq_fft_coupling_forward.16} parent=65 // loop_exit
                  _
              $region66: #{freq_fft_coupling_forward.16} parent=43 // pred_fallthru
                _
              // Predicated region
              $region81: #{freq_fft_coupling_forward.16} parent=43 // pred_check
                _
              $region82: #{freq_fft_coupling_forward.16} parent=43 // pred_check_branch
                %410 = sbr.rel target = $region84
              $region83: #{freq_fft_coupling_forward.16} parent=43 // pred_region
                _
              $region84: #{freq_fft_coupling_forward.16} parent=43 // pred_fallthru
                _
            $region44: #{freq_fft_coupling_forward.16} parent=39 // pred_fallthru
              _
            // Predicated region
            $region45: #{freq_fft_coupling_forward.16} parent=39 // pred_check
              _
            $region46: #{freq_fft_coupling_forward.16} parent=39 // pred_check_branch
              %306 = sbr.rel target = $region48
            $region47: #{freq_fft_coupling_forward.16} parent=39 // pred_region
              %s308 = ssub.s32 256, 1
              %s309 = sdiv.u32.pop %s295, 3
              %s310 = srem.u32.pop %s295, 3
              // While loop
              $region49: #{freq_fft_coupling_forward.16} parent=47 // loop_pre_header
                _
              $region50: #{freq_fft_coupling_forward.16} parent=47 // loop_header
                %s312 = sphi 0, %s314
                %p313 = scmp.ge.s32.totalorder %s312, %s309
                %s317 = sphi 0, %s328
                %s318 = sphi %s288, %s331
                %s319 = sphi %s299, %s332
              $region51: #{freq_fft_coupling_forward.16} parent=47 // loop_header_branch
                %316 = sbr.rel (%p313) target = $region55
              $region52: #{freq_fft_coupling_forward.16} parent=47 // loop_body
                %v320 = vld [vmem:[%s318] sm:%s308]
                %321 = vst [vmem:[%s319] sm:%s308] %v320
                %v322 = vld [vmem:[%s318 + $0x8] sm:%s308]
                %323 = vst [vmem:[%s319 + $0x8] sm:%s308] %v322
                %v324 = vld [vmem:[%s318 + $0x10] sm:%s308]
                %325 = vst [vmem:[%s319 + $0x10] sm:%s308] %v324
                %s326 = sadd.s32 1, %s317
                %p327 = scmp.ge.s32.totalorder %s326, %s309
                %s328 = scalar_select %p327, 0, %s326
                %s329 = smul.u32 %s328, 24
                %s330 = smul.u32 %s328, 24
                %s331 = scalar_lea.vmem %s288, %s329 [#allocation2]
                %s332 = scalar_lea.vmem %s299, %s330
              $region53: #{freq_fft_coupling_forward.16} parent=47 // loop_footer
                %s314 = sadd.s32 %s312, 1
              $region54: #{freq_fft_coupling_forward.16} parent=47 // loop_footer_branch
                %311 = sbr.rel target = $region50
              $region55: #{freq_fft_coupling_forward.16} parent=47 // loop_exit
                _
              %s333 = sdiv.u32.pop %s295, 3
              %s334 = srem.u32.pop %s295, 3
              %s335 = smul.u32 %s333, 3
              %s336 = smul.u32 8, %s335
              %s337 = scalar_lea.vmem %s288, %s336 [#allocation2]
              %s338 = smul.u32 8, %s335
              %s339 = scalar_lea.vmem %s299, %s338
              // While loop
              $region56: #{freq_fft_coupling_forward.16} parent=47 // loop_pre_header
                _
              $region57: #{freq_fft_coupling_forward.16} parent=47 // loop_header
                %s341 = sphi 0, %s343
                %p342 = scmp.ge.s32.totalorder %s341, %s334
                %s346 = sphi 0, %s353
                %s347 = sphi %s337, %s356
                %s348 = sphi %s339, %s357
              $region58: #{freq_fft_coupling_forward.16} parent=47 // loop_header_branch
                %345 = sbr.rel (%p342) target = $region62
              $region59: #{freq_fft_coupling_forward.16} parent=47 // loop_body
                %v349 = vld [vmem:[%s347] sm:%s308]
                %350 = vst [vmem:[%s348] sm:%s308] %v349
                %s351 = sadd.s32 1, %s346
                %p352 = scmp.ge.s32.totalorder %s351, %s334
                %s353 = scalar_select %p352, 0, %s351
                %s354 = smul.u32 %s353, 8
                %s355 = smul.u32 %s353, 8
                %s356 = scalar_lea.vmem %s337, %s354 [#allocation2]
                %s357 = scalar_lea.vmem %s339, %s355
              $region60: #{freq_fft_coupling_forward.16} parent=47 // loop_footer
                %s343 = sadd.s32 %s341, 1
              $region61: #{freq_fft_coupling_forward.16} parent=47 // loop_footer_branch
                %340 = sbr.rel target = $region57
              $region62: #{freq_fft_coupling_forward.16} parent=47 // loop_exit
                _
            $region48: #{freq_fft_coupling_forward.16} parent=39 // pred_fallthru
              _
          $region40: #{freq_fft_coupling_forward.16} parent=35 // pred_fallthru
            _
          %411 = vnop
        $region36: #{freq_fft_coupling_forward.16} parent=31 // pred_fallthru
          _
      $region32: #{freq_fft_coupling_forward.16} parent=5 // pred_fallthru
        _
      %p412 = scmp.le.s32.totalorder 2, %s9
      // Predicated region
      $region85: #{freq_fft_coupling_forward.16} parent=5 // pred_check
        %p413 = pneg %p412
      $region86: #{freq_fft_coupling_forward.16} parent=5 // pred_check_branch
        %415 = sbr.rel (%p413) target = $region88
      $region87: #{freq_fft_coupling_forward.16} parent=5 // pred_region
        %s416 = ssub.s32 %s9, 2
        // Predicated region
        $region89: #{freq_fft_coupling_forward.16} parent=87 // pred_check
          %p417 = pneg %p106
        $region90: #{freq_fft_coupling_forward.16} parent=87 // pred_check_branch
          %419 = sbr.rel (%p417) target = $region92
        $region91: #{freq_fft_coupling_forward.16} parent=87 // pred_region
          %s420 = sand.u32 %s91, 1
          %s421 = sand.u32 %s91, 1
          %s422 = smul.addr %s421, 24
          %s423 = scalar_lea.vmem [#allocation2], %s422
        $region92: #{freq_fft_coupling_forward.16} parent=87 // pred_fallthru
          _
      $region88: #{freq_fft_coupling_forward.16} parent=5 // pred_fallthru
        _
    $region6: #{freq_fft_coupling_forward.16} parent=1 // loop_footer
      %s13 = sadd.s32 1, %s9
    $region7: #{freq_fft_coupling_forward.16} parent=1 // loop_footer_branch
      %8 = sbr.rel target = $region3
    $region8: #{freq_fft_coupling_forward.16} parent=1 // loop_exit
      _

// kernel: freq_fft_coupling_forward.15
$region0: #{freq_fft_coupling_forward.15}
  #allocation0 [shape = 'u32[]', space=smem, size = 0x4, offset = 0x4, fixed_abs, tag = 'smem constant byte address 0x4 - core index']
  #allocation1 [shape = 'u32[144,128]{1,0:T(1,128)}', space=vmem, size = 0x12000, scoped, tag = 'internal scratch']
  %s0 = inlined_call_operand.vmem [shape: bf16[2,56,32], index: 0, kind: input, shape index: {}]
  %s1 = inlined_call_operand.vmem [shape: bf16[9,32,32], index: 1, kind: input, shape index: {}]
  %s2 = inlined_call_operand.vmem [shape: f32[1,32], index: 2, kind: input, shape index: {}]
  %s3 = inlined_call_operand.vmem [shape: bf16[2,40,32], index: 3, kind: output, shape index: {}]
  %s4 = sld [smem:[#allocation0]]
  $region45: #{freq_fft_coupling_forward.15} parent=0
    _
  %s6 = ssub.s32 1, %s4
  %s7 = scalar_select 0, %s6, %s4
  loop: start=0, step=1, limit=4
  $region2: #{freq_fft_coupling_forward.15} parent=0 // loop_pre_header
    _
  $region3: #{freq_fft_coupling_forward.15} parent=0 // loop_header
    %s9 = sphi 0, %s13
    %p10 = scmp.ge.s32.totalorder %s9, 4
    %s19 = sphi 0, %s21
    %s22 = sphi 0, %s19
    %s23 = sphi 0, %s22
    %s39 = sphi 0, %s23
    %s43 = sphi 0, %s43
    %s45 = sphi 0, %s43
    %s46 = sphi 0, %s45
    %s60 = sphi 0, %s46
    %s64 = sphi 0, %s64
    %s66 = sphi 0, %s64
    %s67 = sphi 0, %s66
    %s81 = sphi 0, %s67
    %s87 = sphi 0, %s89
    %s90 = sphi 0, %s87
    %s91 = sphi 0, %s90
    %s107 = sphi 0, %s91
  $region4: #{freq_fft_coupling_forward.15} parent=0 // loop_header_branch
    %12 = sbr.rel (%p10) target = $region8
  $region5: #{freq_fft_coupling_forward.15} parent=0 // loop_body
    %s14 = ssub.s32 %s9, 1
    %s15 = ssub.s32 %s9, 2
    %s16 = sadd.s32 %s9, 1
    %s17 = ssub.s32 %s9, %s16
    %p18 = scmp.eq.s32.totalorder %s17, 0
    %s20 = sadd.s32 %s19, 1
    %s21 = scalar_select %p18, %s19, %s20
    %p24 = pneg %p18
    %p25 = scmp.eq.s32.totalorder %s9, 1
    %p26 = por %p24, %p25
    %p27 = scmp.ne.s32.totalorder %s19, %s22
    %p28 = scmp.eq.s32.totalorder %s9, 0
    %p29 = por %p27, %p28
    %p30 = scmp.ne.s32.totalorder %s19, %s22
    %p31 = scmp.eq.s32.totalorder %s14, 1
    %p32 = por %p30, %p31
    %p33 = scmp.ne.s32.totalorder %s22, %s23
    %p34 = scmp.eq.s32.totalorder %s14, 0
    %p35 = por %p33, %p34
    %p36 = scmp.ne.s32.totalorder %s22, %s23
    %p37 = scmp.eq.s32.totalorder %s15, 1
    %p38 = por %p36, %p37
    %p40 = scmp.ne.s32.totalorder %s23, %s39
    %p41 = scmp.eq.s32.totalorder %s15, 0
    %p42 = por %p40, %p41
    %s44 = sadd.s32 %s43, 1
    %p47 = scmp.eq.s32.totalorder %s9, 1
    %p48 = scmp.ne.s32.totalorder %s43, %s45
    %p49 = scmp.eq.s32.totalorder %s9, 0
    %p50 = por %p48, %p49
    %p51 = scmp.ne.s32.totalorder %s43, %s45
    %p52 = scmp.eq.s32.totalorder %s14, 1
    %p53 = por %p51, %p52
    %p54 = scmp.ne.s32.totalorder %s45, %s46
    %p55 = scmp.eq.s32.totalorder %s14, 0
    %p56 = por %p54, %p55
    %p57 = scmp.ne.s32.totalorder %s45, %s46
    %p58 = scmp.eq.s32.totalorder %s15, 1
    %p59 = por %p57, %p58
    %p61 = scmp.ne.s32.totalorder %s46, %s60
    %p62 = scmp.eq.s32.totalorder %s15, 0
    %p63 = por %p61, %p62
    %s65 = sadd.s32 %s64, 1
    %p68 = scmp.eq.s32.totalorder %s9, 1
    %p69 = scmp.ne.s32.totalorder %s64, %s66
    %p70 = scmp.eq.s32.totalorder %s9, 0
    %p71 = por %p69, %p70
    %p72 = scmp.ne.s32.totalorder %s64, %s66
    %p73 = scmp.eq.s32.totalorder %s14, 1
    %p74 = por %p72, %p73
    %p75 = scmp.ne.s32.totalorder %s66, %s67
    %p76 = scmp.eq.s32.totalorder %s14, 0
    %p77 = por %p75, %p76
    %p78 = scmp.ne.s32.totalorder %s66, %s67
    %p79 = scmp.eq.s32.totalorder %s15, 1
    %p80 = por %p78, %p79
    %p82 = scmp.ne.s32.totalorder %s67, %s81
    %p83 = scmp.eq.s32.totalorder %s15, 0
    %p84 = por %p82, %p83
    %s85 = ssub.s32 %s9, %s16
    %p86 = scmp.eq.s32.totalorder %s85, 0
    %s88 = sadd.s32 %s87, 1
    %s89 = scalar_select %p86, %s87, %s88
    %p92 = pneg %p86
    %p93 = scmp.eq.s32.totalorder %s9, 1
    %p94 = por %p92, %p93
    %p95 = scmp.ne.s32.totalorder %s87, %s90
    %p96 = scmp.eq.s32.totalorder %s9, 0
    %p97 = por %p95, %p96
    %p98 = scmp.ne.s32.totalorder %s87, %s90
    %p99 = scmp.eq.s32.totalorder %s14, 1
    %p100 = por %p98, %p99
    %p101 = scmp.ne.s32.totalorder %s90, %s91
    %p102 = scmp.eq.s32.totalorder %s14, 0
    %p103 = por %p101, %p102
    %p104 = scmp.ne.s32.totalorder %s90, %s91
    %p105 = scmp.eq.s32.totalorder %s15, 1
    %p106 = por %p104, %p105
    %p108 = scmp.ne.s32.totalorder %s91, %s107
    %p109 = scmp.eq.s32.totalorder %s15, 0
    %p110 = por %p108, %p109
    %p111 = scmp.le.s32.totalorder 1, %s9
    %p112 = scmp.lt.s32.totalorder %s9, 3
    %p113 = pnand %p111, %p112
    %p114 = pneg %p113
    // Predicated region
    $region9: #{freq_fft_coupling_forward.15} parent=5 // pred_check
      _
    $region10: #{freq_fft_coupling_forward.15} parent=5 // pred_check_branch
      %116 = sbr.rel (%p113) target = $region12
    $region11: #{freq_fft_coupling_forward.15} parent=5 // pred_region
      %s117 = ssub.s32 %s9, 1
      // Predicated region
      $region13: #{freq_fft_coupling_forward.15} parent=11 // pred_check
        %p118 = pneg %p56
      $region14: #{freq_fft_coupling_forward.15} parent=11 // pred_check_branch
        %120 = sbr.rel (%p118) target = $region16
      $region15: #{freq_fft_coupling_forward.15} parent=11 // pred_region
        _
      $region16: #{freq_fft_coupling_forward.15} parent=11 // pred_fallthru
        _
      // Predicated region
      $region17: #{freq_fft_coupling_forward.15} parent=11 // pred_check
        %p121 = pneg %p77
      $region18: #{freq_fft_coupling_forward.15} parent=11 // pred_check_branch
        %123 = sbr.rel (%p121) target = $region20
      $region19: #{freq_fft_coupling_forward.15} parent=11 // pred_region
        _
      $region20: #{freq_fft_coupling_forward.15} parent=11 // pred_fallthru
        _
    $region12: #{freq_fft_coupling_forward.15} parent=5 // pred_fallthru
      _
    %p124 = scmp.lt.s32.totalorder %s9, 2
    // Predicated region
    $region21: #{freq_fft_coupling_forward.15} parent=5 // pred_check
      %p125 = pneg %p124
    $region22: #{freq_fft_coupling_forward.15} parent=5 // pred_check_branch
      %127 = sbr.rel (%p125) target = $region24
    $region23: #{freq_fft_coupling_forward.15} parent=5 // pred_region
      // Predicated region
      $region25: #{freq_fft_coupling_forward.15} parent=23 // pred_check
        %p128 = pneg %p29
      $region26: #{freq_fft_coupling_forward.15} parent=23 // pred_check_branch
        %130 = sbr.rel (%p128) target = $region28
      $region27: #{freq_fft_coupling_forward.15} parent=23 // pred_region
        %p131 = scmp.lt.s32.totalorder %s9, 1
        %s132 = scalar_select %p131, %s9, 1
        %s133 = smul.addr %s132, 7
        %s134 = smul.addr %s133, 4
        %s135 = scalar_lea.vmem %s0, %s134
      $region28: #{freq_fft_coupling_forward.15} parent=23 // pred_fallthru
        _
    $region24: #{freq_fft_coupling_forward.15} parent=5 // pred_fallthru
      _
    %p136 = scmp.le.s32.totalorder 1, %s9
    %p137 = scmp.lt.s32.totalorder %s9, 3
    %p138 = pnand %p136, %p137
    %p139 = pneg %p138
    // Predicated region
    $region29: #{freq_fft_coupling_forward.15} parent=5 // pred_check
      _
    $region30: #{freq_fft_coupling_forward.15} parent=5 // pred_check_branch
      %141 = sbr.rel (%p138) target = $region32
    $region31: #{freq_fft_coupling_forward.15} parent=5 // pred_region
      %s142 = ssub.s32 %s9, 1
      %p143 = scmp.lt.s32.totalorder %s14, 1
      %s144 = scalar_select %p143, %s14, 1
      %s145 = smul.addr %s144, 7
      %s146 = smul.addr %s145, 4
      %s147 = scalar_lea.vmem %s0, %s146
      %p148 = pneg %p35
      %p149 = pneg %p32
      %p150 = pneg %p56
      %p151 = pneg %p53
      %p152 = pneg %p77
      %p153 = pneg %p74
      %p154 = pneg %p103
      %p155 = pneg %p100
      %p156 = scmp.lt.s32.totalorder %s14, 1
      %s157 = scalar_select %p156, %s14, 1
      %s158 = smul.addr %s157, 5
      %s159 = smul.addr %s158, 4
      %s160 = scalar_lea.vmem %s3, %s159
      %p161 = scmp.lt.s32.totalorder %s14, 1
      %s162 = scalar_select %p161, %s14, 1
      %s163 = smul.addr %s162, 7
      %s164 = smul.addr %s163, 4
      %s165 = scalar_lea.vmem %s0, %s164
      %p166 = scmp.lt.s32.totalorder %s14, 1
      %s167 = scalar_select %p166, %s14, 1
      %s168 = smul.addr %s167, 5
      %s169 = smul.addr %s168, 4
      %s170 = scalar_lea.vmem %s3, %s169
      %v172 = vld [vmem:[%s165] sm:$0xf]
      %v173 = vld [vmem:[%s165 + $0x4] sm:$0xf]
      %v174 = vld [vmem:[%s165 + $0x8] sm:$0xf]
      %v175 = vld [vmem:[%s165 + $0xc] sm:$0xf]
      %v176 = vld [vmem:[%s165 + $0x10] sm:$0xf]
      %v177 = vld [vmem:[%s1] sm:$0xf]
      %v178 = vld [vmem:[%s1 + $0x4] sm:$0xf]
      %v179 = vld [vmem:[%s1 + $0x8] sm:$0xf]
      %v180 = vld [vmem:[%s1 + $0xc] sm:$0xf]
      %v181 = vld [vmem:[%s165 + $0x14] sm:$0x1]
      %s182 = scalar_lea.vmem %s1, 16
      %v183 = vld [vmem:[%s182] sm:$0xf]
      %v184 = vld [vmem:[%s182 + $0x4] sm:$0xf]
      %v185 = vld [vmem:[%s182 + $0x8] sm:$0xf]
      %v186 = vld [vmem:[%s182 + $0xc] sm:$0xf]
      %v193 = vunpack.c.l.b16 %v172
      %v194 = vunpack.c.l.b16 %v173
      %v195 = vunpack.c.l.b16 %v174
      %v196 = vunpack.c.l.b16 %v175
      %v197 = vunpack.c.l.b16 %v176
      %v198 = vunpack.c.l.b16 %v181
      %v199 = vpack.c.b16 %v194, %v193
      %v200 = vpack.c.b16 %v196, %v195
      %v201 = vpack.c.b16 %v198, %v197
      %vm202 = vsmask.f32 7424
      %v204 = vshrl.u32 %v199, 16
      %v206 = vshll.u32 %v199, 16
      %v208 = vrot.slane %v206, 1
      %v209 = vor.u32 %v204, %v208
      %v211 = vshll.u32 %v200, 16
      %v213 = vrot.slane %v211, 1
      %v214 = vsel %vm202, %v209, %v213
      %v215 = vshrl.u32 %v200, 16
      %v217 = vor.u32 %v215, %v213
      %v219 = vshll.u32 %v201, 16
      %v221 = vrot.slane %v219, 1
      %v222 = vsel %vm202, %v217, %v221
      %v223 = vshrl.u32 %v201, 16
      %v225 = vor.u32 %v223, %v221
      %v230 = vunpack.c.l.b16 %v183
      %v231 = vunpack.c.l.b16 %v184
      %v232 = vunpack.c.l.b16 %v185
      %v233 = vunpack.c.l.b16 %v186
      %v234 = vpack.c.b16 %v231, %v230
      %v235 = vpack.c.b16 %v233, %v232
      %vm238 = vcmask 261120
      %v240 = vsel %vm238, %v214, 0
      %v243 = vsel %vm238, %v222, 0
      %v246 = vsel %vm238, %v225, 0
      %248 = vmatprep.subr.bf16.mxu0 0
      %249 = vmatpush1.bf16.msra.mxu0 0
      %250 = vmatprep.subr.bf16.mxu0 0
      %251 = vmatpush1.bf16.msra.mxu0 0
      %252 = vmatprep.subr.bf16.mxu0 0
      %253 = vmatpush1.bf16.msra.mxu0 0
      %254 = vmatprep.subr.bf16.mxu0 0
      %255 = vmatpush1.bf16.msra.mxu0 0
      %256 = vmatprep.subr.bf16.mxu0 0
      %257 = vmatpush1.bf16.msra.mxu0 0
      %258 = vmatprep.subr.bf16.mxu0 0
      %259 = vmatpush1.bf16.msra.mxu0 0
      %260 = vmatprep.subr.bf16.mxu0 0
      %261 = vmatpush1.bf16.msra.mxu0 %v235
      %262 = vmatprep.subr.bf16.mxu0 0
      %263 = vmatpush1.bf16.msra.mxu0 %v234
      %264 = vmatprep.subr.bf16.mxu0 0
      %265 = vmatpush2.bf16.msra.mxu0 0
      %266 = vmatprep.subr.bf16.mxu0 0
      %267 = vmatpush2.bf16.msra.mxu0 0
      %268 = vmatprep.subr.bf16.mxu0 0
      %269 = vmatpush2.bf16.msra.mxu0 0
      %270 = vmatprep.subr.bf16.mxu0 0
      %271 = vmatpush2.bf16.msra.mxu0 0
      %272 = vmatprep.subr.bf16.mxu0 0
      %273 = vmatpush2.bf16.msra.mxu0 0
      %274 = vmatprep.subr.bf16.mxu0 0
      %275 = vmatpush2.bf16.msra.mxu0 0
      %276 = vmatprep.subr.bf16.mxu0 0
      %277 = vmatpush2.bf16.msra.mxu0 0
      %278 = vmatprep.subr.bf16.mxu0 0
      %279 = vmatpush2.bf16.msra.mxu0 0
      %280 = vmatprep.mubr.bf16.mxu0 0
      %281 = vmatmul.mubr.bf16.gmra.mxu0 %v240
      %v282 = vpop.f32.mrf.mxu0
      %v283 = vadd.f32 0.0, %v282
      %v284 = vpop.f32.mrf.mxu0
      %v285 = vpop.f32.mrf.mxu0
      %v286 = vadd.f32 0.0, %v285
      %v287 = vpop.f32.mrf.mxu0
      %288 = vmatprep.mubr.bf16.mxu0 0
      %289 = vmatmul.mubr.bf16.gmra.mxu0 %v243
      %v290 = vpop.f32.mrf.mxu0
      %v291 = vadd.f32 0.0, %v290
      %v292 = vpop.f32.mrf.mxu0
      %v293 = vpop.f32.mrf.mxu0
      %v294 = vadd.f32 0.0, %v293
      %v295 = vpop.f32.mrf.mxu0
      %296 = vmatprep.mubr.bf16.mxu0 0
      %297 = vmatmul.mubr.bf16.gmra.mxu0 %v246
      %v298 = vpop.f32.mrf.mxu0
      %v299 = vadd.f32 0.0, %v298
      %v300 = vpop.f32.mrf.mxu0
      %v301 = vpop.f32.mrf.mxu0
      %v302 = vpop.f32.mrf.mxu0
      %303 = vdwg.mxu0
      %v304 = vpack.c.b16 %v197, %v197
      %v309 = vunpack.c.l.b16 %v177
      %v310 = vunpack.c.l.b16 %v178
      %v311 = vunpack.c.l.b16 %v179
      %v312 = vunpack.c.l.b16 %v180
      %v313 = vpack.c.b16 %v310, %v309
      %v314 = vpack.c.b16 %v312, %v311
      %v317 = vsel %vm238, %v199, 0
      %v319 = vsel %vm238, %v200, 0
      %v322 = vsel %vm238, %v304, 0
      %324 = vmatprep.subr.bf16.mxu0 0
      %325 = vmatpush1.bf16.msra.mxu0 0
      %326 = vmatprep.subr.bf16.mxu0 0
      %327 = vmatpush1.bf16.msra.mxu0 0
      %328 = vmatprep.subr.bf16.mxu0 0
      %329 = vmatpush1.bf16.msra.mxu0 0
      %330 = vmatprep.subr.bf16.mxu0 0
      %331 = vmatpush1.bf16.msra.mxu0 0
      %332 = vmatprep.subr.bf16.mxu0 0
      %333 = vmatpush1.bf16.msra.mxu0 0
      %334 = vmatprep.subr.bf16.mxu0 0
      %335 = vmatpush1.bf16.msra.mxu0 0
      %336 = vmatprep.subr.bf16.mxu0 0
      %337 = vmatpush1.bf16.msra.mxu0 %v314
      %338 = vmatprep.subr.bf16.mxu0 0
      %339 = vmatpush1.bf16.msra.mxu0 %v313
      %340 = vmatprep.subr.bf16.mxu0 0
      %341 = vmatpush2.bf16.msra.mxu0 0
      %342 = vmatprep.subr.bf16.mxu0 0
      %343 = vmatpush2.bf16.msra.mxu0 0
      %344 = vmatprep.subr.bf16.mxu0 0
      %345 = vmatpush2.bf16.msra.mxu0 0
      %346 = vmatprep.subr.bf16.mxu0 0
      %347 = vmatpush2.bf16.msra.mxu0 0
      %348 = vmatprep.subr.bf16.mxu0 0
      %349 = vmatpush2.bf16.msra.mxu0 0
      %350 = vmatprep.subr.bf16.mxu0 0
      %351 = vmatpush2.bf16.msra.mxu0 0
      %352 = vmatprep.subr.bf16.mxu0 0
      %353 = vmatpush2.bf16.msra.mxu0 0
      %354 = vmatprep.subr.bf16.mxu0 0
      %355 = vmatpush2.bf16.msra.mxu0 0
      %356 = vmatprep.mubr.bf16.mxu0 0
      %357 = vmatmul.mubr.bf16.gmra.mxu0 %v317
      %v358 = vpop.f32.mrf.mxu0
      %v359 = vadd.f32 %v283, %v358
      %v360 = vpop.f32.mrf.mxu0
      %v361 = vpop.f32.mrf.mxu0
      %v362 = vadd.f32 %v286, %v361
      %v363 = vpop.f32.mrf.mxu0
      %364 = vmatprep.mubr.bf16.mxu0 0
      %365 = vmatmul.mubr.bf16.gmra.mxu0 %v319
      %v366 = vpop.f32.mrf.mxu0
      %v367 = vadd.f32 %v291, %v366
      %v368 = vpop.f32.mrf.mxu0
      %v369 = vpop.f32.mrf.mxu0
      %v370 = vadd.f32 %v294, %v369
      %v371 = vpop.f32.mrf.mxu0
      %372 = vmatprep.mubr.bf16.mxu0 0
      %373 = vmatmul.mubr.bf16.gmra.mxu0 %v322
      %v374 = vpop.f32.mrf.mxu0
      %v375 = vadd.f32 %v299, %v374
      %v376 = vpop.f32.mrf.mxu0
      %v377 = vpop.f32.mrf.mxu0
      %v378 = vpop.f32.mrf.mxu0
      %379 = vdwg.mxu0
      %v380 = vld [vmem:[%s165] sm:$0xe]
      %s381 = scalar_lea.vmem %s1, 32
      %v382 = vld [vmem:[%s381] sm:$0xf]
      %v383 = vld [vmem:[%s381 + $0x4] sm:$0xf]
      %v384 = vld [vmem:[%s381 + $0x8] sm:$0xf]
      %v385 = vld [vmem:[%s381 + $0xc] sm:$0xf]
      %v387 = vunpack.c.l.b16 %v380
      %v388 = vpack.c.b16 %v194, %v387
      %vm389 = vcmask 1046528
      %v390 = vrot.slane %v388, 1
      %v391 = vrot.slane %v200, 1
      %v392 = vsel %vm389, %v390, %v391
      %v393 = vrot.slane %v201, 1
      %v394 = vsel %vm389, %v391, %v393
      %v399 = vunpack.c.l.b16 %v382
      %v400 = vunpack.c.l.b16 %v383
      %v401 = vunpack.c.l.b16 %v384
      %v402 = vunpack.c.l.b16 %v385
      %v403 = vpack.c.b16 %v400, %v399
      %v404 = vpack.c.b16 %v402, %v401
      %v408 = vsel %vm238, %v392, 0
      %v411 = vsel %vm238, %v394, 0
      %v414 = vsel %vm238, %v393, 0
      %416 = vmatprep.subr.bf16.mxu0 0
      %417 = vmatpush1.bf16.msra.mxu0 0
      %418 = vmatprep.subr.bf16.mxu0 0
      %419 = vmatpush1.bf16.msra.mxu0 0
      %420 = vmatprep.subr.bf16.mxu0 0
      %421 = vmatpush1.bf16.msra.mxu0 0
      %422 = vmatprep.subr.bf16.mxu0 0
      %423 = vmatpush1.bf16.msra.mxu0 0
      %424 = vmatprep.subr.bf16.mxu0 0
      %425 = vmatpush1.bf16.msra.mxu0 0
      %426 = vmatprep.subr.bf16.mxu0 0
      %427 = vmatpush1.bf16.msra.mxu0 0
      %428 = vmatprep.subr.bf16.mxu0 0
      %429 = vmatpush1.bf16.msra.mxu0 %v404
      %430 = vmatprep.subr.bf16.mxu0 0
      %431 = vmatpush1.bf16.msra.mxu0 %v403
      %432 = vmatprep.subr.bf16.mxu0 0
      %433 = vmatpush2.bf16.msra.mxu0 0
      %434 = vmatprep.subr.bf16.mxu0 0
      %435 = vmatpush2.bf16.msra.mxu0 0
      %436 = vmatprep.subr.bf16.mxu0 0
      %437 = vmatpush2.bf16.msra.mxu0 0
      %438 = vmatprep.subr.bf16.mxu0 0
      %439 = vmatpush2.bf16.msra.mxu0 0
      %440 = vmatprep.subr.bf16.mxu0 0
      %441 = vmatpush2.bf16.msra.mxu0 0
      %442 = vmatprep.subr.bf16.mxu0 0
      %443 = vmatpush2.bf16.msra.mxu0 0
      %444 = vmatprep.subr.bf16.mxu0 0
      %445 = vmatpush2.bf16.msra.mxu0 0
      %446 = vmatprep.subr.bf16.mxu0 0
      %447 = vmatpush2.bf16.msra.mxu0 0
      %448 = vmatprep.mubr.bf16.mxu0 0
      %449 = vmatmul.mubr.bf16.gmra.mxu0 %v408
      %v450 = vpop.f32.mrf.mxu0
      %v451 = vadd.f32 0.0, %v450
      %v452 = vpop.f32.mrf.mxu0
      %v453 = vpop.f32.mrf.mxu0
      %v454 = vadd.f32 0.0, %v453
      %v455 = vpop.f32.mrf.mxu0
      %456 = vmatprep.mubr.bf16.mxu0 0
      %457 = vmatmul.mubr.bf16.gmra.mxu0 %v411
      %v458 = vpop.f32.mrf.mxu0
      %v459 = vadd.f32 0.0, %v458
      %v460 = vpop.f32.mrf.mxu0
      %v461 = vpop.f32.mrf.mxu0
      %v462 = vadd.f32 0.0, %v461
      %v463 = vpop.f32.mrf.mxu0
      %464 = vmatprep.mubr.bf16.mxu0 0
      %465 = vmatmul.mubr.bf16.gmra.mxu0 %v414
      %v466 = vpop.f32.mrf.mxu0
      %v467 = vadd.f32 0.0, %v466
      %v468 = vpop.f32.mrf.mxu0
      %v469 = vpop.f32.mrf.mxu0
      %v470 = vpop.f32.mrf.mxu0
      %471 = vdwg.mxu0
      %v472 = vadd.f32 %v359, %v451
      %v473 = vadd.f32 %v362, %v454
      %v474 = vadd.f32 %v367, %v459
      %v475 = vadd.f32 %v370, %v462
      %v476 = vadd.f32 %v375, %v467
      %v477 = vld [vmem:[%s165] sm:$0xc]
      %v478 = vld [vmem:[%s165 + $0x14] sm:$0x3]
      %s479 = scalar_lea.vmem %s1, 48
      %v480 = vld [vmem:[%s479] sm:$0xf]
      %v481 = vld [vmem:[%s479 + $0x4] sm:$0xf]
      %v482 = vld [vmem:[%s479 + $0x8] sm:$0xf]
      %v483 = vld [vmem:[%s479 + $0xc] sm:$0xf]
      %v486 = vunpack.c.l.b16 %v477
      %v487 = vunpack.c.l.b16 %v478
      %v488 = vpack.c.b16 %v194, %v486
      %v489 = vpack.c.b16 %v487, %v197
      %vm490 = vcmask 1045504
      %v491 = vrot.slane %v488, 2
      %v492 = vrot.slane %v200, 2
      %v493 = vsel %vm490, %v491, %v492
      %v494 = vrot.slane %v489, 2
      %v495 = vsel %vm490, %v492, %v494
      %v500 = vunpack.c.l.b16 %v480
      %v501 = vunpack.c.l.b16 %v481
      %v502 = vunpack.c.l.b16 %v482
      %v503 = vunpack.c.l.b16 %v483
      %v504 = vpack.c.b16 %v501, %v500
      %v505 = vpack.c.b16 %v503, %v502
      %v509 = vsel %vm238, %v493, 0
      %v512 = vsel %vm238, %v495, 0
      %v515 = vsel %vm238, %v494, 0
      %517 = vmatprep.subr.bf16.mxu0 0
      %518 = vmatpush1.bf16.msra.mxu0 0
      %519 = vmatprep.subr.bf16.mxu0 0
      %520 = vmatpush1.bf16.msra.mxu0 0
      %521 = vmatprep.subr.bf16.mxu0 0
      %522 = vmatpush1.bf16.msra.mxu0 0
      %523 = vmatprep.subr.bf16.mxu0 0
      %524 = vmatpush1.bf16.msra.mxu0 0
      %525 = vmatprep.subr.bf16.mxu0 0
      %526 = vmatpush1.bf16.msra.mxu0 0
      %527 = vmatprep.subr.bf16.mxu0 0
      %528 = vmatpush1.bf16.msra.mxu0 0
      %529 = vmatprep.subr.bf16.mxu0 0
      %530 = vmatpush1.bf16.msra.mxu0 %v505
      %531 = vmatprep.subr.bf16.mxu0 0
      %532 = vmatpush1.bf16.msra.mxu0 %v504
      %533 = vmatprep.subr.bf16.mxu0 0
      %534 = vmatpush2.bf16.msra.mxu0 0
      %535 = vmatprep.subr.bf16.mxu0 0
      %536 = vmatpush2.bf16.msra.mxu0 0
      %537 = vmatprep.subr.bf16.mxu0 0
      %538 = vmatpush2.bf16.msra.mxu0 0
      %539 = vmatprep.subr.bf16.mxu0 0
      %540 = vmatpush2.bf16.msra.mxu0 0
      %541 = vmatprep.subr.bf16.mxu0 0
      %542 = vmatpush2.bf16.msra.mxu0 0
      %543 = vmatprep.subr.bf16.mxu0 0
      %544 = vmatpush2.bf16.msra.mxu0 0
      %545 = vmatprep.subr.bf16.mxu0 0
      %546 = vmatpush2.bf16.msra.mxu0 0
      %547 = vmatprep.subr.bf16.mxu0 0
      %548 = vmatpush2.bf16.msra.mxu0 0
      %549 = vmatprep.mubr.bf16.mxu0 0
      %550 = vmatmul.mubr.bf16.gmra.mxu0 %v509
      %v551 = vpop.f32.mrf.mxu0
      %v552 = vadd.f32 0.0, %v551
      %v553 = vpop.f32.mrf.mxu0
      %v554 = vpop.f32.mrf.mxu0
      %v555 = vadd.f32 0.0, %v554
      %v556 = vpop.f32.mrf.mxu0
      %557 = vmatprep.mubr.bf16.mxu0 0
      %558 = vmatmul.mubr.bf16.gmra.mxu0 %v512
      %v559 = vpop.f32.mrf.mxu0
      %v560 = vadd.f32 0.0, %v559
      %v561 = vpop.f32.mrf.mxu0
      %v562 = vpop.f32.mrf.mxu0
      %v563 = vadd.f32 0.0, %v562
      %v564 = vpop.f32.mrf.mxu0
      %565 = vmatprep.mubr.bf16.mxu0 0
      %566 = vmatmul.mubr.bf16.gmra.mxu0 %v515
      %v567 = vpop.f32.mrf.mxu0
      %v568 = vadd.f32 0.0, %v567
      %v569 = vpop.f32.mrf.mxu0
      %v570 = vpop.f32.mrf.mxu0
      %v571 = vpop.f32.mrf.mxu0
      %572 = vdwg.mxu0
      %v573 = vadd.f32 %v472, %v552
      %v574 = vadd.f32 %v473, %v555
      %v575 = vadd.f32 %v474, %v560
      %v576 = vadd.f32 %v475, %v563
      %v577 = vadd.f32 %v476, %v568
      %v578 = vld [vmem:[%s165 + $0x14] sm:$0x7]
      %s579 = scalar_lea.vmem %s1, 64
      %v580 = vld [vmem:[%s579] sm:$0xf]
      %v581 = vld [vmem:[%s579 + $0x4] sm:$0xf]
      %v582 = vld [vmem:[%s579 + $0x8] sm:$0xf]
      %v583 = vld [vmem:[%s579 + $0xc] sm:$0xf]
      %v585 = vunpack.c.l.b16 %v578
      %v586 = vpack.c.b16 %v585, %v197
      %vm587 = vsmask.f32 5376
      %v589 = vshrl.u32 %v488, 16
      %v591 = vrot.slane %v589, 2
      %v592 = vshll.u32 %v488, 16
      %v594 = vrot.slane %v592, 3
      %v595 = vor.u32 %v591, %v594
      %v596 = vrot.slane %v215, 2
      %v597 = vrot.slane %v211, 3
      %v598 = vor.u32 %v596, %v597
      %v599 = vsel %vm587, %v595, %v598
      %v601 = vshrl.u32 %v586, 16
      %v603 = vrot.slane %v601, 2
      %v604 = vshll.u32 %v586, 16
      %v606 = vrot.slane %v604, 3
      %v607 = vor.u32 %v603, %v606
      %v608 = vsel %vm587, %v598, %v607
      %v613 = vunpack.c.l.b16 %v580
      %v614 = vunpack.c.l.b16 %v581
      %v615 = vunpack.c.l.b16 %v582
      %v616 = vunpack.c.l.b16 %v583
      %v617 = vpack.c.b16 %v614, %v613
      %v618 = vpack.c.b16 %v616, %v615
      %v622 = vsel %vm238, %v599, 0
      %v625 = vsel %vm238, %v608, 0
      %v628 = vsel %vm238, %v607, 0
      %630 = vmatprep.subr.bf16.mxu0 0
      %631 = vmatpush1.bf16.msra.mxu0 0
      %632 = vmatprep.subr.bf16.mxu0 0
      %633 = vmatpush1.bf16.msra.mxu0 0
      %634 = vmatprep.subr.bf16.mxu0 0
      %635 = vmatpush1.bf16.msra.mxu0 0
      %636 = vmatprep.subr.bf16.mxu0 0
      %637 = vmatpush1.bf16.msra.mxu0 0
      %638 = vmatprep.subr.bf16.mxu0 0
      %639 = vmatpush1.bf16.msra.mxu0 0
      %640 = vmatprep.subr.bf16.mxu0 0
      %641 = vmatpush1.bf16.msra.mxu0 0
      %642 = vmatprep.subr.bf16.mxu0 0
      %643 = vmatpush1.bf16.msra.mxu0 %v618
      %644 = vmatprep.subr.bf16.mxu0 0
      %645 = vmatpush1.bf16.msra.mxu0 %v617
      %646 = vmatprep.subr.bf16.mxu0 0
      %647 = vmatpush2.bf16.msra.mxu0 0
      %648 = vmatprep.subr.bf16.mxu0 0
      %649 = vmatpush2.bf16.msra.mxu0 0
      %650 = vmatprep.subr.bf16.mxu0 0
      %651 = vmatpush2.bf16.msra.mxu0 0
      %652 = vmatprep.subr.bf16.mxu0 0
      %653 = vmatpush2.bf16.msra.mxu0 0
      %654 = vmatprep.subr.bf16.mxu0 0
      %655 = vmatpush2.bf16.msra.mxu0 0
      %656 = vmatprep.subr.bf16.mxu0 0
      %657 = vmatpush2.bf16.msra.mxu0 0
      %658 = vmatprep.subr.bf16.mxu0 0
      %659 = vmatpush2.bf16.msra.mxu0 0
      %660 = vmatprep.subr.bf16.mxu0 0
      %661 = vmatpush2.bf16.msra.mxu0 0
      %662 = vmatprep.mubr.bf16.mxu0 0
      %663 = vmatmul.mubr.bf16.gmra.mxu0 %v622
      %v664 = vpop.f32.mrf.mxu0
      %v665 = vadd.f32 0.0, %v664
      %v666 = vpop.f32.mrf.mxu0
      %v667 = vpop.f32.mrf.mxu0
      %v668 = vadd.f32 0.0, %v667
      %v669 = vpop.f32.mrf.mxu0
      %670 = vmatprep.mubr.bf16.mxu0 0
      %671 = vmatmul.mubr.bf16.gmra.mxu0 %v625
      %v672 = vpop.f32.mrf.mxu0
      %v673 = vadd.f32 0.0, %v672
      %v674 = vpop.f32.mrf.mxu0
      %v675 = vpop.f32.mrf.mxu0
      %v676 = vadd.f32 0.0, %v675
      %v677 = vpop.f32.mrf.mxu0
      %678 = vmatprep.mubr.bf16.mxu0 0
      %679 = vmatmul.mubr.bf16.gmra.mxu0 %v628
      %v680 = vpop.f32.mrf.mxu0
      %v681 = vadd.f32 0.0, %v680
      %v682 = vpop.f32.mrf.mxu0
      %v683 = vpop.f32.mrf.mxu0
      %v684 = vpop.f32.mrf.mxu0
      %685 = vdwg.mxu0
      %v686 = vadd.f32 %v573, %v665
      %v687 = vadd.f32 %v574, %v668
      %v688 = vadd.f32 %v575, %v673
      %v689 = vadd.f32 %v576, %v676
      %v690 = vadd.f32 %v577, %v681
      %v691 = vld [vmem:[%s165] sm:$0x8]
      %s692 = scalar_lea.vmem %s1, 80
      %v693 = vld [vmem:[%s692] sm:$0xf]
      %v694 = vld [vmem:[%s692 + $0x4] sm:$0xf]
      %v695 = vld [vmem:[%s692 + $0x8] sm:$0xf]
      %v696 = vld [vmem:[%s692 + $0xc] sm:$0xf]
      %v698 = vunpack.c.l.b16 %v691
      %v699 = vpack.c.b16 %v194, %v698
      %vm700 = vcmask 1044480
      %v701 = vrot.slane %v699, 3
      %v702 = vrot.slane %v200, 3
      %v703 = vsel %vm700, %v701, %v702
      %v704 = vrot.slane %v586, 3
      %v705 = vsel %vm700, %v702, %v704
      %v710 = vunpack.c.l.b16 %v693
      %v711 = vunpack.c.l.b16 %v694
      %v712 = vunpack.c.l.b16 %v695
      %v713 = vunpack.c.l.b16 %v696
      %v714 = vpack.c.b16 %v711, %v710
      %v715 = vpack.c.b16 %v713, %v712
      %v719 = vsel %vm238, %v703, 0
      %v722 = vsel %vm238, %v705, 0
      %v725 = vsel %vm238, %v704, 0
      %727 = vmatprep.subr.bf16.mxu0 0
      %728 = vmatpush1.bf16.msra.mxu0 0
      %729 = vmatprep.subr.bf16.mxu0 0
      %730 = vmatpush1.bf16.msra.mxu0 0
      %731 = vmatprep.subr.bf16.mxu0 0
      %732 = vmatpush1.bf16.msra.mxu0 0
      %733 = vmatprep.subr.bf16.mxu0 0
      %734 = vmatpush1.bf16.msra.mxu0 0
      %735 = vmatprep.subr.bf16.mxu0 0
      %736 = vmatpush1.bf16.msra.mxu0 0
      %737 = vmatprep.subr.bf16.mxu0 0
      %738 = vmatpush1.bf16.msra.mxu0 0
      %739 = vmatprep.subr.bf16.mxu0 0
      %740 = vmatpush1.bf16.msra.mxu0 %v715
      %741 = vmatprep.subr.bf16.mxu0 0
      %742 = vmatpush1.bf16.msra.mxu0 %v714
      %743 = vmatprep.subr.bf16.mxu0 0
      %744 = vmatpush2.bf16.msra.mxu0 0
      %745 = vmatprep.subr.bf16.mxu0 0
      %746 = vmatpush2.bf16.msra.mxu0 0
      %747 = vmatprep.subr.bf16.mxu0 0
      %748 = vmatpush2.bf16.msra.mxu0 0
      %749 = vmatprep.subr.bf16.mxu0 0
      %750 = vmatpush2.bf16.msra.mxu0 0
      %751 = vmatprep.subr.bf16.mxu0 0
      %752 = vmatpush2.bf16.msra.mxu0 0
      %753 = vmatprep.subr.bf16.mxu0 0
      %754 = vmatpush2.bf16.msra.mxu0 0
      %755 = vmatprep.subr.bf16.mxu0 0
      %756 = vmatpush2.bf16.msra.mxu0 0
      %757 = vmatprep.subr.bf16.mxu0 0
      %758 = vmatpush2.bf16.msra.mxu0 0
      %759 = vmatprep.mubr.bf16.mxu0 0
      %760 = vmatmul.mubr.bf16.gmra.mxu0 %v719
      %v761 = vpop.f32.mrf.mxu0
      %v762 = vadd.f32 0.0, %v761
      %v763 = vpop.f32.mrf.mxu0
      %v764 = vpop.f32.mrf.mxu0
      %v765 = vadd.f32 0.0, %v764
      %v766 = vpop.f32.mrf.mxu0
      %767 = vmatprep.mubr.bf16.mxu0 0
      %768 = vmatmul.mubr.bf16.gmra.mxu0 %v722
      %v769 = vpop.f32.mrf.mxu0
      %v770 = vadd.f32 0.0, %v769
      %v771 = vpop.f32.mrf.mxu0
      %v772 = vpop.f32.mrf.mxu0
      %v773 = vadd.f32 0.0, %v772
      %v774 = vpop.f32.mrf.mxu0
      %775 = vmatprep.mubr.bf16.mxu0 0
      %776 = vmatmul.mubr.bf16.gmra.mxu0 %v725
      %v777 = vpop.f32.mrf.mxu0
      %v778 = vadd.f32 0.0, %v777
      %v779 = vpop.f32.mrf.mxu0
      %v780 = vpop.f32.mrf.mxu0
      %v781 = vpop.f32.mrf.mxu0
      %782 = vdwg.mxu0
      %v783 = vadd.f32 %v686, %v762
      %v784 = vadd.f32 %v687, %v765
      %v785 = vadd.f32 %v688, %v770
      %v786 = vadd.f32 %v689, %v773
      %v787 = vadd.f32 %v690, %v778
      %v788 = vld [vmem:[%s165 + $0x14] sm:$0xf]
      %s789 = scalar_lea.vmem %s1, 96
      %v790 = vld [vmem:[%s789] sm:$0xf]
      %v791 = vld [vmem:[%s789 + $0x4] sm:$0xf]
      %v792 = vld [vmem:[%s789 + $0x8] sm:$0xf]
      %v793 = vld [vmem:[%s789 + $0xc] sm:$0xf]
      %v795 = vunpack.c.l.b16 %v788
      %v796 = vpack.c.b16 %v195, %v194
      %v797 = vpack.c.b16 %v197, %v196
      %v798 = vpack.c.b16 %v795, %v795
      %v803 = vunpack.c.l.b16 %v790
      %v804 = vunpack.c.l.b16 %v791
      %v805 = vunpack.c.l.b16 %v792
      %v806 = vunpack.c.l.b16 %v793
      %v807 = vpack.c.b16 %v804, %v803
      %v808 = vpack.c.b16 %v806, %v805
      %v812 = vsel %vm238, %v796, 0
      %v815 = vsel %vm238, %v797, 0
      %v818 = vsel %vm238, %v798, 0
      %820 = vmatprep.subr.bf16.mxu0 0
      %821 = vmatpush1.bf16.msra.mxu0 0
      %822 = vmatprep.subr.bf16.mxu0 0
      %823 = vmatpush1.bf16.msra.mxu0 0
      %824 = vmatprep.subr.bf16.mxu0 0
      %825 = vmatpush1.bf16.msra.mxu0 0
      %826 = vmatprep.subr.bf16.mxu0 0
      %827 = vmatpush1.bf16.msra.mxu0 0
      %828 = vmatprep.subr.bf16.mxu0 0
      %829 = vmatpush1.bf16.msra.mxu0 0
      %830 = vmatprep.subr.bf16.mxu0 0
      %831 = vmatpush1.bf16.msra.mxu0 0
      %832 = vmatprep.subr.bf16.mxu0 0
      %833 = vmatpush1.bf16.msra.mxu0 %v808
      %834 = vmatprep.subr.bf16.mxu0 0
      %835 = vmatpush1.bf16.msra.mxu0 %v807
      %836 = vmatprep.subr.bf16.mxu0 0
      %837 = vmatpush2.bf16.msra.mxu0 0
      %838 = vmatprep.subr.bf16.mxu0 0
      %839 = vmatpush2.bf16.msra.mxu0 0
      %840 = vmatprep.subr.bf16.mxu0 0
      %841 = vmatpush2.bf16.msra.mxu0 0
      %842 = vmatprep.subr.bf16.mxu0 0
      %843 = vmatpush2.bf16.msra.mxu0 0
      %844 = vmatprep.subr.bf16.mxu0 0
      %845 = vmatpush2.bf16.msra.mxu0 0
      %846 = vmatprep.subr.bf16.mxu0 0
      %847 = vmatpush2.bf16.msra.mxu0 0
      %848 = vmatprep.subr.bf16.mxu0 0
      %849 = vmatpush2.bf16.msra.mxu0 0
      %850 = vmatprep.subr.bf16.mxu0 0
      %851 = vmatpush2.bf16.msra.mxu0 0
      %852 = vmatprep.mubr.bf16.mxu0 0
      %853 = vmatmul.mubr.bf16.gmra.mxu0 %v812
      %v854 = vpop.f32.mrf.mxu0
      %v855 = vadd.f32 0.0, %v854
      %v856 = vpop.f32.mrf.mxu0
      %v857 = vpop.f32.mrf.mxu0
      %v858 = vadd.f32 0.0, %v857
      %v859 = vpop.f32.mrf.mxu0
      %860 = vmatprep.mubr.bf16.mxu0 0
      %861 = vmatmul.mubr.bf16.gmra.mxu0 %v815
      %v862 = vpop.f32.mrf.mxu0
      %v863 = vadd.f32 0.0, %v862
      %v864 = vpop.f32.mrf.mxu0
      %v865 = vpop.f32.mrf.mxu0
      %v866 = vadd.f32 0.0, %v865
      %v867 = vpop.f32.mrf.mxu0
      %868 = vmatprep.mubr.bf16.mxu0 0
      %869 = vmatmul.mubr.bf16.gmra.mxu0 %v818
      %v870 = vpop.f32.mrf.mxu0
      %v871 = vadd.f32 0.0, %v870
      %v872 = vpop.f32.mrf.mxu0
      %v873 = vpop.f32.mrf.mxu0
      %v874 = vpop.f32.mrf.mxu0
      %875 = vdwg.mxu0
      %v876 = vadd.f32 %v783, %v855
      %v877 = vadd.f32 %v784, %v858
      %v878 = vadd.f32 %v785, %v863
      %v879 = vadd.f32 %v786, %v866
      %v880 = vadd.f32 %v787, %v871
      %v881 = vld [vmem:[%s165 + $0x4] sm:$0xf]
      %v882 = vld [vmem:[%s165 + $0x8] sm:$0xf]
      %v883 = vld [vmem:[%s165 + $0xc] sm:$0xf]
      %v884 = vld [vmem:[%s165 + $0x10] sm:$0xf]
      %v885 = vld [vmem:[%s165 + $0x14] sm:$0xf]
      %v886 = vld [vmem:[%s165 + $0x18] sm:$0x1]
      %s887 = scalar_lea.vmem %s1, 112
      %v888 = vld [vmem:[%s887] sm:$0xf]
      %v889 = vld [vmem:[%s887 + $0x4] sm:$0xf]
      %v890 = vld [vmem:[%s887 + $0x8] sm:$0xf]
      %v891 = vld [vmem:[%s887 + $0xc] sm:$0xf]
      %v898 = vunpack.c.l.b16 %v881
      %v899 = vunpack.c.l.b16 %v882
      %v900 = vunpack.c.l.b16 %v883
      %v901 = vunpack.c.l.b16 %v884
      %v902 = vunpack.c.l.b16 %v885
      %v903 = vunpack.c.l.b16 %v886
      %v904 = vpack.c.b16 %v899, %v898
      %v905 = vpack.c.b16 %v901, %v900
      %v906 = vpack.c.b16 %v903, %v902
      %v908 = vshrl.u32 %v904, 16
      %v910 = vshll.u32 %v904, 16
      %v912 = vrot.slane %v910, 1
      %v913 = vor.u32 %v908, %v912
      %v915 = vshll.u32 %v905, 16
      %v917 = vrot.slane %v915, 1
      %v918 = vsel %vm202, %v913, %v917
      %v919 = vshrl.u32 %v905, 16
      %v921 = vor.u32 %v919, %v917
      %v923 = vshll.u32 %v906, 16
      %v925 = vrot.slane %v923, 1
      %v926 = vsel %vm202, %v921, %v925
      %v927 = vshrl.u32 %v906, 16
      %v929 = vor.u32 %v927, %v925
      %v934 = vunpack.c.l.b16 %v888
      %v935 = vunpack.c.l.b16 %v889
      %v936 = vunpack.c.l.b16 %v890
      %v937 = vunpack.c.l.b16 %v891
      %v938 = vpack.c.b16 %v935, %v934
      %v939 = vpack.c.b16 %v937, %v936
      %v943 = vsel %vm238, %v918, 0
      %v946 = vsel %vm238, %v926, 0
      %v949 = vsel %vm238, %v929, 0
      %951 = vmatprep.subr.bf16.mxu0 0
      %952 = vmatpush1.bf16.msra.mxu0 0
      %953 = vmatprep.subr.bf16.mxu0 0
      %954 = vmatpush1.bf16.msra.mxu0 0
      %955 = vmatprep.subr.bf16.mxu0 0
      %956 = vmatpush1.bf16.msra.mxu0 0
      %957 = vmatprep.subr.bf16.mxu0 0
      %958 = vmatpush1.bf16.msra.mxu0 0
      %959 = vmatprep.subr.bf16.mxu0 0
      %960 = vmatpush1.bf16.msra.mxu0 0
      %961 = vmatprep.subr.bf16.mxu0 0
      %962 = vmatpush1.bf16.msra.mxu0 0
      %963 = vmatprep.subr.bf16.mxu0 0
      %964 = vmatpush1.bf16.msra.mxu0 %v939
      %965 = vmatprep.subr.bf16.mxu0 0
      %966 = vmatpush1.bf16.msra.mxu0 %v938
      %967 = vmatprep.subr.bf16.mxu0 0
      %968 = vmatpush2.bf16.msra.mxu0 0
      %969 = vmatprep.subr.bf16.mxu0 0
      %970 = vmatpush2.bf16.msra.mxu0 0
      %971 = vmatprep.subr.bf16.mxu0 0
      %972 = vmatpush2.bf16.msra.mxu0 0
      %973 = vmatprep.subr.bf16.mxu0 0
      %974 = vmatpush2.bf16.msra.mxu0 0
      %975 = vmatprep.subr.bf16.mxu0 0
      %976 = vmatpush2.bf16.msra.mxu0 0
      %977 = vmatprep.subr.bf16.mxu0 0
      %978 = vmatpush2.bf16.msra.mxu0 0
      %979 = vmatprep.subr.bf16.mxu0 0
      %980 = vmatpush2.bf16.msra.mxu0 0
      %981 = vmatprep.subr.bf16.mxu0 0
      %982 = vmatpush2.bf16.msra.mxu0 0
      %983 = vmatprep.mubr.bf16.mxu0 0
      %984 = vmatmul.mubr.bf16.gmra.mxu0 %v943
      %v985 = vpop.f32.mrf.mxu0
      %v986 = vadd.f32 0.0, %v985
      %v987 = vpop.f32.mrf.mxu0
      %v988 = vpop.f32.mrf.mxu0
      %v989 = vadd.f32 0.0, %v988
      %v990 = vpop.f32.mrf.mxu0
      %991 = vmatprep.mubr.bf16.mxu0 0
      %992 = vmatmul.mubr.bf16.gmra.mxu0 %v946
      %v993 = vpop.f32.mrf.mxu0
      %v994 = vadd.f32 0.0, %v993
      %v995 = vpop.f32.mrf.mxu0
      %v996 = vpop.f32.mrf.mxu0
      %v997 = vadd.f32 0.0, %v996
      %v998 = vpop.f32.mrf.mxu0
      %999 = vmatprep.mubr.bf16.mxu0 0
      %1000 = vmatmul.mubr.bf16.gmra.mxu0 %v949
      %v1001 = vpop.f32.mrf.mxu0
      %v1002 = vadd.f32 0.0, %v1001
      %v1003 = vpop.f32.mrf.mxu0
      %v1004 = vpop.f32.mrf.mxu0
      %v1005 = vpop.f32.mrf.mxu0
      %1006 = vdwg.mxu0
      %v1007 = vadd.f32 %v876, %v986
      %v1008 = vadd.f32 %v877, %v989
      %v1009 = vadd.f32 %v878, %v994
      %v1010 = vadd.f32 %v879, %v997
      %v1011 = vadd.f32 %v880, %v1002
      %v1012 = vld [vmem:[%s165 + $0x4] sm:$0xe]
      %s1013 = scalar_lea.vmem %s1, 128
      %v1014 = vld [vmem:[%s1013] sm:$0xf]
      %v1015 = vld [vmem:[%s1013 + $0x4] sm:$0xf]
      %v1016 = vld [vmem:[%s1013 + $0x8] sm:$0xf]
      %v1017 = vld [vmem:[%s1013 + $0xc] sm:$0xf]
      %v1019 = vunpack.c.l.b16 %v1012
      %v1020 = vpack.c.b16 %v899, %v1019
      %v1021 = vrot.slane %v1020, 1
      %v1022 = vrot.slane %v905, 1
      %v1023 = vsel %vm389, %v1021, %v1022
      %v1024 = vrot.slane %v906, 1
      %v1025 = vsel %vm389, %v1022, %v1024
      %v1030 = vunpack.c.l.b16 %v1014
      %v1031 = vunpack.c.l.b16 %v1015
      %v1032 = vunpack.c.l.b16 %v1016
      %v1033 = vunpack.c.l.b16 %v1017
      %v1034 = vpack.c.b16 %v1031, %v1030
      %v1035 = vpack.c.b16 %v1033, %v1032
      %v1039 = vsel %vm238, %v1023, 0
      %v1042 = vsel %vm238, %v1025, 0
      %v1045 = vsel %vm238, %v1024, 0
      %1047 = vmatprep.subr.bf16.mxu0 0
      %1048 = vmatpush1.bf16.msra.mxu0 0
      %1049 = vmatprep.subr.bf16.mxu0 0
      %1050 = vmatpush1.bf16.msra.mxu0 0
      %1051 = vmatprep.subr.bf16.mxu0 0
      %1052 = vmatpush1.bf16.msra.mxu0 0
      %1053 = vmatprep.subr.bf16.mxu0 0
      %1054 = vmatpush1.bf16.msra.mxu0 0
      %1055 = vmatprep.subr.bf16.mxu0 0
      %1056 = vmatpush1.bf16.msra.mxu0 0
      %1057 = vmatprep.subr.bf16.mxu0 0
      %1058 = vmatpush1.bf16.msra.mxu0 0
      %1059 = vmatprep.subr.bf16.mxu0 0
      %1060 = vmatpush1.bf16.msra.mxu0 %v1035
      %1061 = vmatprep.subr.bf16.mxu0 0
      %1062 = vmatpush1.bf16.msra.mxu0 %v1034
      %1063 = vmatprep.subr.bf16.mxu0 0
      %1064 = vmatpush2.bf16.msra.mxu0 0
      %1065 = vmatprep.subr.bf16.mxu0 0
      %1066 = vmatpush2.bf16.msra.mxu0 0
      %1067 = vmatprep.subr.bf16.mxu0 0
      %1068 = vmatpush2.bf16.msra.mxu0 0
      %1069 = vmatprep.subr.bf16.mxu0 0
      %1070 = vmatpush2.bf16.msra.mxu0 0
      %1071 = vmatprep.subr.bf16.mxu0 0
      %1072 = vmatpush2.bf16.msra.mxu0 0
      %1073 = vmatprep.subr.bf16.mxu0 0
      %1074 = vmatpush2.bf16.msra.mxu0 0
      %1075 = vmatprep.subr.bf16.mxu0 0
      %1076 = vmatpush2.bf16.msra.mxu0 0
      %1077 = vmatprep.subr.bf16.mxu0 0
      %1078 = vmatpush2.bf16.msra.mxu0 0
      %1079 = vmatprep.mubr.bf16.mxu0 0
      %1080 = vmatmul.mubr.bf16.gmra.mxu0 %v1039
      %v1081 = vpop.f32.mrf.mxu0
      %v1082 = vadd.f32 0.0, %v1081
      %v1083 = vpop.f32.mrf.mxu0
      %v1084 = vpop.f32.mrf.mxu0
      %v1085 = vadd.f32 0.0, %v1084
      %v1086 = vpop.f32.mrf.mxu0
      %1087 = vmatprep.mubr.bf16.mxu0 0
      %1088 = vmatmul.mubr.bf16.gmra.mxu0 %v1042
      %v1089 = vpop.f32.mrf.mxu0
      %v1090 = vadd.f32 0.0, %v1089
      %v1091 = vpop.f32.mrf.mxu0
      %v1092 = vpop.f32.mrf.mxu0
      %v1093 = vadd.f32 0.0, %v1092
      %v1094 = vpop.f32.mrf.mxu0
      %1095 = vmatprep.mubr.bf16.mxu0 0
      %1096 = vmatmul.mubr.bf16.gmra.mxu0 %v1045
      %v1097 = vpop.f32.mrf.mxu0
      %v1098 = vadd.f32 0.0, %v1097
      %v1099 = vpop.f32.mrf.mxu0
      %v1100 = vpop.f32.mrf.mxu0
      %v1101 = vpop.f32.mrf.mxu0
      %1102 = vdwg.mxu0
      %v1103 = vadd.f32 %v1007, %v1082
      %v1104 = vadd.f32 %v1008, %v1085
      %v1105 = vadd.f32 %v1009, %v1090
      %v1106 = vadd.f32 %v1010, %v1093
      %v1107 = vadd.f32 %v1011, %v1098
      %v1108 = vld [vmem:[%s2] sm:$0x1]
      %v1110 = vlaneseq
      %v1111 = vshrl.u32 %v1110, 7
      %v1112 = vsub.s32 0, %v1111
      %v1113 = vrot.slane %v1108, %v1112
      %v1115 = vadd.f32 %v1103, %v1113
      %v1116 = vadd.f32 %v1104, %v1113
      %v1117 = vadd.f32 %v1105, %v1113
      %v1118 = vadd.f32 %v1106, %v1113
      %v1119 = vadd.f32 %v1107, %v1113
      %v1120 = vpack.c.bf16 %v1116, %v1115
      %v1121 = vpack.c.bf16 %v1118, %v1117
      %v1122 = vpack.c.bf16 %v1119, %v1119
      %v1126 = vunpack.c.l.b16 %v1120
      %v1127 = vunpack.c.h.b16 %v1120
      %v1128 = vunpack.c.l.b16 %v1121
      %v1129 = vunpack.c.h.b16 %v1121
      %v1130 = vunpack.c.l.b16 %v1122
      %v1131 = vpack.c.b16 %v1126, %v1126
      %v1132 = vpack.c.b16 %v1127, %v1127
      %v1133 = vpack.c.b16 %v1128, %v1128
      %v1134 = vpack.c.b16 %v1129, %v1129
      %v1135 = vpack.c.b16 %v1130, %v1130
      %vm1141 = vcmask 257024
      %1142 = vst.msk [vmem:[%s170] sm:$0xf] %vm1141, %v1131
      %1143 = vst.msk [vmem:[%s170 + $0x4] sm:$0xf] %vm1141, %v1132
      %1144 = vst.msk [vmem:[%s170 + $0x8] sm:$0xf] %vm1141, %v1133
      %1145 = vst.msk [vmem:[%s170 + $0xc] sm:$0xf] %vm1141, %v1134
      %1146 = vst.msk [vmem:[%s170 + $0x10] sm:$0xf] %vm1141, %v1135
      %p1147 = scmp.lt.s32.totalorder %s14, 1
      %s1148 = scalar_select %p1147, %s14, 1
      %s1149 = smul.addr %s1148, 5
      %s1150 = smul.addr %s1149, 4
      %s1151 = scalar_lea.vmem %s3, %s1150
      // Predicated region
      $region33: #{freq_fft_coupling_forward.15} parent=31 // pred_check
        %p1152 = pneg %p100
      $region34: #{freq_fft_coupling_forward.15} parent=31 // pred_check_branch
        %1154 = sbr.rel (%p1152) target = $region36
      $region35: #{freq_fft_coupling_forward.15} parent=31 // pred_region
        _
      $region36: #{freq_fft_coupling_forward.15} parent=31 // pred_fallthru
        _
    $region32: #{freq_fft_coupling_forward.15} parent=5 // pred_fallthru
      _
    %p1155 = scmp.le.s32.totalorder 2, %s9
    // Predicated region
    $region37: #{freq_fft_coupling_forward.15} parent=5 // pred_check
      %p1156 = pneg %p1155
    $region38: #{freq_fft_coupling_forward.15} parent=5 // pred_check_branch
      %1158 = sbr.rel (%p1156) target = $region40
    $region39: #{freq_fft_coupling_forward.15} parent=5 // pred_region
      %s1159 = ssub.s32 %s9, 2
      // Predicated region
      $region41: #{freq_fft_coupling_forward.15} parent=39 // pred_check
        %p1160 = pneg %p106
      $region42: #{freq_fft_coupling_forward.15} parent=39 // pred_check_branch
        %1162 = sbr.rel (%p1160) target = $region44
      $region43: #{freq_fft_coupling_forward.15} parent=39 // pred_region
        %p1163 = scmp.lt.s32.totalorder %s15, 1
        %s1164 = scalar_select %p1163, %s15, 1
        %s1165 = smul.addr %s1164, 5
        %s1166 = smul.addr %s1165, 4
        %s1167 = scalar_lea.vmem %s3, %s1166
      $region44: #{freq_fft_coupling_forward.15} parent=39 // pred_fallthru
        _
    $region40: #{freq_fft_coupling_forward.15} parent=5 // pred_fallthru
      _
  $region6: #{freq_fft_coupling_forward.15} parent=0 // loop_footer
    %s13 = sadd.s32 1, %s9
  $region7: #{freq_fft_coupling_forward.15} parent=0 // loop_footer_branch
    %8 = sbr.rel target = $region3
  $region8: #{freq_fft_coupling_forward.15} parent=0 // loop_exit
    _

// kernel: freq_fft_coupling_forward.17
$region0: #{freq_fft_coupling_forward.17}
  #allocation0 [shape = 'u32[]', space=smem, size = 0x4, offset = 0x4, fixed_abs, tag = 'smem constant byte address 0x4 - core index']
  #allocation1 [shape = 'u32[144,128]{1,0:T(1,128)}', space=vmem, size = 0x12000, scoped, tag = 'internal scratch']
  %s0 = inlined_call_operand.vmem [shape: f32[2,80,16], index: 0, kind: input, shape index: {}]
  %s1 = inlined_call_operand.vmem [shape: f32[2,80,16], index: 1, kind: input, shape index: {}]
  %s2 = inlined_call_operand.vmem [shape: f32[2,80,16], index: 2, kind: input, shape index: {}]
  %s3 = inlined_call_operand.vmem [shape: f32[2,1,16], index: 3, kind: input, shape index: {}]
  %s4 = inlined_call_operand.vmem [shape: f32[2,80,16], index: 4, kind: output, shape index: {0}]
  %s5 = inlined_call_operand.vmem [shape: f32[2,1], index: 5, kind: output, shape index: {1}]
  %6 = xla_tuple %s4, %s5
  %s7 = sld [smem:[#allocation0]]
  $region38: #{freq_fft_coupling_forward.17} parent=0
    _
  %s9 = ssub.s32 1, %s7
  %s10 = scalar_select 0, %s9, %s7
  // Predicated region
  $region2: #{freq_fft_coupling_forward.17} parent=0 // pred_check
    _
  $region3: #{freq_fft_coupling_forward.17} parent=0 // pred_check_branch
    %12 = sbr.rel (0) target = $region5
  $region4: #{freq_fft_coupling_forward.17} parent=0 // pred_region
    _
  $region5: #{freq_fft_coupling_forward.17} parent=0 // pred_fallthru
    _
  // Predicated region
  $region6: #{freq_fft_coupling_forward.17} parent=0 // pred_check
    _
  $region7: #{freq_fft_coupling_forward.17} parent=0 // pred_check_branch
    %14 = sbr.rel (0) target = $region9
  $region8: #{freq_fft_coupling_forward.17} parent=0 // pred_region
    _
  $region9: #{freq_fft_coupling_forward.17} parent=0 // pred_fallthru
    _
  // Predicated region
  $region10: #{freq_fft_coupling_forward.17} parent=0 // pred_check
    _
  $region11: #{freq_fft_coupling_forward.17} parent=0 // pred_check_branch
    %16 = sbr.rel (0) target = $region13
  $region12: #{freq_fft_coupling_forward.17} parent=0 // pred_region
    _
  $region13: #{freq_fft_coupling_forward.17} parent=0 // pred_fallthru
    _
  // Predicated region
  $region14: #{freq_fft_coupling_forward.17} parent=0 // pred_check
    _
  $region15: #{freq_fft_coupling_forward.17} parent=0 // pred_check_branch
    %18 = sbr.rel (0) target = $region17
  $region16: #{freq_fft_coupling_forward.17} parent=0 // pred_region
    _
  $region17: #{freq_fft_coupling_forward.17} parent=0 // pred_fallthru
    _
  %p19 = scmp.eq.s32.totalorder 0, 0
  // Predicated region
  $region18: #{freq_fft_coupling_forward.17} parent=0 // pred_check
    %p20 = pneg %p19
  $region19: #{freq_fft_coupling_forward.17} parent=0 // pred_check_branch
    %22 = sbr.rel (%p20) target = $region21
  $region20: #{freq_fft_coupling_forward.17} parent=0 // pred_region
    %vm23 = vcmask 1024
    %24 = vst.msk [vmem:[%s5] sm:$0x3] %vm23, 0.0
  $region21: #{freq_fft_coupling_forward.17} parent=0 // pred_fallthru
    _
  %v25 = vld [vmem:[%s0] sm:$0xff]
  %v26 = vld [vmem:[%s0 + $0x8] sm:$0xff]
  %v27 = vld [vmem:[%s0 + $0x10] sm:$0xff]
  %v28 = vld [vmem:[%s0 + $0x18] sm:$0xff]
  %v29 = vld [vmem:[%s0 + $0x20] sm:$0xff]
  %v30 = vld [vmem:[%s0 + $0x28] sm:$0xff]
  %v31 = vld [vmem:[%s0 + $0x30] sm:$0xff]
  %v32 = vld [vmem:[%s0 + $0x38] sm:$0xff]
  %v33 = vld [vmem:[%s0 + $0x40] sm:$0xff]
  %v34 = vld [vmem:[%s0 + $0x48] sm:$0xff]
  %v35 = vld [vmem:[%s0 + $0x50] sm:$0xff]
  %v36 = vld [vmem:[%s0 + $0x58] sm:$0xff]
  %v37 = vld [vmem:[%s0 + $0x60] sm:$0xff]
  %v38 = vld [vmem:[%s0 + $0x68] sm:$0xff]
  %v39 = vld [vmem:[%s0 + $0x70] sm:$0xff]
  %v40 = vld [vmem:[%s0 + $0x78] sm:$0xff]
  %v41 = vld [vmem:[%s0 + $0x80] sm:$0xff]
  %v42 = vld [vmem:[%s0 + $0x88] sm:$0xff]
  %v43 = vld [vmem:[%s0 + $0x90] sm:$0xff]
  %v44 = vld [vmem:[%s0 + $0x98] sm:$0xff]
  %v45 = vld [vmem:[%s1] sm:$0xff]
  %v46 = vld [vmem:[%s1 + $0x8] sm:$0xff]
  %v47 = vld [vmem:[%s1 + $0x10] sm:$0xff]
  %v48 = vld [vmem:[%s1 + $0x18] sm:$0xff]
  %v49 = vld [vmem:[%s1 + $0x20] sm:$0xff]
  %v50 = vld [vmem:[%s1 + $0x28] sm:$0xff]
  %v51 = vld [vmem:[%s1 + $0x30] sm:$0xff]
  %v52 = vld [vmem:[%s1 + $0x38] sm:$0xff]
  %v53 = vld [vmem:[%s1 + $0x40] sm:$0xff]
  %v54 = vld [vmem:[%s1 + $0x48] sm:$0xff]
  %v55 = vld [vmem:[%s1 + $0x50] sm:$0xff]
  %v56 = vld [vmem:[%s1 + $0x58] sm:$0xff]
  %v57 = vld [vmem:[%s1 + $0x60] sm:$0xff]
  %v58 = vld [vmem:[%s1 + $0x68] sm:$0xff]
  %v59 = vld [vmem:[%s1 + $0x70] sm:$0xff]
  %v60 = vld [vmem:[%s1 + $0x78] sm:$0xff]
  %v61 = vld [vmem:[%s1 + $0x80] sm:$0xff]
  %v62 = vld [vmem:[%s1 + $0x88] sm:$0xff]
  %v63 = vld [vmem:[%s1 + $0x90] sm:$0xff]
  %v64 = vld [vmem:[%s1 + $0x98] sm:$0xff]
  %v65 = vld [vmem:[%s2] sm:$0xff]
  %v66 = vld [vmem:[%s2 + $0x8] sm:$0xff]
  %v67 = vld [vmem:[%s2 + $0x10] sm:$0xff]
  %v68 = vld [vmem:[%s2 + $0x18] sm:$0xff]
  %v69 = vld [vmem:[%s2 + $0x20] sm:$0xff]
  %v70 = vld [vmem:[%s2 + $0x28] sm:$0xff]
  %v71 = vld [vmem:[%s2 + $0x30] sm:$0xff]
  %v72 = vld [vmem:[%s2 + $0x38] sm:$0xff]
  %v73 = vld [vmem:[%s2 + $0x40] sm:$0xff]
  %v74 = vld [vmem:[%s2 + $0x48] sm:$0xff]
  %v75 = vld [vmem:[%s2 + $0x50] sm:$0xff]
  %v76 = vld [vmem:[%s2 + $0x58] sm:$0xff]
  %v77 = vld [vmem:[%s2 + $0x60] sm:$0xff]
  %v78 = vld [vmem:[%s2 + $0x68] sm:$0xff]
  %v79 = vld [vmem:[%s2 + $0x70] sm:$0xff]
  %v80 = vld [vmem:[%s2 + $0x78] sm:$0xff]
  %v81 = vld [vmem:[%s2 + $0x80] sm:$0xff]
  %v82 = vld [vmem:[%s2 + $0x88] sm:$0xff]
  %v83 = vld [vmem:[%s2 + $0x90] sm:$0xff]
  %v84 = vld [vmem:[%s2 + $0x98] sm:$0xff]
  %v85 = vld [vmem:[%s3] sm:$0x1]
  %v86 = vld [vmem:[%s3 + $0x1] sm:$0x1]
  %v87 = vlaneseq
  %v88 = vand.u32 %v87, 127
  %s89 = smul.u32 0, 16
  %v90 = vstv %s89
  %v91 = vadd.s32 %v88, %v90
  %vm92 = vcmp.lt.s32.totalorder %v91, 16
  %v93 = vmul.f32 %v65, 1.442695
  %v94 = vpow.pop %v93
  %v95 = vmul.f32 %v66, 1.442695
  %v96 = vpow.pop %v95
  %v97 = vmul.f32 %v67, 1.442695
  %v98 = vpow.pop %v97
  %v99 = vmul.f32 %v68, 1.442695
  %v100 = vpow.pop %v99
  %v101 = vmul.f32 %v69, 1.442695
  %v102 = vpow.pop %v101
  %v103 = vmul.f32 %v70, 1.442695
  %v104 = vpow.pop %v103
  %v105 = vmul.f32 %v71, 1.442695
  %v106 = vpow.pop %v105
  %v107 = vmul.f32 %v72, 1.442695
  %v108 = vpow.pop %v107
  %v109 = vmul.f32 %v73, 1.442695
  %v110 = vpow.pop %v109
  %v111 = vmul.f32 %v74, 1.442695
  %v112 = vpow.pop %v111
  %v113 = vmul.f32 %v75, 1.442695
  %v114 = vpow.pop %v113
  %v115 = vmul.f32 %v76, 1.442695
  %v116 = vpow.pop %v115
  %v117 = vmul.f32 %v77, 1.442695
  %v118 = vpow.pop %v117
  %v119 = vmul.f32 %v78, 1.442695
  %v120 = vpow.pop %v119
  %v121 = vmul.f32 %v79, 1.442695
  %v122 = vpow.pop %v121
  %v123 = vmul.f32 %v80, 1.442695
  %v124 = vpow.pop %v123
  %v125 = vmul.f32 %v81, 1.442695
  %v126 = vpow.pop %v125
  %v127 = vmul.f32 %v82, 1.442695
  %v128 = vpow.pop %v127
  %v129 = vmul.f32 %v83, 1.442695
  %v130 = vpow.pop %v129
  %v131 = vmul.f32 %v84, 1.442695
  %v132 = vpow.pop %v131
  %v133 = vmul.f32 %v94, %v25
  %v134 = vmul.f32 %v96, %v26
  %v135 = vmul.f32 %v98, %v27
  %v136 = vmul.f32 %v100, %v28
  %v137 = vmul.f32 %v102, %v29
  %v138 = vmul.f32 %v104, %v30
  %v139 = vmul.f32 %v106, %v31
  %v140 = vmul.f32 %v108, %v32
  %v141 = vmul.f32 %v110, %v33
  %v142 = vmul.f32 %v112, %v34
  %v143 = vmul.f32 %v114, %v35
  %v144 = vmul.f32 %v116, %v36
  %v145 = vmul.f32 %v118, %v37
  %v146 = vmul.f32 %v120, %v38
  %v147 = vmul.f32 %v122, %v39
  %v148 = vmul.f32 %v124, %v40
  %v149 = vmul.f32 %v126, %v41
  %v150 = vmul.f32 %v128, %v42
  %v151 = vmul.f32 %v130, %v43
  %v152 = vmul.f32 %v132, %v44
  %v153 = vadd.f32 %v45, %v133
  %v154 = vadd.f32 %v46, %v134
  %v155 = vadd.f32 %v47, %v135
  %v156 = vadd.f32 %v48, %v136
  %v157 = vadd.f32 %v49, %v137
  %v158 = vadd.f32 %v50, %v138
  %v159 = vadd.f32 %v51, %v139
  %v160 = vadd.f32 %v52, %v140
  %v161 = vadd.f32 %v53, %v141
  %v162 = vadd.f32 %v54, %v142
  %v163 = vadd.f32 %v55, %v143
  %v164 = vadd.f32 %v56, %v144
  %v165 = vadd.f32 %v57, %v145
  %v166 = vadd.f32 %v58, %v146
  %v167 = vadd.f32 %v59, %v147
  %v168 = vadd.f32 %v60, %v148
  %v169 = vadd.f32 %v61, %v149
  %v170 = vadd.f32 %v62, %v150
  %v171 = vadd.f32 %v63, %v151
  %v172 = vadd.f32 %v64, %v152
  %v175 = vlaneseq
  %v176 = vshrl.u32 %v175, 7
  %v177 = vsub.s32 0, %v176
  %v178 = vrot.slane %v85, %v177
  %v179 = vlaneseq
  %v180 = vshrl.u32 %v179, 7
  %v181 = vsub.s32 0, %v180
  %v182 = vrot.slane %v86, %v181
  %v185 = vmul.f32 %v153, %v178
  %v186 = vmul.f32 %v154, %v178
  %v187 = vmul.f32 %v155, %v178
  %v188 = vmul.f32 %v156, %v178
  %v189 = vmul.f32 %v157, %v178
  %v190 = vmul.f32 %v158, %v178
  %v191 = vmul.f32 %v159, %v178
  %v192 = vmul.f32 %v160, %v178
  %v193 = vmul.f32 %v161, %v178
  %v194 = vmul.f32 %v162, %v178
  %v195 = vmul.f32 %v163, %v182
  %v196 = vmul.f32 %v164, %v182
  %v197 = vmul.f32 %v165, %v182
  %v198 = vmul.f32 %v166, %v182
  %v199 = vmul.f32 %v167, %v182
  %v200 = vmul.f32 %v168, %v182
  %v201 = vmul.f32 %v169, %v182
  %v202 = vmul.f32 %v170, %v182
  %v203 = vmul.f32 %v171, %v182
  %v204 = vmul.f32 %v172, %v182
  %v205 = vmul.f32 %v65, %v178
  %v206 = vmul.f32 %v66, %v178
  %v207 = vmul.f32 %v67, %v178
  %v208 = vmul.f32 %v68, %v178
  %v209 = vmul.f32 %v69, %v178
  %v210 = vmul.f32 %v70, %v178
  %v211 = vmul.f32 %v71, %v178
  %v212 = vmul.f32 %v72, %v178
  %v213 = vmul.f32 %v73, %v178
  %v214 = vmul.f32 %v74, %v178
  %v215 = vmul.f32 %v75, %v182
  %v216 = vmul.f32 %v76, %v182
  %v217 = vmul.f32 %v77, %v182
  %v218 = vmul.f32 %v78, %v182
  %v219 = vmul.f32 %v79, %v182
  %v220 = vmul.f32 %v80, %v182
  %v221 = vmul.f32 %v81, %v182
  %v222 = vmul.f32 %v82, %v182
  %v223 = vmul.f32 %v83, %v182
  %v224 = vmul.f32 %v84, %v182
  %v225 = vsel %vm92, 1, 0
  %vm226 = vcmp.eq.s32.totalorder %v225, 1
  %v227 = vsel %vm226, %v205, 0.0
  %v228 = vsel %vm226, %v206, 0.0
  %v229 = vsel %vm226, %v207, 0.0
  %v230 = vsel %vm226, %v208, 0.0
  %v231 = vsel %vm226, %v209, 0.0
  %v232 = vsel %vm226, %v210, 0.0
  %v233 = vsel %vm226, %v211, 0.0
  %v234 = vsel %vm226, %v212, 0.0
  %v235 = vsel %vm226, %v213, 0.0
  %v236 = vsel %vm226, %v214, 0.0
  %v237 = vsel %vm226, %v215, 0.0
  %v238 = vsel %vm226, %v216, 0.0
  %v239 = vsel %vm226, %v217, 0.0
  %v240 = vsel %vm226, %v218, 0.0
  %v241 = vsel %vm226, %v219, 0.0
  %v242 = vsel %vm226, %v220, 0.0
  %v243 = vsel %vm226, %v221, 0.0
  %v244 = vsel %vm226, %v222, 0.0
  %v245 = vsel %vm226, %v223, 0.0
  %v246 = vsel %vm226, %v224, 0.0
  %vm247 = vcmask 130048
  %248 = vst.msk [vmem:[%s4] sm:$0xff] %vm247, %v185
  %249 = vst.msk [vmem:[%s4 + $0x8] sm:$0xff] %vm247, %v186
  %250 = vst.msk [vmem:[%s4 + $0x10] sm:$0xff] %vm247, %v187
  %251 = vst.msk [vmem:[%s4 + $0x18] sm:$0xff] %vm247, %v188
  %252 = vst.msk [vmem:[%s4 + $0x20] sm:$0xff] %vm247, %v189
  %253 = vst.msk [vmem:[%s4 + $0x28] sm:$0xff] %vm247, %v190
  %254 = vst.msk [vmem:[%s4 + $0x30] sm:$0xff] %vm247, %v191
  %255 = vst.msk [vmem:[%s4 + $0x38] sm:$0xff] %vm247, %v192
  %256 = vst.msk [vmem:[%s4 + $0x40] sm:$0xff] %vm247, %v193
  %257 = vst.msk [vmem:[%s4 + $0x48] sm:$0xff] %vm247, %v194
  %258 = vst.msk [vmem:[%s4 + $0x50] sm:$0xff] %vm247, %v195
  %259 = vst.msk [vmem:[%s4 + $0x58] sm:$0xff] %vm247, %v196
  %260 = vst.msk [vmem:[%s4 + $0x60] sm:$0xff] %vm247, %v197
  %261 = vst.msk [vmem:[%s4 + $0x68] sm:$0xff] %vm247, %v198
  %262 = vst.msk [vmem:[%s4 + $0x70] sm:$0xff] %vm247, %v199
  %263 = vst.msk [vmem:[%s4 + $0x78] sm:$0xff] %vm247, %v200
  %264 = vst.msk [vmem:[%s4 + $0x80] sm:$0xff] %vm247, %v201
  %265 = vst.msk [vmem:[%s4 + $0x88] sm:$0xff] %vm247, %v202
  %266 = vst.msk [vmem:[%s4 + $0x90] sm:$0xff] %vm247, %v203
  %267 = vst.msk [vmem:[%s4 + $0x98] sm:$0xff] %vm247, %v204
  %v268 = vsel %vm247, %v227, 0.0
  %269 = vadd.xlane.f32.xlu0 %v268
  %v270 = vpop.xlane.xlu0 %269
  %v271 = vsel %vm247, %v228, 0.0
  %272 = vadd.xlane.f32.xlu0 %v271
  %v273 = vpop.xlane.xlu0 %272
  %v274 = vsel %vm247, %v229, 0.0
  %275 = vadd.xlane.f32.xlu0 %v274
  %v276 = vpop.xlane.xlu0 %275
  %v277 = vsel %vm247, %v230, 0.0
  %278 = vadd.xlane.f32.xlu0 %v277
  %v279 = vpop.xlane.xlu0 %278
  %v280 = vsel %vm247, %v231, 0.0
  %281 = vadd.xlane.f32.xlu0 %v280
  %v282 = vpop.xlane.xlu0 %281
  %v283 = vsel %vm247, %v232, 0.0
  %284 = vadd.xlane.f32.xlu0 %v283
  %v285 = vpop.xlane.xlu0 %284
  %v286 = vsel %vm247, %v233, 0.0
  %287 = vadd.xlane.f32.xlu0 %v286
  %v288 = vpop.xlane.xlu0 %287
  %v289 = vsel %vm247, %v234, 0.0
  %290 = vadd.xlane.f32.xlu0 %v289
  %v291 = vpop.xlane.xlu0 %290
  %v292 = vsel %vm247, %v235, 0.0
  %293 = vadd.xlane.f32.xlu0 %v292
  %v294 = vpop.xlane.xlu0 %293
  %v295 = vsel %vm247, %v236, 0.0
  %296 = vadd.xlane.f32.xlu0 %v295
  %v297 = vpop.xlane.xlu0 %296
  %v298 = vsel %vm247, %v237, 0.0
  %299 = vadd.xlane.f32.xlu0 %v298
  %v300 = vpop.xlane.xlu0 %299
  %v301 = vsel %vm247, %v238, 0.0
  %302 = vadd.xlane.f32.xlu0 %v301
  %v303 = vpop.xlane.xlu0 %302
  %v304 = vsel %vm247, %v239, 0.0
  %305 = vadd.xlane.f32.xlu0 %v304
  %v306 = vpop.xlane.xlu0 %305
  %v307 = vsel %vm247, %v240, 0.0
  %308 = vadd.xlane.f32.xlu0 %v307
  %v309 = vpop.xlane.xlu0 %308
  %v310 = vsel %vm247, %v241, 0.0
  %311 = vadd.xlane.f32.xlu0 %v310
  %v312 = vpop.xlane.xlu0 %311
  %v313 = vsel %vm247, %v242, 0.0
  %314 = vadd.xlane.f32.xlu0 %v313
  %v315 = vpop.xlane.xlu0 %314
  %v316 = vsel %vm247, %v243, 0.0
  %317 = vadd.xlane.f32.xlu0 %v316
  %v318 = vpop.xlane.xlu0 %317
  %v319 = vsel %vm247, %v244, 0.0
  %320 = vadd.xlane.f32.xlu0 %v319
  %v321 = vpop.xlane.xlu0 %320
  %v322 = vsel %vm247, %v245, 0.0
  %323 = vadd.xlane.f32.xlu0 %v322
  %v324 = vpop.xlane.xlu0 %323
  %v325 = vsel %vm247, %v246, 0.0
  %326 = vadd.xlane.f32.xlu0 %v325
  %v327 = vpop.xlane.xlu0 %326
  %v328 = vld [vmem:[%s5] sm:$0x3]
  %v349 = vlaneseq
  %v350 = vshrl.u32 %v349, 7
  %v351 = vsub.s32 %v88, %v350
  %v352 = vrot.slane %v270, %v351
  %v353 = vadd.s32 %v88, 4294967288
  %v354 = vlaneseq
  %v355 = vshrl.u32 %v354, 7
  %v356 = vsub.s32 %v353, %v355
  %v357 = vrot.slane %v273, %v356
  %vm358 = vcmask 130112
  %v359 = vsel %vm358, %v357, %v352
  %v360 = vadd.s32 %v88, 4294967280
  %v361 = vlaneseq
  %v362 = vshrl.u32 %v361, 7
  %v363 = vsub.s32 %v360, %v362
  %v364 = vrot.slane %v276, %v363
  %vm365 = vcmask 195712
  %v366 = vsel %vm365, %v364, %v359
  %v367 = vadd.s32 %v88, 4294967272
  %v368 = vlaneseq
  %v369 = vshrl.u32 %v368, 7
  %v370 = vsub.s32 %v367, %v369
  %v371 = vrot.slane %v279, %v370
  %vm372 = vcmask 261312
  %v373 = vsel %vm372, %v371, %v366
  %v374 = vadd.s32 %v88, 4294967264
  %v375 = vlaneseq
  %v376 = vshrl.u32 %v375, 7
  %v377 = vsub.s32 %v374, %v376
  %v378 = vrot.slane %v282, %v377
  %vm379 = vcmask 326912
  %v380 = vsel %vm379, %v378, %v373
  %v381 = vadd.s32 %v88, 4294967256
  %v382 = vlaneseq
  %v383 = vshrl.u32 %v382, 7
  %v384 = vsub.s32 %v381, %v383
  %v385 = vrot.slane %v285, %v384
  %vm386 = vcmask 392512
  %v387 = vsel %vm386, %v385, %v380
  %v388 = vadd.s32 %v88, 4294967248
  %v389 = vlaneseq
  %v390 = vshrl.u32 %v389, 7
  %v391 = vsub.s32 %v388, %v390
  %v392 = vrot.slane %v288, %v391
  %vm393 = vcmask 458112
  %v394 = vsel %vm393, %v392, %v387
  %v395 = vadd.s32 %v88, 4294967240
  %v396 = vlaneseq
  %v397 = vshrl.u32 %v396, 7
  %v398 = vsub.s32 %v395, %v397
  %v399 = vrot.slane %v291, %v398
  %vm400 = vcmask 523712
  %v401 = vsel %vm400, %v399, %v394
  %v402 = vadd.s32 %v88, 4294967232
  %v403 = vlaneseq
  %v404 = vshrl.u32 %v403, 7
  %v405 = vsub.s32 %v402, %v404
  %v406 = vrot.slane %v294, %v405
  %vm407 = vcmask 589312
  %v408 = vsel %vm407, %v406, %v401
  %v409 = vadd.s32 %v88, 4294967224
  %v410 = vlaneseq
  %v411 = vshrl.u32 %v410, 7
  %v412 = vsub.s32 %v409, %v411
  %v413 = vrot.slane %v297, %v412
  %vm414 = vcmask 654912
  %v415 = vsel %vm414, %v413, %v408
  %v416 = vlaneseq
  %v417 = vshrl.u32 %v416, 7
  %v418 = vsub.s32 %v88, %v417
  %v419 = vrot.slane %v300, %v418
  %v420 = vlaneseq
  %v421 = vshrl.u32 %v420, 7
  %v422 = vsub.s32 %v353, %v421
  %v423 = vrot.slane %v303, %v422
  %v424 = vsel %vm358, %v423, %v419
  %v425 = vlaneseq
  %v426 = vshrl.u32 %v425, 7
  %v427 = vsub.s32 %v360, %v426
  %v428 = vrot.slane %v306, %v427
  %v429 = vsel %vm365, %v428, %v424
  %v430 = vlaneseq
  %v431 = vshrl.u32 %v430, 7
  %v432 = vsub.s32 %v367, %v431
  %v433 = vrot.slane %v309, %v432
  %v434 = vsel %vm372, %v433, %v429
  %v435 = vlaneseq
  %v436 = vshrl.u32 %v435, 7
  %v437 = vsub.s32 %v374, %v436
  %v438 = vrot.slane %v312, %v437
  %v439 = vsel %vm379, %v438, %v434
  %v440 = vlaneseq
  %v441 = vshrl.u32 %v440, 7
  %v442 = vsub.s32 %v381, %v441
  %v443 = vrot.slane %v315, %v442
  %v444 = vsel %vm386, %v443, %v439
  %v445 = vlaneseq
  %v446 = vshrl.u32 %v445, 7
  %v447 = vsub.s32 %v388, %v446
  %v448 = vrot.slane %v318, %v447
  %v449 = vsel %vm393, %v448, %v444
  %v450 = vlaneseq
  %v451 = vshrl.u32 %v450, 7
  %v452 = vsub.s32 %v395, %v451
  %v453 = vrot.slane %v321, %v452
  %v454 = vsel %vm400, %v453, %v449
  %v455 = vlaneseq
  %v456 = vshrl.u32 %v455, 7
  %v457 = vsub.s32 %v402, %v456
  %v458 = vrot.slane %v324, %v457
  %v459 = vsel %vm407, %v458, %v454
  %v460 = vlaneseq
  %v461 = vshrl.u32 %v460, 7
  %v462 = vsub.s32 %v409, %v461
  %v463 = vrot.slane %v327, %v462
  %v464 = vsel %vm414, %v463, %v459
  %vm465 = vcmask 1041409
  %v466 = vsel %vm465, %v464, %v415
  %vm468 = vcmask 648192
  %v469 = vsel %vm468, %v466, 0.0
  %470 = vadd.xlane.f32.xlu0 %v469
  %v471 = vpop.xlane.xlu0 %470
  %v472 = vadd.f32 %v328, %v471
  %vm473 = vcmask 1024
  %474 = vst.msk [vmem:[%s5] sm:$0x3] %vm473, %v472
  // Predicated region
  $region22: #{freq_fft_coupling_forward.17} parent=0 // pred_check
    _
  $region23: #{freq_fft_coupling_forward.17} parent=0 // pred_check_branch
    %476 = sbr.rel (0) target = $region25
  $region24: #{freq_fft_coupling_forward.17} parent=0 // pred_region
    _
  $region25: #{freq_fft_coupling_forward.17} parent=0 // pred_fallthru
    _
  // Predicated region
  $region26: #{freq_fft_coupling_forward.17} parent=0 // pred_check
    _
  $region27: #{freq_fft_coupling_forward.17} parent=0 // pred_check_branch
    %478 = sbr.rel (0) target = $region29
  $region28: #{freq_fft_coupling_forward.17} parent=0 // pred_region
    _
  $region29: #{freq_fft_coupling_forward.17} parent=0 // pred_fallthru
    _
  // Predicated region
  $region30: #{freq_fft_coupling_forward.17} parent=0 // pred_check
    _
  $region31: #{freq_fft_coupling_forward.17} parent=0 // pred_check_branch
    %480 = sbr.rel (0) target = $region33
  $region32: #{freq_fft_coupling_forward.17} parent=0 // pred_region
    _
  $region33: #{freq_fft_coupling_forward.17} parent=0 // pred_fallthru
    _
  // Predicated region
  $region34: #{freq_fft_coupling_forward.17} parent=0 // pred_check
    _
  $region35: #{freq_fft_coupling_forward.17} parent=0 // pred_check_branch
    %482 = sbr.rel (0) target = $region37
  $region36: #{freq_fft_coupling_forward.17} parent=0 // pred_region
    _
  $region37: #{freq_fft_coupling_forward.17} parent=0 // pred_fallthru
    _

</llo_original>
